<compile_context>
chip_gen: v5e
topology: v5e:2x2
jax: 0.10.0
libtpu: 0.0.40
codegen_flags: <defaults>
</compile_context>

<pallas_src>
import functools
import math

import jax
import jax.numpy as jnp
from jax.experimental import pallas as pl
from jax.experimental.pallas import tpu as pltpu

_BN_EPS = 1e-5


def _round_up(x, m):
    return (x + m - 1) // m * m


# ----------------------------------------------------------------------------
# In-kernel helper: 3x3 "same" conv with folded BN, using a (3, H+2, Wd, Cin)
# VMEM scratch holding the three dx-shifted, zero-haloed views (built once),
# so the 9 tap loads are aligned and each tap is one MXU dot.
# ----------------------------------------------------------------------------
def _conv3x3_bn(x, w_ref, view_ref, scale, shift):
    """x: (H, Wd, Cin) bf16; w_ref: (9, Cin, Cout) bf16; scale/shift: (1, Cout) f32."""
    H, Wd, Cin = x.shape
    Cout = w_ref.shape[-1]

    zrow = jnp.zeros((1, Wd, Cin), x.dtype)
    zcol = jnp.zeros((H + 2, 1, Cin), x.dtype)
    xp = jnp.concatenate([zrow, x, zrow], axis=0)                 # (H+2, Wd, Cin)

    # Three dx-shifted views (padded column index w+dx), stored once, read 3x each.
    view_ref[1, :, :, :] = xp
    view_ref[0, :, :, :] = jnp.concatenate([zcol, xp[:, :Wd - 1, :]], axis=1)
    view_ref[2, :, :, :] = jnp.concatenate([xp[:, 1:, :], zcol], axis=1)

    acc = jnp.zeros((H * Wd, Cout), jnp.float32)
    for dy in range(3):
        for dx in range(3):
            patch = view_ref[dx, dy:dy + H, :, :].reshape(H * Wd, Cin)   # aligned load
            acc = acc + jnp.dot(patch, w_ref[dy * 3 + dx, :, :],
                                preferred_element_type=jnp.float32)
    return acc * scale + shift


# ----------------------------------------------------------------------------
# Fused Up-block kernel: attention gate + DoubleConv, one image per grid step
# ----------------------------------------------------------------------------
def _up_fused_kernel(x2_ref, x1_ref, wgx_ref, ashift_ref, wpsi_ref, psib_ref,
                     w1_ref, s1_ref, t1_ref, w2_ref, s2_ref, t2_ref,
                     o_ref, v1_ref, v2_ref, *, W):
    _, H, Wd, Cs = x2_ref.shape
    Cd = x1_ref.shape[-1]
    cout = w1_ref.shape[-1]
    M = H * Wd

    # ---- Attention gate (fully fused; one K=Cd+Cs dot) -----------------------
    x2 = x2_ref[0]                                   # (H, Wd, Cs) bf16   skip
    x1 = x1_ref[0]                                   # (H, Wd, Cd) bf16   decoder (upsampled)
    xf = x2.reshape(M, Cs)
    gf = x1.reshape(M, Cd)
    gx = jnp.concatenate([gf, xf], axis=-1)          # (M, Cd+Cs) bf16
    s = jnp.dot(gx, wgx_ref[...], preferred_element_type=jnp.float32)
    p = jnp.maximum(s + ashift_ref[...], 0.0)        # (M, Fint) f32
    pre = jnp.sum(p * wpsi_ref[...], axis=-1, keepdims=True) + psib_ref[...]
    pre = jnp.clip(pre, -30.0, 30.0)
    psi = pl.reciprocal(1.0 + jnp.exp(-pre), approx=True)        # sigmoid on the EUP
    x2a = (xf.astype(jnp.float32) * psi).astype(jnp.bfloat16)    # gated skip, (M, Cs)

    # ---- conv1 on the virtual concat [x2a, x1] + BN + ReLU -------------------
    xc = jnp.concatenate([x2a.reshape(H, Wd, Cs), x1], axis=-1)  # (H, Wd, Cs+Cd) bf16
    y = _conv3x3_bn(xc, w1_ref, v1_ref, s1_ref[...], t1_ref[...])
    y = jnp.maximum(y, 0.0).astype(jnp.bfloat16).reshape(H, Wd, cout)
    if Wd != W:
        # Width pad columns of y are relu(shift) != 0; zero them so conv2's right-edge
        # halo stays a true zero pad.  (Dead code when W is already a multiple of 16.)
        col = jax.lax.broadcasted_iota(jnp.int32, (1, Wd, 1), 1)
        y = jnp.where(col < W, y, jnp.zeros_like(y))

    # ---- conv2 + BN + ReLU (output channels padded to 128 -> lane-dense store)
    y = _conv3x3_bn(y, w2_ref, v2_ref, s2_ref[...], t2_ref[...])
    y = jnp.maximum(y, 0.0)
    o_ref[0] = y.reshape(H, Wd, y.shape[-1]).astype(o_ref.dtype)


def _up_block_pallas(params, x2, x1, w_true):
    """x2: (N,H,Wd,Cs) bf16 skip; x1: (N,H,Wd,Cd) bf16 upsampled decoder."""
    N, H, Wd, Cs = x2.shape
    Cd = x1.shape[-1]
    Ct = Cs + Cd
    att, conv = params["att"], params["conv"]
    Fint = att["wgx"].shape[-1]
    cout = conv["w1"].shape[-1]
    coutp = conv["w2"].shape[-1]

    kernel = functools.partial(_up_fused_kernel, W=w_true)
    return pl.pallas_call(
        kernel,
        out_shape=jax.ShapeDtypeStruct((N, H, Wd, coutp), jnp.float32),
        grid_spec=pltpu.PrefetchScalarGridSpec(
            num_scalar_prefetch=0,
            grid=(N,),
            in_specs=[
                pl.BlockSpec((1, H, Wd, Cs), lambda n: (n, 0, 0, 0)),
                pl.BlockSpec((1, H, Wd, Cd), lambda n: (n, 0, 0, 0)),
                pl.BlockSpec((Ct, Fint), lambda n: (0, 0)),
                pl.BlockSpec((1, Fint), lambda n: (0, 0)),
                pl.BlockSpec((1, Fint), lambda n: (0, 0)),
                pl.BlockSpec((1, 1), lambda n: (0, 0)),
                pl.BlockSpec((9, Ct, cout), lambda n: (0, 0, 0)),
                pl.BlockSpec((1, cout), lambda n: (0, 0)),
                pl.BlockSpec((1, cout), lambda n: (0, 0)),
                pl.BlockSpec((9, cout, coutp), lambda n: (0, 0, 0)),
                pl.BlockSpec((1, coutp), lambda n: (0, 0)),
                pl.BlockSpec((1, coutp), lambda n: (0, 0)),
            ],
            out_specs=pl.BlockSpec((1, H, Wd, coutp), lambda n: (n, 0, 0, 0)),
            scratch_shapes=[pltpu.VMEM((3, H + 2, Wd, Ct), jnp.bfloat16),
                            pltpu.VMEM((3, H + 2, Wd, cout), jnp.bfloat16)],
        ),
        compiler_params=pltpu.CompilerParams(
            dimension_semantics=("parallel",),
            vmem_limit_bytes=48 * 1024 * 1024),
    )(x2, x1, att["wgx"], att["shift"], att["wpsi"], att["psib"],
      conv["w1"], conv["s1"], conv["t1"], conv["w2"], conv["s2"], conv["t2"])


# ----------------------------------------------------------------------------
# Plain-JAX glue: bilinear x2 upsample (align_corners=True)
# ----------------------------------------------------------------------------
def _interp_axis_x2(a, axis, size_in):
    size_out = 2 * size_in
    if size_in == 1:
        return jnp.repeat(a, size_out, axis=axis)
    coords = jnp.arange(size_out, dtype=jnp.float32) * (size_in - 1) / (size_out - 1)
    i0 = jnp.clip(jnp.floor(coords).astype(jnp.int32), 0, size_in - 2)
    frac = coords - i0.astype(jnp.float32)
    a0 = jnp.take(a, i0, axis=axis)
    a1 = jnp.take(a, i0 + 1, axis=axis)
    shape = [1] * a.ndim
    shape[axis] = size_out
    frac = frac.reshape(shape)
    return a0 * (1.0 - frac) + a1 * frac


def upsample_bilinear_x2(x):  # NHWC, align_corners=True
    _, H, W, _ = x.shape
    x = _interp_axis_x2(x, 1, H)
    x = _interp_axis_x2(x, 2, W)
    return x


# ----------------------------------------------------------------------------
# Parameter init (BatchNorm in eval mode, running_mean=0 / running_var=1 folded)
# ----------------------------------------------------------------------------
def _bn_fold(key, c):
    k1, k2 = jax.random.split(key)
    gamma = 1.0 + 0.1 * jax.random.normal(k1, (c,), jnp.float32)
    beta = 0.1 * jax.random.normal(k2, (c,), jnp.float32)
    return gamma / jnp.sqrt(1.0 + _BN_EPS), beta


def init_attention(key, f_g, f_l, f_int):
    k = jax.random.split(key, 9)
    wg = jax.random.normal(k[0], (f_g, f_int), jnp.float32) / math.sqrt(f_g)
    bg = 0.01 * jax.random.normal(k[1], (f_int,), jnp.float32)
    sg, tg = _bn_fold(k[2], f_int)
    wx = jax.random.normal(k[3], (f_l, f_int), jnp.float32) / math.sqrt(f_l)
    bx = 0.01 * jax.random.normal(k[4], (f_int,), jnp.float32)
    sx, tx = _bn_fold(k[5], f_int)
    wpsi = jax.random.normal(k[6], (f_int, 1), jnp.float32) / math.sqrt(f_int)
    bpsi = 0.01 * jax.random.normal(k[7], (1,), jnp.float32)
    sp, tp = _bn_fold(k[8], 1)
    shift = (bg * sg + tg) + (bx * sx + tx)            # folded biases + BN of both branches
    wgx = jnp.concatenate([wg * sg[None, :], wx * sx[None, :]], axis=0)   # rows: [g | x]
    return {
        "wgx": wgx.astype(jnp.bfloat16),                                   # (f_g+f_l, f_int)
        "shift": shift.reshape(1, f_int).astype(jnp.float32),
        "wpsi": (wpsi[:, 0] * sp[0]).reshape(1, f_int).astype(jnp.float32),
        "psib": (bpsi * sp + tp).reshape(1, 1).astype(jnp.float32),
    }


def init_double_conv(key, cin, cout, cout_pad):
    k = jax.random.split(key, 4)
    w1 = jax.random.normal(k[0], (3, 3, cin, cout), jnp.float32) / math.sqrt(9 * cin)
    s1, t1 = _bn_fold(k[1], cout)
    w2 = jax.random.normal(k[2], (3, 3, cout, cout), jnp.float32) / math.sqrt(9 * cout)
    s2, t2 = _bn_fold(k[3], cout)
    # Zero-pad conv2's output channels to a multiple of 128 for a lane-dense final store.
    w2 = jnp.pad(w2, ((0, 0), (0, 0), (0, 0), (0, cout_pad - cout)))
    s2 = jnp.pad(s2, (0, cout_pad - cout), constant_values=1.0)
    t2 = jnp.pad(t2, (0, cout_pad - cout))
    return {"w1": w1.reshape(9, cin, cout).astype(jnp.bfloat16),
            "s1": s1.reshape(1, cout).astype(jnp.float32),
            "t1": t1.reshape(1, cout).astype(jnp.float32),
            "w2": w2.reshape(9, cout, cout_pad).astype(jnp.bfloat16),
            "s2": s2.reshape(1, cout_pad).astype(jnp.float32),
            "t2": t2.reshape(1, cout_pad).astype(jnp.float32)}


def init_up(key, skip_ch, dec_ch, out_ch):
    k1, k2 = jax.random.split(key)
    coutp = _round_up(out_ch, 128)
    return {"att": init_attention(k1, dec_ch, skip_ch, out_ch // 2),
            "conv": init_double_conv(k2, skip_ch + dec_ch, out_ch, coutp)}


# ----------------------------------------------------------------------------
# Up.forward
# ----------------------------------------------------------------------------
def up_forward(params, x1_nchw, x2_nchw):
    """x1: decoder features (N, C_dec, h, w); x2: skip features (N, C_skip, 2h, 2w)."""
    x1 = jnp.transpose(x1_nchw, (0, 2, 3, 1)).astype(jnp.float32)   # -> NHWC
    x2 = jnp.transpose(x2_nchw, (0, 2, 3, 1)).astype(jnp.float32)

    x1 = upsample_bilinear_x2(x1)
    diffY = x2.shape[1] - x1.shape[1]
    diffX = x2.shape[2] - x1.shape[2]
    if diffY or diffX:
        x1 = jnp.pad(x1, ((0, 0),
                          (diffY // 2, diffY - diffY // 2),
                          (diffX // 2, diffX - diffX // 2),
                          (0, 0)))

    N, H, W, _ = x2.shape
    Wd = _round_up(W, 16)      # bf16 sublane tile so the in-kernel reshapes are layout-free
    if Wd != W:
        pad = ((0, 0), (0, 0), (0, Wd - W), (0, 0))
        x1 = jnp.pad(x1, pad)
        x2 = jnp.pad(x2, pad)

    # bf16 activations across HBM; f32 accumulation happens inside the kernel.
    y = _up_block_pallas(params, x2.astype(jnp.bfloat16), x1.astype(jnp.bfloat16), W)

    cout = params["conv"]["s1"].shape[-1]
    y = y[:, :, :W, :cout]
    return jnp.transpose(y, (0, 3, 1, 2))                            # -> NCHW


if __name__ == "__main__":
    key = jax.random.PRNGKey(0)
    kp, k1, k2 = jax.random.split(key, 3)

    skip_ch, dec_ch, out_ch = 128, 128, 64        # e.g. the "up3" stage of the UNet
    params = init_up(kp, skip_ch, dec_ch, out_ch)

    x1 = jax.random.normal(k1, (2, dec_ch, 8, 8), jnp.float32)     # decoder feats
    x2 = jax.random.normal(k2, (2, skip_ch, 16, 16), jnp.float32)  # skip feats

    fwd = jax.jit(up_forward)
    out = jax.block_until_ready(fwd(params, x1, x2))

    assert out.shape == (2, out_ch, 16, 16), out.shape
    assert bool(jnp.all(jnp.isfinite(out)))
    print("KERNEL_OK")
</pallas_src>

<mosaic_0001>
module attributes {stable_mosaic.version = 11 : i64} {
  func.func @_up_fused_kernel(%arg0: i32, %arg1: memref<1x16x16x128xbf16, #tpu.memory_space<vmem>>, %arg2: memref<1x16x16x128xbf16, #tpu.memory_space<vmem>>, %arg3: memref<256x32xbf16, #tpu.memory_space<vmem>>, %arg4: memref<1x32xf32, #tpu.memory_space<vmem>>, %arg5: memref<1x32xf32, #tpu.memory_space<vmem>>, %arg6: memref<1x1xf32, #tpu.memory_space<vmem>>, %arg7: memref<9x256x64xbf16, #tpu.memory_space<vmem>>, %arg8: memref<1x64xf32, #tpu.memory_space<vmem>>, %arg9: memref<1x64xf32, #tpu.memory_space<vmem>>, %arg10: memref<9x64x128xbf16, #tpu.memory_space<vmem>>, %arg11: memref<1x128xf32, #tpu.memory_space<vmem>>, %arg12: memref<1x128xf32, #tpu.memory_space<vmem>>, %arg13: memref<1x16x16x128xf32, #tpu.memory_space<vmem>>, %arg14: memref<3x18x16x256xbf16, #tpu.memory_space<vmem>>, %arg15: memref<3x18x16x64xbf16, #tpu.memory_space<vmem>>) attributes {dimension_semantics = [#tpu.dimension_semantics<parallel>], iteration_bounds = array<i64: 2>, scalar_prefetch = 0 : i64, scratch_operands = 2 : i64, tpu.core_type = #tpu.core_type<tc>, window_params = [{transform_indices = @transform_0, window_bounds = array<i64: 1, 16, 16, 128>}, {transform_indices = @transform_1, window_bounds = array<i64: 1, 16, 16, 128>}, {pipeline_mode = #tpu.pipeline_mode<synchronous>, transform_indices = @transform_2, window_bounds = array<i64: 256, 32>}, {pipeline_mode = #tpu.pipeline_mode<synchronous>, transform_indices = @transform_3, window_bounds = array<i64: 1, 32>}, {pipeline_mode = #tpu.pipeline_mode<synchronous>, transform_indices = @transform_4, window_bounds = array<i64: 1, 32>}, {pipeline_mode = #tpu.pipeline_mode<synchronous>, transform_indices = @transform_5, window_bounds = array<i64: 1, 1>}, {pipeline_mode = #tpu.pipeline_mode<synchronous>, transform_indices = @transform_6, window_bounds = array<i64: 9, 256, 64>}, {pipeline_mode = #tpu.pipeline_mode<synchronous>, transform_indices = @transform_7, window_bounds = array<i64: 1, 64>}, {pipeline_mode = #tpu.pipeline_mode<synchronous>, transform_indices = @transform_8, window_bounds = array<i64: 1, 64>}, {pipeline_mode = #tpu.pipeline_mode<synchronous>, transform_indices = @transform_9, window_bounds = array<i64: 9, 64, 128>}, {pipeline_mode = #tpu.pipeline_mode<synchronous>, transform_indices = @transform_10, window_bounds = array<i64: 1, 128>}, {pipeline_mode = #tpu.pipeline_mode<synchronous>, transform_indices = @transform_11, window_bounds = array<i64: 1, 128>}, {transform_indices = @transform_12, window_bounds = array<i64: 1, 16, 16, 128>}]} {
    %c0 = arith.constant 0 : index
    %c0_0 = arith.constant 0 : index
    %c0_1 = arith.constant 0 : index
    %c0_2 = arith.constant 0 : index
    %0 = vector.load %arg1[%c0, %c0_0, %c0_1, %c0_2] : memref<1x16x16x128xbf16, #tpu.memory_space<vmem>>, vector<1x16x16x128xbf16>
    %1 = vector.shape_cast %0 : vector<1x16x16x128xbf16> to vector<16x16x128xbf16>
    %c0_3 = arith.constant 0 : index
    %c0_4 = arith.constant 0 : index
    %c0_5 = arith.constant 0 : index
    %c0_6 = arith.constant 0 : index
    %2 = vector.load %arg2[%c0_3, %c0_4, %c0_5, %c0_6] : memref<1x16x16x128xbf16, #tpu.memory_space<vmem>>, vector<1x16x16x128xbf16>
    %3 = vector.shape_cast %2 : vector<1x16x16x128xbf16> to vector<16x16x128xbf16>
    %4 = vector.shape_cast %1 : vector<16x16x128xbf16> to vector<256x128xbf16>
    %5 = vector.shape_cast %3 : vector<16x16x128xbf16> to vector<256x128xbf16>
    %6 = tpu.concatenate %5, %4 in 1 : vector<256x128xbf16>, vector<256x128xbf16> -> vector<256x256xbf16>
    %c0_7 = arith.constant 0 : index
    %c0_8 = arith.constant 0 : index
    %7 = vector.load %arg3[%c0_7, %c0_8] : memref<256x32xbf16, #tpu.memory_space<vmem>>, vector<256x32xbf16>
    %cst = arith.constant dense<0.000000e+00> : vector<256x32xf32>
    %8 = tpu.matmul %6, %7, %cst {dimension_numbers = #tpu.dot_dimension_numbers<[1], [0], [0], [1], [0, 0, 1, 1], [], []>} : vector<256x256xbf16>, vector<256x32xbf16>, vector<256x32xf32> -> vector<256x32xf32>
    %c0_9 = arith.constant 0 : index
    %c0_10 = arith.constant 0 : index
    %9 = vector.load %arg4[%c0_9, %c0_10] : memref<1x32xf32, #tpu.memory_space<vmem>>, vector<1x32xf32>
    %10 = vector.broadcast %9 : vector<1x32xf32> to vector<256x32xf32>
    %11 = arith.addf %8, %10 : vector<256x32xf32>
    %cst_11 = arith.constant 0.000000e+00 : f32
    %12 = vector.broadcast %cst_11 : f32 to vector<256x32xf32>
    %13 = arith.maximumf %11, %12 : vector<256x32xf32>
    %c0_12 = arith.constant 0 : index
    %c0_13 = arith.constant 0 : index
    %14 = vector.load %arg5[%c0_12, %c0_13] : memref<1x32xf32, #tpu.memory_space<vmem>>, vector<1x32xf32>
    %15 = vector.broadcast %14 : vector<1x32xf32> to vector<256x32xf32>
    %16 = arith.mulf %13, %15 : vector<256x32xf32>
    %cst_14 = arith.constant dense<0.000000e+00> : vector<256xf32>
    %17 = vector.multi_reduction <add>, %16, %cst_14 [1] : vector<256x32xf32> to vector<256xf32>
    %18 = vector.shape_cast %17 : vector<256xf32> to vector<256x1xf32>
    %c0_15 = arith.constant 0 : index
    %c0_16 = arith.constant 0 : index
    %19 = vector.load %arg6[%c0_15, %c0_16] : memref<1x1xf32, #tpu.memory_space<vmem>>, vector<1x1xf32>
    %20 = vector.broadcast %19 : vector<1x1xf32> to vector<256x1xf32>
    %21 = arith.addf %18, %20 : vector<256x1xf32>
    %cst_17 = arith.constant -3.000000e+01 : f32
    %cst_18 = arith.constant 3.000000e+01 : f32
    %22 = vector.broadcast %cst_17 : f32 to vector<256x1xf32>
    %23 = arith.maximumf %22, %21 : vector<256x1xf32>
    %24 = vector.broadcast %cst_18 : f32 to vector<256x1xf32>
    %25 = arith.minimumf %24, %23 : vector<256x1xf32>
    %cst_19 = arith.constant 0.000000e+00 : f32
    %26 = vector.broadcast %cst_19 : f32 to vector<256x1xf32>
    %27 = arith.subf %26, %25 : vector<256x1xf32>
    %28 = math.exp %27 : vector<256x1xf32>
    %cst_20 = arith.constant 1.000000e+00 : f32
    %29 = vector.broadcast %cst_20 : f32 to vector<256x1xf32>
    %30 = arith.addf %29, %28 : vector<256x1xf32>
    %31 = tpu.reciprocal %30 {approx = true} : vector<256x1xf32> -> vector<256x1xf32>
    %32 = arith.extf %4 : vector<256x128xbf16> to vector<256x128xf32>
    %33 = vector.broadcast %31 : vector<256x1xf32> to vector<256x128xf32>
    %34 = arith.mulf %32, %33 : vector<256x128xf32>
    %35 = arith.truncf %34 : vector<256x128xf32> to vector<256x128xbf16>
    %36 = vector.shape_cast %35 : vector<256x128xbf16> to vector<16x16x128xbf16>
    %37 = tpu.concatenate %36, %3 in 2 : vector<16x16x128xbf16>, vector<16x16x128xbf16> -> vector<16x16x256xbf16>
    %c0_21 = arith.constant 0 : index
    %c0_22 = arith.constant 0 : index
    %38 = vector.load %arg8[%c0_21, %c0_22] : memref<1x64xf32, #tpu.memory_space<vmem>>, vector<1x64xf32>
    %c0_23 = arith.constant 0 : index
    %c0_24 = arith.constant 0 : index
    %39 = vector.load %arg9[%c0_23, %c0_24] : memref<1x64xf32, #tpu.memory_space<vmem>>, vector<1x64xf32>
    %cst_25 = arith.constant 0.000000e+00 : bf16
    %40 = vector.broadcast %cst_25 : bf16 to vector<1x16x256xbf16>
    %cst_26 = arith.constant 0.000000e+00 : bf16
    %41 = vector.broadcast %cst_26 : bf16 to vector<18x1x256xbf16>
    %42 = tpu.concatenate %40, %37, %40 in 0 : vector<1x16x256xbf16>, vector<16x16x256xbf16>, vector<1x16x256xbf16> -> vector<18x16x256xbf16>
    %c1 = arith.constant 1 : index
    %c0_27 = arith.constant 0 : index
    %c0_28 = arith.constant 0 : index
    %c0_29 = arith.constant 0 : index
    %43 = vector.load %arg14[%c1, %c0_27, %c0_28, %c0_29] : memref<3x18x16x256xbf16, #tpu.memory_space<vmem>>, vector<1x18x16x256xbf16>
    %44 = vector.shape_cast %43 : vector<1x18x16x256xbf16> to vector<18x16x256xbf16>
    %45 = vector.shape_cast %42 : vector<18x16x256xbf16> to vector<1x18x16x256xbf16>
    tpu.vector_store %arg14[%c1, %c0_27, %c0_28, %c0_29], %45 {strides = array<i32>} : memref<3x18x16x256xbf16, #tpu.memory_space<vmem>>, vector<1x18x16x256xbf16>,
    %46 = vector.extract_strided_slice %42 {offsets = [0, 0, 0], sizes = [18, 15, 256], strides = [1, 1, 1]} : vector<18x16x256xbf16> to vector<18x15x256xbf16>
    %47 = tpu.concatenate %41, %46 in 1 : vector<18x1x256xbf16>, vector<18x15x256xbf16> -> vector<18x16x256xbf16>
    %c0_30 = arith.constant 0 : index
    %c0_31 = arith.constant 0 : index
    %c0_32 = arith.constant 0 : index
    %c0_33 = arith.constant 0 : index
    %48 = vector.load %arg14[%c0_30, %c0_31, %c0_32, %c0_33] : memref<3x18x16x256xbf16, #tpu.memory_space<vmem>>, vector<1x18x16x256xbf16>
    %49 = vector.shape_cast %48 : vector<1x18x16x256xbf16> to vector<18x16x256xbf16>
    %50 = vector.shape_cast %47 : vector<18x16x256xbf16> to vector<1x18x16x256xbf16>
    tpu.vector_store %arg14[%c0_30, %c0_31, %c0_32, %c0_33], %50 {strides = array<i32>} : memref<3x18x16x256xbf16, #tpu.memory_space<vmem>>, vector<1x18x16x256xbf16>,
    %51 = vector.extract_strided_slice %42 {offsets = [0, 1, 0], sizes = [18, 15, 256], strides = [1, 1, 1]} : vector<18x16x256xbf16> to vector<18x15x256xbf16>
    %52 = tpu.concatenate %51, %41 in 1 : vector<18x15x256xbf16>, vector<18x1x256xbf16> -> vector<18x16x256xbf16>
    %c2 = arith.constant 2 : index
    %c0_34 = arith.constant 0 : index
    %c0_35 = arith.constant 0 : index
    %c0_36 = arith.constant 0 : index
    %53 = vector.load %arg14[%c2, %c0_34, %c0_35, %c0_36] : memref<3x18x16x256xbf16, #tpu.memory_space<vmem>>, vector<1x18x16x256xbf16>
    %54 = vector.shape_cast %53 : vector<1x18x16x256xbf16> to vector<18x16x256xbf16>
    %55 = vector.shape_cast %52 : vector<18x16x256xbf16> to vector<1x18x16x256xbf16>
    tpu.vector_store %arg14[%c2, %c0_34, %c0_35, %c0_36], %55 {strides = array<i32>} : memref<3x18x16x256xbf16, #tpu.memory_space<vmem>>, vector<1x18x16x256xbf16>,
    %cst_37 = arith.constant 0.000000e+00 : f32
    %56 = vector.broadcast %cst_37 : f32 to vector<256x64xf32>
    %c0_38 = arith.constant 0 : index
    %c0_39 = arith.constant 0 : index
    %c0_40 = arith.constant 0 : index
    %c0_41 = arith.constant 0 : index
    %57 = vector.load %arg14[%c0_38, %c0_39, %c0_40, %c0_41] : memref<3x18x16x256xbf16, #tpu.memory_space<vmem>>, vector<1x16x16x256xbf16>
    %58 = vector.shape_cast %57 : vector<1x16x16x256xbf16> to vector<16x16x256xbf16>
    %59 = vector.shape_cast %58 : vector<16x16x256xbf16> to vector<256x256xbf16>
    %c0_42 = arith.constant 0 : index
    %c0_43 = arith.constant 0 : index
    %c0_44 = arith.constant 0 : index
    %60 = vector.load %arg7[%c0_42, %c0_43, %c0_44] : memref<9x256x64xbf16, #tpu.memory_space<vmem>>, vector<1x256x64xbf16>
    %61 = vector.shape_cast %60 : vector<1x256x64xbf16> to vector<256x64xbf16>
    %cst_45 = arith.constant dense<0.000000e+00> : vector<256x64xf32>
    %62 = tpu.matmul %59, %61, %cst_45 {dimension_numbers = #tpu.dot_dimension_numbers<[1], [0], [0], [1], [0, 0, 1, 1], [], []>} : vector<256x256xbf16>, vector<256x64xbf16>, vector<256x64xf32> -> vector<256x64xf32>
    %63 = arith.addf %56, %62 : vector<256x64xf32>
    %c1_46 = arith.constant 1 : index
    %c0_47 = arith.constant 0 : index
    %c0_48 = arith.constant 0 : index
    %c0_49 = arith.constant 0 : index
    %64 = vector.load %arg14[%c1_46, %c0_47, %c0_48, %c0_49] : memref<3x18x16x256xbf16, #tpu.memory_space<vmem>>, vector<1x16x16x256xbf16>
    %65 = vector.shape_cast %64 : vector<1x16x16x256xbf16> to vector<16x16x256xbf16>
    %66 = vector.shape_cast %65 : vector<16x16x256xbf16> to vector<256x256xbf16>
    %c1_50 = arith.constant 1 : index
    %c0_51 = arith.constant 0 : index
    %c0_52 = arith.constant 0 : index
    %67 = vector.load %arg7[%c1_50, %c0_51, %c0_52] : memref<9x256x64xbf16, #tpu.memory_space<vmem>>, vector<1x256x64xbf16>
    %68 = vector.shape_cast %67 : vector<1x256x64xbf16> to vector<256x64xbf16>
    %cst_53 = arith.constant dense<0.000000e+00> : vector<256x64xf32>
    %69 = tpu.matmul %66, %68, %cst_53 {dimension_numbers = #tpu.dot_dimension_numbers<[1], [0], [0], [1], [0, 0, 1, 1], [], []>} : vector<256x256xbf16>, vector<256x64xbf16>, vector<256x64xf32> -> vector<256x64xf32>
    %70 = arith.addf %63, %69 : vector<256x64xf32>
    %c2_54 = arith.constant 2 : index
    %c0_55 = arith.constant 0 : index
    %c0_56 = arith.constant 0 : index
    %c0_57 = arith.constant 0 : index
    %71 = vector.load %arg14[%c2_54, %c0_55, %c0_56, %c0_57] : memref<3x18x16x256xbf16, #tpu.memory_space<vmem>>, vector<1x16x16x256xbf16>
    %72 = vector.shape_cast %71 : vector<1x16x16x256xbf16> to vector<16x16x256xbf16>
    %73 = vector.shape_cast %72 : vector<16x16x256xbf16> to vector<256x256xbf16>
    %c2_58 = arith.constant 2 : index
    %c0_59 = arith.constant 0 : index
    %c0_60 = arith.constant 0 : index
    %74 = vector.load %arg7[%c2_58, %c0_59, %c0_60] : memref<9x256x64xbf16, #tpu.memory_space<vmem>>, vector<1x256x64xbf16>
    %75 = vector.shape_cast %74 : vector<1x256x64xbf16> to vector<256x64xbf16>
    %cst_61 = arith.constant dense<0.000000e+00> : vector<256x64xf32>
    %76 = tpu.matmul %73, %75, %cst_61 {dimension_numbers = #tpu.dot_dimension_numbers<[1], [0], [0], [1], [0, 0, 1, 1], [], []>} : vector<256x256xbf16>, vector<256x64xbf16>, vector<256x64xf32> -> vector<256x64xf32>
    %77 = arith.addf %70, %76 : vector<256x64xf32>
    %c0_62 = arith.constant 0 : index
    %c1_63 = arith.constant 1 : index
    %c0_64 = arith.constant 0 : index
    %c0_65 = arith.constant 0 : index
    %78 = vector.load %arg14[%c0_62, %c1_63, %c0_64, %c0_65] : memref<3x18x16x256xbf16, #tpu.memory_space<vmem>>, vector<1x16x16x256xbf16>
    %79 = vector.shape_cast %78 : vector<1x16x16x256xbf16> to vector<16x16x256xbf16>
    %80 = vector.shape_cast %79 : vector<16x16x256xbf16> to vector<256x256xbf16>
    %c3 = arith.constant 3 : index
    %c0_66 = arith.constant 0 : index
    %c0_67 = arith.constant 0 : index
    %81 = vector.load %arg7[%c3, %c0_66, %c0_67] : memref<9x256x64xbf16, #tpu.memory_space<vmem>>, vector<1x256x64xbf16>
    %82 = vector.shape_cast %81 : vector<1x256x64xbf16> to vector<256x64xbf16>
    %cst_68 = arith.constant dense<0.000000e+00> : vector<256x64xf32>
    %83 = tpu.matmul %80, %82, %cst_68 {dimension_numbers = #tpu.dot_dimension_numbers<[1], [0], [0], [1], [0, 0, 1, 1], [], []>} : vector<256x256xbf16>, vector<256x64xbf16>, vector<256x64xf32> -> vector<256x64xf32>
    %84 = arith.addf %77, %83 : vector<256x64xf32>
    %c1_69 = arith.constant 1 : index
    %c1_70 = arith.constant 1 : index
    %c0_71 = arith.constant 0 : index
    %c0_72 = arith.constant 0 : index
    %85 = vector.load %arg14[%c1_69, %c1_70, %c0_71, %c0_72] : memref<3x18x16x256xbf16, #tpu.memory_space<vmem>>, vector<1x16x16x256xbf16>
    %86 = vector.shape_cast %85 : vector<1x16x16x256xbf16> to vector<16x16x256xbf16>
    %87 = vector.shape_cast %86 : vector<16x16x256xbf16> to vector<256x256xbf16>
    %c4 = arith.constant 4 : index
    %c0_73 = arith.constant 0 : index
    %c0_74 = arith.constant 0 : index
    %88 = vector.load %arg7[%c4, %c0_73, %c0_74] : memref<9x256x64xbf16, #tpu.memory_space<vmem>>, vector<1x256x64xbf16>
    %89 = vector.shape_cast %88 : vector<1x256x64xbf16> to vector<256x64xbf16>
    %cst_75 = arith.constant dense<0.000000e+00> : vector<256x64xf32>
    %90 = tpu.matmul %87, %89, %cst_75 {dimension_numbers = #tpu.dot_dimension_numbers<[1], [0], [0], [1], [0, 0, 1, 1], [], []>} : vector<256x256xbf16>, vector<256x64xbf16>, vector<256x64xf32> -> vector<256x64xf32>
    %91 = arith.addf %84, %90 : vector<256x64xf32>
    %c2_76 = arith.constant 2 : index
    %c1_77 = arith.constant 1 : index
    %c0_78 = arith.constant 0 : index
    %c0_79 = arith.constant 0 : index
    %92 = vector.load %arg14[%c2_76, %c1_77, %c0_78, %c0_79] : memref<3x18x16x256xbf16, #tpu.memory_space<vmem>>, vector<1x16x16x256xbf16>
    %93 = vector.shape_cast %92 : vector<1x16x16x256xbf16> to vector<16x16x256xbf16>
    %94 = vector.shape_cast %93 : vector<16x16x256xbf16> to vector<256x256xbf16>
    %c5 = arith.constant 5 : index
    %c0_80 = arith.constant 0 : index
    %c0_81 = arith.constant 0 : index
    %95 = vector.load %arg7[%c5, %c0_80, %c0_81] : memref<9x256x64xbf16, #tpu.memory_space<vmem>>, vector<1x256x64xbf16>
    %96 = vector.shape_cast %95 : vector<1x256x64xbf16> to vector<256x64xbf16>
    %cst_82 = arith.constant dense<0.000000e+00> : vector<256x64xf32>
    %97 = tpu.matmul %94, %96, %cst_82 {dimension_numbers = #tpu.dot_dimension_numbers<[1], [0], [0], [1], [0, 0, 1, 1], [], []>} : vector<256x256xbf16>, vector<256x64xbf16>, vector<256x64xf32> -> vector<256x64xf32>
    %98 = arith.addf %91, %97 : vector<256x64xf32>
    %c0_83 = arith.constant 0 : index
    %c2_84 = arith.constant 2 : index
    %c0_85 = arith.constant 0 : index
    %c0_86 = arith.constant 0 : index
    %99 = vector.load %arg14[%c0_83, %c2_84, %c0_85, %c0_86] : memref<3x18x16x256xbf16, #tpu.memory_space<vmem>>, vector<1x16x16x256xbf16>
    %100 = vector.shape_cast %99 : vector<1x16x16x256xbf16> to vector<16x16x256xbf16>
    %101 = vector.shape_cast %100 : vector<16x16x256xbf16> to vector<256x256xbf16>
    %c6 = arith.constant 6 : index
    %c0_87 = arith.constant 0 : index
    %c0_88 = arith.constant 0 : index
    %102 = vector.load %arg7[%c6, %c0_87, %c0_88] : memref<9x256x64xbf16, #tpu.memory_space<vmem>>, vector<1x256x64xbf16>
    %103 = vector.shape_cast %102 : vector<1x256x64xbf16> to vector<256x64xbf16>
    %cst_89 = arith.constant dense<0.000000e+00> : vector<256x64xf32>
    %104 = tpu.matmul %101, %103, %cst_89 {dimension_numbers = #tpu.dot_dimension_numbers<[1], [0], [0], [1], [0, 0, 1, 1], [], []>} : vector<256x256xbf16>, vector<256x64xbf16>, vector<256x64xf32> -> vector<256x64xf32>
    %105 = arith.addf %98, %104 : vector<256x64xf32>
    %c1_90 = arith.constant 1 : index
    %c2_91 = arith.constant 2 : index
    %c0_92 = arith.constant 0 : index
    %c0_93 = arith.constant 0 : index
    %106 = vector.load %arg14[%c1_90, %c2_91, %c0_92, %c0_93] : memref<3x18x16x256xbf16, #tpu.memory_space<vmem>>, vector<1x16x16x256xbf16>
    %107 = vector.shape_cast %106 : vector<1x16x16x256xbf16> to vector<16x16x256xbf16>
    %108 = vector.shape_cast %107 : vector<16x16x256xbf16> to vector<256x256xbf16>
    %c7 = arith.constant 7 : index
    %c0_94 = arith.constant 0 : index
    %c0_95 = arith.constant 0 : index
    %109 = vector.load %arg7[%c7, %c0_94, %c0_95] : memref<9x256x64xbf16, #tpu.memory_space<vmem>>, vector<1x256x64xbf16>
    %110 = vector.shape_cast %109 : vector<1x256x64xbf16> to vector<256x64xbf16>
    %cst_96 = arith.constant dense<0.000000e+00> : vector<256x64xf32>
    %111 = tpu.matmul %108, %110, %cst_96 {dimension_numbers = #tpu.dot_dimension_numbers<[1], [0], [0], [1], [0, 0, 1, 1], [], []>} : vector<256x256xbf16>, vector<256x64xbf16>, vector<256x64xf32> -> vector<256x64xf32>
    %112 = arith.addf %105, %111 : vector<256x64xf32>
    %c2_97 = arith.constant 2 : index
    %c2_98 = arith.constant 2 : index
    %c0_99 = arith.constant 0 : index
    %c0_100 = arith.constant 0 : index
    %113 = vector.load %arg14[%c2_97, %c2_98, %c0_99, %c0_100] : memref<3x18x16x256xbf16, #tpu.memory_space<vmem>>, vector<1x16x16x256xbf16>
    %114 = vector.shape_cast %113 : vector<1x16x16x256xbf16> to vector<16x16x256xbf16>
    %115 = vector.shape_cast %114 : vector<16x16x256xbf16> to vector<256x256xbf16>
    %c8 = arith.constant 8 : index
    %c0_101 = arith.constant 0 : index
    %c0_102 = arith.constant 0 : index
    %116 = vector.load %arg7[%c8, %c0_101, %c0_102] : memref<9x256x64xbf16, #tpu.memory_space<vmem>>, vector<1x256x64xbf16>
    %117 = vector.shape_cast %116 : vector<1x256x64xbf16> to vector<256x64xbf16>
    %cst_103 = arith.constant dense<0.000000e+00> : vector<256x64xf32>
    %118 = tpu.matmul %115, %117, %cst_103 {dimension_numbers = #tpu.dot_dimension_numbers<[1], [0], [0], [1], [0, 0, 1, 1], [], []>} : vector<256x256xbf16>, vector<256x64xbf16>, vector<256x64xf32> -> vector<256x64xf32>
    %119 = arith.addf %112, %118 : vector<256x64xf32>
    %120 = vector.broadcast %38 : vector<1x64xf32> to vector<256x64xf32>
    %121 = arith.mulf %119, %120 : vector<256x64xf32>
    %122 = vector.broadcast %39 : vector<1x64xf32> to vector<256x64xf32>
    %123 = arith.addf %121, %122 : vector<256x64xf32>
    %cst_104 = arith.constant 0.000000e+00 : f32
    %124 = vector.broadcast %cst_104 : f32 to vector<256x64xf32>
    %125 = arith.maximumf %123, %124 : vector<256x64xf32>
    %126 = arith.truncf %125 : vector<256x64xf32> to vector<256x64xbf16>
    %127 = vector.shape_cast %126 : vector<256x64xbf16> to vector<16x16x64xbf16>
    %c0_105 = arith.constant 0 : index
    %c0_106 = arith.constant 0 : index
    %128 = vector.load %arg11[%c0_105, %c0_106] : memref<1x128xf32, #tpu.memory_space<vmem>>, vector<1x128xf32>
    %c0_107 = arith.constant 0 : index
    %c0_108 = arith.constant 0 : index
    %129 = vector.load %arg12[%c0_107, %c0_108] : memref<1x128xf32, #tpu.memory_space<vmem>>, vector<1x128xf32>
    %cst_109 = arith.constant 0.000000e+00 : bf16
    %130 = vector.broadcast %cst_109 : bf16 to vector<1x16x64xbf16>
    %cst_110 = arith.constant 0.000000e+00 : bf16
    %131 = vector.broadcast %cst_110 : bf16 to vector<18x1x64xbf16>
    %132 = tpu.concatenate %130, %127, %130 in 0 : vector<1x16x64xbf16>, vector<16x16x64xbf16>, vector<1x16x64xbf16> -> vector<18x16x64xbf16>
    %c1_111 = arith.constant 1 : index
    %c0_112 = arith.constant 0 : index
    %c0_113 = arith.constant 0 : index
    %c0_114 = arith.constant 0 : index
    %133 = vector.load %arg15[%c1_111, %c0_112, %c0_113, %c0_114] : memref<3x18x16x64xbf16, #tpu.memory_space<vmem>>, vector<1x18x16x64xbf16>
    %134 = vector.shape_cast %133 : vector<1x18x16x64xbf16> to vector<18x16x64xbf16>
    %135 = vector.shape_cast %132 : vector<18x16x64xbf16> to vector<1x18x16x64xbf16>
    tpu.vector_store %arg15[%c1_111, %c0_112, %c0_113, %c0_114], %135 {strides = array<i32>} : memref<3x18x16x64xbf16, #tpu.memory_space<vmem>>, vector<1x18x16x64xbf16>,
    %136 = vector.extract_strided_slice %132 {offsets = [0, 0, 0], sizes = [18, 15, 64], strides = [1, 1, 1]} : vector<18x16x64xbf16> to vector<18x15x64xbf16>
    %137 = tpu.concatenate %131, %136 in 1 : vector<18x1x64xbf16>, vector<18x15x64xbf16> -> vector<18x16x64xbf16>
    %c0_115 = arith.constant 0 : index
    %c0_116 = arith.constant 0 : index
    %c0_117 = arith.constant 0 : index
    %c0_118 = arith.constant 0 : index
    %138 = vector.load %arg15[%c0_115, %c0_116, %c0_117, %c0_118] : memref<3x18x16x64xbf16, #tpu.memory_space<vmem>>, vector<1x18x16x64xbf16>
    %139 = vector.shape_cast %138 : vector<1x18x16x64xbf16> to vector<18x16x64xbf16>
    %140 = vector.shape_cast %137 : vector<18x16x64xbf16> to vector<1x18x16x64xbf16>
    tpu.vector_store %arg15[%c0_115, %c0_116, %c0_117, %c0_118], %140 {strides = array<i32>} : memref<3x18x16x64xbf16, #tpu.memory_space<vmem>>, vector<1x18x16x64xbf16>,
    %141 = vector.extract_strided_slice %132 {offsets = [0, 1, 0], sizes = [18, 15, 64], strides = [1, 1, 1]} : vector<18x16x64xbf16> to vector<18x15x64xbf16>
    %142 = tpu.concatenate %141, %131 in 1 : vector<18x15x64xbf16>, vector<18x1x64xbf16> -> vector<18x16x64xbf16>
    %c2_119 = arith.constant 2 : index
    %c0_120 = arith.constant 0 : index
    %c0_121 = arith.constant 0 : index
    %c0_122 = arith.constant 0 : index
    %143 = vector.load %arg15[%c2_119, %c0_120, %c0_121, %c0_122] : memref<3x18x16x64xbf16, #tpu.memory_space<vmem>>, vector<1x18x16x64xbf16>
    %144 = vector.shape_cast %143 : vector<1x18x16x64xbf16> to vector<18x16x64xbf16>
    %145 = vector.shape_cast %142 : vector<18x16x64xbf16> to vector<1x18x16x64xbf16>
    tpu.vector_store %arg15[%c2_119, %c0_120, %c0_121, %c0_122], %145 {strides = array<i32>} : memref<3x18x16x64xbf16, #tpu.memory_space<vmem>>, vector<1x18x16x64xbf16>,
    %cst_123 = arith.constant 0.000000e+00 : f32
    %146 = vector.broadcast %cst_123 : f32 to vector<256x128xf32>
    %c0_124 = arith.constant 0 : index
    %c0_125 = arith.constant 0 : index
    %c0_126 = arith.constant 0 : index
    %c0_127 = arith.constant 0 : index
    %147 = vector.load %arg15[%c0_124, %c0_125, %c0_126, %c0_127] : memref<3x18x16x64xbf16, #tpu.memory_space<vmem>>, vector<1x16x16x64xbf16>
    %148 = vector.shape_cast %147 : vector<1x16x16x64xbf16> to vector<16x16x64xbf16>
    %149 = vector.shape_cast %148 : vector<16x16x64xbf16> to vector<256x64xbf16>
    %c0_128 = arith.constant 0 : index
    %c0_129 = arith.constant 0 : index
    %c0_130 = arith.constant 0 : index
    %150 = vector.load %arg10[%c0_128, %c0_129, %c0_130] : memref<9x64x128xbf16, #tpu.memory_space<vmem>>, vector<1x64x128xbf16>
    %151 = vector.shape_cast %150 : vector<1x64x128xbf16> to vector<64x128xbf16>
    %cst_131 = arith.constant dense<0.000000e+00> : vector<256x128xf32>
    %152 = tpu.matmul %149, %151, %cst_131 {dimension_numbers = #tpu.dot_dimension_numbers<[1], [0], [0], [1], [0, 0, 1, 1], [], []>} : vector<256x64xbf16>, vector<64x128xbf16>, vector<256x128xf32> -> vector<256x128xf32>
    %153 = arith.addf %146, %152 : vector<256x128xf32>
    %c1_132 = arith.constant 1 : index
    %c0_133 = arith.constant 0 : index
    %c0_134 = arith.constant 0 : index
    %c0_135 = arith.constant 0 : index
    %154 = vector.load %arg15[%c1_132, %c0_133, %c0_134, %c0_135] : memref<3x18x16x64xbf16, #tpu.memory_space<vmem>>, vector<1x16x16x64xbf16>
    %155 = vector.shape_cast %154 : vector<1x16x16x64xbf16> to vector<16x16x64xbf16>
    %156 = vector.shape_cast %155 : vector<16x16x64xbf16> to vector<256x64xbf16>
    %c1_136 = arith.constant 1 : index
    %c0_137 = arith.constant 0 : index
    %c0_138 = arith.constant 0 : index
    %157 = vector.load %arg10[%c1_136, %c0_137, %c0_138] : memref<9x64x128xbf16, #tpu.memory_space<vmem>>, vector<1x64x128xbf16>
    %158 = vector.shape_cast %157 : vector<1x64x128xbf16> to vector<64x128xbf16>
    %cst_139 = arith.constant dense<0.000000e+00> : vector<256x128xf32>
    %159 = tpu.matmul %156, %158, %cst_139 {dimension_numbers = #tpu.dot_dimension_numbers<[1], [0], [0], [1], [0, 0, 1, 1], [], []>} : vector<256x64xbf16>, vector<64x128xbf16>, vector<256x128xf32> -> vector<256x128xf32>
    %160 = arith.addf %153, %159 : vector<256x128xf32>
    %c2_140 = arith.constant 2 : index
    %c0_141 = arith.constant 0 : index
    %c0_142 = arith.constant 0 : index
    %c0_143 = arith.constant 0 : index
    %161 = vector.load %arg15[%c2_140, %c0_141, %c0_142, %c0_143] : memref<3x18x16x64xbf16, #tpu.memory_space<vmem>>, vector<1x16x16x64xbf16>
    %162 = vector.shape_cast %161 : vector<1x16x16x64xbf16> to vector<16x16x64xbf16>
    %163 = vector.shape_cast %162 : vector<16x16x64xbf16> to vector<256x64xbf16>
    %c2_144 = arith.constant 2 : index
    %c0_145 = arith.constant 0 : index
    %c0_146 = arith.constant 0 : index
    %164 = vector.load %arg10[%c2_144, %c0_145, %c0_146] : memref<9x64x128xbf16, #tpu.memory_space<vmem>>, vector<1x64x128xbf16>
    %165 = vector.shape_cast %164 : vector<1x64x128xbf16> to vector<64x128xbf16>
    %cst_147 = arith.constant dense<0.000000e+00> : vector<256x128xf32>
    %166 = tpu.matmul %163, %165, %cst_147 {dimension_numbers = #tpu.dot_dimension_numbers<[1], [0], [0], [1], [0, 0, 1, 1], [], []>} : vector<256x64xbf16>, vector<64x128xbf16>, vector<256x128xf32> -> vector<256x128xf32>
    %167 = arith.addf %160, %166 : vector<256x128xf32>
    %c0_148 = arith.constant 0 : index
    %c1_149 = arith.constant 1 : index
    %c0_150 = arith.constant 0 : index
    %c0_151 = arith.constant 0 : index
    %168 = vector.load %arg15[%c0_148, %c1_149, %c0_150, %c0_151] : memref<3x18x16x64xbf16, #tpu.memory_space<vmem>>, vector<1x16x16x64xbf16>
    %169 = vector.shape_cast %168 : vector<1x16x16x64xbf16> to vector<16x16x64xbf16>
    %170 = vector.shape_cast %169 : vector<16x16x64xbf16> to vector<256x64xbf16>
    %c3_152 = arith.constant 3 : index
    %c0_153 = arith.constant 0 : index
    %c0_154 = arith.constant 0 : index
    %171 = vector.load %arg10[%c3_152, %c0_153, %c0_154] : memref<9x64x128xbf16, #tpu.memory_space<vmem>>, vector<1x64x128xbf16>
    %172 = vector.shape_cast %171 : vector<1x64x128xbf16> to vector<64x128xbf16>
    %cst_155 = arith.constant dense<0.000000e+00> : vector<256x128xf32>
    %173 = tpu.matmul %170, %172, %cst_155 {dimension_numbers = #tpu.dot_dimension_numbers<[1], [0], [0], [1], [0, 0, 1, 1], [], []>} : vector<256x64xbf16>, vector<64x128xbf16>, vector<256x128xf32> -> vector<256x128xf32>
    %174 = arith.addf %167, %173 : vector<256x128xf32>
    %c1_156 = arith.constant 1 : index
    %c1_157 = arith.constant 1 : index
    %c0_158 = arith.constant 0 : index
    %c0_159 = arith.constant 0 : index
    %175 = vector.load %arg15[%c1_156, %c1_157, %c0_158, %c0_159] : memref<3x18x16x64xbf16, #tpu.memory_space<vmem>>, vector<1x16x16x64xbf16>
    %176 = vector.shape_cast %175 : vector<1x16x16x64xbf16> to vector<16x16x64xbf16>
    %177 = vector.shape_cast %176 : vector<16x16x64xbf16> to vector<256x64xbf16>
    %c4_160 = arith.constant 4 : index
    %c0_161 = arith.constant 0 : index
    %c0_162 = arith.constant 0 : index
    %178 = vector.load %arg10[%c4_160, %c0_161, %c0_162] : memref<9x64x128xbf16, #tpu.memory_space<vmem>>, vector<1x64x128xbf16>
    %179 = vector.shape_cast %178 : vector<1x64x128xbf16> to vector<64x128xbf16>
    %cst_163 = arith.constant dense<0.000000e+00> : vector<256x128xf32>
    %180 = tpu.matmul %177, %179, %cst_163 {dimension_numbers = #tpu.dot_dimension_numbers<[1], [0], [0], [1], [0, 0, 1, 1], [], []>} : vector<256x64xbf16>, vector<64x128xbf16>, vector<256x128xf32> -> vector<256x128xf32>
    %181 = arith.addf %174, %180 : vector<256x128xf32>
    %c2_164 = arith.constant 2 : index
    %c1_165 = arith.constant 1 : index
    %c0_166 = arith.constant 0 : index
    %c0_167 = arith.constant 0 : index
    %182 = vector.load %arg15[%c2_164, %c1_165, %c0_166, %c0_167] : memref<3x18x16x64xbf16, #tpu.memory_space<vmem>>, vector<1x16x16x64xbf16>
    %183 = vector.shape_cast %182 : vector<1x16x16x64xbf16> to vector<16x16x64xbf16>
    %184 = vector.shape_cast %183 : vector<16x16x64xbf16> to vector<256x64xbf16>
    %c5_168 = arith.constant 5 : index
    %c0_169 = arith.constant 0 : index
    %c0_170 = arith.constant 0 : index
    %185 = vector.load %arg10[%c5_168, %c0_169, %c0_170] : memref<9x64x128xbf16, #tpu.memory_space<vmem>>, vector<1x64x128xbf16>
    %186 = vector.shape_cast %185 : vector<1x64x128xbf16> to vector<64x128xbf16>
    %cst_171 = arith.constant dense<0.000000e+00> : vector<256x128xf32>
    %187 = tpu.matmul %184, %186, %cst_171 {dimension_numbers = #tpu.dot_dimension_numbers<[1], [0], [0], [1], [0, 0, 1, 1], [], []>} : vector<256x64xbf16>, vector<64x128xbf16>, vector<256x128xf32> -> vector<256x128xf32>
    %188 = arith.addf %181, %187 : vector<256x128xf32>
    %c0_172 = arith.constant 0 : index
    %c2_173 = arith.constant 2 : index
    %c0_174 = arith.constant 0 : index
    %c0_175 = arith.constant 0 : index
    %189 = vector.load %arg15[%c0_172, %c2_173, %c0_174, %c0_175] : memref<3x18x16x64xbf16, #tpu.memory_space<vmem>>, vector<1x16x16x64xbf16>
    %190 = vector.shape_cast %189 : vector<1x16x16x64xbf16> to vector<16x16x64xbf16>
    %191 = vector.shape_cast %190 : vector<16x16x64xbf16> to vector<256x64xbf16>
    %c6_176 = arith.constant 6 : index
    %c0_177 = arith.constant 0 : index
    %c0_178 = arith.constant 0 : index
    %192 = vector.load %arg10[%c6_176, %c0_177, %c0_178] : memref<9x64x128xbf16, #tpu.memory_space<vmem>>, vector<1x64x128xbf16>
    %193 = vector.shape_cast %192 : vector<1x64x128xbf16> to vector<64x128xbf16>
    %cst_179 = arith.constant dense<0.000000e+00> : vector<256x128xf32>
    %194 = tpu.matmul %191, %193, %cst_179 {dimension_numbers = #tpu.dot_dimension_numbers<[1], [0], [0], [1], [0, 0, 1, 1], [], []>} : vector<256x64xbf16>, vector<64x128xbf16>, vector<256x128xf32> -> vector<256x128xf32>
    %195 = arith.addf %188, %194 : vector<256x128xf32>
    %c1_180 = arith.constant 1 : index
    %c2_181 = arith.constant 2 : index
    %c0_182 = arith.constant 0 : index
    %c0_183 = arith.constant 0 : index
    %196 = vector.load %arg15[%c1_180, %c2_181, %c0_182, %c0_183] : memref<3x18x16x64xbf16, #tpu.memory_space<vmem>>, vector<1x16x16x64xbf16>
    %197 = vector.shape_cast %196 : vector<1x16x16x64xbf16> to vector<16x16x64xbf16>
    %198 = vector.shape_cast %197 : vector<16x16x64xbf16> to vector<256x64xbf16>
    %c7_184 = arith.constant 7 : index
    %c0_185 = arith.constant 0 : index
    %c0_186 = arith.constant 0 : index
    %199 = vector.load %arg10[%c7_184, %c0_185, %c0_186] : memref<9x64x128xbf16, #tpu.memory_space<vmem>>, vector<1x64x128xbf16>
    %200 = vector.shape_cast %199 : vector<1x64x128xbf16> to vector<64x128xbf16>
    %cst_187 = arith.constant dense<0.000000e+00> : vector<256x128xf32>
    %201 = tpu.matmul %198, %200, %cst_187 {dimension_numbers = #tpu.dot_dimension_numbers<[1], [0], [0], [1], [0, 0, 1, 1], [], []>} : vector<256x64xbf16>, vector<64x128xbf16>, vector<256x128xf32> -> vector<256x128xf32>
    %202 = arith.addf %195, %201 : vector<256x128xf32>
    %c2_188 = arith.constant 2 : index
    %c2_189 = arith.constant 2 : index
    %c0_190 = arith.constant 0 : index
    %c0_191 = arith.constant 0 : index
    %203 = vector.load %arg15[%c2_188, %c2_189, %c0_190, %c0_191] : memref<3x18x16x64xbf16, #tpu.memory_space<vmem>>, vector<1x16x16x64xbf16>
    %204 = vector.shape_cast %203 : vector<1x16x16x64xbf16> to vector<16x16x64xbf16>
    %205 = vector.shape_cast %204 : vector<16x16x64xbf16> to vector<256x64xbf16>
    %c8_192 = arith.constant 8 : index
    %c0_193 = arith.constant 0 : index
    %c0_194 = arith.constant 0 : index
    %206 = vector.load %arg10[%c8_192, %c0_193, %c0_194] : memref<9x64x128xbf16, #tpu.memory_space<vmem>>, vector<1x64x128xbf16>
    %207 = vector.shape_cast %206 : vector<1x64x128xbf16> to vector<64x128xbf16>
    %cst_195 = arith.constant dense<0.000000e+00> : vector<256x128xf32>
    %208 = tpu.matmul %205, %207, %cst_195 {dimension_numbers = #tpu.dot_dimension_numbers<[1], [0], [0], [1], [0, 0, 1, 1], [], []>} : vector<256x64xbf16>, vector<64x128xbf16>, vector<256x128xf32> -> vector<256x128xf32>
    %209 = arith.addf %202, %208 : vector<256x128xf32>
    %210 = vector.broadcast %128 : vector<1x128xf32> to vector<256x128xf32>
    %211 = arith.mulf %209, %210 : vector<256x128xf32>
    %212 = vector.broadcast %129 : vector<1x128xf32> to vector<256x128xf32>
    %213 = arith.addf %211, %212 : vector<256x128xf32>
    %cst_196 = arith.constant 0.000000e+00 : f32
    %214 = vector.broadcast %cst_196 : f32 to vector<256x128xf32>
    %215 = arith.maximumf %213, %214 : vector<256x128xf32>
    %216 = vector.shape_cast %215 : vector<256x128xf32> to vector<16x16x128xf32>
    %c0_197 = arith.constant 0 : index
    %c0_198 = arith.constant 0 : index
    %c0_199 = arith.constant 0 : index
    %c0_200 = arith.constant 0 : index
    %217 = vector.load %arg13[%c0_197, %c0_198, %c0_199, %c0_200] : memref<1x16x16x128xf32, #tpu.memory_space<vmem>>, vector<1x16x16x128xf32>
    %218 = vector.shape_cast %217 : vector<1x16x16x128xf32> to vector<16x16x128xf32>
    %219 = vector.shape_cast %216 : vector<16x16x128xf32> to vector<1x16x16x128xf32>
    tpu.vector_store %arg13[%c0_197, %c0_198, %c0_199, %c0_200], %219 {strides = array<i32>} : memref<1x16x16x128xf32, #tpu.memory_space<vmem>>, vector<1x16x16x128xf32>,
    return
  }
  func.func @transform_0(%arg0: i32) -> (i32, i32, i32, i32) {
    %c0_i32 = arith.constant 0 : i32
    %c0_i32_0 = arith.constant 0 : i32
    %c0_i32_1 = arith.constant 0 : i32
    %c0_i32_2 = arith.constant 0 : i32
    return %arg0, %c0_i32, %c0_i32_0, %c0_i32_1 : i32, i32, i32, i32
  }
  func.func @transform_1(%arg0: i32) -> (i32, i32, i32, i32) {
    %c0_i32 = arith.constant 0 : i32
    %c0_i32_0 = arith.constant 0 : i32
    %c0_i32_1 = arith.constant 0 : i32
    %c0_i32_2 = arith.constant 0 : i32
    return %arg0, %c0_i32, %c0_i32_0, %c0_i32_1 : i32, i32, i32, i32
  }
  func.func @transform_2(%arg0: i32) -> (i32, i32) {
    %c0_i32 = arith.constant 0 : i32
    %c0_i32_0 = arith.constant 0 : i32
    %c0_i32_1 = arith.constant 0 : i32
    return %c0_i32, %c0_i32_0 : i32, i32
  }
  func.func @transform_3(%arg0: i32) -> (i32, i32) {
    %c0_i32 = arith.constant 0 : i32
    %c0_i32_0 = arith.constant 0 : i32
    %c0_i32_1 = arith.constant 0 : i32
    return %c0_i32, %c0_i32_0 : i32, i32
  }
  func.func @transform_4(%arg0: i32) -> (i32, i32) {
    %c0_i32 = arith.constant 0 : i32
    %c0_i32_0 = arith.constant 0 : i32
    %c0_i32_1 = arith.constant 0 : i32
    return %c0_i32, %c0_i32_0 : i32, i32
  }
  func.func @transform_5(%arg0: i32) -> (i32, i32) {
    %c0_i32 = arith.constant 0 : i32
    %c0_i32_0 = arith.constant 0 : i32
    %c0_i32_1 = arith.constant 0 : i32
    return %c0_i32, %c0_i32_0 : i32, i32
  }
  func.func @transform_6(%arg0: i32) -> (i32, i32, i32) {
    %c0_i32 = arith.constant 0 : i32
    %c0_i32_0 = arith.constant 0 : i32
    %c0_i32_1 = arith.constant 0 : i32
    %c0_i32_2 = arith.constant 0 : i32
    return %c0_i32, %c0_i32_0, %c0_i32_1 : i32, i32, i32
  }
  func.func @transform_7(%arg0: i32) -> (i32, i32) {
    %c0_i32 = arith.constant 0 : i32
    %c0_i32_0 = arith.constant 0 : i32
    %c0_i32_1 = arith.constant 0 : i32
    return %c0_i32, %c0_i32_0 : i32, i32
  }
  func.func @transform_8(%arg0: i32) -> (i32, i32) {
    %c0_i32 = arith.constant 0 : i32
    %c0_i32_0 = arith.constant 0 : i32
    %c0_i32_1 = arith.constant 0 : i32
    return %c0_i32, %c0_i32_0 : i32, i32
  }
  func.func @transform_9(%arg0: i32) -> (i32, i32, i32) {
    %c0_i32 = arith.constant 0 : i32
    %c0_i32_0 = arith.constant 0 : i32
    %c0_i32_1 = arith.constant 0 : i32
    %c0_i32_2 = arith.constant 0 : i32
    return %c0_i32, %c0_i32_0, %c0_i32_1 : i32, i32, i32
  }
  func.func @transform_10(%arg0: i32) -> (i32, i32) {
    %c0_i32 = arith.constant 0 : i32
    %c0_i32_0 = arith.constant 0 : i32
    %c0_i32_1 = arith.constant 0 : i32
    return %c0_i32, %c0_i32_0 : i32, i32
  }
  func.func @transform_11(%arg0: i32) -> (i32, i32) {
    %c0_i32 = arith.constant 0 : i32
    %c0_i32_0 = arith.constant 0 : i32
    %c0_i32_1 = arith.constant 0 : i32
    return %c0_i32, %c0_i32_0 : i32, i32
  }
  func.func @transform_12(%arg0: i32) -> (i32, i32, i32, i32) {
    %c0_i32 = arith.constant 0 : i32
    %c0_i32_0 = arith.constant 0 : i32
    %c0_i32_1 = arith.constant 0 : i32
    %c0_i32_2 = arith.constant 0 : i32
    return %arg0, %c0_i32, %c0_i32_0, %c0_i32_1 : i32, i32, i32, i32
  }
}

</mosaic_0001>

<llo_original>
// kernel: up_forward.1
$region0: #{up_forward.1}
  #allocation0 [shape = 'u32[]', space=smem, size = 0x4, offset = 0x4, fixed_abs, tag = 'smem constant byte address 0x4 - core index']
  #allocation1 [shape = 'u32[72,128]{1,0:T(1,128)}', space=vmem, size = 0x9000, scoped, tag = 'internal scratch']
  #allocation2 [shape = 'bf16[3,18,16,256]{3,2,1,0:T(8,128)(2,1)}', space=vmem, size = 0x6c000, scoped, tag = 'scratch operand']
  #allocation3 [shape = 'bf16[3,18,16,64]{3,2,1,0:T(8,128)(2,1)}', space=vmem, size = 0x36000, scoped, tag = 'scratch operand']
  #allocation4 [shape = 'f32[1,1]{1,0:T(1,128)S(1)}', space=vmem, size = 0x200, scoped, tag = 'scoped memory for up_forward.1']
  %s0 = inlined_call_operand.vmem [shape: bf16[2,16,16,128], index: 0, kind: input, shape index: {}]
  %s1 = inlined_call_operand.vmem [shape: bf16[2,16,16,128], index: 1, kind: input, shape index: {}]
  %s2 = inlined_call_operand.vmem [shape: bf16[256,32], index: 2, kind: input, shape index: {}]
  %s3 = inlined_call_operand.vmem [shape: f32[1,32], index: 3, kind: input, shape index: {}]
  %s4 = inlined_call_operand.vmem [shape: f32[1,32], index: 4, kind: input, shape index: {}]
  %s5 = inlined_call_operand.<no memory space> [shape: f32[1,1], index: 5, kind: input, shape index: {}]
  %s6 = inlined_call_operand.vmem [shape: bf16[9,256,64], index: 6, kind: input, shape index: {}]
  %s7 = inlined_call_operand.vmem [shape: f32[1,64], index: 7, kind: input, shape index: {}]
  %s8 = inlined_call_operand.vmem [shape: f32[1,64], index: 8, kind: input, shape index: {}]
  %s9 = inlined_call_operand.vmem [shape: bf16[9,64,128], index: 9, kind: input, shape index: {}]
  %s10 = inlined_call_operand.vmem [shape: f32[1,128], index: 10, kind: input, shape index: {}]
  %s11 = inlined_call_operand.vmem [shape: f32[1,128], index: 11, kind: input, shape index: {}]
  %s12 = inlined_call_operand.vmem [shape: f32[2,16,16,128], index: 12, kind: output, shape index: {}]
  %s13 = sld [smem:[#allocation0]]
  $region81: #{up_forward.1} parent=0
    _
  %s15 = ssub.s32 1, %s13
  %s16 = scalar_select 0, %s15, %s13
  %v17 = vstv %s5
  %18 = vst [vmem:[#allocation4] sm:$0x1] %v17
  loop: start=0, step=1, limit=4
  $region2: #{up_forward.1} parent=0 // loop_pre_header
    _
  $region3: #{up_forward.1} parent=0 // loop_header
    %s20 = sphi 0, %s24
    %p21 = scmp.ge.s32.totalorder %s20, 4
    %s30 = sphi 0, %s32
    %s33 = sphi 0, %s30
    %s34 = sphi 0, %s33
    %s50 = sphi 0, %s34
    %s56 = sphi 0, %s58
    %s59 = sphi 0, %s56
    %s60 = sphi 0, %s59
    %s76 = sphi 0, %s60
    %s80 = sphi 0, %s80
    %s82 = sphi 0, %s80
    %s83 = sphi 0, %s82
    %s97 = sphi 0, %s83
    %s101 = sphi 0, %s101
    %s103 = sphi 0, %s101
    %s104 = sphi 0, %s103
    %s118 = sphi 0, %s104
    %s122 = sphi 0, %s122
    %s124 = sphi 0, %s122
    %s125 = sphi 0, %s124
    %s139 = sphi 0, %s125
    %s143 = sphi 0, %s143
    %s145 = sphi 0, %s143
    %s146 = sphi 0, %s145
    %s160 = sphi 0, %s146
    %s164 = sphi 0, %s164
    %s166 = sphi 0, %s164
    %s167 = sphi 0, %s166
    %s181 = sphi 0, %s167
    %s185 = sphi 0, %s185
    %s187 = sphi 0, %s185
    %s188 = sphi 0, %s187
    %s202 = sphi 0, %s188
    %s206 = sphi 0, %s206
    %s208 = sphi 0, %s206
    %s209 = sphi 0, %s208
    %s223 = sphi 0, %s209
    %s227 = sphi 0, %s227
    %s229 = sphi 0, %s227
    %s230 = sphi 0, %s229
    %s244 = sphi 0, %s230
    %s248 = sphi 0, %s248
    %s250 = sphi 0, %s248
    %s251 = sphi 0, %s250
    %s265 = sphi 0, %s251
    %s269 = sphi 0, %s269
    %s271 = sphi 0, %s269
    %s272 = sphi 0, %s271
    %s286 = sphi 0, %s272
    %s292 = sphi 0, %s294
    %s295 = sphi 0, %s292
    %s296 = sphi 0, %s295
    %s312 = sphi 0, %s296
  $region4: #{up_forward.1} parent=0 // loop_header_branch
    %23 = sbr.rel (%p21) target = $region8
  $region5: #{up_forward.1} parent=0 // loop_body
    %s25 = ssub.s32 %s20, 1
    %s26 = ssub.s32 %s20, 2
    %s27 = sadd.s32 %s20, 1
    %s28 = ssub.s32 %s20, %s27
    %p29 = scmp.eq.s32.totalorder %s28, 0
    %s31 = sadd.s32 %s30, 1
    %s32 = scalar_select %p29, %s30, %s31
    %p35 = pneg %p29
    %p36 = scmp.eq.s32.totalorder %s20, 1
    %p37 = por %p35, %p36
    %p38 = scmp.ne.s32.totalorder %s30, %s33
    %p39 = scmp.eq.s32.totalorder %s20, 0
    %p40 = por %p38, %p39
    %p41 = scmp.ne.s32.totalorder %s30, %s33
    %p42 = scmp.eq.s32.totalorder %s25, 1
    %p43 = por %p41, %p42
    %p44 = scmp.ne.s32.totalorder %s33, %s34
    %p45 = scmp.eq.s32.totalorder %s25, 0
    %p46 = por %p44, %p45
    %p47 = scmp.ne.s32.totalorder %s33, %s34
    %p48 = scmp.eq.s32.totalorder %s26, 1
    %p49 = por %p47, %p48
    %p51 = scmp.ne.s32.totalorder %s34, %s50
    %p52 = scmp.eq.s32.totalorder %s26, 0
    %p53 = por %p51, %p52
    %s54 = ssub.s32 %s20, %s27
    %p55 = scmp.eq.s32.totalorder %s54, 0
    %s57 = sadd.s32 %s56, 1
    %s58 = scalar_select %p55, %s56, %s57
    %p61 = pneg %p55
    %p62 = scmp.eq.s32.totalorder %s20, 1
    %p63 = por %p61, %p62
    %p64 = scmp.ne.s32.totalorder %s56, %s59
    %p65 = scmp.eq.s32.totalorder %s20, 0
    %p66 = por %p64, %p65
    %p67 = scmp.ne.s32.totalorder %s56, %s59
    %p68 = scmp.eq.s32.totalorder %s25, 1
    %p69 = por %p67, %p68
    %p70 = scmp.ne.s32.totalorder %s59, %s60
    %p71 = scmp.eq.s32.totalorder %s25, 0
    %p72 = por %p70, %p71
    %p73 = scmp.ne.s32.totalorder %s59, %s60
    %p74 = scmp.eq.s32.totalorder %s26, 1
    %p75 = por %p73, %p74
    %p77 = scmp.ne.s32.totalorder %s60, %s76
    %p78 = scmp.eq.s32.totalorder %s26, 0
    %p79 = por %p77, %p78
    %s81 = sadd.s32 %s80, 1
    %p84 = scmp.eq.s32.totalorder %s20, 1
    %p85 = scmp.ne.s32.totalorder %s80, %s82
    %p86 = scmp.eq.s32.totalorder %s20, 0
    %p87 = por %p85, %p86
    %p88 = scmp.ne.s32.totalorder %s80, %s82
    %p89 = scmp.eq.s32.totalorder %s25, 1
    %p90 = por %p88, %p89
    %p91 = scmp.ne.s32.totalorder %s82, %s83
    %p92 = scmp.eq.s32.totalorder %s25, 0
    %p93 = por %p91, %p92
    %p94 = scmp.ne.s32.totalorder %s82, %s83
    %p95 = scmp.eq.s32.totalorder %s26, 1
    %p96 = por %p94, %p95
    %p98 = scmp.ne.s32.totalorder %s83, %s97
    %p99 = scmp.eq.s32.totalorder %s26, 0
    %p100 = por %p98, %p99
    %s102 = sadd.s32 %s101, 1
    %p105 = scmp.eq.s32.totalorder %s20, 1
    %p106 = scmp.ne.s32.totalorder %s101, %s103
    %p107 = scmp.eq.s32.totalorder %s20, 0
    %p108 = por %p106, %p107
    %p109 = scmp.ne.s32.totalorder %s101, %s103
    %p110 = scmp.eq.s32.totalorder %s25, 1
    %p111 = por %p109, %p110
    %p112 = scmp.ne.s32.totalorder %s103, %s104
    %p113 = scmp.eq.s32.totalorder %s25, 0
    %p114 = por %p112, %p113
    %p115 = scmp.ne.s32.totalorder %s103, %s104
    %p116 = scmp.eq.s32.totalorder %s26, 1
    %p117 = por %p115, %p116
    %p119 = scmp.ne.s32.totalorder %s104, %s118
    %p120 = scmp.eq.s32.totalorder %s26, 0
    %p121 = por %p119, %p120
    %s123 = sadd.s32 %s122, 1
    %p126 = scmp.eq.s32.totalorder %s20, 1
    %p127 = scmp.ne.s32.totalorder %s122, %s124
    %p128 = scmp.eq.s32.totalorder %s20, 0
    %p129 = por %p127, %p128
    %p130 = scmp.ne.s32.totalorder %s122, %s124
    %p131 = scmp.eq.s32.totalorder %s25, 1
    %p132 = por %p130, %p131
    %p133 = scmp.ne.s32.totalorder %s124, %s125
    %p134 = scmp.eq.s32.totalorder %s25, 0
    %p135 = por %p133, %p134
    %p136 = scmp.ne.s32.totalorder %s124, %s125
    %p137 = scmp.eq.s32.totalorder %s26, 1
    %p138 = por %p136, %p137
    %p140 = scmp.ne.s32.totalorder %s125, %s139
    %p141 = scmp.eq.s32.totalorder %s26, 0
    %p142 = por %p140, %p141
    %s144 = sadd.s32 %s143, 1
    %p147 = scmp.eq.s32.totalorder %s20, 1
    %p148 = scmp.ne.s32.totalorder %s143, %s145
    %p149 = scmp.eq.s32.totalorder %s20, 0
    %p150 = por %p148, %p149
    %p151 = scmp.ne.s32.totalorder %s143, %s145
    %p152 = scmp.eq.s32.totalorder %s25, 1
    %p153 = por %p151, %p152
    %p154 = scmp.ne.s32.totalorder %s145, %s146
    %p155 = scmp.eq.s32.totalorder %s25, 0
    %p156 = por %p154, %p155
    %p157 = scmp.ne.s32.totalorder %s145, %s146
    %p158 = scmp.eq.s32.totalorder %s26, 1
    %p159 = por %p157, %p158
    %p161 = scmp.ne.s32.totalorder %s146, %s160
    %p162 = scmp.eq.s32.totalorder %s26, 0
    %p163 = por %p161, %p162
    %s165 = sadd.s32 %s164, 1
    %p168 = scmp.eq.s32.totalorder %s20, 1
    %p169 = scmp.ne.s32.totalorder %s164, %s166
    %p170 = scmp.eq.s32.totalorder %s20, 0
    %p171 = por %p169, %p170
    %p172 = scmp.ne.s32.totalorder %s164, %s166
    %p173 = scmp.eq.s32.totalorder %s25, 1
    %p174 = por %p172, %p173
    %p175 = scmp.ne.s32.totalorder %s166, %s167
    %p176 = scmp.eq.s32.totalorder %s25, 0
    %p177 = por %p175, %p176
    %p178 = scmp.ne.s32.totalorder %s166, %s167
    %p179 = scmp.eq.s32.totalorder %s26, 1
    %p180 = por %p178, %p179
    %p182 = scmp.ne.s32.totalorder %s167, %s181
    %p183 = scmp.eq.s32.totalorder %s26, 0
    %p184 = por %p182, %p183
    %s186 = sadd.s32 %s185, 1
    %p189 = scmp.eq.s32.totalorder %s20, 1
    %p190 = scmp.ne.s32.totalorder %s185, %s187
    %p191 = scmp.eq.s32.totalorder %s20, 0
    %p192 = por %p190, %p191
    %p193 = scmp.ne.s32.totalorder %s185, %s187
    %p194 = scmp.eq.s32.totalorder %s25, 1
    %p195 = por %p193, %p194
    %p196 = scmp.ne.s32.totalorder %s187, %s188
    %p197 = scmp.eq.s32.totalorder %s25, 0
    %p198 = por %p196, %p197
    %p199 = scmp.ne.s32.totalorder %s187, %s188
    %p200 = scmp.eq.s32.totalorder %s26, 1
    %p201 = por %p199, %p200
    %p203 = scmp.ne.s32.totalorder %s188, %s202
    %p204 = scmp.eq.s32.totalorder %s26, 0
    %p205 = por %p203, %p204
    %s207 = sadd.s32 %s206, 1
    %p210 = scmp.eq.s32.totalorder %s20, 1
    %p211 = scmp.ne.s32.totalorder %s206, %s208
    %p212 = scmp.eq.s32.totalorder %s20, 0
    %p213 = por %p211, %p212
    %p214 = scmp.ne.s32.totalorder %s206, %s208
    %p215 = scmp.eq.s32.totalorder %s25, 1
    %p216 = por %p214, %p215
    %p217 = scmp.ne.s32.totalorder %s208, %s209
    %p218 = scmp.eq.s32.totalorder %s25, 0
    %p219 = por %p217, %p218
    %p220 = scmp.ne.s32.totalorder %s208, %s209
    %p221 = scmp.eq.s32.totalorder %s26, 1
    %p222 = por %p220, %p221
    %p224 = scmp.ne.s32.totalorder %s209, %s223
    %p225 = scmp.eq.s32.totalorder %s26, 0
    %p226 = por %p224, %p225
    %s228 = sadd.s32 %s227, 1
    %p231 = scmp.eq.s32.totalorder %s20, 1
    %p232 = scmp.ne.s32.totalorder %s227, %s229
    %p233 = scmp.eq.s32.totalorder %s20, 0
    %p234 = por %p232, %p233
    %p235 = scmp.ne.s32.totalorder %s227, %s229
    %p236 = scmp.eq.s32.totalorder %s25, 1
    %p237 = por %p235, %p236
    %p238 = scmp.ne.s32.totalorder %s229, %s230
    %p239 = scmp.eq.s32.totalorder %s25, 0
    %p240 = por %p238, %p239
    %p241 = scmp.ne.s32.totalorder %s229, %s230
    %p242 = scmp.eq.s32.totalorder %s26, 1
    %p243 = por %p241, %p242
    %p245 = scmp.ne.s32.totalorder %s230, %s244
    %p246 = scmp.eq.s32.totalorder %s26, 0
    %p247 = por %p245, %p246
    %s249 = sadd.s32 %s248, 1
    %p252 = scmp.eq.s32.totalorder %s20, 1
    %p253 = scmp.ne.s32.totalorder %s248, %s250
    %p254 = scmp.eq.s32.totalorder %s20, 0
    %p255 = por %p253, %p254
    %p256 = scmp.ne.s32.totalorder %s248, %s250
    %p257 = scmp.eq.s32.totalorder %s25, 1
    %p258 = por %p256, %p257
    %p259 = scmp.ne.s32.totalorder %s250, %s251
    %p260 = scmp.eq.s32.totalorder %s25, 0
    %p261 = por %p259, %p260
    %p262 = scmp.ne.s32.totalorder %s250, %s251
    %p263 = scmp.eq.s32.totalorder %s26, 1
    %p264 = por %p262, %p263
    %p266 = scmp.ne.s32.totalorder %s251, %s265
    %p267 = scmp.eq.s32.totalorder %s26, 0
    %p268 = por %p266, %p267
    %s270 = sadd.s32 %s269, 1
    %p273 = scmp.eq.s32.totalorder %s20, 1
    %p274 = scmp.ne.s32.totalorder %s269, %s271
    %p275 = scmp.eq.s32.totalorder %s20, 0
    %p276 = por %p274, %p275
    %p277 = scmp.ne.s32.totalorder %s269, %s271
    %p278 = scmp.eq.s32.totalorder %s25, 1
    %p279 = por %p277, %p278
    %p280 = scmp.ne.s32.totalorder %s271, %s272
    %p281 = scmp.eq.s32.totalorder %s25, 0
    %p282 = por %p280, %p281
    %p283 = scmp.ne.s32.totalorder %s271, %s272
    %p284 = scmp.eq.s32.totalorder %s26, 1
    %p285 = por %p283, %p284
    %p287 = scmp.ne.s32.totalorder %s272, %s286
    %p288 = scmp.eq.s32.totalorder %s26, 0
    %p289 = por %p287, %p288
    %s290 = ssub.s32 %s20, %s27
    %p291 = scmp.eq.s32.totalorder %s290, 0
    %s293 = sadd.s32 %s292, 1
    %s294 = scalar_select %p291, %s292, %s293
    %p297 = pneg %p291
    %p298 = scmp.eq.s32.totalorder %s20, 1
    %p299 = por %p297, %p298
    %p300 = scmp.ne.s32.totalorder %s292, %s295
    %p301 = scmp.eq.s32.totalorder %s20, 0
    %p302 = por %p300, %p301
    %p303 = scmp.ne.s32.totalorder %s292, %s295
    %p304 = scmp.eq.s32.totalorder %s25, 1
    %p305 = por %p303, %p304
    %p306 = scmp.ne.s32.totalorder %s295, %s296
    %p307 = scmp.eq.s32.totalorder %s25, 0
    %p308 = por %p306, %p307
    %p309 = scmp.ne.s32.totalorder %s295, %s296
    %p310 = scmp.eq.s32.totalorder %s26, 1
    %p311 = por %p309, %p310
    %p313 = scmp.ne.s32.totalorder %s296, %s312
    %p314 = scmp.eq.s32.totalorder %s26, 0
    %p315 = por %p313, %p314
    %p316 = scmp.le.s32.totalorder 1, %s20
    %p317 = scmp.lt.s32.totalorder %s20, 3
    %p318 = pnand %p316, %p317
    %p319 = pneg %p318
    // Predicated region
    $region9: #{up_forward.1} parent=5 // pred_check
      _
    $region10: #{up_forward.1} parent=5 // pred_check_branch
      %321 = sbr.rel (%p318) target = $region12
    $region11: #{up_forward.1} parent=5 // pred_region
      %s322 = ssub.s32 %s20, 1
      // Predicated region
      $region13: #{up_forward.1} parent=11 // pred_check
        %p323 = pneg %p93
      $region14: #{up_forward.1} parent=11 // pred_check_branch
        %325 = sbr.rel (%p323) target = $region16
      $region15: #{up_forward.1} parent=11 // pred_region
        _
      $region16: #{up_forward.1} parent=11 // pred_fallthru
        _
      // Predicated region
      $region17: #{up_forward.1} parent=11 // pred_check
        %p326 = pneg %p114
      $region18: #{up_forward.1} parent=11 // pred_check_branch
        %328 = sbr.rel (%p326) target = $region20
      $region19: #{up_forward.1} parent=11 // pred_region
        _
      $region20: #{up_forward.1} parent=11 // pred_fallthru
        _
      // Predicated region
      $region21: #{up_forward.1} parent=11 // pred_check
        %p329 = pneg %p135
      $region22: #{up_forward.1} parent=11 // pred_check_branch
        %331 = sbr.rel (%p329) target = $region24
      $region23: #{up_forward.1} parent=11 // pred_region
        _
      $region24: #{up_forward.1} parent=11 // pred_fallthru
        _
      // Predicated region
      $region25: #{up_forward.1} parent=11 // pred_check
        %p332 = pneg %p156
      $region26: #{up_forward.1} parent=11 // pred_check_branch
        %334 = sbr.rel (%p332) target = $region28
      $region27: #{up_forward.1} parent=11 // pred_region
        _
      $region28: #{up_forward.1} parent=11 // pred_fallthru
        _
      // Predicated region
      $region29: #{up_forward.1} parent=11 // pred_check
        %p335 = pneg %p177
      $region30: #{up_forward.1} parent=11 // pred_check_branch
        %337 = sbr.rel (%p335) target = $region32
      $region31: #{up_forward.1} parent=11 // pred_region
        _
      $region32: #{up_forward.1} parent=11 // pred_fallthru
        _
      // Predicated region
      $region33: #{up_forward.1} parent=11 // pred_check
        %p338 = pneg %p198
      $region34: #{up_forward.1} parent=11 // pred_check_branch
        %340 = sbr.rel (%p338) target = $region36
      $region35: #{up_forward.1} parent=11 // pred_region
        _
      $region36: #{up_forward.1} parent=11 // pred_fallthru
        _
      // Predicated region
      $region37: #{up_forward.1} parent=11 // pred_check
        %p341 = pneg %p219
      $region38: #{up_forward.1} parent=11 // pred_check_branch
        %343 = sbr.rel (%p341) target = $region40
      $region39: #{up_forward.1} parent=11 // pred_region
        _
      $region40: #{up_forward.1} parent=11 // pred_fallthru
        _
      // Predicated region
      $region41: #{up_forward.1} parent=11 // pred_check
        %p344 = pneg %p240
      $region42: #{up_forward.1} parent=11 // pred_check_branch
        %346 = sbr.rel (%p344) target = $region44
      $region43: #{up_forward.1} parent=11 // pred_region
        _
      $region44: #{up_forward.1} parent=11 // pred_fallthru
        _
      // Predicated region
      $region45: #{up_forward.1} parent=11 // pred_check
        %p347 = pneg %p261
      $region46: #{up_forward.1} parent=11 // pred_check_branch
        %349 = sbr.rel (%p347) target = $region48
      $region47: #{up_forward.1} parent=11 // pred_region
        _
      $region48: #{up_forward.1} parent=11 // pred_fallthru
        _
      // Predicated region
      $region49: #{up_forward.1} parent=11 // pred_check
        %p350 = pneg %p282
      $region50: #{up_forward.1} parent=11 // pred_check_branch
        %352 = sbr.rel (%p350) target = $region52
      $region51: #{up_forward.1} parent=11 // pred_region
        _
      $region52: #{up_forward.1} parent=11 // pred_fallthru
        _
    $region12: #{up_forward.1} parent=5 // pred_fallthru
      _
    %p353 = scmp.lt.s32.totalorder %s20, 2
    // Predicated region
    $region53: #{up_forward.1} parent=5 // pred_check
      %p354 = pneg %p353
    $region54: #{up_forward.1} parent=5 // pred_check_branch
      %356 = sbr.rel (%p354) target = $region56
    $region55: #{up_forward.1} parent=5 // pred_region
      // Predicated region
      $region57: #{up_forward.1} parent=55 // pred_check
        %p357 = pneg %p40
      $region58: #{up_forward.1} parent=55 // pred_check_branch
        %359 = sbr.rel (%p357) target = $region60
      $region59: #{up_forward.1} parent=55 // pred_region
        %p360 = scmp.lt.s32.totalorder %s20, 1
        %s361 = scalar_select %p360, %s20, 1
        %s362 = smul.addr %s361, 32
        %s363 = smul.addr %s362, 4
        %s364 = scalar_lea.vmem %s0, %s363
      $region60: #{up_forward.1} parent=55 // pred_fallthru
        _
      // Predicated region
      $region61: #{up_forward.1} parent=55 // pred_check
        %p365 = pneg %p66
      $region62: #{up_forward.1} parent=55 // pred_check_branch
        %367 = sbr.rel (%p365) target = $region64
      $region63: #{up_forward.1} parent=55 // pred_region
        %p368 = scmp.lt.s32.totalorder %s20, 1
        %s369 = scalar_select %p368, %s20, 1
        %s370 = smul.addr %s369, 32
        %s371 = smul.addr %s370, 4
        %s372 = scalar_lea.vmem %s1, %s371
      $region64: #{up_forward.1} parent=55 // pred_fallthru
        _
    $region56: #{up_forward.1} parent=5 // pred_fallthru
      _
    %p373 = scmp.le.s32.totalorder 1, %s20
    %p374 = scmp.lt.s32.totalorder %s20, 3
    %p375 = pnand %p373, %p374
    %p376 = pneg %p375
    // Predicated region
    $region65: #{up_forward.1} parent=5 // pred_check
      _
    $region66: #{up_forward.1} parent=5 // pred_check_branch
      %378 = sbr.rel (%p375) target = $region68
    $region67: #{up_forward.1} parent=5 // pred_region
      %s379 = ssub.s32 %s20, 1
      %p380 = scmp.lt.s32.totalorder %s25, 1
      %s381 = scalar_select %p380, %s25, 1
      %s382 = smul.addr %s381, 32
      %s383 = smul.addr %s382, 4
      %s384 = scalar_lea.vmem %s0, %s383
      %p385 = pneg %p46
      %p386 = pneg %p43
      %p387 = scmp.lt.s32.totalorder %s25, 1
      %s388 = scalar_select %p387, %s25, 1
      %s389 = smul.addr %s388, 32
      %s390 = smul.addr %s389, 4
      %s391 = scalar_lea.vmem %s1, %s390
      %p392 = pneg %p72
      %p393 = pneg %p69
      %p394 = pneg %p93
      %p395 = pneg %p90
      %p396 = pneg %p114
      %p397 = pneg %p111
      %p398 = pneg %p135
      %p399 = pneg %p132
      %p400 = pneg %p156
      %p401 = pneg %p153
      %p402 = pneg %p177
      %p403 = pneg %p174
      %p404 = pneg %p198
      %p405 = pneg %p195
      %p406 = pneg %p219
      %p407 = pneg %p216
      %p408 = pneg %p240
      %p409 = pneg %p237
      %p410 = pneg %p261
      %p411 = pneg %p258
      %p412 = pneg %p282
      %p413 = pneg %p279
      %p414 = pneg %p308
      %p415 = pneg %p305
      %p416 = scmp.lt.s32.totalorder %s25, 1
      %s417 = scalar_select %p416, %s25, 1
      %s418 = smul.addr %s417, 32
      %s419 = smul.addr %s418, 8
      %s420 = scalar_lea.vmem %s12, %s419
      %p421 = scmp.lt.s32.totalorder %s25, 1
      %s422 = scalar_select %p421, %s25, 1
      %s423 = smul.addr %s422, 32
      %s424 = smul.addr %s423, 4
      %s425 = scalar_lea.vmem %s0, %s424
      %p426 = scmp.lt.s32.totalorder %s25, 1
      %s427 = scalar_select %p426, %s25, 1
      %s428 = smul.addr %s427, 32
      %s429 = smul.addr %s428, 4
      %s430 = scalar_lea.vmem %s1, %s429
      %p431 = scmp.lt.s32.totalorder %s25, 1
      %s432 = scalar_select %p431, %s25, 1
      %s433 = smul.addr %s432, 32
      %s434 = smul.addr %s433, 8
      %s435 = scalar_lea.vmem %s12, %s434
      %v437 = vld [vmem:[%s425] sm:$0xf]
      %v438 = vld [vmem:[%s425 + $0x4] sm:$0xf]
      %v439 = vld [vmem:[%s425 + $0x8] sm:$0xf]
      %v440 = vld [vmem:[%s425 + $0xc] sm:$0xf]
      %v441 = vld [vmem:[%s425 + $0x10] sm:$0xf]
      %v442 = vld [vmem:[%s425 + $0x14] sm:$0xf]
      %v443 = vld [vmem:[%s425 + $0x18] sm:$0xf]
      %v444 = vld [vmem:[%s425 + $0x1c] sm:$0xf]
      %v445 = vld [vmem:[%s425 + $0x20] sm:$0xf]
      %v446 = vld [vmem:[%s425 + $0x24] sm:$0xf]
      %v447 = vld [vmem:[%s425 + $0x28] sm:$0xf]
      %v448 = vld [vmem:[%s425 + $0x2c] sm:$0xf]
      %v449 = vld [vmem:[%s425 + $0x30] sm:$0xf]
      %v450 = vld [vmem:[%s425 + $0x34] sm:$0xf]
      %v451 = vld [vmem:[%s425 + $0x38] sm:$0xf]
      %v452 = vld [vmem:[%s425 + $0x3c] sm:$0xf]
      %v453 = vld [vmem:[%s425 + $0x40] sm:$0xf]
      %v454 = vld [vmem:[%s425 + $0x44] sm:$0xf]
      %v455 = vld [vmem:[%s425 + $0x48] sm:$0xf]
      %v456 = vld [vmem:[%s425 + $0x4c] sm:$0xf]
      %v457 = vld [vmem:[%s425 + $0x50] sm:$0xf]
      %v458 = vld [vmem:[%s425 + $0x54] sm:$0xf]
      %v459 = vld [vmem:[%s425 + $0x58] sm:$0xf]
      %v460 = vld [vmem:[%s425 + $0x5c] sm:$0xf]
      %v461 = vld [vmem:[%s425 + $0x60] sm:$0xf]
      %v462 = vld [vmem:[%s425 + $0x64] sm:$0xf]
      %v463 = vld [vmem:[%s425 + $0x68] sm:$0xf]
      %v464 = vld [vmem:[%s425 + $0x6c] sm:$0xf]
      %v465 = vld [vmem:[%s425 + $0x70] sm:$0xf]
      %v466 = vld [vmem:[%s425 + $0x74] sm:$0xf]
      %v467 = vld [vmem:[%s425 + $0x78] sm:$0xf]
      %v468 = vld [vmem:[%s425 + $0x7c] sm:$0xf]
      %v469 = vld [vmem:[%s430] sm:$0xf]
      %v470 = vld [vmem:[%s430 + $0x4] sm:$0xf]
      %v471 = vld [vmem:[%s430 + $0x8] sm:$0xf]
      %v472 = vld [vmem:[%s430 + $0xc] sm:$0xf]
      %v473 = vld [vmem:[%s430 + $0x10] sm:$0xf]
      %v474 = vld [vmem:[%s430 + $0x14] sm:$0xf]
      %v475 = vld [vmem:[%s430 + $0x18] sm:$0xf]
      %v476 = vld [vmem:[%s430 + $0x1c] sm:$0xf]
      %v477 = vld [vmem:[%s430 + $0x20] sm:$0xf]
      %v478 = vld [vmem:[%s430 + $0x24] sm:$0xf]
      %v479 = vld [vmem:[%s430 + $0x28] sm:$0xf]
      %v480 = vld [vmem:[%s430 + $0x2c] sm:$0xf]
      %v481 = vld [vmem:[%s430 + $0x30] sm:$0xf]
      %v482 = vld [vmem:[%s430 + $0x34] sm:$0xf]
      %v483 = vld [vmem:[%s430 + $0x38] sm:$0xf]
      %v484 = vld [vmem:[%s430 + $0x3c] sm:$0xf]
      %v485 = vld [vmem:[%s430 + $0x40] sm:$0xf]
      %v486 = vld [vmem:[%s430 + $0x44] sm:$0xf]
      %v487 = vld [vmem:[%s430 + $0x48] sm:$0xf]
      %v488 = vld [vmem:[%s430 + $0x4c] sm:$0xf]
      %v489 = vld [vmem:[%s430 + $0x50] sm:$0xf]
      %v490 = vld [vmem:[%s430 + $0x54] sm:$0xf]
      %v491 = vld [vmem:[%s430 + $0x58] sm:$0xf]
      %v492 = vld [vmem:[%s430 + $0x5c] sm:$0xf]
      %v493 = vld [vmem:[%s430 + $0x60] sm:$0xf]
      %v494 = vld [vmem:[%s430 + $0x64] sm:$0xf]
      %v495 = vld [vmem:[%s430 + $0x68] sm:$0xf]
      %v496 = vld [vmem:[%s430 + $0x6c] sm:$0xf]
      %v497 = vld [vmem:[%s430 + $0x70] sm:$0xf]
      %v498 = vld [vmem:[%s430 + $0x74] sm:$0xf]
      %v499 = vld [vmem:[%s430 + $0x78] sm:$0xf]
      %v500 = vld [vmem:[%s430 + $0x7c] sm:$0xf]
      %v533 = vunpack.c.l.b16 %v469
      %v534 = vunpack.c.l.b16 %v470
      %v535 = vunpack.c.l.b16 %v471
      %v536 = vunpack.c.l.b16 %v472
      %v537 = vunpack.c.l.b16 %v473
      %v538 = vunpack.c.l.b16 %v474
      %v539 = vunpack.c.l.b16 %v475
      %v540 = vunpack.c.l.b16 %v476
      %v541 = vunpack.c.l.b16 %v477
      %v542 = vunpack.c.l.b16 %v478
      %v543 = vunpack.c.l.b16 %v479
      %v544 = vunpack.c.l.b16 %v480
      %v545 = vunpack.c.l.b16 %v481
      %v546 = vunpack.c.l.b16 %v482
      %v547 = vunpack.c.l.b16 %v483
      %v548 = vunpack.c.l.b16 %v484
      %v549 = vunpack.c.l.b16 %v485
      %v550 = vunpack.c.l.b16 %v486
      %v551 = vunpack.c.l.b16 %v487
      %v552 = vunpack.c.l.b16 %v488
      %v553 = vunpack.c.l.b16 %v489
      %v554 = vunpack.c.l.b16 %v490
      %v555 = vunpack.c.l.b16 %v491
      %v556 = vunpack.c.l.b16 %v492
      %v557 = vunpack.c.l.b16 %v493
      %v558 = vunpack.c.l.b16 %v494
      %v559 = vunpack.c.l.b16 %v495
      %v560 = vunpack.c.l.b16 %v496
      %v561 = vunpack.c.l.b16 %v497
      %v562 = vunpack.c.l.b16 %v498
      %v563 = vunpack.c.l.b16 %v499
      %v564 = vunpack.c.l.b16 %v500
      %v565 = vpack.c.b16 %v534, %v533
      %v566 = vpack.c.b16 %v536, %v535
      %v567 = vpack.c.b16 %v538, %v537
      %v568 = vpack.c.b16 %v540, %v539
      %v569 = vpack.c.b16 %v542, %v541
      %v570 = vpack.c.b16 %v544, %v543
      %v571 = vpack.c.b16 %v546, %v545
      %v572 = vpack.c.b16 %v548, %v547
      %v573 = vpack.c.b16 %v550, %v549
      %v574 = vpack.c.b16 %v552, %v551
      %v575 = vpack.c.b16 %v554, %v553
      %v576 = vpack.c.b16 %v556, %v555
      %v577 = vpack.c.b16 %v558, %v557
      %v578 = vpack.c.b16 %v560, %v559
      %v579 = vpack.c.b16 %v562, %v561
      %v580 = vpack.c.b16 %v564, %v563
      %v629 = vunpack.c.l.b16 %v437
      %v630 = vunpack.c.l.b16 %v438
      %v631 = vunpack.c.l.b16 %v439
      %v632 = vunpack.c.l.b16 %v440
      %v633 = vunpack.c.l.b16 %v441
      %v634 = vunpack.c.l.b16 %v442
      %v635 = vunpack.c.l.b16 %v443
      %v636 = vunpack.c.l.b16 %v444
      %v637 = vunpack.c.l.b16 %v445
      %v638 = vunpack.c.l.b16 %v446
      %v639 = vunpack.c.l.b16 %v447
      %v640 = vunpack.c.l.b16 %v448
      %v641 = vunpack.c.l.b16 %v449
      %v642 = vunpack.c.l.b16 %v450
      %v643 = vunpack.c.l.b16 %v451
      %v644 = vunpack.c.l.b16 %v452
      %v645 = vunpack.c.l.b16 %v453
      %v646 = vunpack.c.l.b16 %v454
      %v647 = vunpack.c.l.b16 %v455
      %v648 = vunpack.c.l.b16 %v456
      %v649 = vunpack.c.l.b16 %v457
      %v650 = vunpack.c.l.b16 %v458
      %v651 = vunpack.c.l.b16 %v459
      %v652 = vunpack.c.l.b16 %v460
      %v653 = vunpack.c.l.b16 %v461
      %v654 = vunpack.c.l.b16 %v462
      %v655 = vunpack.c.l.b16 %v463
      %v656 = vunpack.c.l.b16 %v464
      %v657 = vunpack.c.l.b16 %v465
      %v658 = vunpack.c.l.b16 %v466
      %v659 = vunpack.c.l.b16 %v467
      %v660 = vunpack.c.l.b16 %v468
      %v661 = vpack.c.b16 %v630, %v629
      %v662 = vpack.c.b16 %v632, %v631
      %v663 = vpack.c.b16 %v634, %v633
      %v664 = vpack.c.b16 %v636, %v635
      %v665 = vpack.c.b16 %v638, %v637
      %v666 = vpack.c.b16 %v640, %v639
      %v667 = vpack.c.b16 %v642, %v641
      %v668 = vpack.c.b16 %v644, %v643
      %v669 = vpack.c.b16 %v646, %v645
      %v670 = vpack.c.b16 %v648, %v647
      %v671 = vpack.c.b16 %v650, %v649
      %v672 = vpack.c.b16 %v652, %v651
      %v673 = vpack.c.b16 %v654, %v653
      %v674 = vpack.c.b16 %v656, %v655
      %v675 = vpack.c.b16 %v658, %v657
      %v676 = vpack.c.b16 %v660, %v659
      %v693 = vld [vmem:[%s2] sm:$0xf]
      %v694 = vld [vmem:[%s2 + $0x4] sm:$0xf]
      %v695 = vld [vmem:[%s2 + $0x8] sm:$0xf]
      %v696 = vld [vmem:[%s2 + $0xc] sm:$0xf]
      %v697 = vld [vmem:[%s2 + $0x10] sm:$0xf]
      %v698 = vld [vmem:[%s2 + $0x14] sm:$0xf]
      %v699 = vld [vmem:[%s2 + $0x18] sm:$0xf]
      %v700 = vld [vmem:[%s2 + $0x1c] sm:$0xf]
      %v701 = vld [vmem:[%s2 + $0x20] sm:$0xf]
      %v702 = vld [vmem:[%s2 + $0x24] sm:$0xf]
      %v703 = vld [vmem:[%s2 + $0x28] sm:$0xf]
      %v704 = vld [vmem:[%s2 + $0x2c] sm:$0xf]
      %v705 = vld [vmem:[%s2 + $0x30] sm:$0xf]
      %v706 = vld [vmem:[%s2 + $0x34] sm:$0xf]
      %v707 = vld [vmem:[%s2 + $0x38] sm:$0xf]
      %v708 = vld [vmem:[%s2 + $0x3c] sm:$0xf]
      %v709 = vld [vmem:[%s2 + $0x40] sm:$0xf]
      %v710 = vld [vmem:[%s2 + $0x44] sm:$0xf]
      %v711 = vld [vmem:[%s2 + $0x48] sm:$0xf]
      %v712 = vld [vmem:[%s2 + $0x4c] sm:$0xf]
      %v713 = vld [vmem:[%s2 + $0x50] sm:$0xf]
      %v714 = vld [vmem:[%s2 + $0x54] sm:$0xf]
      %v715 = vld [vmem:[%s2 + $0x58] sm:$0xf]
      %v716 = vld [vmem:[%s2 + $0x5c] sm:$0xf]
      %v717 = vld [vmem:[%s2 + $0x60] sm:$0xf]
      %v718 = vld [vmem:[%s2 + $0x64] sm:$0xf]
      %v719 = vld [vmem:[%s2 + $0x68] sm:$0xf]
      %v720 = vld [vmem:[%s2 + $0x6c] sm:$0xf]
      %v721 = vld [vmem:[%s2 + $0x70] sm:$0xf]
      %v722 = vld [vmem:[%s2 + $0x74] sm:$0xf]
      %v723 = vld [vmem:[%s2 + $0x78] sm:$0xf]
      %v724 = vld [vmem:[%s2 + $0x7c] sm:$0xf]
      %v725 = vld [vmem:[%s3] sm:$0x1]
      %v727 = vperm.slane %v725, 0
      %v761 = vunpack.c.l.b16 %v693
      %v762 = vunpack.c.l.b16 %v694
      %v763 = vunpack.c.l.b16 %v695
      %v764 = vunpack.c.l.b16 %v696
      %v765 = vunpack.c.l.b16 %v697
      %v766 = vunpack.c.l.b16 %v698
      %v767 = vunpack.c.l.b16 %v699
      %v768 = vunpack.c.l.b16 %v700
      %v769 = vunpack.c.l.b16 %v701
      %v770 = vunpack.c.l.b16 %v702
      %v771 = vunpack.c.l.b16 %v703
      %v772 = vunpack.c.l.b16 %v704
      %v773 = vunpack.c.l.b16 %v705
      %v774 = vunpack.c.l.b16 %v706
      %v775 = vunpack.c.l.b16 %v707
      %v776 = vunpack.c.l.b16 %v708
      %v777 = vunpack.c.l.b16 %v709
      %v778 = vunpack.c.l.b16 %v710
      %v779 = vunpack.c.l.b16 %v711
      %v780 = vunpack.c.l.b16 %v712
      %v781 = vunpack.c.l.b16 %v713
      %v782 = vunpack.c.l.b16 %v714
      %v783 = vunpack.c.l.b16 %v715
      %v784 = vunpack.c.l.b16 %v716
      %v785 = vunpack.c.l.b16 %v717
      %v786 = vunpack.c.l.b16 %v718
      %v787 = vunpack.c.l.b16 %v719
      %v788 = vunpack.c.l.b16 %v720
      %v789 = vunpack.c.l.b16 %v721
      %v790 = vunpack.c.l.b16 %v722
      %v791 = vunpack.c.l.b16 %v723
      %v792 = vunpack.c.l.b16 %v724
      %v793 = vpack.c.b16 %v762, %v761
      %v794 = vpack.c.b16 %v764, %v763
      %v795 = vpack.c.b16 %v766, %v765
      %v796 = vpack.c.b16 %v768, %v767
      %v797 = vpack.c.b16 %v770, %v769
      %v798 = vpack.c.b16 %v772, %v771
      %v799 = vpack.c.b16 %v774, %v773
      %v800 = vpack.c.b16 %v776, %v775
      %v801 = vpack.c.b16 %v778, %v777
      %v802 = vpack.c.b16 %v780, %v779
      %v803 = vpack.c.b16 %v782, %v781
      %v804 = vpack.c.b16 %v784, %v783
      %v805 = vpack.c.b16 %v786, %v785
      %v806 = vpack.c.b16 %v788, %v787
      %v807 = vpack.c.b16 %v790, %v789
      %v808 = vpack.c.b16 %v792, %v791
      %825 = vmatpush.bf16.msra.mxu0 %v800
      %826 = vmatpush.bf16.msra.mxu0 %v799
      %827 = vmatpush.bf16.msra.mxu0 %v798
      %828 = vmatpush.bf16.msra.mxu0 %v797
      %829 = vmatpush.bf16.msra.mxu0 %v796
      %830 = vmatpush.bf16.msra.mxu0 %v795
      %831 = vmatpush.bf16.msra.mxu0 %v794
      %832 = vmatpush.bf16.msra.mxu0 %v793
      %833 = vmatmul.bf16.gmra.mxu0 %v565
      %v834 = vpop.f32.mrf.mxu0
      %v835 = vadd.f32 %v727, %v834
      %v836 = vpop.f32.mrf.mxu0
      %v837 = vadd.f32 %v727, %v836
      %838 = vmatmul.bf16.gmra.mxu0 %v566
      %v839 = vpop.f32.mrf.mxu0
      %v840 = vadd.f32 %v727, %v839
      %v841 = vpop.f32.mrf.mxu0
      %v842 = vadd.f32 %v727, %v841
      %843 = vmatmul.bf16.gmra.mxu0 %v567
      %v844 = vpop.f32.mrf.mxu0
      %v845 = vadd.f32 %v727, %v844
      %v846 = vpop.f32.mrf.mxu0
      %v847 = vadd.f32 %v727, %v846
      %848 = vmatmul.bf16.gmra.mxu0 %v568
      %v849 = vpop.f32.mrf.mxu0
      %v850 = vadd.f32 %v727, %v849
      %v851 = vpop.f32.mrf.mxu0
      %v852 = vadd.f32 %v727, %v851
      %853 = vmatmul.bf16.gmra.mxu0 %v569
      %v854 = vpop.f32.mrf.mxu0
      %v855 = vadd.f32 %v727, %v854
      %v856 = vpop.f32.mrf.mxu0
      %v857 = vadd.f32 %v727, %v856
      %858 = vmatmul.bf16.gmra.mxu0 %v570
      %v859 = vpop.f32.mrf.mxu0
      %v860 = vadd.f32 %v727, %v859
      %v861 = vpop.f32.mrf.mxu0
      %v862 = vadd.f32 %v727, %v861
      %863 = vmatmul.bf16.gmra.mxu0 %v571
      %v864 = vpop.f32.mrf.mxu0
      %v865 = vadd.f32 %v727, %v864
      %v866 = vpop.f32.mrf.mxu0
      %v867 = vadd.f32 %v727, %v866
      %868 = vmatmul.bf16.gmra.mxu0 %v572
      %v869 = vpop.f32.mrf.mxu0
      %v870 = vadd.f32 %v727, %v869
      %v871 = vpop.f32.mrf.mxu0
      %v872 = vadd.f32 %v727, %v871
      %873 = vmatmul.bf16.gmra.mxu0 %v573
      %v874 = vpop.f32.mrf.mxu0
      %v875 = vadd.f32 %v727, %v874
      %v876 = vpop.f32.mrf.mxu0
      %v877 = vadd.f32 %v727, %v876
      %878 = vmatmul.bf16.gmra.mxu0 %v574
      %v879 = vpop.f32.mrf.mxu0
      %v880 = vadd.f32 %v727, %v879
      %v881 = vpop.f32.mrf.mxu0
      %v882 = vadd.f32 %v727, %v881
      %883 = vmatmul.bf16.gmra.mxu0 %v575
      %v884 = vpop.f32.mrf.mxu0
      %v885 = vadd.f32 %v727, %v884
      %v886 = vpop.f32.mrf.mxu0
      %v887 = vadd.f32 %v727, %v886
      %888 = vmatmul.bf16.gmra.mxu0 %v576
      %v889 = vpop.f32.mrf.mxu0
      %v890 = vadd.f32 %v727, %v889
      %v891 = vpop.f32.mrf.mxu0
      %v892 = vadd.f32 %v727, %v891
      %893 = vmatmul.bf16.gmra.mxu0 %v577
      %v894 = vpop.f32.mrf.mxu0
      %v895 = vadd.f32 %v727, %v894
      %v896 = vpop.f32.mrf.mxu0
      %v897 = vadd.f32 %v727, %v896
      %898 = vmatmul.bf16.gmra.mxu0 %v578
      %v899 = vpop.f32.mrf.mxu0
      %v900 = vadd.f32 %v727, %v899
      %v901 = vpop.f32.mrf.mxu0
      %v902 = vadd.f32 %v727, %v901
      %903 = vmatmul.bf16.gmra.mxu0 %v579
      %v904 = vpop.f32.mrf.mxu0
      %v905 = vadd.f32 %v727, %v904
      %v906 = vpop.f32.mrf.mxu0
      %v907 = vadd.f32 %v727, %v906
      %908 = vmatmul.bf16.gmra.mxu0 %v580
      %v909 = vpop.f32.mrf.mxu0
      %v910 = vadd.f32 %v727, %v909
      %v911 = vpop.f32.mrf.mxu0
      %v912 = vadd.f32 %v727, %v911
      %913 = vdwg.mxu0
      %914 = vmatpush.bf16.msra.mxu0 %v808
      %915 = vmatpush.bf16.msra.mxu0 %v807
      %916 = vmatpush.bf16.msra.mxu0 %v806
      %917 = vmatpush.bf16.msra.mxu0 %v805
      %918 = vmatpush.bf16.msra.mxu0 %v804
      %919 = vmatpush.bf16.msra.mxu0 %v803
      %920 = vmatpush.bf16.msra.mxu0 %v802
      %921 = vmatpush.bf16.msra.mxu0 %v801
      %922 = vmatmul.bf16.gmra.mxu0 %v661
      %v923 = vpop.f32.mrf.mxu0
      %v924 = vadd.f32 %v835, %v923
      %v925 = vpop.f32.mrf.mxu0
      %v926 = vadd.f32 %v837, %v925
      %927 = vmatmul.bf16.gmra.mxu0 %v662
      %v928 = vpop.f32.mrf.mxu0
      %v929 = vadd.f32 %v840, %v928
      %v930 = vpop.f32.mrf.mxu0
      %v931 = vadd.f32 %v842, %v930
      %932 = vmatmul.bf16.gmra.mxu0 %v663
      %v933 = vpop.f32.mrf.mxu0
      %v934 = vadd.f32 %v845, %v933
      %v935 = vpop.f32.mrf.mxu0
      %v936 = vadd.f32 %v847, %v935
      %937 = vmatmul.bf16.gmra.mxu0 %v664
      %v938 = vpop.f32.mrf.mxu0
      %v939 = vadd.f32 %v850, %v938
      %v940 = vpop.f32.mrf.mxu0
      %v941 = vadd.f32 %v852, %v940
      %942 = vmatmul.bf16.gmra.mxu0 %v665
      %v943 = vpop.f32.mrf.mxu0
      %v944 = vadd.f32 %v855, %v943
      %v945 = vpop.f32.mrf.mxu0
      %v946 = vadd.f32 %v857, %v945
      %947 = vmatmul.bf16.gmra.mxu0 %v666
      %v948 = vpop.f32.mrf.mxu0
      %v949 = vadd.f32 %v860, %v948
      %v950 = vpop.f32.mrf.mxu0
      %v951 = vadd.f32 %v862, %v950
      %952 = vmatmul.bf16.gmra.mxu0 %v667
      %v953 = vpop.f32.mrf.mxu0
      %v954 = vadd.f32 %v865, %v953
      %v955 = vpop.f32.mrf.mxu0
      %v956 = vadd.f32 %v867, %v955
      %957 = vmatmul.bf16.gmra.mxu0 %v668
      %v958 = vpop.f32.mrf.mxu0
      %v959 = vadd.f32 %v870, %v958
      %v960 = vpop.f32.mrf.mxu0
      %v961 = vadd.f32 %v872, %v960
      %962 = vmatmul.bf16.gmra.mxu0 %v669
      %v963 = vpop.f32.mrf.mxu0
      %v964 = vadd.f32 %v875, %v963
      %v965 = vpop.f32.mrf.mxu0
      %v966 = vadd.f32 %v877, %v965
      %967 = vmatmul.bf16.gmra.mxu0 %v670
      %v968 = vpop.f32.mrf.mxu0
      %v969 = vadd.f32 %v880, %v968
      %v970 = vpop.f32.mrf.mxu0
      %v971 = vadd.f32 %v882, %v970
      %972 = vmatmul.bf16.gmra.mxu0 %v671
      %v973 = vpop.f32.mrf.mxu0
      %v974 = vadd.f32 %v885, %v973
      %v975 = vpop.f32.mrf.mxu0
      %v976 = vadd.f32 %v887, %v975
      %977 = vmatmul.bf16.gmra.mxu0 %v672
      %v978 = vpop.f32.mrf.mxu0
      %v979 = vadd.f32 %v890, %v978
      %v980 = vpop.f32.mrf.mxu0
      %v981 = vadd.f32 %v892, %v980
      %982 = vmatmul.bf16.gmra.mxu0 %v673
      %v983 = vpop.f32.mrf.mxu0
      %v984 = vadd.f32 %v895, %v983
      %v985 = vpop.f32.mrf.mxu0
      %v986 = vadd.f32 %v897, %v985
      %987 = vmatmul.bf16.gmra.mxu0 %v674
      %v988 = vpop.f32.mrf.mxu0
      %v989 = vadd.f32 %v900, %v988
      %v990 = vpop.f32.mrf.mxu0
      %v991 = vadd.f32 %v902, %v990
      %992 = vmatmul.bf16.gmra.mxu0 %v675
      %v993 = vpop.f32.mrf.mxu0
      %v994 = vadd.f32 %v905, %v993
      %v995 = vpop.f32.mrf.mxu0
      %v996 = vadd.f32 %v907, %v995
      %997 = vmatmul.bf16.gmra.mxu0 %v676
      %v998 = vpop.f32.mrf.mxu0
      %v999 = vadd.f32 %v910, %v998
      %v1000 = vpop.f32.mrf.mxu0
      %v1001 = vadd.f32 %v912, %v1000
      %1002 = vdwg.mxu0
      %v1003 = vmax.f32 %v924, 0.0
      %v1004 = vmax.f32 %v926, 0.0
      %v1005 = vmax.f32 %v929, 0.0
      %v1006 = vmax.f32 %v931, 0.0
      %v1007 = vmax.f32 %v934, 0.0
      %v1008 = vmax.f32 %v936, 0.0
      %v1009 = vmax.f32 %v939, 0.0
      %v1010 = vmax.f32 %v941, 0.0
      %v1011 = vmax.f32 %v944, 0.0
      %v1012 = vmax.f32 %v946, 0.0
      %v1013 = vmax.f32 %v949, 0.0
      %v1014 = vmax.f32 %v951, 0.0
      %v1015 = vmax.f32 %v954, 0.0
      %v1016 = vmax.f32 %v956, 0.0
      %v1017 = vmax.f32 %v959, 0.0
      %v1018 = vmax.f32 %v961, 0.0
      %v1019 = vmax.f32 %v964, 0.0
      %v1020 = vmax.f32 %v966, 0.0
      %v1021 = vmax.f32 %v969, 0.0
      %v1022 = vmax.f32 %v971, 0.0
      %v1023 = vmax.f32 %v974, 0.0
      %v1024 = vmax.f32 %v976, 0.0
      %v1025 = vmax.f32 %v979, 0.0
      %v1026 = vmax.f32 %v981, 0.0
      %v1027 = vmax.f32 %v984, 0.0
      %v1028 = vmax.f32 %v986, 0.0
      %v1029 = vmax.f32 %v989, 0.0
      %v1030 = vmax.f32 %v991, 0.0
      %v1031 = vmax.f32 %v994, 0.0
      %v1032 = vmax.f32 %v996, 0.0
      %v1033 = vmax.f32 %v999, 0.0
      %v1034 = vmax.f32 %v1001, 0.0
      %v1035 = vld [vmem:[%s4] sm:$0x1]
      %v1037 = vperm.slane %v1035, 0
      %v1039 = vmul.f32 %v1003, %v1037
      %v1040 = vmul.f32 %v1004, %v1037
      %v1041 = vmul.f32 %v1005, %v1037
      %v1042 = vmul.f32 %v1006, %v1037
      %v1043 = vmul.f32 %v1007, %v1037
      %v1044 = vmul.f32 %v1008, %v1037
      %v1045 = vmul.f32 %v1009, %v1037
      %v1046 = vmul.f32 %v1010, %v1037
      %v1047 = vmul.f32 %v1011, %v1037
      %v1048 = vmul.f32 %v1012, %v1037
      %v1049 = vmul.f32 %v1013, %v1037
      %v1050 = vmul.f32 %v1014, %v1037
      %v1051 = vmul.f32 %v1015, %v1037
      %v1052 = vmul.f32 %v1016, %v1037
      %v1053 = vmul.f32 %v1017, %v1037
      %v1054 = vmul.f32 %v1018, %v1037
      %v1055 = vmul.f32 %v1019, %v1037
      %v1056 = vmul.f32 %v1020, %v1037
      %v1057 = vmul.f32 %v1021, %v1037
      %v1058 = vmul.f32 %v1022, %v1037
      %v1059 = vmul.f32 %v1023, %v1037
      %v1060 = vmul.f32 %v1024, %v1037
      %v1061 = vmul.f32 %v1025, %v1037
      %v1062 = vmul.f32 %v1026, %v1037
      %v1063 = vmul.f32 %v1027, %v1037
      %v1064 = vmul.f32 %v1028, %v1037
      %v1065 = vmul.f32 %v1029, %v1037
      %v1066 = vmul.f32 %v1030, %v1037
      %v1067 = vmul.f32 %v1031, %v1037
      %v1068 = vmul.f32 %v1032, %v1037
      %v1069 = vmul.f32 %v1033, %v1037
      %v1070 = vmul.f32 %v1034, %v1037
      %vm1071 = vcmask 261120
      %v1072 = vsel %vm1071, %v1039, 0.0
      %1073 = vadd.xlane.f32.xlu0 %v1072
      %v1074 = vpop.xlane.xlu0 %1073
      %v1075 = vsel %vm1071, %v1040, 0.0
      %1076 = vadd.xlane.f32.xlu0 %v1075
      %v1077 = vpop.xlane.xlu0 %1076
      %v1078 = vsel %vm1071, %v1041, 0.0
      %1079 = vadd.xlane.f32.xlu0 %v1078
      %v1080 = vpop.xlane.xlu0 %1079
      %v1081 = vsel %vm1071, %v1042, 0.0
      %1082 = vadd.xlane.f32.xlu0 %v1081
      %v1083 = vpop.xlane.xlu0 %1082
      %v1084 = vsel %vm1071, %v1043, 0.0
      %1085 = vadd.xlane.f32.xlu0 %v1084
      %v1086 = vpop.xlane.xlu0 %1085
      %v1087 = vsel %vm1071, %v1044, 0.0
      %1088 = vadd.xlane.f32.xlu0 %v1087
      %v1089 = vpop.xlane.xlu0 %1088
      %v1090 = vsel %vm1071, %v1045, 0.0
      %1091 = vadd.xlane.f32.xlu0 %v1090
      %v1092 = vpop.xlane.xlu0 %1091
      %v1093 = vsel %vm1071, %v1046, 0.0
      %1094 = vadd.xlane.f32.xlu0 %v1093
      %v1095 = vpop.xlane.xlu0 %1094
      %v1096 = vsel %vm1071, %v1047, 0.0
      %1097 = vadd.xlane.f32.xlu0 %v1096
      %v1098 = vpop.xlane.xlu0 %1097
      %v1099 = vsel %vm1071, %v1048, 0.0
      %1100 = vadd.xlane.f32.xlu0 %v1099
      %v1101 = vpop.xlane.xlu0 %1100
      %v1102 = vsel %vm1071, %v1049, 0.0
      %1103 = vadd.xlane.f32.xlu0 %v1102
      %v1104 = vpop.xlane.xlu0 %1103
      %v1105 = vsel %vm1071, %v1050, 0.0
      %1106 = vadd.xlane.f32.xlu0 %v1105
      %v1107 = vpop.xlane.xlu0 %1106
      %v1108 = vsel %vm1071, %v1051, 0.0
      %1109 = vadd.xlane.f32.xlu0 %v1108
      %v1110 = vpop.xlane.xlu0 %1109
      %v1111 = vsel %vm1071, %v1052, 0.0
      %1112 = vadd.xlane.f32.xlu0 %v1111
      %v1113 = vpop.xlane.xlu0 %1112
      %v1114 = vsel %vm1071, %v1053, 0.0
      %1115 = vadd.xlane.f32.xlu0 %v1114
      %v1116 = vpop.xlane.xlu0 %1115
      %v1117 = vsel %vm1071, %v1054, 0.0
      %1118 = vadd.xlane.f32.xlu0 %v1117
      %v1119 = vpop.xlane.xlu0 %1118
      %v1120 = vsel %vm1071, %v1055, 0.0
      %1121 = vadd.xlane.f32.xlu0 %v1120
      %v1122 = vpop.xlane.xlu0 %1121
      %v1123 = vsel %vm1071, %v1056, 0.0
      %1124 = vadd.xlane.f32.xlu0 %v1123
      %v1125 = vpop.xlane.xlu0 %1124
      %v1126 = vsel %vm1071, %v1057, 0.0
      %1127 = vadd.xlane.f32.xlu0 %v1126
      %v1128 = vpop.xlane.xlu0 %1127
      %v1129 = vsel %vm1071, %v1058, 0.0
      %1130 = vadd.xlane.f32.xlu0 %v1129
      %v1131 = vpop.xlane.xlu0 %1130
      %v1132 = vsel %vm1071, %v1059, 0.0
      %1133 = vadd.xlane.f32.xlu0 %v1132
      %v1134 = vpop.xlane.xlu0 %1133
      %v1135 = vsel %vm1071, %v1060, 0.0
      %1136 = vadd.xlane.f32.xlu0 %v1135
      %v1137 = vpop.xlane.xlu0 %1136
      %v1138 = vsel %vm1071, %v1061, 0.0
      %1139 = vadd.xlane.f32.xlu0 %v1138
      %v1140 = vpop.xlane.xlu0 %1139
      %v1141 = vsel %vm1071, %v1062, 0.0
      %1142 = vadd.xlane.f32.xlu0 %v1141
      %v1143 = vpop.xlane.xlu0 %1142
      %v1144 = vsel %vm1071, %v1063, 0.0
      %1145 = vadd.xlane.f32.xlu0 %v1144
      %v1146 = vpop.xlane.xlu0 %1145
      %v1147 = vsel %vm1071, %v1064, 0.0
      %1148 = vadd.xlane.f32.xlu0 %v1147
      %v1149 = vpop.xlane.xlu0 %1148
      %v1150 = vsel %vm1071, %v1065, 0.0
      %1151 = vadd.xlane.f32.xlu0 %v1150
      %v1152 = vpop.xlane.xlu0 %1151
      %v1153 = vsel %vm1071, %v1066, 0.0
      %1154 = vadd.xlane.f32.xlu0 %v1153
      %v1155 = vpop.xlane.xlu0 %1154
      %v1156 = vsel %vm1071, %v1067, 0.0
      %1157 = vadd.xlane.f32.xlu0 %v1156
      %v1158 = vpop.xlane.xlu0 %1157
      %v1159 = vsel %vm1071, %v1068, 0.0
      %1160 = vadd.xlane.f32.xlu0 %v1159
      %v1161 = vpop.xlane.xlu0 %1160
      %v1162 = vsel %vm1071, %v1069, 0.0
      %1163 = vadd.xlane.f32.xlu0 %v1162
      %v1164 = vpop.xlane.xlu0 %1163
      %v1165 = vsel %vm1071, %v1070, 0.0
      %1166 = vadd.xlane.f32.xlu0 %v1165
      %v1167 = vpop.xlane.xlu0 %1166
      %v1168 = vld [vmem:[#allocation4] sm:$0x1]
      %v1170 = vperm.slane %v1168, 0
      %v1172 = vadd.f32 %v1074, %v1170
      %v1173 = vadd.f32 %v1077, %v1170
      %v1174 = vadd.f32 %v1080, %v1170
      %v1175 = vadd.f32 %v1083, %v1170
      %v1176 = vadd.f32 %v1086, %v1170
      %v1177 = vadd.f32 %v1089, %v1170
      %v1178 = vadd.f32 %v1092, %v1170
      %v1179 = vadd.f32 %v1095, %v1170
      %v1180 = vadd.f32 %v1098, %v1170
      %v1181 = vadd.f32 %v1101, %v1170
      %v1182 = vadd.f32 %v1104, %v1170
      %v1183 = vadd.f32 %v1107, %v1170
      %v1184 = vadd.f32 %v1110, %v1170
      %v1185 = vadd.f32 %v1113, %v1170
      %v1186 = vadd.f32 %v1116, %v1170
      %v1187 = vadd.f32 %v1119, %v1170
      %v1188 = vadd.f32 %v1122, %v1170
      %v1189 = vadd.f32 %v1125, %v1170
      %v1190 = vadd.f32 %v1128, %v1170
      %v1191 = vadd.f32 %v1131, %v1170
      %v1192 = vadd.f32 %v1134, %v1170
      %v1193 = vadd.f32 %v1137, %v1170
      %v1194 = vadd.f32 %v1140, %v1170
      %v1195 = vadd.f32 %v1143, %v1170
      %v1196 = vadd.f32 %v1146, %v1170
      %v1197 = vadd.f32 %v1149, %v1170
      %v1198 = vadd.f32 %v1152, %v1170
      %v1199 = vadd.f32 %v1155, %v1170
      %v1200 = vadd.f32 %v1158, %v1170
      %v1201 = vadd.f32 %v1161, %v1170
      %v1202 = vadd.f32 %v1164, %v1170
      %v1203 = vadd.f32 %v1167, %v1170
      %v1204 = vmax.f32 %v1172, -30.0
      %v1205 = vmax.f32 %v1173, -30.0
      %v1206 = vmax.f32 %v1174, -30.0
      %v1207 = vmax.f32 %v1175, -30.0
      %v1208 = vmax.f32 %v1176, -30.0
      %v1209 = vmax.f32 %v1177, -30.0
      %v1210 = vmax.f32 %v1178, -30.0
      %v1211 = vmax.f32 %v1179, -30.0
      %v1212 = vmax.f32 %v1180, -30.0
      %v1213 = vmax.f32 %v1181, -30.0
      %v1214 = vmax.f32 %v1182, -30.0
      %v1215 = vmax.f32 %v1183, -30.0
      %v1216 = vmax.f32 %v1184, -30.0
      %v1217 = vmax.f32 %v1185, -30.0
      %v1218 = vmax.f32 %v1186, -30.0
      %v1219 = vmax.f32 %v1187, -30.0
      %v1220 = vmax.f32 %v1188, -30.0
      %v1221 = vmax.f32 %v1189, -30.0
      %v1222 = vmax.f32 %v1190, -30.0
      %v1223 = vmax.f32 %v1191, -30.0
      %v1224 = vmax.f32 %v1192, -30.0
      %v1225 = vmax.f32 %v1193, -30.0
      %v1226 = vmax.f32 %v1194, -30.0
      %v1227 = vmax.f32 %v1195, -30.0
      %v1228 = vmax.f32 %v1196, -30.0
      %v1229 = vmax.f32 %v1197, -30.0
      %v1230 = vmax.f32 %v1198, -30.0
      %v1231 = vmax.f32 %v1199, -30.0
      %v1232 = vmax.f32 %v1200, -30.0
      %v1233 = vmax.f32 %v1201, -30.0
      %v1234 = vmax.f32 %v1202, -30.0
      %v1235 = vmax.f32 %v1203, -30.0
      %v1236 = vmin.f32 %v1204, 30.0
      %v1237 = vmin.f32 %v1205, 30.0
      %v1238 = vmin.f32 %v1206, 30.0
      %v1239 = vmin.f32 %v1207, 30.0
      %v1240 = vmin.f32 %v1208, 30.0
      %v1241 = vmin.f32 %v1209, 30.0
      %v1242 = vmin.f32 %v1210, 30.0
      %v1243 = vmin.f32 %v1211, 30.0
      %v1244 = vmin.f32 %v1212, 30.0
      %v1245 = vmin.f32 %v1213, 30.0
      %v1246 = vmin.f32 %v1214, 30.0
      %v1247 = vmin.f32 %v1215, 30.0
      %v1248 = vmin.f32 %v1216, 30.0
      %v1249 = vmin.f32 %v1217, 30.0
      %v1250 = vmin.f32 %v1218, 30.0
      %v1251 = vmin.f32 %v1219, 30.0
      %v1252 = vmin.f32 %v1220, 30.0
      %v1253 = vmin.f32 %v1221, 30.0
      %v1254 = vmin.f32 %v1222, 30.0
      %v1255 = vmin.f32 %v1223, 30.0
      %v1256 = vmin.f32 %v1224, 30.0
      %v1257 = vmin.f32 %v1225, 30.0
      %v1258 = vmin.f32 %v1226, 30.0
      %v1259 = vmin.f32 %v1227, 30.0
      %v1260 = vmin.f32 %v1228, 30.0
      %v1261 = vmin.f32 %v1229, 30.0
      %v1262 = vmin.f32 %v1230, 30.0
      %v1263 = vmin.f32 %v1231, 30.0
      %v1264 = vmin.f32 %v1232, 30.0
      %v1265 = vmin.f32 %v1233, 30.0
      %v1266 = vmin.f32 %v1234, 30.0
      %v1267 = vmin.f32 %v1235, 30.0
      %v1268 = vsub.f32 0.0, %v1236
      %v1269 = vsub.f32 0.0, %v1237
      %v1270 = vsub.f32 0.0, %v1238
      %v1271 = vsub.f32 0.0, %v1239
      %v1272 = vsub.f32 0.0, %v1240
      %v1273 = vsub.f32 0.0, %v1241
      %v1274 = vsub.f32 0.0, %v1242
      %v1275 = vsub.f32 0.0, %v1243
      %v1276 = vsub.f32 0.0, %v1244
      %v1277 = vsub.f32 0.0, %v1245
      %v1278 = vsub.f32 0.0, %v1246
      %v1279 = vsub.f32 0.0, %v1247
      %v1280 = vsub.f32 0.0, %v1248
      %v1281 = vsub.f32 0.0, %v1249
      %v1282 = vsub.f32 0.0, %v1250
      %v1283 = vsub.f32 0.0, %v1251
      %v1284 = vsub.f32 0.0, %v1252
      %v1285 = vsub.f32 0.0, %v1253
      %v1286 = vsub.f32 0.0, %v1254
      %v1287 = vsub.f32 0.0, %v1255
      %v1288 = vsub.f32 0.0, %v1256
      %v1289 = vsub.f32 0.0, %v1257
      %v1290 = vsub.f32 0.0, %v1258
      %v1291 = vsub.f32 0.0, %v1259
      %v1292 = vsub.f32 0.0, %v1260
      %v1293 = vsub.f32 0.0, %v1261
      %v1294 = vsub.f32 0.0, %v1262
      %v1295 = vsub.f32 0.0, %v1263
      %v1296 = vsub.f32 0.0, %v1264
      %v1297 = vsub.f32 0.0, %v1265
      %v1298 = vsub.f32 0.0, %v1266
      %v1299 = vsub.f32 0.0, %v1267
      %v1300 = vmul.f32 %v1268, 1.442695
      %v1301 = vpow.pop %v1300
      %v1302 = vmul.f32 %v1269, 1.442695
      %v1303 = vpow.pop %v1302
      %v1304 = vmul.f32 %v1270, 1.442695
      %v1305 = vpow.pop %v1304
      %v1306 = vmul.f32 %v1271, 1.442695
      %v1307 = vpow.pop %v1306
      %v1308 = vmul.f32 %v1272, 1.442695
      %v1309 = vpow.pop %v1308
      %v1310 = vmul.f32 %v1273, 1.442695
      %v1311 = vpow.pop %v1310
      %v1312 = vmul.f32 %v1274, 1.442695
      %v1313 = vpow.pop %v1312
      %v1314 = vmul.f32 %v1275, 1.442695
      %v1315 = vpow.pop %v1314
      %v1316 = vmul.f32 %v1276, 1.442695
      %v1317 = vpow.pop %v1316
      %v1318 = vmul.f32 %v1277, 1.442695
      %v1319 = vpow.pop %v1318
      %v1320 = vmul.f32 %v1278, 1.442695
      %v1321 = vpow.pop %v1320
      %v1322 = vmul.f32 %v1279, 1.442695
      %v1323 = vpow.pop %v1322
      %v1324 = vmul.f32 %v1280, 1.442695
      %v1325 = vpow.pop %v1324
      %v1326 = vmul.f32 %v1281, 1.442695
      %v1327 = vpow.pop %v1326
      %v1328 = vmul.f32 %v1282, 1.442695
      %v1329 = vpow.pop %v1328
      %v1330 = vmul.f32 %v1283, 1.442695
      %v1331 = vpow.pop %v1330
      %v1332 = vmul.f32 %v1284, 1.442695
      %v1333 = vpow.pop %v1332
      %v1334 = vmul.f32 %v1285, 1.442695
      %v1335 = vpow.pop %v1334
      %v1336 = vmul.f32 %v1286, 1.442695
      %v1337 = vpow.pop %v1336
      %v1338 = vmul.f32 %v1287, 1.442695
      %v1339 = vpow.pop %v1338
      %v1340 = vmul.f32 %v1288, 1.442695
      %v1341 = vpow.pop %v1340
      %v1342 = vmul.f32 %v1289, 1.442695
      %v1343 = vpow.pop %v1342
      %v1344 = vmul.f32 %v1290, 1.442695
      %v1345 = vpow.pop %v1344
      %v1346 = vmul.f32 %v1291, 1.442695
      %v1347 = vpow.pop %v1346
      %v1348 = vmul.f32 %v1292, 1.442695
      %v1349 = vpow.pop %v1348
      %v1350 = vmul.f32 %v1293, 1.442695
      %v1351 = vpow.pop %v1350
      %v1352 = vmul.f32 %v1294, 1.442695
      %v1353 = vpow.pop %v1352
      %v1354 = vmul.f32 %v1295, 1.442695
      %v1355 = vpow.pop %v1354
      %v1356 = vmul.f32 %v1296, 1.442695
      %v1357 = vpow.pop %v1356
      %v1358 = vmul.f32 %v1297, 1.442695
      %v1359 = vpow.pop %v1358
      %v1360 = vmul.f32 %v1298, 1.442695
      %v1361 = vpow.pop %v1360
      %v1362 = vmul.f32 %v1299, 1.442695
      %v1363 = vpow.pop %v1362
      %v1364 = vadd.f32 %v1301, 1.0
      %v1365 = vadd.f32 %v1303, 1.0
      %v1366 = vadd.f32 %v1305, 1.0
      %v1367 = vadd.f32 %v1307, 1.0
      %v1368 = vadd.f32 %v1309, 1.0
      %v1369 = vadd.f32 %v1311, 1.0
      %v1370 = vadd.f32 %v1313, 1.0
      %v1371 = vadd.f32 %v1315, 1.0
      %v1372 = vadd.f32 %v1317, 1.0
      %v1373 = vadd.f32 %v1319, 1.0
      %v1374 = vadd.f32 %v1321, 1.0
      %v1375 = vadd.f32 %v1323, 1.0
      %v1376 = vadd.f32 %v1325, 1.0
      %v1377 = vadd.f32 %v1327, 1.0
      %v1378 = vadd.f32 %v1329, 1.0
      %v1379 = vadd.f32 %v1331, 1.0
      %v1380 = vadd.f32 %v1333, 1.0
      %v1381 = vadd.f32 %v1335, 1.0
      %v1382 = vadd.f32 %v1337, 1.0
      %v1383 = vadd.f32 %v1339, 1.0
      %v1384 = vadd.f32 %v1341, 1.0
      %v1385 = vadd.f32 %v1343, 1.0
      %v1386 = vadd.f32 %v1345, 1.0
      %v1387 = vadd.f32 %v1347, 1.0
      %v1388 = vadd.f32 %v1349, 1.0
      %v1389 = vadd.f32 %v1351, 1.0
      %v1390 = vadd.f32 %v1353, 1.0
      %v1391 = vadd.f32 %v1355, 1.0
      %v1392 = vadd.f32 %v1357, 1.0
      %v1393 = vadd.f32 %v1359, 1.0
      %v1394 = vadd.f32 %v1361, 1.0
      %v1395 = vadd.f32 %v1363, 1.0
      %v1396 = vrcp.pop %v1364
      %v1397 = vrcp.pop %v1365
      %v1398 = vrcp.pop %v1366
      %v1399 = vrcp.pop %v1367
      %v1400 = vrcp.pop %v1368
      %v1401 = vrcp.pop %v1369
      %v1402 = vrcp.pop %v1370
      %v1403 = vrcp.pop %v1371
      %v1404 = vrcp.pop %v1372
      %v1405 = vrcp.pop %v1373
      %v1406 = vrcp.pop %v1374
      %v1407 = vrcp.pop %v1375
      %v1408 = vrcp.pop %v1376
      %v1409 = vrcp.pop %v1377
      %v1410 = vrcp.pop %v1378
      %v1411 = vrcp.pop %v1379
      %v1412 = vrcp.pop %v1380
      %v1413 = vrcp.pop %v1381
      %v1414 = vrcp.pop %v1382
      %v1415 = vrcp.pop %v1383
      %v1416 = vrcp.pop %v1384
      %v1417 = vrcp.pop %v1385
      %v1418 = vrcp.pop %v1386
      %v1419 = vrcp.pop %v1387
      %v1420 = vrcp.pop %v1388
      %v1421 = vrcp.pop %v1389
      %v1422 = vrcp.pop %v1390
      %v1423 = vrcp.pop %v1391
      %v1424 = vrcp.pop %v1392
      %v1425 = vrcp.pop %v1393
      %v1426 = vrcp.pop %v1394
      %v1427 = vrcp.pop %v1395
      %v1428 = vunpack.c.l.bf16 %v437
      %v1429 = vunpack.c.l.bf16 %v438
      %v1430 = vunpack.c.l.bf16 %v439
      %v1431 = vunpack.c.l.bf16 %v440
      %v1432 = vunpack.c.l.bf16 %v441
      %v1433 = vunpack.c.l.bf16 %v442
      %v1434 = vunpack.c.l.bf16 %v443
      %v1435 = vunpack.c.l.bf16 %v444
      %v1436 = vunpack.c.l.bf16 %v445
      %v1437 = vunpack.c.l.bf16 %v446
      %v1438 = vunpack.c.l.bf16 %v447
      %v1439 = vunpack.c.l.bf16 %v448
      %v1440 = vunpack.c.l.bf16 %v449
      %v1441 = vunpack.c.l.bf16 %v450
      %v1442 = vunpack.c.l.bf16 %v451
      %v1443 = vunpack.c.l.bf16 %v452
      %v1444 = vunpack.c.l.bf16 %v453
      %v1445 = vunpack.c.l.bf16 %v454
      %v1446 = vunpack.c.l.bf16 %v455
      %v1447 = vunpack.c.l.bf16 %v456
      %v1448 = vunpack.c.l.bf16 %v457
      %v1449 = vunpack.c.l.bf16 %v458
      %v1450 = vunpack.c.l.bf16 %v459
      %v1451 = vunpack.c.l.bf16 %v460
      %v1452 = vunpack.c.l.bf16 %v461
      %v1453 = vunpack.c.l.bf16 %v462
      %v1454 = vunpack.c.l.bf16 %v463
      %v1455 = vunpack.c.l.bf16 %v464
      %v1456 = vunpack.c.l.bf16 %v465
      %v1457 = vunpack.c.l.bf16 %v466
      %v1458 = vunpack.c.l.bf16 %v467
      %v1459 = vunpack.c.l.bf16 %v468
      %1461 = vset.pattern.permute.xlu0 0
      %1462 = vperm.xlu0 %1461, %v1396
      %v1463 = vpop.permute.xlu0 %1462
      %1466 = vset.pattern.permute.xlu0 0
      %1467 = vperm.xlu0 %1466, %v1397
      %v1468 = vpop.permute.xlu0 %1467
      %1471 = vset.pattern.permute.xlu0 0
      %1472 = vperm.xlu0 %1471, %v1398
      %v1473 = vpop.permute.xlu0 %1472
      %1476 = vset.pattern.permute.xlu0 0
      %1477 = vperm.xlu0 %1476, %v1399
      %v1478 = vpop.permute.xlu0 %1477
      %1481 = vset.pattern.permute.xlu0 0
      %1482 = vperm.xlu0 %1481, %v1400
      %v1483 = vpop.permute.xlu0 %1482
      %1486 = vset.pattern.permute.xlu0 0
      %1487 = vperm.xlu0 %1486, %v1401
      %v1488 = vpop.permute.xlu0 %1487
      %1491 = vset.pattern.permute.xlu0 0
      %1492 = vperm.xlu0 %1491, %v1402
      %v1493 = vpop.permute.xlu0 %1492
      %1496 = vset.pattern.permute.xlu0 0
      %1497 = vperm.xlu0 %1496, %v1403
      %v1498 = vpop.permute.xlu0 %1497
      %1501 = vset.pattern.permute.xlu0 0
      %1502 = vperm.xlu0 %1501, %v1404
      %v1503 = vpop.permute.xlu0 %1502
      %1506 = vset.pattern.permute.xlu0 0
      %1507 = vperm.xlu0 %1506, %v1405
      %v1508 = vpop.permute.xlu0 %1507
      %1511 = vset.pattern.permute.xlu0 0
      %1512 = vperm.xlu0 %1511, %v1406
      %v1513 = vpop.permute.xlu0 %1512
      %1516 = vset.pattern.permute.xlu0 0
      %1517 = vperm.xlu0 %1516, %v1407
      %v1518 = vpop.permute.xlu0 %1517
      %1521 = vset.pattern.permute.xlu0 0
      %1522 = vperm.xlu0 %1521, %v1408
      %v1523 = vpop.permute.xlu0 %1522
      %1526 = vset.pattern.permute.xlu0 0
      %1527 = vperm.xlu0 %1526, %v1409
      %v1528 = vpop.permute.xlu0 %1527
      %1531 = vset.pattern.permute.xlu0 0
      %1532 = vperm.xlu0 %1531, %v1410
      %v1533 = vpop.permute.xlu0 %1532
      %1536 = vset.pattern.permute.xlu0 0
      %1537 = vperm.xlu0 %1536, %v1411
      %v1538 = vpop.permute.xlu0 %1537
      %1541 = vset.pattern.permute.xlu0 0
      %1542 = vperm.xlu0 %1541, %v1412
      %v1543 = vpop.permute.xlu0 %1542
      %1546 = vset.pattern.permute.xlu0 0
      %1547 = vperm.xlu0 %1546, %v1413
      %v1548 = vpop.permute.xlu0 %1547
      %1551 = vset.pattern.permute.xlu0 0
      %1552 = vperm.xlu0 %1551, %v1414
      %v1553 = vpop.permute.xlu0 %1552
      %1556 = vset.pattern.permute.xlu0 0
      %1557 = vperm.xlu0 %1556, %v1415
      %v1558 = vpop.permute.xlu0 %1557
      %1561 = vset.pattern.permute.xlu0 0
      %1562 = vperm.xlu0 %1561, %v1416
      %v1563 = vpop.permute.xlu0 %1562
      %1566 = vset.pattern.permute.xlu0 0
      %1567 = vperm.xlu0 %1566, %v1417
      %v1568 = vpop.permute.xlu0 %1567
      %1571 = vset.pattern.permute.xlu0 0
      %1572 = vperm.xlu0 %1571, %v1418
      %v1573 = vpop.permute.xlu0 %1572
      %1576 = vset.pattern.permute.xlu0 0
      %1577 = vperm.xlu0 %1576, %v1419
      %v1578 = vpop.permute.xlu0 %1577
      %1581 = vset.pattern.permute.xlu0 0
      %1582 = vperm.xlu0 %1581, %v1420
      %v1583 = vpop.permute.xlu0 %1582
      %1586 = vset.pattern.permute.xlu0 0
      %1587 = vperm.xlu0 %1586, %v1421
      %v1588 = vpop.permute.xlu0 %1587
      %1591 = vset.pattern.permute.xlu0 0
      %1592 = vperm.xlu0 %1591, %v1422
      %v1593 = vpop.permute.xlu0 %1592
      %1596 = vset.pattern.permute.xlu0 0
      %1597 = vperm.xlu0 %1596, %v1423
      %v1598 = vpop.permute.xlu0 %1597
      %1601 = vset.pattern.permute.xlu0 0
      %1602 = vperm.xlu0 %1601, %v1424
      %v1603 = vpop.permute.xlu0 %1602
      %1606 = vset.pattern.permute.xlu0 0
      %1607 = vperm.xlu0 %1606, %v1425
      %v1608 = vpop.permute.xlu0 %1607
      %1611 = vset.pattern.permute.xlu0 0
      %1612 = vperm.xlu0 %1611, %v1426
      %v1613 = vpop.permute.xlu0 %1612
      %1616 = vset.pattern.permute.xlu0 0
      %1617 = vperm.xlu0 %1616, %v1427
      %v1618 = vpop.permute.xlu0 %1617
      %v1620 = vmul.f32 %v1428, %v1463
      %v1621 = vmul.f32 %v1429, %v1468
      %v1622 = vmul.f32 %v1430, %v1473
      %v1623 = vmul.f32 %v1431, %v1478
      %v1624 = vmul.f32 %v1432, %v1483
      %v1625 = vmul.f32 %v1433, %v1488
      %v1626 = vmul.f32 %v1434, %v1493
      %v1627 = vmul.f32 %v1435, %v1498
      %v1628 = vmul.f32 %v1436, %v1503
      %v1629 = vmul.f32 %v1437, %v1508
      %v1630 = vmul.f32 %v1438, %v1513
      %v1631 = vmul.f32 %v1439, %v1518
      %v1632 = vmul.f32 %v1440, %v1523
      %v1633 = vmul.f32 %v1441, %v1528
      %v1634 = vmul.f32 %v1442, %v1533
      %v1635 = vmul.f32 %v1443, %v1538
      %v1636 = vmul.f32 %v1444, %v1543
      %v1637 = vmul.f32 %v1445, %v1548
      %v1638 = vmul.f32 %v1446, %v1553
      %v1639 = vmul.f32 %v1447, %v1558
      %v1640 = vmul.f32 %v1448, %v1563
      %v1641 = vmul.f32 %v1449, %v1568
      %v1642 = vmul.f32 %v1450, %v1573
      %v1643 = vmul.f32 %v1451, %v1578
      %v1644 = vmul.f32 %v1452, %v1583
      %v1645 = vmul.f32 %v1453, %v1588
      %v1646 = vmul.f32 %v1454, %v1593
      %v1647 = vmul.f32 %v1455, %v1598
      %v1648 = vmul.f32 %v1456, %v1603
      %v1649 = vmul.f32 %v1457, %v1608
      %v1650 = vmul.f32 %v1458, %v1613
      %v1651 = vmul.f32 %v1459, %v1618
      %v1652 = vpack.c.bf16 %v1620, %v1620
      %v1653 = vpack.c.bf16 %v1621, %v1621
      %v1654 = vpack.c.bf16 %v1622, %v1622
      %v1655 = vpack.c.bf16 %v1623, %v1623
      %v1656 = vpack.c.bf16 %v1624, %v1624
      %v1657 = vpack.c.bf16 %v1625, %v1625
      %v1658 = vpack.c.bf16 %v1626, %v1626
      %v1659 = vpack.c.bf16 %v1627, %v1627
      %v1660 = vpack.c.bf16 %v1628, %v1628
      %v1661 = vpack.c.bf16 %v1629, %v1629
      %v1662 = vpack.c.bf16 %v1630, %v1630
      %v1663 = vpack.c.bf16 %v1631, %v1631
      %v1664 = vpack.c.bf16 %v1632, %v1632
      %v1665 = vpack.c.bf16 %v1633, %v1633
      %v1666 = vpack.c.bf16 %v1634, %v1634
      %v1667 = vpack.c.bf16 %v1635, %v1635
      %v1668 = vpack.c.bf16 %v1636, %v1636
      %v1669 = vpack.c.bf16 %v1637, %v1637
      %v1670 = vpack.c.bf16 %v1638, %v1638
      %v1671 = vpack.c.bf16 %v1639, %v1639
      %v1672 = vpack.c.bf16 %v1640, %v1640
      %v1673 = vpack.c.bf16 %v1641, %v1641
      %v1674 = vpack.c.bf16 %v1642, %v1642
      %v1675 = vpack.c.bf16 %v1643, %v1643
      %v1676 = vpack.c.bf16 %v1644, %v1644
      %v1677 = vpack.c.bf16 %v1645, %v1645
      %v1678 = vpack.c.bf16 %v1646, %v1646
      %v1679 = vpack.c.bf16 %v1647, %v1647
      %v1680 = vpack.c.bf16 %v1648, %v1648
      %v1681 = vpack.c.bf16 %v1649, %v1649
      %v1682 = vpack.c.bf16 %v1650, %v1650
      %v1683 = vpack.c.bf16 %v1651, %v1651
      %v1716 = vunpack.c.l.b16 %v1652
      %v1717 = vunpack.c.l.b16 %v1653
      %v1718 = vunpack.c.l.b16 %v1654
      %v1719 = vunpack.c.l.b16 %v1655
      %v1720 = vunpack.c.l.b16 %v1656
      %v1721 = vunpack.c.l.b16 %v1657
      %v1722 = vunpack.c.l.b16 %v1658
      %v1723 = vunpack.c.l.b16 %v1659
      %v1724 = vunpack.c.l.b16 %v1660
      %v1725 = vunpack.c.l.b16 %v1661
      %v1726 = vunpack.c.l.b16 %v1662
      %v1727 = vunpack.c.l.b16 %v1663
      %v1728 = vunpack.c.l.b16 %v1664
      %v1729 = vunpack.c.l.b16 %v1665
      %v1730 = vunpack.c.l.b16 %v1666
      %v1731 = vunpack.c.l.b16 %v1667
      %v1732 = vunpack.c.l.b16 %v1668
      %v1733 = vunpack.c.l.b16 %v1669
      %v1734 = vunpack.c.l.b16 %v1670
      %v1735 = vunpack.c.l.b16 %v1671
      %v1736 = vunpack.c.l.b16 %v1672
      %v1737 = vunpack.c.l.b16 %v1673
      %v1738 = vunpack.c.l.b16 %v1674
      %v1739 = vunpack.c.l.b16 %v1675
      %v1740 = vunpack.c.l.b16 %v1676
      %v1741 = vunpack.c.l.b16 %v1677
      %v1742 = vunpack.c.l.b16 %v1678
      %v1743 = vunpack.c.l.b16 %v1679
      %v1744 = vunpack.c.l.b16 %v1680
      %v1745 = vunpack.c.l.b16 %v1681
      %v1746 = vunpack.c.l.b16 %v1682
      %v1747 = vunpack.c.l.b16 %v1683
      %v1748 = vpack.c.b16 %v1717, %v1716
      %v1749 = vpack.c.b16 %v1719, %v1718
      %v1750 = vpack.c.b16 %v1721, %v1720
      %v1751 = vpack.c.b16 %v1723, %v1722
      %v1752 = vpack.c.b16 %v1725, %v1724
      %v1753 = vpack.c.b16 %v1727, %v1726
      %v1754 = vpack.c.b16 %v1729, %v1728
      %v1755 = vpack.c.b16 %v1731, %v1730
      %v1756 = vpack.c.b16 %v1733, %v1732
      %v1757 = vpack.c.b16 %v1735, %v1734
      %v1758 = vpack.c.b16 %v1737, %v1736
      %v1759 = vpack.c.b16 %v1739, %v1738
      %v1760 = vpack.c.b16 %v1741, %v1740
      %v1761 = vpack.c.b16 %v1743, %v1742
      %v1762 = vpack.c.b16 %v1745, %v1744
      %v1763 = vpack.c.b16 %v1747, %v1746
      %v1764 = vld [vmem:[%s7] sm:$0x1]
      %v1765 = vld [vmem:[%s8] sm:$0x1]
      %v1767 = vunpack.c.l.b16 0
      %v1768 = vunpack.c.h.b16 0
      %v1769 = vpack.c.b16 %v1767, %v1767
      %v1770 = vpack.c.b16 %v1768, %v1768
      %v1771 = vpack.c.b16 %v533, %v1716
      %v1772 = vpack.c.b16 %v534, %v1717
      %v1773 = vpack.c.b16 %v535, %v1718
      %v1774 = vpack.c.b16 %v536, %v1719
      %v1775 = vpack.c.b16 %v537, %v1720
      %v1776 = vpack.c.b16 %v538, %v1721
      %v1777 = vpack.c.b16 %v539, %v1722
      %v1778 = vpack.c.b16 %v540, %v1723
      %v1779 = vpack.c.b16 %v541, %v1724
      %v1780 = vpack.c.b16 %v542, %v1725
      %v1781 = vpack.c.b16 %v543, %v1726
      %v1782 = vpack.c.b16 %v544, %v1727
      %v1783 = vpack.c.b16 %v545, %v1728
      %v1784 = vpack.c.b16 %v546, %v1729
      %v1785 = vpack.c.b16 %v547, %v1730
      %v1786 = vpack.c.b16 %v548, %v1731
      %v1787 = vpack.c.b16 %v549, %v1732
      %v1788 = vpack.c.b16 %v550, %v1733
      %v1789 = vpack.c.b16 %v551, %v1734
      %v1790 = vpack.c.b16 %v552, %v1735
      %v1791 = vpack.c.b16 %v553, %v1736
      %v1792 = vpack.c.b16 %v554, %v1737
      %v1793 = vpack.c.b16 %v555, %v1738
      %v1794 = vpack.c.b16 %v556, %v1739
      %v1795 = vpack.c.b16 %v557, %v1740
      %v1796 = vpack.c.b16 %v558, %v1741
      %v1797 = vpack.c.b16 %v559, %v1742
      %v1798 = vpack.c.b16 %v560, %v1743
      %v1799 = vpack.c.b16 %v561, %v1744
      %v1800 = vpack.c.b16 %v562, %v1745
      %v1801 = vpack.c.b16 %v563, %v1746
      %v1802 = vpack.c.b16 %v564, %v1747
      %s1837 = scalar_lea.vmem [#allocation2], 288
      %1838 = vst [vmem:[%s1837] sm:$0xff] %v1769
      %1839 = vst [vmem:[%s1837 + $0x8] sm:$0xff] %v1770
      %1840 = vst [vmem:[%s1837 + $0x10] sm:$0xff] %v1771
      %1841 = vst [vmem:[%s1837 + $0x18] sm:$0xff] %v1772
      %1842 = vst [vmem:[%s1837 + $0x20] sm:$0xff] %v1773
      %1843 = vst [vmem:[%s1837 + $0x28] sm:$0xff] %v1774
      %1844 = vst [vmem:[%s1837 + $0x30] sm:$0xff] %v1775
      %1845 = vst [vmem:[%s1837 + $0x38] sm:$0xff] %v1776
      %1846 = vst [vmem:[%s1837 + $0x40] sm:$0xff] %v1777
      %1847 = vst [vmem:[%s1837 + $0x48] sm:$0xff] %v1778
      %1848 = vst [vmem:[%s1837 + $0x50] sm:$0xff] %v1779
      %1849 = vst [vmem:[%s1837 + $0x58] sm:$0xff] %v1780
      %1850 = vst [vmem:[%s1837 + $0x60] sm:$0xff] %v1781
      %1851 = vst [vmem:[%s1837 + $0x68] sm:$0xff] %v1782
      %1852 = vst [vmem:[%s1837 + $0x70] sm:$0xff] %v1783
      %1853 = vst [vmem:[%s1837 + $0x78] sm:$0xff] %v1784
      %1854 = vst [vmem:[%s1837 + $0x80] sm:$0xff] %v1785
      %1855 = vst [vmem:[%s1837 + $0x88] sm:$0xff] %v1786
      %1856 = vst [vmem:[%s1837 + $0x90] sm:$0xff] %v1787
      %1857 = vst [vmem:[%s1837 + $0x98] sm:$0xff] %v1788
      %1858 = vst [vmem:[%s1837 + $0xa0] sm:$0xff] %v1789
      %1859 = vst [vmem:[%s1837 + $0xa8] sm:$0xff] %v1790
      %1860 = vst [vmem:[%s1837 + $0xb0] sm:$0xff] %v1791
      %1861 = vst [vmem:[%s1837 + $0xb8] sm:$0xff] %v1792
      %1862 = vst [vmem:[%s1837 + $0xc0] sm:$0xff] %v1793
      %1863 = vst [vmem:[%s1837 + $0xc8] sm:$0xff] %v1794
      %1864 = vst [vmem:[%s1837 + $0xd0] sm:$0xff] %v1795
      %1865 = vst [vmem:[%s1837 + $0xd8] sm:$0xff] %v1796
      %1866 = vst [vmem:[%s1837 + $0xe0] sm:$0xff] %v1797
      %1867 = vst [vmem:[%s1837 + $0xe8] sm:$0xff] %v1798
      %1868 = vst [vmem:[%s1837 + $0xf0] sm:$0xff] %v1799
      %1869 = vst [vmem:[%s1837 + $0xf8] sm:$0xff] %v1800
      %1870 = vst [vmem:[%s1837 + $0x100] sm:$0xff] %v1801
      %1871 = vst [vmem:[%s1837 + $0x108] sm:$0xff] %v1802
      %1872 = vst [vmem:[%s1837 + $0x110] sm:$0xff] %v1769
      %1873 = vst [vmem:[%s1837 + $0x118] sm:$0xff] %v1770
      %v1875 = vshrl.u32 0, 16
      %v1877 = vrot.slane %v1875, 7
      %v1878 = vshll.u32 0, 16
      %v1880 = vor.u32 %v1877, %v1878
      %v1882 = vshrl.u32 %v1748, 16
      %v1884 = vrot.slane %v1882, 7
      %v1885 = vshll.u32 %v1748, 16
      %v1887 = vor.u32 %v1884, %v1885
      %v1889 = vshrl.u32 %v565, 16
      %v1891 = vrot.slane %v1889, 7
      %v1892 = vshll.u32 %v565, 16
      %v1894 = vor.u32 %v1891, %v1892
      %v1896 = vshrl.u32 %v1749, 16
      %v1898 = vrot.slane %v1896, 7
      %v1899 = vshll.u32 %v1749, 16
      %v1901 = vor.u32 %v1898, %v1899
      %v1903 = vshrl.u32 %v566, 16
      %v1905 = vrot.slane %v1903, 7
      %v1906 = vshll.u32 %v566, 16
      %v1908 = vor.u32 %v1905, %v1906
      %v1910 = vshrl.u32 %v1750, 16
      %v1912 = vrot.slane %v1910, 7
      %v1913 = vshll.u32 %v1750, 16
      %v1915 = vor.u32 %v1912, %v1913
      %v1917 = vshrl.u32 %v567, 16
      %v1919 = vrot.slane %v1917, 7
      %v1920 = vshll.u32 %v567, 16
      %v1922 = vor.u32 %v1919, %v1920
      %v1924 = vshrl.u32 %v1751, 16
      %v1926 = vrot.slane %v1924, 7
      %v1927 = vshll.u32 %v1751, 16
      %v1929 = vor.u32 %v1926, %v1927
      %v1931 = vshrl.u32 %v568, 16
      %v1933 = vrot.slane %v1931, 7
      %v1934 = vshll.u32 %v568, 16
      %v1936 = vor.u32 %v1933, %v1934
      %v1938 = vshrl.u32 %v1752, 16
      %v1940 = vrot.slane %v1938, 7
      %v1941 = vshll.u32 %v1752, 16
      %v1943 = vor.u32 %v1940, %v1941
      %v1945 = vshrl.u32 %v569, 16
      %v1947 = vrot.slane %v1945, 7
      %v1948 = vshll.u32 %v569, 16
      %v1950 = vor.u32 %v1947, %v1948
      %v1952 = vshrl.u32 %v1753, 16
      %v1954 = vrot.slane %v1952, 7
      %v1955 = vshll.u32 %v1753, 16
      %v1957 = vor.u32 %v1954, %v1955
      %v1959 = vshrl.u32 %v570, 16
      %v1961 = vrot.slane %v1959, 7
      %v1962 = vshll.u32 %v570, 16
      %v1964 = vor.u32 %v1961, %v1962
      %v1966 = vshrl.u32 %v1754, 16
      %v1968 = vrot.slane %v1966, 7
      %v1969 = vshll.u32 %v1754, 16
      %v1971 = vor.u32 %v1968, %v1969
      %v1973 = vshrl.u32 %v571, 16
      %v1975 = vrot.slane %v1973, 7
      %v1976 = vshll.u32 %v571, 16
      %v1978 = vor.u32 %v1975, %v1976
      %v1980 = vshrl.u32 %v1755, 16
      %v1982 = vrot.slane %v1980, 7
      %v1983 = vshll.u32 %v1755, 16
      %v1985 = vor.u32 %v1982, %v1983
      %v1987 = vshrl.u32 %v572, 16
      %v1989 = vrot.slane %v1987, 7
      %v1990 = vshll.u32 %v572, 16
      %v1992 = vor.u32 %v1989, %v1990
      %v1994 = vshrl.u32 %v1756, 16
      %v1996 = vrot.slane %v1994, 7
      %v1997 = vshll.u32 %v1756, 16
      %v1999 = vor.u32 %v1996, %v1997
      %v2001 = vshrl.u32 %v573, 16
      %v2003 = vrot.slane %v2001, 7
      %v2004 = vshll.u32 %v573, 16
      %v2006 = vor.u32 %v2003, %v2004
      %v2008 = vshrl.u32 %v1757, 16
      %v2010 = vrot.slane %v2008, 7
      %v2011 = vshll.u32 %v1757, 16
      %v2013 = vor.u32 %v2010, %v2011
      %v2015 = vshrl.u32 %v574, 16
      %v2017 = vrot.slane %v2015, 7
      %v2018 = vshll.u32 %v574, 16
      %v2020 = vor.u32 %v2017, %v2018
      %v2022 = vshrl.u32 %v1758, 16
      %v2024 = vrot.slane %v2022, 7
      %v2025 = vshll.u32 %v1758, 16
      %v2027 = vor.u32 %v2024, %v2025
      %v2029 = vshrl.u32 %v575, 16
      %v2031 = vrot.slane %v2029, 7
      %v2032 = vshll.u32 %v575, 16
      %v2034 = vor.u32 %v2031, %v2032
      %v2036 = vshrl.u32 %v1759, 16
      %v2038 = vrot.slane %v2036, 7
      %v2039 = vshll.u32 %v1759, 16
      %v2041 = vor.u32 %v2038, %v2039
      %v2043 = vshrl.u32 %v576, 16
      %v2045 = vrot.slane %v2043, 7
      %v2046 = vshll.u32 %v576, 16
      %v2048 = vor.u32 %v2045, %v2046
      %v2050 = vshrl.u32 %v1760, 16
      %v2052 = vrot.slane %v2050, 7
      %v2053 = vshll.u32 %v1760, 16
      %v2055 = vor.u32 %v2052, %v2053
      %v2057 = vshrl.u32 %v577, 16
      %v2059 = vrot.slane %v2057, 7
      %v2060 = vshll.u32 %v577, 16
      %v2062 = vor.u32 %v2059, %v2060
      %v2064 = vshrl.u32 %v1761, 16
      %v2066 = vrot.slane %v2064, 7
      %v2067 = vshll.u32 %v1761, 16
      %v2069 = vor.u32 %v2066, %v2067
      %v2071 = vshrl.u32 %v578, 16
      %v2073 = vrot.slane %v2071, 7
      %v2074 = vshll.u32 %v578, 16
      %v2076 = vor.u32 %v2073, %v2074
      %v2078 = vshrl.u32 %v1762, 16
      %v2080 = vrot.slane %v2078, 7
      %v2081 = vshll.u32 %v1762, 16
      %v2083 = vor.u32 %v2080, %v2081
      %v2085 = vshrl.u32 %v579, 16
      %v2087 = vrot.slane %v2085, 7
      %v2088 = vshll.u32 %v579, 16
      %v2090 = vor.u32 %v2087, %v2088
      %v2092 = vshrl.u32 %v1763, 16
      %v2094 = vrot.slane %v2092, 7
      %v2095 = vshll.u32 %v1763, 16
      %v2097 = vor.u32 %v2094, %v2095
      %v2099 = vshrl.u32 %v580, 16
      %v2101 = vrot.slane %v2099, 7
      %v2102 = vshll.u32 %v580, 16
      %v2104 = vor.u32 %v2101, %v2102
      %vm2138 = vcmask 1040384
      %vm2139 = vsmask.f32 256
      %vm2140 = vmand %vm2138, %vm2139
      %v2141 = vsel %vm2140, 0, %v1880
      %v2142 = vsel %vm2140, 0, %v1887
      %v2143 = vsel %vm2140, 0, %v1894
      %v2144 = vsel %vm2140, 0, %v1901
      %v2145 = vsel %vm2140, 0, %v1908
      %v2146 = vsel %vm2140, 0, %v1915
      %v2147 = vsel %vm2140, 0, %v1922
      %v2148 = vsel %vm2140, 0, %v1929
      %v2149 = vsel %vm2140, 0, %v1936
      %v2150 = vsel %vm2140, 0, %v1943
      %v2151 = vsel %vm2140, 0, %v1950
      %v2152 = vsel %vm2140, 0, %v1957
      %v2153 = vsel %vm2140, 0, %v1964
      %v2154 = vsel %vm2140, 0, %v1971
      %v2155 = vsel %vm2140, 0, %v1978
      %v2156 = vsel %vm2140, 0, %v1985
      %v2157 = vsel %vm2140, 0, %v1992
      %v2158 = vsel %vm2140, 0, %v1999
      %v2159 = vsel %vm2140, 0, %v2006
      %v2160 = vsel %vm2140, 0, %v2013
      %v2161 = vsel %vm2140, 0, %v2020
      %v2162 = vsel %vm2140, 0, %v2027
      %v2163 = vsel %vm2140, 0, %v2034
      %v2164 = vsel %vm2140, 0, %v2041
      %v2165 = vsel %vm2140, 0, %v2048
      %v2166 = vsel %vm2140, 0, %v2055
      %v2167 = vsel %vm2140, 0, %v2062
      %v2168 = vsel %vm2140, 0, %v2069
      %v2169 = vsel %vm2140, 0, %v2076
      %v2170 = vsel %vm2140, 0, %v2083
      %v2171 = vsel %vm2140, 0, %v2090
      %v2172 = vsel %vm2140, 0, %v2097
      %v2173 = vsel %vm2140, 0, %v2104
      %v2207 = vunpack.c.l.b16 %v2141
      %v2208 = vunpack.c.h.b16 %v2141
      %v2209 = vunpack.c.l.b16 %v2142
      %v2210 = vunpack.c.l.b16 %v2143
      %v2211 = vunpack.c.h.b16 %v2142
      %v2212 = vunpack.c.h.b16 %v2143
      %v2213 = vunpack.c.l.b16 %v2144
      %v2214 = vunpack.c.l.b16 %v2145
      %v2215 = vunpack.c.h.b16 %v2144
      %v2216 = vunpack.c.h.b16 %v2145
      %v2217 = vunpack.c.l.b16 %v2146
      %v2218 = vunpack.c.l.b16 %v2147
      %v2219 = vunpack.c.h.b16 %v2146
      %v2220 = vunpack.c.h.b16 %v2147
      %v2221 = vunpack.c.l.b16 %v2148
      %v2222 = vunpack.c.l.b16 %v2149
      %v2223 = vunpack.c.h.b16 %v2148
      %v2224 = vunpack.c.h.b16 %v2149
      %v2225 = vunpack.c.l.b16 %v2150
      %v2226 = vunpack.c.l.b16 %v2151
      %v2227 = vunpack.c.h.b16 %v2150
      %v2228 = vunpack.c.h.b16 %v2151
      %v2229 = vunpack.c.l.b16 %v2152
      %v2230 = vunpack.c.l.b16 %v2153
      %v2231 = vunpack.c.h.b16 %v2152
      %v2232 = vunpack.c.h.b16 %v2153
      %v2233 = vunpack.c.l.b16 %v2154
      %v2234 = vunpack.c.l.b16 %v2155
      %v2235 = vunpack.c.h.b16 %v2154
      %v2236 = vunpack.c.h.b16 %v2155
      %v2237 = vunpack.c.l.b16 %v2156
      %v2238 = vunpack.c.l.b16 %v2157
      %v2239 = vunpack.c.h.b16 %v2156
      %v2240 = vunpack.c.h.b16 %v2157
      %v2241 = vunpack.c.l.b16 %v2158
      %v2242 = vunpack.c.l.b16 %v2159
      %v2243 = vunpack.c.h.b16 %v2158
      %v2244 = vunpack.c.h.b16 %v2159
      %v2245 = vunpack.c.l.b16 %v2160
      %v2246 = vunpack.c.l.b16 %v2161
      %v2247 = vunpack.c.h.b16 %v2160
      %v2248 = vunpack.c.h.b16 %v2161
      %v2249 = vunpack.c.l.b16 %v2162
      %v2250 = vunpack.c.l.b16 %v2163
      %v2251 = vunpack.c.h.b16 %v2162
      %v2252 = vunpack.c.h.b16 %v2163
      %v2253 = vunpack.c.l.b16 %v2164
      %v2254 = vunpack.c.l.b16 %v2165
      %v2255 = vunpack.c.h.b16 %v2164
      %v2256 = vunpack.c.h.b16 %v2165
      %v2257 = vunpack.c.l.b16 %v2166
      %v2258 = vunpack.c.l.b16 %v2167
      %v2259 = vunpack.c.h.b16 %v2166
      %v2260 = vunpack.c.h.b16 %v2167
      %v2261 = vunpack.c.l.b16 %v2168
      %v2262 = vunpack.c.l.b16 %v2169
      %v2263 = vunpack.c.h.b16 %v2168
      %v2264 = vunpack.c.h.b16 %v2169
      %v2265 = vunpack.c.l.b16 %v2170
      %v2266 = vunpack.c.l.b16 %v2171
      %v2267 = vunpack.c.h.b16 %v2170
      %v2268 = vunpack.c.h.b16 %v2171
      %v2269 = vunpack.c.l.b16 %v2172
      %v2270 = vunpack.c.l.b16 %v2173
      %v2271 = vunpack.c.h.b16 %v2172
      %v2272 = vunpack.c.h.b16 %v2173
      %v2273 = vpack.c.b16 %v2207, %v2207
      %v2274 = vpack.c.b16 %v2208, %v2208
      %v2275 = vpack.c.b16 %v2210, %v2209
      %v2276 = vpack.c.b16 %v2212, %v2211
      %v2277 = vpack.c.b16 %v2214, %v2213
      %v2278 = vpack.c.b16 %v2216, %v2215
      %v2279 = vpack.c.b16 %v2218, %v2217
      %v2280 = vpack.c.b16 %v2220, %v2219
      %v2281 = vpack.c.b16 %v2222, %v2221
      %v2282 = vpack.c.b16 %v2224, %v2223
      %v2283 = vpack.c.b16 %v2226, %v2225
      %v2284 = vpack.c.b16 %v2228, %v2227
      %v2285 = vpack.c.b16 %v2230, %v2229
      %v2286 = vpack.c.b16 %v2232, %v2231
      %v2287 = vpack.c.b16 %v2234, %v2233
      %v2288 = vpack.c.b16 %v2236, %v2235
      %v2289 = vpack.c.b16 %v2238, %v2237
      %v2290 = vpack.c.b16 %v2240, %v2239
      %v2291 = vpack.c.b16 %v2242, %v2241
      %v2292 = vpack.c.b16 %v2244, %v2243
      %v2293 = vpack.c.b16 %v2246, %v2245
      %v2294 = vpack.c.b16 %v2248, %v2247
      %v2295 = vpack.c.b16 %v2250, %v2249
      %v2296 = vpack.c.b16 %v2252, %v2251
      %v2297 = vpack.c.b16 %v2254, %v2253
      %v2298 = vpack.c.b16 %v2256, %v2255
      %v2299 = vpack.c.b16 %v2258, %v2257
      %v2300 = vpack.c.b16 %v2260, %v2259
      %v2301 = vpack.c.b16 %v2262, %v2261
      %v2302 = vpack.c.b16 %v2264, %v2263
      %v2303 = vpack.c.b16 %v2266, %v2265
      %v2304 = vpack.c.b16 %v2268, %v2267
      %v2305 = vpack.c.b16 %v2270, %v2269
      %v2306 = vpack.c.b16 %v2272, %v2271
      %2341 = vst [vmem:[#allocation2] sm:$0xff] %v2273
      %2342 = vst [vmem:[#allocation2 + $0x8] sm:$0xff] %v2274
      %2343 = vst [vmem:[#allocation2 + $0x10] sm:$0xff] %v2275
      %2344 = vst [vmem:[#allocation2 + $0x18] sm:$0xff] %v2276
      %2345 = vst [vmem:[#allocation2 + $0x20] sm:$0xff] %v2277
      %2346 = vst [vmem:[#allocation2 + $0x28] sm:$0xff] %v2278
      %2347 = vst [vmem:[#allocation2 + $0x30] sm:$0xff] %v2279
      %2348 = vst [vmem:[#allocation2 + $0x38] sm:$0xff] %v2280
      %2349 = vst [vmem:[#allocation2 + $0x40] sm:$0xff] %v2281
      %2350 = vst [vmem:[#allocation2 + $0x48] sm:$0xff] %v2282
      %2351 = vst [vmem:[#allocation2 + $0x50] sm:$0xff] %v2283
      %2352 = vst [vmem:[#allocation2 + $0x58] sm:$0xff] %v2284
      %2353 = vst [vmem:[#allocation2 + $0x60] sm:$0xff] %v2285
      %2354 = vst [vmem:[#allocation2 + $0x68] sm:$0xff] %v2286
      %2355 = vst [vmem:[#allocation2 + $0x70] sm:$0xff] %v2287
      %2356 = vst [vmem:[#allocation2 + $0x78] sm:$0xff] %v2288
      %2357 = vst [vmem:[#allocation2 + $0x80] sm:$0xff] %v2289
      %2358 = vst [vmem:[#allocation2 + $0x88] sm:$0xff] %v2290
      %2359 = vst [vmem:[#allocation2 + $0x90] sm:$0xff] %v2291
      %2360 = vst [vmem:[#allocation2 + $0x98] sm:$0xff] %v2292
      %2361 = vst [vmem:[#allocation2 + $0xa0] sm:$0xff] %v2293
      %2362 = vst [vmem:[#allocation2 + $0xa8] sm:$0xff] %v2294
      %2363 = vst [vmem:[#allocation2 + $0xb0] sm:$0xff] %v2295
      %2364 = vst [vmem:[#allocation2 + $0xb8] sm:$0xff] %v2296
      %2365 = vst [vmem:[#allocation2 + $0xc0] sm:$0xff] %v2297
      %2366 = vst [vmem:[#allocation2 + $0xc8] sm:$0xff] %v2298
      %2367 = vst [vmem:[#allocation2 + $0xd0] sm:$0xff] %v2299
      %2368 = vst [vmem:[#allocation2 + $0xd8] sm:$0xff] %v2300
      %2369 = vst [vmem:[#allocation2 + $0xe0] sm:$0xff] %v2301
      %2370 = vst [vmem:[#allocation2 + $0xe8] sm:$0xff] %v2302
      %2371 = vst [vmem:[#allocation2 + $0xf0] sm:$0xff] %v2303
      %2372 = vst [vmem:[#allocation2 + $0xf8] sm:$0xff] %v2304
      %2373 = vst [vmem:[#allocation2 + $0x100] sm:$0xff] %v2305
      %2374 = vst [vmem:[#allocation2 + $0x108] sm:$0xff] %v2306
      %2375 = vst [vmem:[#allocation2 + $0x110] sm:$0xff] %v2273
      %2376 = vst [vmem:[#allocation2 + $0x118] sm:$0xff] %v2274
      %v2377 = vrot.slane %v1878, 1
      %v2378 = vor.u32 %v1875, %v2377
      %v2379 = vrot.slane %v1885, 1
      %v2380 = vor.u32 %v1882, %v2379
      %v2381 = vrot.slane %v1892, 1
      %v2382 = vor.u32 %v1889, %v2381
      %v2383 = vrot.slane %v1899, 1
      %v2384 = vor.u32 %v1896, %v2383
      %v2385 = vrot.slane %v1906, 1
      %v2386 = vor.u32 %v1903, %v2385
      %v2387 = vrot.slane %v1913, 1
      %v2388 = vor.u32 %v1910, %v2387
      %v2389 = vrot.slane %v1920, 1
      %v2390 = vor.u32 %v1917, %v2389
      %v2391 = vrot.slane %v1927, 1
      %v2392 = vor.u32 %v1924, %v2391
      %v2393 = vrot.slane %v1934, 1
      %v2394 = vor.u32 %v1931, %v2393
      %v2395 = vrot.slane %v1941, 1
      %v2396 = vor.u32 %v1938, %v2395
      %v2397 = vrot.slane %v1948, 1
      %v2398 = vor.u32 %v1945, %v2397
      %v2399 = vrot.slane %v1955, 1
      %v2400 = vor.u32 %v1952, %v2399
      %v2401 = vrot.slane %v1962, 1
      %v2402 = vor.u32 %v1959, %v2401
      %v2403 = vrot.slane %v1969, 1
      %v2404 = vor.u32 %v1966, %v2403
      %v2405 = vrot.slane %v1976, 1
      %v2406 = vor.u32 %v1973, %v2405
      %v2407 = vrot.slane %v1983, 1
      %v2408 = vor.u32 %v1980, %v2407
      %v2409 = vrot.slane %v1990, 1
      %v2410 = vor.u32 %v1987, %v2409
      %v2411 = vrot.slane %v1997, 1
      %v2412 = vor.u32 %v1994, %v2411
      %v2413 = vrot.slane %v2004, 1
      %v2414 = vor.u32 %v2001, %v2413
      %v2415 = vrot.slane %v2011, 1
      %v2416 = vor.u32 %v2008, %v2415
      %v2417 = vrot.slane %v2018, 1
      %v2418 = vor.u32 %v2015, %v2417
      %v2419 = vrot.slane %v2025, 1
      %v2420 = vor.u32 %v2022, %v2419
      %v2421 = vrot.slane %v2032, 1
      %v2422 = vor.u32 %v2029, %v2421
      %v2423 = vrot.slane %v2039, 1
      %v2424 = vor.u32 %v2036, %v2423
      %v2425 = vrot.slane %v2046, 1
      %v2426 = vor.u32 %v2043, %v2425
      %v2427 = vrot.slane %v2053, 1
      %v2428 = vor.u32 %v2050, %v2427
      %v2429 = vrot.slane %v2060, 1
      %v2430 = vor.u32 %v2057, %v2429
      %v2431 = vrot.slane %v2067, 1
      %v2432 = vor.u32 %v2064, %v2431
      %v2433 = vrot.slane %v2074, 1
      %v2434 = vor.u32 %v2071, %v2433
      %v2435 = vrot.slane %v2081, 1
      %v2436 = vor.u32 %v2078, %v2435
      %v2437 = vrot.slane %v2088, 1
      %v2438 = vor.u32 %v2085, %v2437
      %v2439 = vrot.slane %v2095, 1
      %v2440 = vor.u32 %v2092, %v2439
      %v2441 = vrot.slane %v2102, 1
      %v2442 = vor.u32 %v2099, %v2441
      %vm2476 = vcmask 1047552
      %vm2477 = vsmask.f32 7424
      %vm2478 = vmand %vm2476, %vm2477
      %v2479 = vsel %vm2478, %v2378, 0
      %v2480 = vsel %vm2478, %v2380, 0
      %v2481 = vsel %vm2478, %v2382, 0
      %v2482 = vsel %vm2478, %v2384, 0
      %v2483 = vsel %vm2478, %v2386, 0
      %v2484 = vsel %vm2478, %v2388, 0
      %v2485 = vsel %vm2478, %v2390, 0
      %v2486 = vsel %vm2478, %v2392, 0
      %v2487 = vsel %vm2478, %v2394, 0
      %v2488 = vsel %vm2478, %v2396, 0
      %v2489 = vsel %vm2478, %v2398, 0
      %v2490 = vsel %vm2478, %v2400, 0
      %v2491 = vsel %vm2478, %v2402, 0
      %v2492 = vsel %vm2478, %v2404, 0
      %v2493 = vsel %vm2478, %v2406, 0
      %v2494 = vsel %vm2478, %v2408, 0
      %v2495 = vsel %vm2478, %v2410, 0
      %v2496 = vsel %vm2478, %v2412, 0
      %v2497 = vsel %vm2478, %v2414, 0
      %v2498 = vsel %vm2478, %v2416, 0
      %v2499 = vsel %vm2478, %v2418, 0
      %v2500 = vsel %vm2478, %v2420, 0
      %v2501 = vsel %vm2478, %v2422, 0
      %v2502 = vsel %vm2478, %v2424, 0
      %v2503 = vsel %vm2478, %v2426, 0
      %v2504 = vsel %vm2478, %v2428, 0
      %v2505 = vsel %vm2478, %v2430, 0
      %v2506 = vsel %vm2478, %v2432, 0
      %v2507 = vsel %vm2478, %v2434, 0
      %v2508 = vsel %vm2478, %v2436, 0
      %v2509 = vsel %vm2478, %v2438, 0
      %v2510 = vsel %vm2478, %v2440, 0
      %v2511 = vsel %vm2478, %v2442, 0
      %v2545 = vunpack.c.l.b16 %v2479
      %v2546 = vunpack.c.h.b16 %v2479
      %v2547 = vunpack.c.l.b16 %v2480
      %v2548 = vunpack.c.l.b16 %v2481
      %v2549 = vunpack.c.h.b16 %v2480
      %v2550 = vunpack.c.h.b16 %v2481
      %v2551 = vunpack.c.l.b16 %v2482
      %v2552 = vunpack.c.l.b16 %v2483
      %v2553 = vunpack.c.h.b16 %v2482
      %v2554 = vunpack.c.h.b16 %v2483
      %v2555 = vunpack.c.l.b16 %v2484
      %v2556 = vunpack.c.l.b16 %v2485
      %v2557 = vunpack.c.h.b16 %v2484
      %v2558 = vunpack.c.h.b16 %v2485
      %v2559 = vunpack.c.l.b16 %v2486
      %v2560 = vunpack.c.l.b16 %v2487
      %v2561 = vunpack.c.h.b16 %v2486
      %v2562 = vunpack.c.h.b16 %v2487
      %v2563 = vunpack.c.l.b16 %v2488
      %v2564 = vunpack.c.l.b16 %v2489
      %v2565 = vunpack.c.h.b16 %v2488
      %v2566 = vunpack.c.h.b16 %v2489
      %v2567 = vunpack.c.l.b16 %v2490
      %v2568 = vunpack.c.l.b16 %v2491
      %v2569 = vunpack.c.h.b16 %v2490
      %v2570 = vunpack.c.h.b16 %v2491
      %v2571 = vunpack.c.l.b16 %v2492
      %v2572 = vunpack.c.l.b16 %v2493
      %v2573 = vunpack.c.h.b16 %v2492
      %v2574 = vunpack.c.h.b16 %v2493
      %v2575 = vunpack.c.l.b16 %v2494
      %v2576 = vunpack.c.l.b16 %v2495
      %v2577 = vunpack.c.h.b16 %v2494
      %v2578 = vunpack.c.h.b16 %v2495
      %v2579 = vunpack.c.l.b16 %v2496
      %v2580 = vunpack.c.l.b16 %v2497
      %v2581 = vunpack.c.h.b16 %v2496
      %v2582 = vunpack.c.h.b16 %v2497
      %v2583 = vunpack.c.l.b16 %v2498
      %v2584 = vunpack.c.l.b16 %v2499
      %v2585 = vunpack.c.h.b16 %v2498
      %v2586 = vunpack.c.h.b16 %v2499
      %v2587 = vunpack.c.l.b16 %v2500
      %v2588 = vunpack.c.l.b16 %v2501
      %v2589 = vunpack.c.h.b16 %v2500
      %v2590 = vunpack.c.h.b16 %v2501
      %v2591 = vunpack.c.l.b16 %v2502
      %v2592 = vunpack.c.l.b16 %v2503
      %v2593 = vunpack.c.h.b16 %v2502
      %v2594 = vunpack.c.h.b16 %v2503
      %v2595 = vunpack.c.l.b16 %v2504
      %v2596 = vunpack.c.l.b16 %v2505
      %v2597 = vunpack.c.h.b16 %v2504
      %v2598 = vunpack.c.h.b16 %v2505
      %v2599 = vunpack.c.l.b16 %v2506
      %v2600 = vunpack.c.l.b16 %v2507
      %v2601 = vunpack.c.h.b16 %v2506
      %v2602 = vunpack.c.h.b16 %v2507
      %v2603 = vunpack.c.l.b16 %v2508
      %v2604 = vunpack.c.l.b16 %v2509
      %v2605 = vunpack.c.h.b16 %v2508
      %v2606 = vunpack.c.h.b16 %v2509
      %v2607 = vunpack.c.l.b16 %v2510
      %v2608 = vunpack.c.l.b16 %v2511
      %v2609 = vunpack.c.h.b16 %v2510
      %v2610 = vunpack.c.h.b16 %v2511
      %v2611 = vpack.c.b16 %v2545, %v2545
      %v2612 = vpack.c.b16 %v2546, %v2546
      %v2613 = vpack.c.b16 %v2548, %v2547
      %v2614 = vpack.c.b16 %v2550, %v2549
      %v2615 = vpack.c.b16 %v2552, %v2551
      %v2616 = vpack.c.b16 %v2554, %v2553
      %v2617 = vpack.c.b16 %v2556, %v2555
      %v2618 = vpack.c.b16 %v2558, %v2557
      %v2619 = vpack.c.b16 %v2560, %v2559
      %v2620 = vpack.c.b16 %v2562, %v2561
      %v2621 = vpack.c.b16 %v2564, %v2563
      %v2622 = vpack.c.b16 %v2566, %v2565
      %v2623 = vpack.c.b16 %v2568, %v2567
      %v2624 = vpack.c.b16 %v2570, %v2569
      %v2625 = vpack.c.b16 %v2572, %v2571
      %v2626 = vpack.c.b16 %v2574, %v2573
      %v2627 = vpack.c.b16 %v2576, %v2575
      %v2628 = vpack.c.b16 %v2578, %v2577
      %v2629 = vpack.c.b16 %v2580, %v2579
      %v2630 = vpack.c.b16 %v2582, %v2581
      %v2631 = vpack.c.b16 %v2584, %v2583
      %v2632 = vpack.c.b16 %v2586, %v2585
      %v2633 = vpack.c.b16 %v2588, %v2587
      %v2634 = vpack.c.b16 %v2590, %v2589
      %v2635 = vpack.c.b16 %v2592, %v2591
      %v2636 = vpack.c.b16 %v2594, %v2593
      %v2637 = vpack.c.b16 %v2596, %v2595
      %v2638 = vpack.c.b16 %v2598, %v2597
      %v2639 = vpack.c.b16 %v2600, %v2599
      %v2640 = vpack.c.b16 %v2602, %v2601
      %v2641 = vpack.c.b16 %v2604, %v2603
      %v2642 = vpack.c.b16 %v2606, %v2605
      %v2643 = vpack.c.b16 %v2608, %v2607
      %v2644 = vpack.c.b16 %v2610, %v2609
      %s2679 = scalar_lea.vmem [#allocation2], 576
      %2680 = vst [vmem:[%s2679] sm:$0xff] %v2611
      %2681 = vst [vmem:[%s2679 + $0x8] sm:$0xff] %v2612
      %2682 = vst [vmem:[%s2679 + $0x10] sm:$0xff] %v2613
      %2683 = vst [vmem:[%s2679 + $0x18] sm:$0xff] %v2614
      %2684 = vst [vmem:[%s2679 + $0x20] sm:$0xff] %v2615
      %2685 = vst [vmem:[%s2679 + $0x28] sm:$0xff] %v2616
      %2686 = vst [vmem:[%s2679 + $0x30] sm:$0xff] %v2617
      %2687 = vst [vmem:[%s2679 + $0x38] sm:$0xff] %v2618
      %2688 = vst [vmem:[%s2679 + $0x40] sm:$0xff] %v2619
      %2689 = vst [vmem:[%s2679 + $0x48] sm:$0xff] %v2620
      %2690 = vst [vmem:[%s2679 + $0x50] sm:$0xff] %v2621
      %2691 = vst [vmem:[%s2679 + $0x58] sm:$0xff] %v2622
      %2692 = vst [vmem:[%s2679 + $0x60] sm:$0xff] %v2623
      %2693 = vst [vmem:[%s2679 + $0x68] sm:$0xff] %v2624
      %2694 = vst [vmem:[%s2679 + $0x70] sm:$0xff] %v2625
      %2695 = vst [vmem:[%s2679 + $0x78] sm:$0xff] %v2626
      %2696 = vst [vmem:[%s2679 + $0x80] sm:$0xff] %v2627
      %2697 = vst [vmem:[%s2679 + $0x88] sm:$0xff] %v2628
      %2698 = vst [vmem:[%s2679 + $0x90] sm:$0xff] %v2629
      %2699 = vst [vmem:[%s2679 + $0x98] sm:$0xff] %v2630
      %2700 = vst [vmem:[%s2679 + $0xa0] sm:$0xff] %v2631
      %2701 = vst [vmem:[%s2679 + $0xa8] sm:$0xff] %v2632
      %2702 = vst [vmem:[%s2679 + $0xb0] sm:$0xff] %v2633
      %2703 = vst [vmem:[%s2679 + $0xb8] sm:$0xff] %v2634
      %2704 = vst [vmem:[%s2679 + $0xc0] sm:$0xff] %v2635
      %2705 = vst [vmem:[%s2679 + $0xc8] sm:$0xff] %v2636
      %2706 = vst [vmem:[%s2679 + $0xd0] sm:$0xff] %v2637
      %2707 = vst [vmem:[%s2679 + $0xd8] sm:$0xff] %v2638
      %2708 = vst [vmem:[%s2679 + $0xe0] sm:$0xff] %v2639
      %2709 = vst [vmem:[%s2679 + $0xe8] sm:$0xff] %v2640
      %2710 = vst [vmem:[%s2679 + $0xf0] sm:$0xff] %v2641
      %2711 = vst [vmem:[%s2679 + $0xf8] sm:$0xff] %v2642
      %2712 = vst [vmem:[%s2679 + $0x100] sm:$0xff] %v2643
      %2713 = vst [vmem:[%s2679 + $0x108] sm:$0xff] %v2644
      %2714 = vst [vmem:[%s2679 + $0x110] sm:$0xff] %v2611
      %2715 = vst [vmem:[%s2679 + $0x118] sm:$0xff] %v2612
      %v2716 = vld [vmem:[#allocation2] sm:$0xff]
      %v2717 = vld [vmem:[#allocation2 + $0x8] sm:$0xff]
      %v2718 = vld [vmem:[#allocation2 + $0x10] sm:$0xff]
      %v2719 = vld [vmem:[#allocation2 + $0x18] sm:$0xff]
      %v2720 = vld [vmem:[#allocation2 + $0x20] sm:$0xff]
      %v2721 = vld [vmem:[#allocation2 + $0x28] sm:$0xff]
      %v2722 = vld [vmem:[#allocation2 + $0x30] sm:$0xff]
      %v2723 = vld [vmem:[#allocation2 + $0x38] sm:$0xff]
      %v2724 = vld [vmem:[#allocation2 + $0x40] sm:$0xff]
      %v2725 = vld [vmem:[#allocation2 + $0x48] sm:$0xff]
      %v2726 = vld [vmem:[#allocation2 + $0x50] sm:$0xff]
      %v2727 = vld [vmem:[#allocation2 + $0x58] sm:$0xff]
      %v2728 = vld [vmem:[#allocation2 + $0x60] sm:$0xff]
      %v2729 = vld [vmem:[#allocation2 + $0x68] sm:$0xff]
      %v2730 = vld [vmem:[#allocation2 + $0x70] sm:$0xff]
      %v2731 = vld [vmem:[#allocation2 + $0x78] sm:$0xff]
      %v2732 = vld [vmem:[#allocation2 + $0x80] sm:$0xff]
      %v2733 = vld [vmem:[#allocation2 + $0x88] sm:$0xff]
      %v2734 = vld [vmem:[#allocation2 + $0x90] sm:$0xff]
      %v2735 = vld [vmem:[#allocation2 + $0x98] sm:$0xff]
      %v2736 = vld [vmem:[#allocation2 + $0xa0] sm:$0xff]
      %v2737 = vld [vmem:[#allocation2 + $0xa8] sm:$0xff]
      %v2738 = vld [vmem:[#allocation2 + $0xb0] sm:$0xff]
      %v2739 = vld [vmem:[#allocation2 + $0xb8] sm:$0xff]
      %v2740 = vld [vmem:[#allocation2 + $0xc0] sm:$0xff]
      %v2741 = vld [vmem:[#allocation2 + $0xc8] sm:$0xff]
      %v2742 = vld [vmem:[#allocation2 + $0xd0] sm:$0xff]
      %v2743 = vld [vmem:[#allocation2 + $0xd8] sm:$0xff]
      %v2744 = vld [vmem:[#allocation2 + $0xe0] sm:$0xff]
      %v2745 = vld [vmem:[#allocation2 + $0xe8] sm:$0xff]
      %v2746 = vld [vmem:[#allocation2 + $0xf0] sm:$0xff]
      %v2747 = vld [vmem:[#allocation2 + $0xf8] sm:$0xff]
      %v2748 = vld [vmem:[%s6] sm:$0xf]
      %v2749 = vld [vmem:[%s6 + $0x4] sm:$0xf]
      %v2750 = vld [vmem:[%s6 + $0x8] sm:$0xf]
      %v2751 = vld [vmem:[%s6 + $0xc] sm:$0xf]
      %v2752 = vld [vmem:[%s6 + $0x10] sm:$0xf]
      %v2753 = vld [vmem:[%s6 + $0x14] sm:$0xf]
      %v2754 = vld [vmem:[%s6 + $0x18] sm:$0xf]
      %v2755 = vld [vmem:[%s6 + $0x1c] sm:$0xf]
      %v2756 = vld [vmem:[%s6 + $0x20] sm:$0xf]
      %v2757 = vld [vmem:[%s6 + $0x24] sm:$0xf]
      %v2758 = vld [vmem:[%s6 + $0x28] sm:$0xf]
      %v2759 = vld [vmem:[%s6 + $0x2c] sm:$0xf]
      %v2760 = vld [vmem:[%s6 + $0x30] sm:$0xf]
      %v2761 = vld [vmem:[%s6 + $0x34] sm:$0xf]
      %v2762 = vld [vmem:[%s6 + $0x38] sm:$0xf]
      %v2763 = vld [vmem:[%s6 + $0x3c] sm:$0xf]
      %v2764 = vld [vmem:[%s6 + $0x40] sm:$0xf]
      %v2765 = vld [vmem:[%s6 + $0x44] sm:$0xf]
      %v2766 = vld [vmem:[%s6 + $0x48] sm:$0xf]
      %v2767 = vld [vmem:[%s6 + $0x4c] sm:$0xf]
      %v2768 = vld [vmem:[%s6 + $0x50] sm:$0xf]
      %v2769 = vld [vmem:[%s6 + $0x54] sm:$0xf]
      %v2770 = vld [vmem:[%s6 + $0x58] sm:$0xf]
      %v2771 = vld [vmem:[%s6 + $0x5c] sm:$0xf]
      %v2772 = vld [vmem:[%s6 + $0x60] sm:$0xf]
      %v2773 = vld [vmem:[%s6 + $0x64] sm:$0xf]
      %v2774 = vld [vmem:[%s6 + $0x68] sm:$0xf]
      %v2775 = vld [vmem:[%s6 + $0x6c] sm:$0xf]
      %v2776 = vld [vmem:[%s6 + $0x70] sm:$0xf]
      %v2777 = vld [vmem:[%s6 + $0x74] sm:$0xf]
      %v2778 = vld [vmem:[%s6 + $0x78] sm:$0xf]
      %v2779 = vld [vmem:[%s6 + $0x7c] sm:$0xf]
      %v2780 = vld [vmem:[%s1837] sm:$0xff]
      %v2781 = vld [vmem:[%s1837 + $0x8] sm:$0xff]
      %v2782 = vld [vmem:[%s1837 + $0x10] sm:$0xff]
      %v2783 = vld [vmem:[%s1837 + $0x18] sm:$0xff]
      %v2784 = vld [vmem:[%s1837 + $0x20] sm:$0xff]
      %v2785 = vld [vmem:[%s1837 + $0x28] sm:$0xff]
      %v2786 = vld [vmem:[%s1837 + $0x30] sm:$0xff]
      %v2787 = vld [vmem:[%s1837 + $0x38] sm:$0xff]
      %v2788 = vld [vmem:[%s1837 + $0x40] sm:$0xff]
      %v2789 = vld [vmem:[%s1837 + $0x48] sm:$0xff]
      %v2790 = vld [vmem:[%s1837 + $0x50] sm:$0xff]
      %v2791 = vld [vmem:[%s1837 + $0x58] sm:$0xff]
      %v2792 = vld [vmem:[%s1837 + $0x60] sm:$0xff]
      %v2793 = vld [vmem:[%s1837 + $0x68] sm:$0xff]
      %v2794 = vld [vmem:[%s1837 + $0x70] sm:$0xff]
      %v2795 = vld [vmem:[%s1837 + $0x78] sm:$0xff]
      %v2796 = vld [vmem:[%s1837 + $0x80] sm:$0xff]
      %v2797 = vld [vmem:[%s1837 + $0x88] sm:$0xff]
      %v2798 = vld [vmem:[%s1837 + $0x90] sm:$0xff]
      %v2799 = vld [vmem:[%s1837 + $0x98] sm:$0xff]
      %v2800 = vld [vmem:[%s1837 + $0xa0] sm:$0xff]
      %v2801 = vld [vmem:[%s1837 + $0xa8] sm:$0xff]
      %v2802 = vld [vmem:[%s1837 + $0xb0] sm:$0xff]
      %v2803 = vld [vmem:[%s1837 + $0xb8] sm:$0xff]
      %v2804 = vld [vmem:[%s1837 + $0xc0] sm:$0xff]
      %v2805 = vld [vmem:[%s1837 + $0xc8] sm:$0xff]
      %v2806 = vld [vmem:[%s1837 + $0xd0] sm:$0xff]
      %v2807 = vld [vmem:[%s1837 + $0xd8] sm:$0xff]
      %v2808 = vld [vmem:[%s1837 + $0xe0] sm:$0xff]
      %v2809 = vld [vmem:[%s1837 + $0xe8] sm:$0xff]
      %v2810 = vld [vmem:[%s1837 + $0xf0] sm:$0xff]
      %v2811 = vld [vmem:[%s1837 + $0xf8] sm:$0xff]
      %s2812 = scalar_lea.vmem %s6, 128
      %v2813 = vld [vmem:[%s2812] sm:$0xf]
      %v2814 = vld [vmem:[%s2812 + $0x4] sm:$0xf]
      %v2815 = vld [vmem:[%s2812 + $0x8] sm:$0xf]
      %v2816 = vld [vmem:[%s2812 + $0xc] sm:$0xf]
      %v2817 = vld [vmem:[%s2812 + $0x10] sm:$0xf]
      %v2818 = vld [vmem:[%s2812 + $0x14] sm:$0xf]
      %v2819 = vld [vmem:[%s2812 + $0x18] sm:$0xf]
      %v2820 = vld [vmem:[%s2812 + $0x1c] sm:$0xf]
      %v2821 = vld [vmem:[%s2812 + $0x20] sm:$0xf]
      %v2822 = vld [vmem:[%s2812 + $0x24] sm:$0xf]
      %v2823 = vld [vmem:[%s2812 + $0x28] sm:$0xf]
      %v2824 = vld [vmem:[%s2812 + $0x2c] sm:$0xf]
      %v2825 = vld [vmem:[%s2812 + $0x30] sm:$0xf]
      %v2826 = vld [vmem:[%s2812 + $0x34] sm:$0xf]
      %v2827 = vld [vmem:[%s2812 + $0x38] sm:$0xf]
      %v2828 = vld [vmem:[%s2812 + $0x3c] sm:$0xf]
      %v2829 = vld [vmem:[%s2812 + $0x40] sm:$0xf]
      %v2830 = vld [vmem:[%s2812 + $0x44] sm:$0xf]
      %v2831 = vld [vmem:[%s2812 + $0x48] sm:$0xf]
      %v2832 = vld [vmem:[%s2812 + $0x4c] sm:$0xf]
      %v2833 = vld [vmem:[%s2812 + $0x50] sm:$0xf]
      %v2834 = vld [vmem:[%s2812 + $0x54] sm:$0xf]
      %v2835 = vld [vmem:[%s2812 + $0x58] sm:$0xf]
      %v2836 = vld [vmem:[%s2812 + $0x5c] sm:$0xf]
      %v2837 = vld [vmem:[%s2812 + $0x60] sm:$0xf]
      %v2838 = vld [vmem:[%s2812 + $0x64] sm:$0xf]
      %v2839 = vld [vmem:[%s2812 + $0x68] sm:$0xf]
      %v2840 = vld [vmem:[%s2812 + $0x6c] sm:$0xf]
      %v2841 = vld [vmem:[%s2812 + $0x70] sm:$0xf]
      %v2842 = vld [vmem:[%s2812 + $0x74] sm:$0xf]
      %v2843 = vld [vmem:[%s2812 + $0x78] sm:$0xf]
      %v2844 = vld [vmem:[%s2812 + $0x7c] sm:$0xf]
      %v2877 = vunpack.c.l.b16 %v2780
      %v2878 = vunpack.c.h.b16 %v2780
      %v2879 = vunpack.c.l.b16 %v2781
      %v2880 = vunpack.c.h.b16 %v2781
      %v2881 = vunpack.c.l.b16 %v2782
      %v2882 = vunpack.c.h.b16 %v2782
      %v2883 = vunpack.c.l.b16 %v2783
      %v2884 = vunpack.c.h.b16 %v2783
      %v2885 = vunpack.c.l.b16 %v2784
      %v2886 = vunpack.c.h.b16 %v2784
      %v2887 = vunpack.c.l.b16 %v2785
      %v2888 = vunpack.c.h.b16 %v2785
      %v2889 = vunpack.c.l.b16 %v2786
      %v2890 = vunpack.c.h.b16 %v2786
      %v2891 = vunpack.c.l.b16 %v2787
      %v2892 = vunpack.c.h.b16 %v2787
      %v2893 = vunpack.c.l.b16 %v2788
      %v2894 = vunpack.c.h.b16 %v2788
      %v2895 = vunpack.c.l.b16 %v2789
      %v2896 = vunpack.c.h.b16 %v2789
      %v2897 = vunpack.c.l.b16 %v2790
      %v2898 = vunpack.c.h.b16 %v2790
      %v2899 = vunpack.c.l.b16 %v2791
      %v2900 = vunpack.c.h.b16 %v2791
      %v2901 = vunpack.c.l.b16 %v2792
      %v2902 = vunpack.c.h.b16 %v2792
      %v2903 = vunpack.c.l.b16 %v2793
      %v2904 = vunpack.c.h.b16 %v2793
      %v2905 = vunpack.c.l.b16 %v2794
      %v2906 = vunpack.c.h.b16 %v2794
      %v2907 = vunpack.c.l.b16 %v2795
      %v2908 = vunpack.c.h.b16 %v2795
      %v2909 = vunpack.c.l.b16 %v2796
      %v2910 = vunpack.c.h.b16 %v2796
      %v2911 = vunpack.c.l.b16 %v2797
      %v2912 = vunpack.c.h.b16 %v2797
      %v2913 = vunpack.c.l.b16 %v2798
      %v2914 = vunpack.c.h.b16 %v2798
      %v2915 = vunpack.c.l.b16 %v2799
      %v2916 = vunpack.c.h.b16 %v2799
      %v2917 = vunpack.c.l.b16 %v2800
      %v2918 = vunpack.c.h.b16 %v2800
      %v2919 = vunpack.c.l.b16 %v2801
      %v2920 = vunpack.c.h.b16 %v2801
      %v2921 = vunpack.c.l.b16 %v2802
      %v2922 = vunpack.c.h.b16 %v2802
      %v2923 = vunpack.c.l.b16 %v2803
      %v2924 = vunpack.c.h.b16 %v2803
      %v2925 = vunpack.c.l.b16 %v2804
      %v2926 = vunpack.c.h.b16 %v2804
      %v2927 = vunpack.c.l.b16 %v2805
      %v2928 = vunpack.c.h.b16 %v2805
      %v2929 = vunpack.c.l.b16 %v2806
      %v2930 = vunpack.c.h.b16 %v2806
      %v2931 = vunpack.c.l.b16 %v2807
      %v2932 = vunpack.c.h.b16 %v2807
      %v2933 = vunpack.c.l.b16 %v2808
      %v2934 = vunpack.c.h.b16 %v2808
      %v2935 = vunpack.c.l.b16 %v2809
      %v2936 = vunpack.c.h.b16 %v2809
      %v2937 = vunpack.c.l.b16 %v2810
      %v2938 = vunpack.c.h.b16 %v2810
      %v2939 = vunpack.c.l.b16 %v2811
      %v2940 = vunpack.c.h.b16 %v2811
      %v2941 = vpack.c.b16 %v2879, %v2877
      %v2942 = vpack.c.b16 %v2880, %v2878
      %v2943 = vpack.c.b16 %v2883, %v2881
      %v2944 = vpack.c.b16 %v2884, %v2882
      %v2945 = vpack.c.b16 %v2887, %v2885
      %v2946 = vpack.c.b16 %v2888, %v2886
      %v2947 = vpack.c.b16 %v2891, %v2889
      %v2948 = vpack.c.b16 %v2892, %v2890
      %v2949 = vpack.c.b16 %v2895, %v2893
      %v2950 = vpack.c.b16 %v2896, %v2894
      %v2951 = vpack.c.b16 %v2899, %v2897
      %v2952 = vpack.c.b16 %v2900, %v2898
      %v2953 = vpack.c.b16 %v2903, %v2901
      %v2954 = vpack.c.b16 %v2904, %v2902
      %v2955 = vpack.c.b16 %v2907, %v2905
      %v2956 = vpack.c.b16 %v2908, %v2906
      %v2957 = vpack.c.b16 %v2911, %v2909
      %v2958 = vpack.c.b16 %v2912, %v2910
      %v2959 = vpack.c.b16 %v2915, %v2913
      %v2960 = vpack.c.b16 %v2916, %v2914
      %v2961 = vpack.c.b16 %v2919, %v2917
      %v2962 = vpack.c.b16 %v2920, %v2918
      %v2963 = vpack.c.b16 %v2923, %v2921
      %v2964 = vpack.c.b16 %v2924, %v2922
      %v2965 = vpack.c.b16 %v2927, %v2925
      %v2966 = vpack.c.b16 %v2928, %v2926
      %v2967 = vpack.c.b16 %v2931, %v2929
      %v2968 = vpack.c.b16 %v2932, %v2930
      %v2969 = vpack.c.b16 %v2935, %v2933
      %v2970 = vpack.c.b16 %v2936, %v2934
      %v2971 = vpack.c.b16 %v2939, %v2937
      %v2972 = vpack.c.b16 %v2940, %v2938
      %v3037 = vunpack.c.l.b16 %v2813
      %v3038 = vunpack.c.l.b16 %v2814
      %v3039 = vunpack.c.l.b16 %v2815
      %v3040 = vunpack.c.l.b16 %v2816
      %v3041 = vunpack.c.l.b16 %v2817
      %v3042 = vunpack.c.l.b16 %v2818
      %v3043 = vunpack.c.l.b16 %v2819
      %v3044 = vunpack.c.l.b16 %v2820
      %v3045 = vunpack.c.l.b16 %v2821
      %v3046 = vunpack.c.l.b16 %v2822
      %v3047 = vunpack.c.l.b16 %v2823
      %v3048 = vunpack.c.l.b16 %v2824
      %v3049 = vunpack.c.l.b16 %v2825
      %v3050 = vunpack.c.l.b16 %v2826
      %v3051 = vunpack.c.l.b16 %v2827
      %v3052 = vunpack.c.l.b16 %v2828
      %v3053 = vunpack.c.l.b16 %v2829
      %v3054 = vunpack.c.l.b16 %v2830
      %v3055 = vunpack.c.l.b16 %v2831
      %v3056 = vunpack.c.l.b16 %v2832
      %v3057 = vunpack.c.l.b16 %v2833
      %v3058 = vunpack.c.l.b16 %v2834
      %v3059 = vunpack.c.l.b16 %v2835
      %v3060 = vunpack.c.l.b16 %v2836
      %v3061 = vunpack.c.l.b16 %v2837
      %v3062 = vunpack.c.l.b16 %v2838
      %v3063 = vunpack.c.l.b16 %v2839
      %v3064 = vunpack.c.l.b16 %v2840
      %v3065 = vunpack.c.l.b16 %v2841
      %v3066 = vunpack.c.l.b16 %v2842
      %v3067 = vunpack.c.l.b16 %v2843
      %v3068 = vunpack.c.l.b16 %v2844
      %v3069 = vpack.c.b16 %v3038, %v3037
      %v3070 = vpack.c.b16 %v3040, %v3039
      %v3071 = vpack.c.b16 %v3042, %v3041
      %v3072 = vpack.c.b16 %v3044, %v3043
      %v3073 = vpack.c.b16 %v3046, %v3045
      %v3074 = vpack.c.b16 %v3048, %v3047
      %v3075 = vpack.c.b16 %v3050, %v3049
      %v3076 = vpack.c.b16 %v3052, %v3051
      %v3077 = vpack.c.b16 %v3054, %v3053
      %v3078 = vpack.c.b16 %v3056, %v3055
      %v3079 = vpack.c.b16 %v3058, %v3057
      %v3080 = vpack.c.b16 %v3060, %v3059
      %v3081 = vpack.c.b16 %v3062, %v3061
      %v3082 = vpack.c.b16 %v3064, %v3063
      %v3083 = vpack.c.b16 %v3066, %v3065
      %v3084 = vpack.c.b16 %v3068, %v3067
      %3101 = vmatpush.bf16.msra.mxu0 %v3076
      %3102 = vmatpush.bf16.msra.mxu0 %v3075
      %3103 = vmatpush.bf16.msra.mxu0 %v3074
      %3104 = vmatpush.bf16.msra.mxu0 %v3073
      %3105 = vmatpush.bf16.msra.mxu0 %v3072
      %3106 = vmatpush.bf16.msra.mxu0 %v3071
      %3107 = vmatpush.bf16.msra.mxu0 %v3070
      %3108 = vmatpush.bf16.msra.mxu0 %v3069
      %3109 = vmatmul.bf16.gmra.mxu0 %v2941
      %v3110 = vpop.f32.mrf.mxu0
      %v3111 = vadd.f32 0.0, %v3110
      %v3112 = vpop.f32.mrf.mxu0
      %v3113 = vadd.f32 0.0, %v3112
      %3114 = vmatmul.bf16.gmra.mxu0 %v2943
      %v3115 = vpop.f32.mrf.mxu0
      %v3116 = vadd.f32 0.0, %v3115
      %v3117 = vpop.f32.mrf.mxu0
      %v3118 = vadd.f32 0.0, %v3117
      %3119 = vmatmul.bf16.gmra.mxu0 %v2945
      %v3120 = vpop.f32.mrf.mxu0
      %v3121 = vadd.f32 0.0, %v3120
      %v3122 = vpop.f32.mrf.mxu0
      %v3123 = vadd.f32 0.0, %v3122
      %3124 = vmatmul.bf16.gmra.mxu0 %v2947
      %v3125 = vpop.f32.mrf.mxu0
      %v3126 = vadd.f32 0.0, %v3125
      %v3127 = vpop.f32.mrf.mxu0
      %v3128 = vadd.f32 0.0, %v3127
      %3129 = vmatmul.bf16.gmra.mxu0 %v2949
      %v3130 = vpop.f32.mrf.mxu0
      %v3131 = vadd.f32 0.0, %v3130
      %v3132 = vpop.f32.mrf.mxu0
      %v3133 = vadd.f32 0.0, %v3132
      %3134 = vmatmul.bf16.gmra.mxu0 %v2951
      %v3135 = vpop.f32.mrf.mxu0
      %v3136 = vadd.f32 0.0, %v3135
      %v3137 = vpop.f32.mrf.mxu0
      %v3138 = vadd.f32 0.0, %v3137
      %3139 = vmatmul.bf16.gmra.mxu0 %v2953
      %v3140 = vpop.f32.mrf.mxu0
      %v3141 = vadd.f32 0.0, %v3140
      %v3142 = vpop.f32.mrf.mxu0
      %v3143 = vadd.f32 0.0, %v3142
      %3144 = vmatmul.bf16.gmra.mxu0 %v2955
      %v3145 = vpop.f32.mrf.mxu0
      %v3146 = vadd.f32 0.0, %v3145
      %v3147 = vpop.f32.mrf.mxu0
      %v3148 = vadd.f32 0.0, %v3147
      %3149 = vmatmul.bf16.gmra.mxu0 %v2957
      %v3150 = vpop.f32.mrf.mxu0
      %v3151 = vadd.f32 0.0, %v3150
      %v3152 = vpop.f32.mrf.mxu0
      %v3153 = vadd.f32 0.0, %v3152
      %3154 = vmatmul.bf16.gmra.mxu0 %v2959
      %v3155 = vpop.f32.mrf.mxu0
      %v3156 = vadd.f32 0.0, %v3155
      %v3157 = vpop.f32.mrf.mxu0
      %v3158 = vadd.f32 0.0, %v3157
      %3159 = vmatmul.bf16.gmra.mxu0 %v2961
      %v3160 = vpop.f32.mrf.mxu0
      %v3161 = vadd.f32 0.0, %v3160
      %v3162 = vpop.f32.mrf.mxu0
      %v3163 = vadd.f32 0.0, %v3162
      %3164 = vmatmul.bf16.gmra.mxu0 %v2963
      %v3165 = vpop.f32.mrf.mxu0
      %v3166 = vadd.f32 0.0, %v3165
      %v3167 = vpop.f32.mrf.mxu0
      %v3168 = vadd.f32 0.0, %v3167
      %3169 = vmatmul.bf16.gmra.mxu0 %v2965
      %v3170 = vpop.f32.mrf.mxu0
      %v3171 = vadd.f32 0.0, %v3170
      %v3172 = vpop.f32.mrf.mxu0
      %v3173 = vadd.f32 0.0, %v3172
      %3174 = vmatmul.bf16.gmra.mxu0 %v2967
      %v3175 = vpop.f32.mrf.mxu0
      %v3176 = vadd.f32 0.0, %v3175
      %v3177 = vpop.f32.mrf.mxu0
      %v3178 = vadd.f32 0.0, %v3177
      %3179 = vmatmul.bf16.gmra.mxu0 %v2969
      %v3180 = vpop.f32.mrf.mxu0
      %v3181 = vadd.f32 0.0, %v3180
      %v3182 = vpop.f32.mrf.mxu0
      %v3183 = vadd.f32 0.0, %v3182
      %3184 = vmatmul.bf16.gmra.mxu0 %v2971
      %v3185 = vpop.f32.mrf.mxu0
      %v3186 = vadd.f32 0.0, %v3185
      %v3187 = vpop.f32.mrf.mxu0
      %v3188 = vadd.f32 0.0, %v3187
      %3189 = vdwg.mxu0
      %3190 = vmatpush.bf16.msra.mxu0 %v3084
      %3191 = vmatpush.bf16.msra.mxu0 %v3083
      %3192 = vmatpush.bf16.msra.mxu0 %v3082
      %3193 = vmatpush.bf16.msra.mxu0 %v3081
      %3194 = vmatpush.bf16.msra.mxu0 %v3080
      %3195 = vmatpush.bf16.msra.mxu0 %v3079
      %3196 = vmatpush.bf16.msra.mxu0 %v3078
      %3197 = vmatpush.bf16.msra.mxu0 %v3077
      %3198 = vmatmul.bf16.gmra.mxu0 %v2942
      %v3199 = vpop.f32.mrf.mxu0
      %v3200 = vadd.f32 %v3111, %v3199
      %v3201 = vpop.f32.mrf.mxu0
      %v3202 = vadd.f32 %v3113, %v3201
      %3203 = vmatmul.bf16.gmra.mxu0 %v2944
      %v3204 = vpop.f32.mrf.mxu0
      %v3205 = vadd.f32 %v3116, %v3204
      %v3206 = vpop.f32.mrf.mxu0
      %v3207 = vadd.f32 %v3118, %v3206
      %3208 = vmatmul.bf16.gmra.mxu0 %v2946
      %v3209 = vpop.f32.mrf.mxu0
      %v3210 = vadd.f32 %v3121, %v3209
      %v3211 = vpop.f32.mrf.mxu0
      %v3212 = vadd.f32 %v3123, %v3211
      %3213 = vmatmul.bf16.gmra.mxu0 %v2948
      %v3214 = vpop.f32.mrf.mxu0
      %v3215 = vadd.f32 %v3126, %v3214
      %v3216 = vpop.f32.mrf.mxu0
      %v3217 = vadd.f32 %v3128, %v3216
      %3218 = vmatmul.bf16.gmra.mxu0 %v2950
      %v3219 = vpop.f32.mrf.mxu0
      %v3220 = vadd.f32 %v3131, %v3219
      %v3221 = vpop.f32.mrf.mxu0
      %v3222 = vadd.f32 %v3133, %v3221
      %3223 = vmatmul.bf16.gmra.mxu0 %v2952
      %v3224 = vpop.f32.mrf.mxu0
      %v3225 = vadd.f32 %v3136, %v3224
      %v3226 = vpop.f32.mrf.mxu0
      %v3227 = vadd.f32 %v3138, %v3226
      %3228 = vmatmul.bf16.gmra.mxu0 %v2954
      %v3229 = vpop.f32.mrf.mxu0
      %v3230 = vadd.f32 %v3141, %v3229
      %v3231 = vpop.f32.mrf.mxu0
      %v3232 = vadd.f32 %v3143, %v3231
      %3233 = vmatmul.bf16.gmra.mxu0 %v2956
      %v3234 = vpop.f32.mrf.mxu0
      %v3235 = vadd.f32 %v3146, %v3234
      %v3236 = vpop.f32.mrf.mxu0
      %v3237 = vadd.f32 %v3148, %v3236
      %3238 = vmatmul.bf16.gmra.mxu0 %v2958
      %v3239 = vpop.f32.mrf.mxu0
      %v3240 = vadd.f32 %v3151, %v3239
      %v3241 = vpop.f32.mrf.mxu0
      %v3242 = vadd.f32 %v3153, %v3241
      %3243 = vmatmul.bf16.gmra.mxu0 %v2960
      %v3244 = vpop.f32.mrf.mxu0
      %v3245 = vadd.f32 %v3156, %v3244
      %v3246 = vpop.f32.mrf.mxu0
      %v3247 = vadd.f32 %v3158, %v3246
      %3248 = vmatmul.bf16.gmra.mxu0 %v2962
      %v3249 = vpop.f32.mrf.mxu0
      %v3250 = vadd.f32 %v3161, %v3249
      %v3251 = vpop.f32.mrf.mxu0
      %v3252 = vadd.f32 %v3163, %v3251
      %3253 = vmatmul.bf16.gmra.mxu0 %v2964
      %v3254 = vpop.f32.mrf.mxu0
      %v3255 = vadd.f32 %v3166, %v3254
      %v3256 = vpop.f32.mrf.mxu0
      %v3257 = vadd.f32 %v3168, %v3256
      %3258 = vmatmul.bf16.gmra.mxu0 %v2966
      %v3259 = vpop.f32.mrf.mxu0
      %v3260 = vadd.f32 %v3171, %v3259
      %v3261 = vpop.f32.mrf.mxu0
      %v3262 = vadd.f32 %v3173, %v3261
      %3263 = vmatmul.bf16.gmra.mxu0 %v2968
      %v3264 = vpop.f32.mrf.mxu0
      %v3265 = vadd.f32 %v3176, %v3264
      %v3266 = vpop.f32.mrf.mxu0
      %v3267 = vadd.f32 %v3178, %v3266
      %3268 = vmatmul.bf16.gmra.mxu0 %v2970
      %v3269 = vpop.f32.mrf.mxu0
      %v3270 = vadd.f32 %v3181, %v3269
      %v3271 = vpop.f32.mrf.mxu0
      %v3272 = vadd.f32 %v3183, %v3271
      %3273 = vmatmul.bf16.gmra.mxu0 %v2972
      %v3274 = vpop.f32.mrf.mxu0
      %v3275 = vadd.f32 %v3186, %v3274
      %v3276 = vpop.f32.mrf.mxu0
      %v3277 = vadd.f32 %v3188, %v3276
      %3278 = vdwg.mxu0
      %v3311 = vunpack.c.l.b16 %v2716
      %v3312 = vunpack.c.h.b16 %v2716
      %v3313 = vunpack.c.l.b16 %v2717
      %v3314 = vunpack.c.h.b16 %v2717
      %v3315 = vunpack.c.l.b16 %v2718
      %v3316 = vunpack.c.h.b16 %v2718
      %v3317 = vunpack.c.l.b16 %v2719
      %v3318 = vunpack.c.h.b16 %v2719
      %v3319 = vunpack.c.l.b16 %v2720
      %v3320 = vunpack.c.h.b16 %v2720
      %v3321 = vunpack.c.l.b16 %v2721
      %v3322 = vunpack.c.h.b16 %v2721
      %v3323 = vunpack.c.l.b16 %v2722
      %v3324 = vunpack.c.h.b16 %v2722
      %v3325 = vunpack.c.l.b16 %v2723
      %v3326 = vunpack.c.h.b16 %v2723
      %v3327 = vunpack.c.l.b16 %v2724
      %v3328 = vunpack.c.h.b16 %v2724
      %v3329 = vunpack.c.l.b16 %v2725
      %v3330 = vunpack.c.h.b16 %v2725
      %v3331 = vunpack.c.l.b16 %v2726
      %v3332 = vunpack.c.h.b16 %v2726
      %v3333 = vunpack.c.l.b16 %v2727
      %v3334 = vunpack.c.h.b16 %v2727
      %v3335 = vunpack.c.l.b16 %v2728
      %v3336 = vunpack.c.h.b16 %v2728
      %v3337 = vunpack.c.l.b16 %v2729
      %v3338 = vunpack.c.h.b16 %v2729
      %v3339 = vunpack.c.l.b16 %v2730
      %v3340 = vunpack.c.h.b16 %v2730
      %v3341 = vunpack.c.l.b16 %v2731
      %v3342 = vunpack.c.h.b16 %v2731
      %v3343 = vunpack.c.l.b16 %v2732
      %v3344 = vunpack.c.h.b16 %v2732
      %v3345 = vunpack.c.l.b16 %v2733
      %v3346 = vunpack.c.h.b16 %v2733
      %v3347 = vunpack.c.l.b16 %v2734
      %v3348 = vunpack.c.h.b16 %v2734
      %v3349 = vunpack.c.l.b16 %v2735
      %v3350 = vunpack.c.h.b16 %v2735
      %v3351 = vunpack.c.l.b16 %v2736
      %v3352 = vunpack.c.h.b16 %v2736
      %v3353 = vunpack.c.l.b16 %v2737
      %v3354 = vunpack.c.h.b16 %v2737
      %v3355 = vunpack.c.l.b16 %v2738
      %v3356 = vunpack.c.h.b16 %v2738
      %v3357 = vunpack.c.l.b16 %v2739
      %v3358 = vunpack.c.h.b16 %v2739
      %v3359 = vunpack.c.l.b16 %v2740
      %v3360 = vunpack.c.h.b16 %v2740
      %v3361 = vunpack.c.l.b16 %v2741
      %v3362 = vunpack.c.h.b16 %v2741
      %v3363 = vunpack.c.l.b16 %v2742
      %v3364 = vunpack.c.h.b16 %v2742
      %v3365 = vunpack.c.l.b16 %v2743
      %v3366 = vunpack.c.h.b16 %v2743
      %v3367 = vunpack.c.l.b16 %v2744
      %v3368 = vunpack.c.h.b16 %v2744
      %v3369 = vunpack.c.l.b16 %v2745
      %v3370 = vunpack.c.h.b16 %v2745
      %v3371 = vunpack.c.l.b16 %v2746
      %v3372 = vunpack.c.h.b16 %v2746
      %v3373 = vunpack.c.l.b16 %v2747
      %v3374 = vunpack.c.h.b16 %v2747
      %v3375 = vpack.c.b16 %v3313, %v3311
      %v3376 = vpack.c.b16 %v3314, %v3312
      %v3377 = vpack.c.b16 %v3317, %v3315
      %v3378 = vpack.c.b16 %v3318, %v3316
      %v3379 = vpack.c.b16 %v3321, %v3319
      %v3380 = vpack.c.b16 %v3322, %v3320
      %v3381 = vpack.c.b16 %v3325, %v3323
      %v3382 = vpack.c.b16 %v3326, %v3324
      %v3383 = vpack.c.b16 %v3329, %v3327
      %v3384 = vpack.c.b16 %v3330, %v3328
      %v3385 = vpack.c.b16 %v3333, %v3331
      %v3386 = vpack.c.b16 %v3334, %v3332
      %v3387 = vpack.c.b16 %v3337, %v3335
      %v3388 = vpack.c.b16 %v3338, %v3336
      %v3389 = vpack.c.b16 %v3341, %v3339
      %v3390 = vpack.c.b16 %v3342, %v3340
      %v3391 = vpack.c.b16 %v3345, %v3343
      %v3392 = vpack.c.b16 %v3346, %v3344
      %v3393 = vpack.c.b16 %v3349, %v3347
      %v3394 = vpack.c.b16 %v3350, %v3348
      %v3395 = vpack.c.b16 %v3353, %v3351
      %v3396 = vpack.c.b16 %v3354, %v3352
      %v3397 = vpack.c.b16 %v3357, %v3355
      %v3398 = vpack.c.b16 %v3358, %v3356
      %v3399 = vpack.c.b16 %v3361, %v3359
      %v3400 = vpack.c.b16 %v3362, %v3360
      %v3401 = vpack.c.b16 %v3365, %v3363
      %v3402 = vpack.c.b16 %v3366, %v3364
      %v3403 = vpack.c.b16 %v3369, %v3367
      %v3404 = vpack.c.b16 %v3370, %v3368
      %v3405 = vpack.c.b16 %v3373, %v3371
      %v3406 = vpack.c.b16 %v3374, %v3372
      %v3471 = vunpack.c.l.b16 %v2748
      %v3472 = vunpack.c.l.b16 %v2749
      %v3473 = vunpack.c.l.b16 %v2750
      %v3474 = vunpack.c.l.b16 %v2751
      %v3475 = vunpack.c.l.b16 %v2752
      %v3476 = vunpack.c.l.b16 %v2753
      %v3477 = vunpack.c.l.b16 %v2754
      %v3478 = vunpack.c.l.b16 %v2755
      %v3479 = vunpack.c.l.b16 %v2756
      %v3480 = vunpack.c.l.b16 %v2757
      %v3481 = vunpack.c.l.b16 %v2758
      %v3482 = vunpack.c.l.b16 %v2759
      %v3483 = vunpack.c.l.b16 %v2760
      %v3484 = vunpack.c.l.b16 %v2761
      %v3485 = vunpack.c.l.b16 %v2762
      %v3486 = vunpack.c.l.b16 %v2763
      %v3487 = vunpack.c.l.b16 %v2764
      %v3488 = vunpack.c.l.b16 %v2765
      %v3489 = vunpack.c.l.b16 %v2766
      %v3490 = vunpack.c.l.b16 %v2767
      %v3491 = vunpack.c.l.b16 %v2768
      %v3492 = vunpack.c.l.b16 %v2769
      %v3493 = vunpack.c.l.b16 %v2770
      %v3494 = vunpack.c.l.b16 %v2771
      %v3495 = vunpack.c.l.b16 %v2772
      %v3496 = vunpack.c.l.b16 %v2773
      %v3497 = vunpack.c.l.b16 %v2774
      %v3498 = vunpack.c.l.b16 %v2775
      %v3499 = vunpack.c.l.b16 %v2776
      %v3500 = vunpack.c.l.b16 %v2777
      %v3501 = vunpack.c.l.b16 %v2778
      %v3502 = vunpack.c.l.b16 %v2779
      %v3503 = vpack.c.b16 %v3472, %v3471
      %v3504 = vpack.c.b16 %v3474, %v3473
      %v3505 = vpack.c.b16 %v3476, %v3475
      %v3506 = vpack.c.b16 %v3478, %v3477
      %v3507 = vpack.c.b16 %v3480, %v3479
      %v3508 = vpack.c.b16 %v3482, %v3481
      %v3509 = vpack.c.b16 %v3484, %v3483
      %v3510 = vpack.c.b16 %v3486, %v3485
      %v3511 = vpack.c.b16 %v3488, %v3487
      %v3512 = vpack.c.b16 %v3490, %v3489
      %v3513 = vpack.c.b16 %v3492, %v3491
      %v3514 = vpack.c.b16 %v3494, %v3493
      %v3515 = vpack.c.b16 %v3496, %v3495
      %v3516 = vpack.c.b16 %v3498, %v3497
      %v3517 = vpack.c.b16 %v3500, %v3499
      %v3518 = vpack.c.b16 %v3502, %v3501
      %3535 = vmatpush.bf16.msra.mxu0 %v3510
      %3536 = vmatpush.bf16.msra.mxu0 %v3509
      %3537 = vmatpush.bf16.msra.mxu0 %v3508
      %3538 = vmatpush.bf16.msra.mxu0 %v3507
      %3539 = vmatpush.bf16.msra.mxu0 %v3506
      %3540 = vmatpush.bf16.msra.mxu0 %v3505
      %3541 = vmatpush.bf16.msra.mxu0 %v3504
      %3542 = vmatpush.bf16.msra.mxu0 %v3503
      %3543 = vmatmul.bf16.gmra.mxu0 %v3375
      %v3544 = vpop.f32.mrf.mxu0
      %v3545 = vadd.f32 %v3200, %v3544
      %v3546 = vpop.f32.mrf.mxu0
      %v3547 = vadd.f32 %v3202, %v3546
      %3548 = vmatmul.bf16.gmra.mxu0 %v3377
      %v3549 = vpop.f32.mrf.mxu0
      %v3550 = vadd.f32 %v3205, %v3549
      %v3551 = vpop.f32.mrf.mxu0
      %v3552 = vadd.f32 %v3207, %v3551
      %3553 = vmatmul.bf16.gmra.mxu0 %v3379
      %v3554 = vpop.f32.mrf.mxu0
      %v3555 = vadd.f32 %v3210, %v3554
      %v3556 = vpop.f32.mrf.mxu0
      %v3557 = vadd.f32 %v3212, %v3556
      %3558 = vmatmul.bf16.gmra.mxu0 %v3381
      %v3559 = vpop.f32.mrf.mxu0
      %v3560 = vadd.f32 %v3215, %v3559
      %v3561 = vpop.f32.mrf.mxu0
      %v3562 = vadd.f32 %v3217, %v3561
      %3563 = vmatmul.bf16.gmra.mxu0 %v3383
      %v3564 = vpop.f32.mrf.mxu0
      %v3565 = vadd.f32 %v3220, %v3564
      %v3566 = vpop.f32.mrf.mxu0
      %v3567 = vadd.f32 %v3222, %v3566
      %3568 = vmatmul.bf16.gmra.mxu0 %v3385
      %v3569 = vpop.f32.mrf.mxu0
      %v3570 = vadd.f32 %v3225, %v3569
      %v3571 = vpop.f32.mrf.mxu0
      %v3572 = vadd.f32 %v3227, %v3571
      %3573 = vmatmul.bf16.gmra.mxu0 %v3387
      %v3574 = vpop.f32.mrf.mxu0
      %v3575 = vadd.f32 %v3230, %v3574
      %v3576 = vpop.f32.mrf.mxu0
      %v3577 = vadd.f32 %v3232, %v3576
      %3578 = vmatmul.bf16.gmra.mxu0 %v3389
      %v3579 = vpop.f32.mrf.mxu0
      %v3580 = vadd.f32 %v3235, %v3579
      %v3581 = vpop.f32.mrf.mxu0
      %v3582 = vadd.f32 %v3237, %v3581
      %3583 = vmatmul.bf16.gmra.mxu0 %v3391
      %v3584 = vpop.f32.mrf.mxu0
      %v3585 = vadd.f32 %v3240, %v3584
      %v3586 = vpop.f32.mrf.mxu0
      %v3587 = vadd.f32 %v3242, %v3586
      %3588 = vmatmul.bf16.gmra.mxu0 %v3393
      %v3589 = vpop.f32.mrf.mxu0
      %v3590 = vadd.f32 %v3245, %v3589
      %v3591 = vpop.f32.mrf.mxu0
      %v3592 = vadd.f32 %v3247, %v3591
      %3593 = vmatmul.bf16.gmra.mxu0 %v3395
      %v3594 = vpop.f32.mrf.mxu0
      %v3595 = vadd.f32 %v3250, %v3594
      %v3596 = vpop.f32.mrf.mxu0
      %v3597 = vadd.f32 %v3252, %v3596
      %3598 = vmatmul.bf16.gmra.mxu0 %v3397
      %v3599 = vpop.f32.mrf.mxu0
      %v3600 = vadd.f32 %v3255, %v3599
      %v3601 = vpop.f32.mrf.mxu0
      %v3602 = vadd.f32 %v3257, %v3601
      %3603 = vmatmul.bf16.gmra.mxu0 %v3399
      %v3604 = vpop.f32.mrf.mxu0
      %v3605 = vadd.f32 %v3260, %v3604
      %v3606 = vpop.f32.mrf.mxu0
      %v3607 = vadd.f32 %v3262, %v3606
      %3608 = vmatmul.bf16.gmra.mxu0 %v3401
      %v3609 = vpop.f32.mrf.mxu0
      %v3610 = vadd.f32 %v3265, %v3609
      %v3611 = vpop.f32.mrf.mxu0
      %v3612 = vadd.f32 %v3267, %v3611
      %3613 = vmatmul.bf16.gmra.mxu0 %v3403
      %v3614 = vpop.f32.mrf.mxu0
      %v3615 = vadd.f32 %v3270, %v3614
      %v3616 = vpop.f32.mrf.mxu0
      %v3617 = vadd.f32 %v3272, %v3616
      %3618 = vmatmul.bf16.gmra.mxu0 %v3405
      %v3619 = vpop.f32.mrf.mxu0
      %v3620 = vadd.f32 %v3275, %v3619
      %v3621 = vpop.f32.mrf.mxu0
      %v3622 = vadd.f32 %v3277, %v3621
      %3623 = vdwg.mxu0
      %3624 = vmatpush.bf16.msra.mxu0 %v3518
      %3625 = vmatpush.bf16.msra.mxu0 %v3517
      %3626 = vmatpush.bf16.msra.mxu0 %v3516
      %3627 = vmatpush.bf16.msra.mxu0 %v3515
      %3628 = vmatpush.bf16.msra.mxu0 %v3514
      %3629 = vmatpush.bf16.msra.mxu0 %v3513
      %3630 = vmatpush.bf16.msra.mxu0 %v3512
      %3631 = vmatpush.bf16.msra.mxu0 %v3511
      %3632 = vmatmul.bf16.gmra.mxu0 %v3376
      %v3633 = vpop.f32.mrf.mxu0
      %v3634 = vadd.f32 %v3545, %v3633
      %v3635 = vpop.f32.mrf.mxu0
      %v3636 = vadd.f32 %v3547, %v3635
      %3637 = vmatmul.bf16.gmra.mxu0 %v3378
      %v3638 = vpop.f32.mrf.mxu0
      %v3639 = vadd.f32 %v3550, %v3638
      %v3640 = vpop.f32.mrf.mxu0
      %v3641 = vadd.f32 %v3552, %v3640
      %3642 = vmatmul.bf16.gmra.mxu0 %v3380
      %v3643 = vpop.f32.mrf.mxu0
      %v3644 = vadd.f32 %v3555, %v3643
      %v3645 = vpop.f32.mrf.mxu0
      %v3646 = vadd.f32 %v3557, %v3645
      %3647 = vmatmul.bf16.gmra.mxu0 %v3382
      %v3648 = vpop.f32.mrf.mxu0
      %v3649 = vadd.f32 %v3560, %v3648
      %v3650 = vpop.f32.mrf.mxu0
      %v3651 = vadd.f32 %v3562, %v3650
      %3652 = vmatmul.bf16.gmra.mxu0 %v3384
      %v3653 = vpop.f32.mrf.mxu0
      %v3654 = vadd.f32 %v3565, %v3653
      %v3655 = vpop.f32.mrf.mxu0
      %v3656 = vadd.f32 %v3567, %v3655
      %3657 = vmatmul.bf16.gmra.mxu0 %v3386
      %v3658 = vpop.f32.mrf.mxu0
      %v3659 = vadd.f32 %v3570, %v3658
      %v3660 = vpop.f32.mrf.mxu0
      %v3661 = vadd.f32 %v3572, %v3660
      %3662 = vmatmul.bf16.gmra.mxu0 %v3388
      %v3663 = vpop.f32.mrf.mxu0
      %v3664 = vadd.f32 %v3575, %v3663
      %v3665 = vpop.f32.mrf.mxu0
      %v3666 = vadd.f32 %v3577, %v3665
      %3667 = vmatmul.bf16.gmra.mxu0 %v3390
      %v3668 = vpop.f32.mrf.mxu0
      %v3669 = vadd.f32 %v3580, %v3668
      %v3670 = vpop.f32.mrf.mxu0
      %v3671 = vadd.f32 %v3582, %v3670
      %3672 = vmatmul.bf16.gmra.mxu0 %v3392
      %v3673 = vpop.f32.mrf.mxu0
      %v3674 = vadd.f32 %v3585, %v3673
      %v3675 = vpop.f32.mrf.mxu0
      %v3676 = vadd.f32 %v3587, %v3675
      %3677 = vmatmul.bf16.gmra.mxu0 %v3394
      %v3678 = vpop.f32.mrf.mxu0
      %v3679 = vadd.f32 %v3590, %v3678
      %v3680 = vpop.f32.mrf.mxu0
      %v3681 = vadd.f32 %v3592, %v3680
      %3682 = vmatmul.bf16.gmra.mxu0 %v3396
      %v3683 = vpop.f32.mrf.mxu0
      %v3684 = vadd.f32 %v3595, %v3683
      %v3685 = vpop.f32.mrf.mxu0
      %v3686 = vadd.f32 %v3597, %v3685
      %3687 = vmatmul.bf16.gmra.mxu0 %v3398
      %v3688 = vpop.f32.mrf.mxu0
      %v3689 = vadd.f32 %v3600, %v3688
      %v3690 = vpop.f32.mrf.mxu0
      %v3691 = vadd.f32 %v3602, %v3690
      %3692 = vmatmul.bf16.gmra.mxu0 %v3400
      %v3693 = vpop.f32.mrf.mxu0
      %v3694 = vadd.f32 %v3605, %v3693
      %v3695 = vpop.f32.mrf.mxu0
      %v3696 = vadd.f32 %v3607, %v3695
      %3697 = vmatmul.bf16.gmra.mxu0 %v3402
      %v3698 = vpop.f32.mrf.mxu0
      %v3699 = vadd.f32 %v3610, %v3698
      %v3700 = vpop.f32.mrf.mxu0
      %v3701 = vadd.f32 %v3612, %v3700
      %3702 = vmatmul.bf16.gmra.mxu0 %v3404
      %v3703 = vpop.f32.mrf.mxu0
      %v3704 = vadd.f32 %v3615, %v3703
      %v3705 = vpop.f32.mrf.mxu0
      %v3706 = vadd.f32 %v3617, %v3705
      %3707 = vmatmul.bf16.gmra.mxu0 %v3406
      %v3708 = vpop.f32.mrf.mxu0
      %v3709 = vadd.f32 %v3620, %v3708
      %v3710 = vpop.f32.mrf.mxu0
      %v3711 = vadd.f32 %v3622, %v3710
      %3712 = vdwg.mxu0
      %v3713 = vld [vmem:[%s2679] sm:$0xff]
      %v3714 = vld [vmem:[%s2679 + $0x8] sm:$0xff]
      %v3715 = vld [vmem:[%s2679 + $0x10] sm:$0xff]
      %v3716 = vld [vmem:[%s2679 + $0x18] sm:$0xff]
      %v3717 = vld [vmem:[%s2679 + $0x20] sm:$0xff]
      %v3718 = vld [vmem:[%s2679 + $0x28] sm:$0xff]
      %v3719 = vld [vmem:[%s2679 + $0x30] sm:$0xff]
      %v3720 = vld [vmem:[%s2679 + $0x38] sm:$0xff]
      %v3721 = vld [vmem:[%s2679 + $0x40] sm:$0xff]
      %v3722 = vld [vmem:[%s2679 + $0x48] sm:$0xff]
      %v3723 = vld [vmem:[%s2679 + $0x50] sm:$0xff]
      %v3724 = vld [vmem:[%s2679 + $0x58] sm:$0xff]
      %v3725 = vld [vmem:[%s2679 + $0x60] sm:$0xff]
      %v3726 = vld [vmem:[%s2679 + $0x68] sm:$0xff]
      %v3727 = vld [vmem:[%s2679 + $0x70] sm:$0xff]
      %v3728 = vld [vmem:[%s2679 + $0x78] sm:$0xff]
      %v3729 = vld [vmem:[%s2679 + $0x80] sm:$0xff]
      %v3730 = vld [vmem:[%s2679 + $0x88] sm:$0xff]
      %v3731 = vld [vmem:[%s2679 + $0x90] sm:$0xff]
      %v3732 = vld [vmem:[%s2679 + $0x98] sm:$0xff]
      %v3733 = vld [vmem:[%s2679 + $0xa0] sm:$0xff]
      %v3734 = vld [vmem:[%s2679 + $0xa8] sm:$0xff]
      %v3735 = vld [vmem:[%s2679 + $0xb0] sm:$0xff]
      %v3736 = vld [vmem:[%s2679 + $0xb8] sm:$0xff]
      %v3737 = vld [vmem:[%s2679 + $0xc0] sm:$0xff]
      %v3738 = vld [vmem:[%s2679 + $0xc8] sm:$0xff]
      %v3739 = vld [vmem:[%s2679 + $0xd0] sm:$0xff]
      %v3740 = vld [vmem:[%s2679 + $0xd8] sm:$0xff]
      %v3741 = vld [vmem:[%s2679 + $0xe0] sm:$0xff]
      %v3742 = vld [vmem:[%s2679 + $0xe8] sm:$0xff]
      %v3743 = vld [vmem:[%s2679 + $0xf0] sm:$0xff]
      %v3744 = vld [vmem:[%s2679 + $0xf8] sm:$0xff]
      %s3745 = scalar_lea.vmem %s6, 256
      %v3746 = vld [vmem:[%s3745] sm:$0xf]
      %v3747 = vld [vmem:[%s3745 + $0x4] sm:$0xf]
      %v3748 = vld [vmem:[%s3745 + $0x8] sm:$0xf]
      %v3749 = vld [vmem:[%s3745 + $0xc] sm:$0xf]
      %v3750 = vld [vmem:[%s3745 + $0x10] sm:$0xf]
      %v3751 = vld [vmem:[%s3745 + $0x14] sm:$0xf]
      %v3752 = vld [vmem:[%s3745 + $0x18] sm:$0xf]
      %v3753 = vld [vmem:[%s3745 + $0x1c] sm:$0xf]
      %v3754 = vld [vmem:[%s3745 + $0x20] sm:$0xf]
      %v3755 = vld [vmem:[%s3745 + $0x24] sm:$0xf]
      %v3756 = vld [vmem:[%s3745 + $0x28] sm:$0xf]
      %v3757 = vld [vmem:[%s3745 + $0x2c] sm:$0xf]
      %v3758 = vld [vmem:[%s3745 + $0x30] sm:$0xf]
      %v3759 = vld [vmem:[%s3745 + $0x34] sm:$0xf]
      %v3760 = vld [vmem:[%s3745 + $0x38] sm:$0xf]
      %v3761 = vld [vmem:[%s3745 + $0x3c] sm:$0xf]
      %v3762 = vld [vmem:[%s3745 + $0x40] sm:$0xf]
      %v3763 = vld [vmem:[%s3745 + $0x44] sm:$0xf]
      %v3764 = vld [vmem:[%s3745 + $0x48] sm:$0xf]
      %v3765 = vld [vmem:[%s3745 + $0x4c] sm:$0xf]
      %v3766 = vld [vmem:[%s3745 + $0x50] sm:$0xf]
      %v3767 = vld [vmem:[%s3745 + $0x54] sm:$0xf]
      %v3768 = vld [vmem:[%s3745 + $0x58] sm:$0xf]
      %v3769 = vld [vmem:[%s3745 + $0x5c] sm:$0xf]
      %v3770 = vld [vmem:[%s3745 + $0x60] sm:$0xf]
      %v3771 = vld [vmem:[%s3745 + $0x64] sm:$0xf]
      %v3772 = vld [vmem:[%s3745 + $0x68] sm:$0xf]
      %v3773 = vld [vmem:[%s3745 + $0x6c] sm:$0xf]
      %v3774 = vld [vmem:[%s3745 + $0x70] sm:$0xf]
      %v3775 = vld [vmem:[%s3745 + $0x74] sm:$0xf]
      %v3776 = vld [vmem:[%s3745 + $0x78] sm:$0xf]
      %v3777 = vld [vmem:[%s3745 + $0x7c] sm:$0xf]
      %v3810 = vunpack.c.l.b16 %v3713
      %v3811 = vunpack.c.h.b16 %v3713
      %v3812 = vunpack.c.l.b16 %v3714
      %v3813 = vunpack.c.h.b16 %v3714
      %v3814 = vunpack.c.l.b16 %v3715
      %v3815 = vunpack.c.h.b16 %v3715
      %v3816 = vunpack.c.l.b16 %v3716
      %v3817 = vunpack.c.h.b16 %v3716
      %v3818 = vunpack.c.l.b16 %v3717
      %v3819 = vunpack.c.h.b16 %v3717
      %v3820 = vunpack.c.l.b16 %v3718
      %v3821 = vunpack.c.h.b16 %v3718
      %v3822 = vunpack.c.l.b16 %v3719
      %v3823 = vunpack.c.h.b16 %v3719
      %v3824 = vunpack.c.l.b16 %v3720
      %v3825 = vunpack.c.h.b16 %v3720
      %v3826 = vunpack.c.l.b16 %v3721
      %v3827 = vunpack.c.h.b16 %v3721
      %v3828 = vunpack.c.l.b16 %v3722
      %v3829 = vunpack.c.h.b16 %v3722
      %v3830 = vunpack.c.l.b16 %v3723
      %v3831 = vunpack.c.h.b16 %v3723
      %v3832 = vunpack.c.l.b16 %v3724
      %v3833 = vunpack.c.h.b16 %v3724
      %v3834 = vunpack.c.l.b16 %v3725
      %v3835 = vunpack.c.h.b16 %v3725
      %v3836 = vunpack.c.l.b16 %v3726
      %v3837 = vunpack.c.h.b16 %v3726
      %v3838 = vunpack.c.l.b16 %v3727
      %v3839 = vunpack.c.h.b16 %v3727
      %v3840 = vunpack.c.l.b16 %v3728
      %v3841 = vunpack.c.h.b16 %v3728
      %v3842 = vunpack.c.l.b16 %v3729
      %v3843 = vunpack.c.h.b16 %v3729
      %v3844 = vunpack.c.l.b16 %v3730
      %v3845 = vunpack.c.h.b16 %v3730
      %v3846 = vunpack.c.l.b16 %v3731
      %v3847 = vunpack.c.h.b16 %v3731
      %v3848 = vunpack.c.l.b16 %v3732
      %v3849 = vunpack.c.h.b16 %v3732
      %v3850 = vunpack.c.l.b16 %v3733
      %v3851 = vunpack.c.h.b16 %v3733
      %v3852 = vunpack.c.l.b16 %v3734
      %v3853 = vunpack.c.h.b16 %v3734
      %v3854 = vunpack.c.l.b16 %v3735
      %v3855 = vunpack.c.h.b16 %v3735
      %v3856 = vunpack.c.l.b16 %v3736
      %v3857 = vunpack.c.h.b16 %v3736
      %v3858 = vunpack.c.l.b16 %v3737
      %v3859 = vunpack.c.h.b16 %v3737
      %v3860 = vunpack.c.l.b16 %v3738
      %v3861 = vunpack.c.h.b16 %v3738
      %v3862 = vunpack.c.l.b16 %v3739
      %v3863 = vunpack.c.h.b16 %v3739
      %v3864 = vunpack.c.l.b16 %v3740
      %v3865 = vunpack.c.h.b16 %v3740
      %v3866 = vunpack.c.l.b16 %v3741
      %v3867 = vunpack.c.h.b16 %v3741
      %v3868 = vunpack.c.l.b16 %v3742
      %v3869 = vunpack.c.h.b16 %v3742
      %v3870 = vunpack.c.l.b16 %v3743
      %v3871 = vunpack.c.h.b16 %v3743
      %v3872 = vunpack.c.l.b16 %v3744
      %v3873 = vunpack.c.h.b16 %v3744
      %v3874 = vpack.c.b16 %v3812, %v3810
      %v3875 = vpack.c.b16 %v3813, %v3811
      %v3876 = vpack.c.b16 %v3816, %v3814
      %v3877 = vpack.c.b16 %v3817, %v3815
      %v3878 = vpack.c.b16 %v3820, %v3818
      %v3879 = vpack.c.b16 %v3821, %v3819
      %v3880 = vpack.c.b16 %v3824, %v3822
      %v3881 = vpack.c.b16 %v3825, %v3823
      %v3882 = vpack.c.b16 %v3828, %v3826
      %v3883 = vpack.c.b16 %v3829, %v3827
      %v3884 = vpack.c.b16 %v3832, %v3830
      %v3885 = vpack.c.b16 %v3833, %v3831
      %v3886 = vpack.c.b16 %v3836, %v3834
      %v3887 = vpack.c.b16 %v3837, %v3835
      %v3888 = vpack.c.b16 %v3840, %v3838
      %v3889 = vpack.c.b16 %v3841, %v3839
      %v3890 = vpack.c.b16 %v3844, %v3842
      %v3891 = vpack.c.b16 %v3845, %v3843
      %v3892 = vpack.c.b16 %v3848, %v3846
      %v3893 = vpack.c.b16 %v3849, %v3847
      %v3894 = vpack.c.b16 %v3852, %v3850
      %v3895 = vpack.c.b16 %v3853, %v3851
      %v3896 = vpack.c.b16 %v3856, %v3854
      %v3897 = vpack.c.b16 %v3857, %v3855
      %v3898 = vpack.c.b16 %v3860, %v3858
      %v3899 = vpack.c.b16 %v3861, %v3859
      %v3900 = vpack.c.b16 %v3864, %v3862
      %v3901 = vpack.c.b16 %v3865, %v3863
      %v3902 = vpack.c.b16 %v3868, %v3866
      %v3903 = vpack.c.b16 %v3869, %v3867
      %v3904 = vpack.c.b16 %v3872, %v3870
      %v3905 = vpack.c.b16 %v3873, %v3871
      %v3970 = vunpack.c.l.b16 %v3746
      %v3971 = vunpack.c.l.b16 %v3747
      %v3972 = vunpack.c.l.b16 %v3748
      %v3973 = vunpack.c.l.b16 %v3749
      %v3974 = vunpack.c.l.b16 %v3750
      %v3975 = vunpack.c.l.b16 %v3751
      %v3976 = vunpack.c.l.b16 %v3752
      %v3977 = vunpack.c.l.b16 %v3753
      %v3978 = vunpack.c.l.b16 %v3754
      %v3979 = vunpack.c.l.b16 %v3755
      %v3980 = vunpack.c.l.b16 %v3756
      %v3981 = vunpack.c.l.b16 %v3757
      %v3982 = vunpack.c.l.b16 %v3758
      %v3983 = vunpack.c.l.b16 %v3759
      %v3984 = vunpack.c.l.b16 %v3760
      %v3985 = vunpack.c.l.b16 %v3761
      %v3986 = vunpack.c.l.b16 %v3762
      %v3987 = vunpack.c.l.b16 %v3763
      %v3988 = vunpack.c.l.b16 %v3764
      %v3989 = vunpack.c.l.b16 %v3765
      %v3990 = vunpack.c.l.b16 %v3766
      %v3991 = vunpack.c.l.b16 %v3767
      %v3992 = vunpack.c.l.b16 %v3768
      %v3993 = vunpack.c.l.b16 %v3769
      %v3994 = vunpack.c.l.b16 %v3770
      %v3995 = vunpack.c.l.b16 %v3771
      %v3996 = vunpack.c.l.b16 %v3772
      %v3997 = vunpack.c.l.b16 %v3773
      %v3998 = vunpack.c.l.b16 %v3774
      %v3999 = vunpack.c.l.b16 %v3775
      %v4000 = vunpack.c.l.b16 %v3776
      %v4001 = vunpack.c.l.b16 %v3777
      %v4002 = vpack.c.b16 %v3971, %v3970
      %v4003 = vpack.c.b16 %v3973, %v3972
      %v4004 = vpack.c.b16 %v3975, %v3974
      %v4005 = vpack.c.b16 %v3977, %v3976
      %v4006 = vpack.c.b16 %v3979, %v3978
      %v4007 = vpack.c.b16 %v3981, %v3980
      %v4008 = vpack.c.b16 %v3983, %v3982
      %v4009 = vpack.c.b16 %v3985, %v3984
      %v4010 = vpack.c.b16 %v3987, %v3986
      %v4011 = vpack.c.b16 %v3989, %v3988
      %v4012 = vpack.c.b16 %v3991, %v3990
      %v4013 = vpack.c.b16 %v3993, %v3992
      %v4014 = vpack.c.b16 %v3995, %v3994
      %v4015 = vpack.c.b16 %v3997, %v3996
      %v4016 = vpack.c.b16 %v3999, %v3998
      %v4017 = vpack.c.b16 %v4001, %v4000
      %4034 = vmatpush.bf16.msra.mxu0 %v4009
      %4035 = vmatpush.bf16.msra.mxu0 %v4008
      %4036 = vmatpush.bf16.msra.mxu0 %v4007
      %4037 = vmatpush.bf16.msra.mxu0 %v4006
      %4038 = vmatpush.bf16.msra.mxu0 %v4005
      %4039 = vmatpush.bf16.msra.mxu0 %v4004
      %4040 = vmatpush.bf16.msra.mxu0 %v4003
      %4041 = vmatpush.bf16.msra.mxu0 %v4002
      %4042 = vmatmul.bf16.gmra.mxu0 %v3874
      %v4043 = vpop.f32.mrf.mxu0
      %v4044 = vadd.f32 0.0, %v4043
      %v4045 = vpop.f32.mrf.mxu0
      %v4046 = vadd.f32 0.0, %v4045
      %4047 = vmatmul.bf16.gmra.mxu0 %v3876
      %v4048 = vpop.f32.mrf.mxu0
      %v4049 = vadd.f32 0.0, %v4048
      %v4050 = vpop.f32.mrf.mxu0
      %v4051 = vadd.f32 0.0, %v4050
      %4052 = vmatmul.bf16.gmra.mxu0 %v3878
      %v4053 = vpop.f32.mrf.mxu0
      %v4054 = vadd.f32 0.0, %v4053
      %v4055 = vpop.f32.mrf.mxu0
      %v4056 = vadd.f32 0.0, %v4055
      %4057 = vmatmul.bf16.gmra.mxu0 %v3880
      %v4058 = vpop.f32.mrf.mxu0
      %v4059 = vadd.f32 0.0, %v4058
      %v4060 = vpop.f32.mrf.mxu0
      %v4061 = vadd.f32 0.0, %v4060
      %4062 = vmatmul.bf16.gmra.mxu0 %v3882
      %v4063 = vpop.f32.mrf.mxu0
      %v4064 = vadd.f32 0.0, %v4063
      %v4065 = vpop.f32.mrf.mxu0
      %v4066 = vadd.f32 0.0, %v4065
      %4067 = vmatmul.bf16.gmra.mxu0 %v3884
      %v4068 = vpop.f32.mrf.mxu0
      %v4069 = vadd.f32 0.0, %v4068
      %v4070 = vpop.f32.mrf.mxu0
      %v4071 = vadd.f32 0.0, %v4070
      %4072 = vmatmul.bf16.gmra.mxu0 %v3886
      %v4073 = vpop.f32.mrf.mxu0
      %v4074 = vadd.f32 0.0, %v4073
      %v4075 = vpop.f32.mrf.mxu0
      %v4076 = vadd.f32 0.0, %v4075
      %4077 = vmatmul.bf16.gmra.mxu0 %v3888
      %v4078 = vpop.f32.mrf.mxu0
      %v4079 = vadd.f32 0.0, %v4078
      %v4080 = vpop.f32.mrf.mxu0
      %v4081 = vadd.f32 0.0, %v4080
      %4082 = vmatmul.bf16.gmra.mxu0 %v3890
      %v4083 = vpop.f32.mrf.mxu0
      %v4084 = vadd.f32 0.0, %v4083
      %v4085 = vpop.f32.mrf.mxu0
      %v4086 = vadd.f32 0.0, %v4085
      %4087 = vmatmul.bf16.gmra.mxu0 %v3892
      %v4088 = vpop.f32.mrf.mxu0
      %v4089 = vadd.f32 0.0, %v4088
      %v4090 = vpop.f32.mrf.mxu0
      %v4091 = vadd.f32 0.0, %v4090
      %4092 = vmatmul.bf16.gmra.mxu0 %v3894
      %v4093 = vpop.f32.mrf.mxu0
      %v4094 = vadd.f32 0.0, %v4093
      %v4095 = vpop.f32.mrf.mxu0
      %v4096 = vadd.f32 0.0, %v4095
      %4097 = vmatmul.bf16.gmra.mxu0 %v3896
      %v4098 = vpop.f32.mrf.mxu0
      %v4099 = vadd.f32 0.0, %v4098
      %v4100 = vpop.f32.mrf.mxu0
      %v4101 = vadd.f32 0.0, %v4100
      %4102 = vmatmul.bf16.gmra.mxu0 %v3898
      %v4103 = vpop.f32.mrf.mxu0
      %v4104 = vadd.f32 0.0, %v4103
      %v4105 = vpop.f32.mrf.mxu0
      %v4106 = vadd.f32 0.0, %v4105
      %4107 = vmatmul.bf16.gmra.mxu0 %v3900
      %v4108 = vpop.f32.mrf.mxu0
      %v4109 = vadd.f32 0.0, %v4108
      %v4110 = vpop.f32.mrf.mxu0
      %v4111 = vadd.f32 0.0, %v4110
      %4112 = vmatmul.bf16.gmra.mxu0 %v3902
      %v4113 = vpop.f32.mrf.mxu0
      %v4114 = vadd.f32 0.0, %v4113
      %v4115 = vpop.f32.mrf.mxu0
      %v4116 = vadd.f32 0.0, %v4115
      %4117 = vmatmul.bf16.gmra.mxu0 %v3904
      %v4118 = vpop.f32.mrf.mxu0
      %v4119 = vadd.f32 0.0, %v4118
      %v4120 = vpop.f32.mrf.mxu0
      %v4121 = vadd.f32 0.0, %v4120
      %4122 = vdwg.mxu0
      %4123 = vmatpush.bf16.msra.mxu0 %v4017
      %4124 = vmatpush.bf16.msra.mxu0 %v4016
      %4125 = vmatpush.bf16.msra.mxu0 %v4015
      %4126 = vmatpush.bf16.msra.mxu0 %v4014
      %4127 = vmatpush.bf16.msra.mxu0 %v4013
      %4128 = vmatpush.bf16.msra.mxu0 %v4012
      %4129 = vmatpush.bf16.msra.mxu0 %v4011
      %4130 = vmatpush.bf16.msra.mxu0 %v4010
      %4131 = vmatmul.bf16.gmra.mxu0 %v3875
      %v4132 = vpop.f32.mrf.mxu0
      %v4133 = vadd.f32 %v4044, %v4132
      %v4134 = vpop.f32.mrf.mxu0
      %v4135 = vadd.f32 %v4046, %v4134
      %4136 = vmatmul.bf16.gmra.mxu0 %v3877
      %v4137 = vpop.f32.mrf.mxu0
      %v4138 = vadd.f32 %v4049, %v4137
      %v4139 = vpop.f32.mrf.mxu0
      %v4140 = vadd.f32 %v4051, %v4139
      %4141 = vmatmul.bf16.gmra.mxu0 %v3879
      %v4142 = vpop.f32.mrf.mxu0
      %v4143 = vadd.f32 %v4054, %v4142
      %v4144 = vpop.f32.mrf.mxu0
      %v4145 = vadd.f32 %v4056, %v4144
      %4146 = vmatmul.bf16.gmra.mxu0 %v3881
      %v4147 = vpop.f32.mrf.mxu0
      %v4148 = vadd.f32 %v4059, %v4147
      %v4149 = vpop.f32.mrf.mxu0
      %v4150 = vadd.f32 %v4061, %v4149
      %4151 = vmatmul.bf16.gmra.mxu0 %v3883
      %v4152 = vpop.f32.mrf.mxu0
      %v4153 = vadd.f32 %v4064, %v4152
      %v4154 = vpop.f32.mrf.mxu0
      %v4155 = vadd.f32 %v4066, %v4154
      %4156 = vmatmul.bf16.gmra.mxu0 %v3885
      %v4157 = vpop.f32.mrf.mxu0
      %v4158 = vadd.f32 %v4069, %v4157
      %v4159 = vpop.f32.mrf.mxu0
      %v4160 = vadd.f32 %v4071, %v4159
      %4161 = vmatmul.bf16.gmra.mxu0 %v3887
      %v4162 = vpop.f32.mrf.mxu0
      %v4163 = vadd.f32 %v4074, %v4162
      %v4164 = vpop.f32.mrf.mxu0
      %v4165 = vadd.f32 %v4076, %v4164
      %4166 = vmatmul.bf16.gmra.mxu0 %v3889
      %v4167 = vpop.f32.mrf.mxu0
      %v4168 = vadd.f32 %v4079, %v4167
      %v4169 = vpop.f32.mrf.mxu0
      %v4170 = vadd.f32 %v4081, %v4169
      %4171 = vmatmul.bf16.gmra.mxu0 %v3891
      %v4172 = vpop.f32.mrf.mxu0
      %v4173 = vadd.f32 %v4084, %v4172
      %v4174 = vpop.f32.mrf.mxu0
      %v4175 = vadd.f32 %v4086, %v4174
      %4176 = vmatmul.bf16.gmra.mxu0 %v3893
      %v4177 = vpop.f32.mrf.mxu0
      %v4178 = vadd.f32 %v4089, %v4177
      %v4179 = vpop.f32.mrf.mxu0
      %v4180 = vadd.f32 %v4091, %v4179
      %4181 = vmatmul.bf16.gmra.mxu0 %v3895
      %v4182 = vpop.f32.mrf.mxu0
      %v4183 = vadd.f32 %v4094, %v4182
      %v4184 = vpop.f32.mrf.mxu0
      %v4185 = vadd.f32 %v4096, %v4184
      %4186 = vmatmul.bf16.gmra.mxu0 %v3897
      %v4187 = vpop.f32.mrf.mxu0
      %v4188 = vadd.f32 %v4099, %v4187
      %v4189 = vpop.f32.mrf.mxu0
      %v4190 = vadd.f32 %v4101, %v4189
      %4191 = vmatmul.bf16.gmra.mxu0 %v3899
      %v4192 = vpop.f32.mrf.mxu0
      %v4193 = vadd.f32 %v4104, %v4192
      %v4194 = vpop.f32.mrf.mxu0
      %v4195 = vadd.f32 %v4106, %v4194
      %4196 = vmatmul.bf16.gmra.mxu0 %v3901
      %v4197 = vpop.f32.mrf.mxu0
      %v4198 = vadd.f32 %v4109, %v4197
      %v4199 = vpop.f32.mrf.mxu0
      %v4200 = vadd.f32 %v4111, %v4199
      %4201 = vmatmul.bf16.gmra.mxu0 %v3903
      %v4202 = vpop.f32.mrf.mxu0
      %v4203 = vadd.f32 %v4114, %v4202
      %v4204 = vpop.f32.mrf.mxu0
      %v4205 = vadd.f32 %v4116, %v4204
      %4206 = vmatmul.bf16.gmra.mxu0 %v3905
      %v4207 = vpop.f32.mrf.mxu0
      %v4208 = vadd.f32 %v4119, %v4207
      %v4209 = vpop.f32.mrf.mxu0
      %v4210 = vadd.f32 %v4121, %v4209
      %4211 = vdwg.mxu0
      %v4212 = vadd.f32 %v3634, %v4133
      %v4213 = vadd.f32 %v3636, %v4135
      %v4214 = vadd.f32 %v3639, %v4138
      %v4215 = vadd.f32 %v3641, %v4140
      %v4216 = vadd.f32 %v3644, %v4143
      %v4217 = vadd.f32 %v3646, %v4145
      %v4218 = vadd.f32 %v3649, %v4148
      %v4219 = vadd.f32 %v3651, %v4150
      %v4220 = vadd.f32 %v3654, %v4153
      %v4221 = vadd.f32 %v3656, %v4155
      %v4222 = vadd.f32 %v3659, %v4158
      %v4223 = vadd.f32 %v3661, %v4160
      %v4224 = vadd.f32 %v3664, %v4163
      %v4225 = vadd.f32 %v3666, %v4165
      %v4226 = vadd.f32 %v3669, %v4168
      %v4227 = vadd.f32 %v3671, %v4170
      %v4228 = vadd.f32 %v3674, %v4173
      %v4229 = vadd.f32 %v3676, %v4175
      %v4230 = vadd.f32 %v3679, %v4178
      %v4231 = vadd.f32 %v3681, %v4180
      %v4232 = vadd.f32 %v3684, %v4183
      %v4233 = vadd.f32 %v3686, %v4185
      %v4234 = vadd.f32 %v3689, %v4188
      %v4235 = vadd.f32 %v3691, %v4190
      %v4236 = vadd.f32 %v3694, %v4193
      %v4237 = vadd.f32 %v3696, %v4195
      %v4238 = vadd.f32 %v3699, %v4198
      %v4239 = vadd.f32 %v3701, %v4200
      %v4240 = vadd.f32 %v3704, %v4203
      %v4241 = vadd.f32 %v3706, %v4205
      %v4242 = vadd.f32 %v3709, %v4208
      %v4243 = vadd.f32 %v3711, %v4210
      %s4244 = scalar_lea.vmem [#allocation2], 16
      %v4245 = vld [vmem:[%s4244] sm:$0xff]
      %v4246 = vld [vmem:[%s4244 + $0x8] sm:$0xff]
      %v4247 = vld [vmem:[%s4244 + $0x10] sm:$0xff]
      %v4248 = vld [vmem:[%s4244 + $0x18] sm:$0xff]
      %v4249 = vld [vmem:[%s4244 + $0x20] sm:$0xff]
      %v4250 = vld [vmem:[%s4244 + $0x28] sm:$0xff]
      %v4251 = vld [vmem:[%s4244 + $0x30] sm:$0xff]
      %v4252 = vld [vmem:[%s4244 + $0x38] sm:$0xff]
      %v4253 = vld [vmem:[%s4244 + $0x40] sm:$0xff]
      %v4254 = vld [vmem:[%s4244 + $0x48] sm:$0xff]
      %v4255 = vld [vmem:[%s4244 + $0x50] sm:$0xff]
      %v4256 = vld [vmem:[%s4244 + $0x58] sm:$0xff]
      %v4257 = vld [vmem:[%s4244 + $0x60] sm:$0xff]
      %v4258 = vld [vmem:[%s4244 + $0x68] sm:$0xff]
      %v4259 = vld [vmem:[%s4244 + $0x70] sm:$0xff]
      %v4260 = vld [vmem:[%s4244 + $0x78] sm:$0xff]
      %v4261 = vld [vmem:[%s4244 + $0x80] sm:$0xff]
      %v4262 = vld [vmem:[%s4244 + $0x88] sm:$0xff]
      %v4263 = vld [vmem:[%s4244 + $0x90] sm:$0xff]
      %v4264 = vld [vmem:[%s4244 + $0x98] sm:$0xff]
      %v4265 = vld [vmem:[%s4244 + $0xa0] sm:$0xff]
      %v4266 = vld [vmem:[%s4244 + $0xa8] sm:$0xff]
      %v4267 = vld [vmem:[%s4244 + $0xb0] sm:$0xff]
      %v4268 = vld [vmem:[%s4244 + $0xb8] sm:$0xff]
      %v4269 = vld [vmem:[%s4244 + $0xc0] sm:$0xff]
      %v4270 = vld [vmem:[%s4244 + $0xc8] sm:$0xff]
      %v4271 = vld [vmem:[%s4244 + $0xd0] sm:$0xff]
      %v4272 = vld [vmem:[%s4244 + $0xd8] sm:$0xff]
      %v4273 = vld [vmem:[%s4244 + $0xe0] sm:$0xff]
      %v4274 = vld [vmem:[%s4244 + $0xe8] sm:$0xff]
      %v4275 = vld [vmem:[%s4244 + $0xf0] sm:$0xff]
      %v4276 = vld [vmem:[%s4244 + $0xf8] sm:$0xff]
      %s4277 = scalar_lea.vmem %s6, 384
      %v4278 = vld [vmem:[%s4277] sm:$0xf]
      %v4279 = vld [vmem:[%s4277 + $0x4] sm:$0xf]
      %v4280 = vld [vmem:[%s4277 + $0x8] sm:$0xf]
      %v4281 = vld [vmem:[%s4277 + $0xc] sm:$0xf]
      %v4282 = vld [vmem:[%s4277 + $0x10] sm:$0xf]
      %v4283 = vld [vmem:[%s4277 + $0x14] sm:$0xf]
      %v4284 = vld [vmem:[%s4277 + $0x18] sm:$0xf]
      %v4285 = vld [vmem:[%s4277 + $0x1c] sm:$0xf]
      %v4286 = vld [vmem:[%s4277 + $0x20] sm:$0xf]
      %v4287 = vld [vmem:[%s4277 + $0x24] sm:$0xf]
      %v4288 = vld [vmem:[%s4277 + $0x28] sm:$0xf]
      %v4289 = vld [vmem:[%s4277 + $0x2c] sm:$0xf]
      %v4290 = vld [vmem:[%s4277 + $0x30] sm:$0xf]
      %v4291 = vld [vmem:[%s4277 + $0x34] sm:$0xf]
      %v4292 = vld [vmem:[%s4277 + $0x38] sm:$0xf]
      %v4293 = vld [vmem:[%s4277 + $0x3c] sm:$0xf]
      %v4294 = vld [vmem:[%s4277 + $0x40] sm:$0xf]
      %v4295 = vld [vmem:[%s4277 + $0x44] sm:$0xf]
      %v4296 = vld [vmem:[%s4277 + $0x48] sm:$0xf]
      %v4297 = vld [vmem:[%s4277 + $0x4c] sm:$0xf]
      %v4298 = vld [vmem:[%s4277 + $0x50] sm:$0xf]
      %v4299 = vld [vmem:[%s4277 + $0x54] sm:$0xf]
      %v4300 = vld [vmem:[%s4277 + $0x58] sm:$0xf]
      %v4301 = vld [vmem:[%s4277 + $0x5c] sm:$0xf]
      %v4302 = vld [vmem:[%s4277 + $0x60] sm:$0xf]
      %v4303 = vld [vmem:[%s4277 + $0x64] sm:$0xf]
      %v4304 = vld [vmem:[%s4277 + $0x68] sm:$0xf]
      %v4305 = vld [vmem:[%s4277 + $0x6c] sm:$0xf]
      %v4306 = vld [vmem:[%s4277 + $0x70] sm:$0xf]
      %v4307 = vld [vmem:[%s4277 + $0x74] sm:$0xf]
      %v4308 = vld [vmem:[%s4277 + $0x78] sm:$0xf]
      %v4309 = vld [vmem:[%s4277 + $0x7c] sm:$0xf]
      %v4342 = vunpack.c.l.b16 %v4245
      %v4343 = vunpack.c.h.b16 %v4245
      %v4344 = vunpack.c.l.b16 %v4246
      %v4345 = vunpack.c.h.b16 %v4246
      %v4346 = vunpack.c.l.b16 %v4247
      %v4347 = vunpack.c.h.b16 %v4247
      %v4348 = vunpack.c.l.b16 %v4248
      %v4349 = vunpack.c.h.b16 %v4248
      %v4350 = vunpack.c.l.b16 %v4249
      %v4351 = vunpack.c.h.b16 %v4249
      %v4352 = vunpack.c.l.b16 %v4250
      %v4353 = vunpack.c.h.b16 %v4250
      %v4354 = vunpack.c.l.b16 %v4251
      %v4355 = vunpack.c.h.b16 %v4251
      %v4356 = vunpack.c.l.b16 %v4252
      %v4357 = vunpack.c.h.b16 %v4252
      %v4358 = vunpack.c.l.b16 %v4253
      %v4359 = vunpack.c.h.b16 %v4253
      %v4360 = vunpack.c.l.b16 %v4254
      %v4361 = vunpack.c.h.b16 %v4254
      %v4362 = vunpack.c.l.b16 %v4255
      %v4363 = vunpack.c.h.b16 %v4255
      %v4364 = vunpack.c.l.b16 %v4256
      %v4365 = vunpack.c.h.b16 %v4256
      %v4366 = vunpack.c.l.b16 %v4257
      %v4367 = vunpack.c.h.b16 %v4257
      %v4368 = vunpack.c.l.b16 %v4258
      %v4369 = vunpack.c.h.b16 %v4258
      %v4370 = vunpack.c.l.b16 %v4259
      %v4371 = vunpack.c.h.b16 %v4259
      %v4372 = vunpack.c.l.b16 %v4260
      %v4373 = vunpack.c.h.b16 %v4260
      %v4374 = vunpack.c.l.b16 %v4261
      %v4375 = vunpack.c.h.b16 %v4261
      %v4376 = vunpack.c.l.b16 %v4262
      %v4377 = vunpack.c.h.b16 %v4262
      %v4378 = vunpack.c.l.b16 %v4263
      %v4379 = vunpack.c.h.b16 %v4263
      %v4380 = vunpack.c.l.b16 %v4264
      %v4381 = vunpack.c.h.b16 %v4264
      %v4382 = vunpack.c.l.b16 %v4265
      %v4383 = vunpack.c.h.b16 %v4265
      %v4384 = vunpack.c.l.b16 %v4266
      %v4385 = vunpack.c.h.b16 %v4266
      %v4386 = vunpack.c.l.b16 %v4267
      %v4387 = vunpack.c.h.b16 %v4267
      %v4388 = vunpack.c.l.b16 %v4268
      %v4389 = vunpack.c.h.b16 %v4268
      %v4390 = vunpack.c.l.b16 %v4269
      %v4391 = vunpack.c.h.b16 %v4269
      %v4392 = vunpack.c.l.b16 %v4270
      %v4393 = vunpack.c.h.b16 %v4270
      %v4394 = vunpack.c.l.b16 %v4271
      %v4395 = vunpack.c.h.b16 %v4271
      %v4396 = vunpack.c.l.b16 %v4272
      %v4397 = vunpack.c.h.b16 %v4272
      %v4398 = vunpack.c.l.b16 %v4273
      %v4399 = vunpack.c.h.b16 %v4273
      %v4400 = vunpack.c.l.b16 %v4274
      %v4401 = vunpack.c.h.b16 %v4274
      %v4402 = vunpack.c.l.b16 %v4275
      %v4403 = vunpack.c.h.b16 %v4275
      %v4404 = vunpack.c.l.b16 %v4276
      %v4405 = vunpack.c.h.b16 %v4276
      %v4406 = vpack.c.b16 %v4344, %v4342
      %v4407 = vpack.c.b16 %v4345, %v4343
      %v4408 = vpack.c.b16 %v4348, %v4346
      %v4409 = vpack.c.b16 %v4349, %v4347
      %v4410 = vpack.c.b16 %v4352, %v4350
      %v4411 = vpack.c.b16 %v4353, %v4351
      %v4412 = vpack.c.b16 %v4356, %v4354
      %v4413 = vpack.c.b16 %v4357, %v4355
      %v4414 = vpack.c.b16 %v4360, %v4358
      %v4415 = vpack.c.b16 %v4361, %v4359
      %v4416 = vpack.c.b16 %v4364, %v4362
      %v4417 = vpack.c.b16 %v4365, %v4363
      %v4418 = vpack.c.b16 %v4368, %v4366
      %v4419 = vpack.c.b16 %v4369, %v4367
      %v4420 = vpack.c.b16 %v4372, %v4370
      %v4421 = vpack.c.b16 %v4373, %v4371
      %v4422 = vpack.c.b16 %v4376, %v4374
      %v4423 = vpack.c.b16 %v4377, %v4375
      %v4424 = vpack.c.b16 %v4380, %v4378
      %v4425 = vpack.c.b16 %v4381, %v4379
      %v4426 = vpack.c.b16 %v4384, %v4382
      %v4427 = vpack.c.b16 %v4385, %v4383
      %v4428 = vpack.c.b16 %v4388, %v4386
      %v4429 = vpack.c.b16 %v4389, %v4387
      %v4430 = vpack.c.b16 %v4392, %v4390
      %v4431 = vpack.c.b16 %v4393, %v4391
      %v4432 = vpack.c.b16 %v4396, %v4394
      %v4433 = vpack.c.b16 %v4397, %v4395
      %v4434 = vpack.c.b16 %v4400, %v4398
      %v4435 = vpack.c.b16 %v4401, %v4399
      %v4436 = vpack.c.b16 %v4404, %v4402
      %v4437 = vpack.c.b16 %v4405, %v4403
      %v4502 = vunpack.c.l.b16 %v4278
      %v4503 = vunpack.c.l.b16 %v4279
      %v4504 = vunpack.c.l.b16 %v4280
      %v4505 = vunpack.c.l.b16 %v4281
      %v4506 = vunpack.c.l.b16 %v4282
      %v4507 = vunpack.c.l.b16 %v4283
      %v4508 = vunpack.c.l.b16 %v4284
      %v4509 = vunpack.c.l.b16 %v4285
      %v4510 = vunpack.c.l.b16 %v4286
      %v4511 = vunpack.c.l.b16 %v4287
      %v4512 = vunpack.c.l.b16 %v4288
      %v4513 = vunpack.c.l.b16 %v4289
      %v4514 = vunpack.c.l.b16 %v4290
      %v4515 = vunpack.c.l.b16 %v4291
      %v4516 = vunpack.c.l.b16 %v4292
      %v4517 = vunpack.c.l.b16 %v4293
      %v4518 = vunpack.c.l.b16 %v4294
      %v4519 = vunpack.c.l.b16 %v4295
      %v4520 = vunpack.c.l.b16 %v4296
      %v4521 = vunpack.c.l.b16 %v4297
      %v4522 = vunpack.c.l.b16 %v4298
      %v4523 = vunpack.c.l.b16 %v4299
      %v4524 = vunpack.c.l.b16 %v4300
      %v4525 = vunpack.c.l.b16 %v4301
      %v4526 = vunpack.c.l.b16 %v4302
      %v4527 = vunpack.c.l.b16 %v4303
      %v4528 = vunpack.c.l.b16 %v4304
      %v4529 = vunpack.c.l.b16 %v4305
      %v4530 = vunpack.c.l.b16 %v4306
      %v4531 = vunpack.c.l.b16 %v4307
      %v4532 = vunpack.c.l.b16 %v4308
      %v4533 = vunpack.c.l.b16 %v4309
      %v4534 = vpack.c.b16 %v4503, %v4502
      %v4535 = vpack.c.b16 %v4505, %v4504
      %v4536 = vpack.c.b16 %v4507, %v4506
      %v4537 = vpack.c.b16 %v4509, %v4508
      %v4538 = vpack.c.b16 %v4511, %v4510
      %v4539 = vpack.c.b16 %v4513, %v4512
      %v4540 = vpack.c.b16 %v4515, %v4514
      %v4541 = vpack.c.b16 %v4517, %v4516
      %v4542 = vpack.c.b16 %v4519, %v4518
      %v4543 = vpack.c.b16 %v4521, %v4520
      %v4544 = vpack.c.b16 %v4523, %v4522
      %v4545 = vpack.c.b16 %v4525, %v4524
      %v4546 = vpack.c.b16 %v4527, %v4526
      %v4547 = vpack.c.b16 %v4529, %v4528
      %v4548 = vpack.c.b16 %v4531, %v4530
      %v4549 = vpack.c.b16 %v4533, %v4532
      %4566 = vmatpush.bf16.msra.mxu0 %v4541
      %4567 = vmatpush.bf16.msra.mxu0 %v4540
      %4568 = vmatpush.bf16.msra.mxu0 %v4539
      %4569 = vmatpush.bf16.msra.mxu0 %v4538
      %4570 = vmatpush.bf16.msra.mxu0 %v4537
      %4571 = vmatpush.bf16.msra.mxu0 %v4536
      %4572 = vmatpush.bf16.msra.mxu0 %v4535
      %4573 = vmatpush.bf16.msra.mxu0 %v4534
      %4574 = vmatmul.bf16.gmra.mxu0 %v4406
      %v4575 = vpop.f32.mrf.mxu0
      %v4576 = vadd.f32 0.0, %v4575
      %v4577 = vpop.f32.mrf.mxu0
      %v4578 = vadd.f32 0.0, %v4577
      %4579 = vmatmul.bf16.gmra.mxu0 %v4408
      %v4580 = vpop.f32.mrf.mxu0
      %v4581 = vadd.f32 0.0, %v4580
      %v4582 = vpop.f32.mrf.mxu0
      %v4583 = vadd.f32 0.0, %v4582
      %4584 = vmatmul.bf16.gmra.mxu0 %v4410
      %v4585 = vpop.f32.mrf.mxu0
      %v4586 = vadd.f32 0.0, %v4585
      %v4587 = vpop.f32.mrf.mxu0
      %v4588 = vadd.f32 0.0, %v4587
      %4589 = vmatmul.bf16.gmra.mxu0 %v4412
      %v4590 = vpop.f32.mrf.mxu0
      %v4591 = vadd.f32 0.0, %v4590
      %v4592 = vpop.f32.mrf.mxu0
      %v4593 = vadd.f32 0.0, %v4592
      %4594 = vmatmul.bf16.gmra.mxu0 %v4414
      %v4595 = vpop.f32.mrf.mxu0
      %v4596 = vadd.f32 0.0, %v4595
      %v4597 = vpop.f32.mrf.mxu0
      %v4598 = vadd.f32 0.0, %v4597
      %4599 = vmatmul.bf16.gmra.mxu0 %v4416
      %v4600 = vpop.f32.mrf.mxu0
      %v4601 = vadd.f32 0.0, %v4600
      %v4602 = vpop.f32.mrf.mxu0
      %v4603 = vadd.f32 0.0, %v4602
      %4604 = vmatmul.bf16.gmra.mxu0 %v4418
      %v4605 = vpop.f32.mrf.mxu0
      %v4606 = vadd.f32 0.0, %v4605
      %v4607 = vpop.f32.mrf.mxu0
      %v4608 = vadd.f32 0.0, %v4607
      %4609 = vmatmul.bf16.gmra.mxu0 %v4420
      %v4610 = vpop.f32.mrf.mxu0
      %v4611 = vadd.f32 0.0, %v4610
      %v4612 = vpop.f32.mrf.mxu0
      %v4613 = vadd.f32 0.0, %v4612
      %4614 = vmatmul.bf16.gmra.mxu0 %v4422
      %v4615 = vpop.f32.mrf.mxu0
      %v4616 = vadd.f32 0.0, %v4615
      %v4617 = vpop.f32.mrf.mxu0
      %v4618 = vadd.f32 0.0, %v4617
      %4619 = vmatmul.bf16.gmra.mxu0 %v4424
      %v4620 = vpop.f32.mrf.mxu0
      %v4621 = vadd.f32 0.0, %v4620
      %v4622 = vpop.f32.mrf.mxu0
      %v4623 = vadd.f32 0.0, %v4622
      %4624 = vmatmul.bf16.gmra.mxu0 %v4426
      %v4625 = vpop.f32.mrf.mxu0
      %v4626 = vadd.f32 0.0, %v4625
      %v4627 = vpop.f32.mrf.mxu0
      %v4628 = vadd.f32 0.0, %v4627
      %4629 = vmatmul.bf16.gmra.mxu0 %v4428
      %v4630 = vpop.f32.mrf.mxu0
      %v4631 = vadd.f32 0.0, %v4630
      %v4632 = vpop.f32.mrf.mxu0
      %v4633 = vadd.f32 0.0, %v4632
      %4634 = vmatmul.bf16.gmra.mxu0 %v4430
      %v4635 = vpop.f32.mrf.mxu0
      %v4636 = vadd.f32 0.0, %v4635
      %v4637 = vpop.f32.mrf.mxu0
      %v4638 = vadd.f32 0.0, %v4637
      %4639 = vmatmul.bf16.gmra.mxu0 %v4432
      %v4640 = vpop.f32.mrf.mxu0
      %v4641 = vadd.f32 0.0, %v4640
      %v4642 = vpop.f32.mrf.mxu0
      %v4643 = vadd.f32 0.0, %v4642
      %4644 = vmatmul.bf16.gmra.mxu0 %v4434
      %v4645 = vpop.f32.mrf.mxu0
      %v4646 = vadd.f32 0.0, %v4645
      %v4647 = vpop.f32.mrf.mxu0
      %v4648 = vadd.f32 0.0, %v4647
      %4649 = vmatmul.bf16.gmra.mxu0 %v4436
      %v4650 = vpop.f32.mrf.mxu0
      %v4651 = vadd.f32 0.0, %v4650
      %v4652 = vpop.f32.mrf.mxu0
      %v4653 = vadd.f32 0.0, %v4652
      %4654 = vdwg.mxu0
      %4655 = vmatpush.bf16.msra.mxu0 %v4549
      %4656 = vmatpush.bf16.msra.mxu0 %v4548
      %4657 = vmatpush.bf16.msra.mxu0 %v4547
      %4658 = vmatpush.bf16.msra.mxu0 %v4546
      %4659 = vmatpush.bf16.msra.mxu0 %v4545
      %4660 = vmatpush.bf16.msra.mxu0 %v4544
      %4661 = vmatpush.bf16.msra.mxu0 %v4543
      %4662 = vmatpush.bf16.msra.mxu0 %v4542
      %4663 = vmatmul.bf16.gmra.mxu0 %v4407
      %v4664 = vpop.f32.mrf.mxu0
      %v4665 = vadd.f32 %v4576, %v4664
      %v4666 = vpop.f32.mrf.mxu0
      %v4667 = vadd.f32 %v4578, %v4666
      %4668 = vmatmul.bf16.gmra.mxu0 %v4409
      %v4669 = vpop.f32.mrf.mxu0
      %v4670 = vadd.f32 %v4581, %v4669
      %v4671 = vpop.f32.mrf.mxu0
      %v4672 = vadd.f32 %v4583, %v4671
      %4673 = vmatmul.bf16.gmra.mxu0 %v4411
      %v4674 = vpop.f32.mrf.mxu0
      %v4675 = vadd.f32 %v4586, %v4674
      %v4676 = vpop.f32.mrf.mxu0
      %v4677 = vadd.f32 %v4588, %v4676
      %4678 = vmatmul.bf16.gmra.mxu0 %v4413
      %v4679 = vpop.f32.mrf.mxu0
      %v4680 = vadd.f32 %v4591, %v4679
      %v4681 = vpop.f32.mrf.mxu0
      %v4682 = vadd.f32 %v4593, %v4681
      %4683 = vmatmul.bf16.gmra.mxu0 %v4415
      %v4684 = vpop.f32.mrf.mxu0
      %v4685 = vadd.f32 %v4596, %v4684
      %v4686 = vpop.f32.mrf.mxu0
      %v4687 = vadd.f32 %v4598, %v4686
      %4688 = vmatmul.bf16.gmra.mxu0 %v4417
      %v4689 = vpop.f32.mrf.mxu0
      %v4690 = vadd.f32 %v4601, %v4689
      %v4691 = vpop.f32.mrf.mxu0
      %v4692 = vadd.f32 %v4603, %v4691
      %4693 = vmatmul.bf16.gmra.mxu0 %v4419
      %v4694 = vpop.f32.mrf.mxu0
      %v4695 = vadd.f32 %v4606, %v4694
      %v4696 = vpop.f32.mrf.mxu0
      %v4697 = vadd.f32 %v4608, %v4696
      %4698 = vmatmul.bf16.gmra.mxu0 %v4421
      %v4699 = vpop.f32.mrf.mxu0
      %v4700 = vadd.f32 %v4611, %v4699
      %v4701 = vpop.f32.mrf.mxu0
      %v4702 = vadd.f32 %v4613, %v4701
      %4703 = vmatmul.bf16.gmra.mxu0 %v4423
      %v4704 = vpop.f32.mrf.mxu0
      %v4705 = vadd.f32 %v4616, %v4704
      %v4706 = vpop.f32.mrf.mxu0
      %v4707 = vadd.f32 %v4618, %v4706
      %4708 = vmatmul.bf16.gmra.mxu0 %v4425
      %v4709 = vpop.f32.mrf.mxu0
      %v4710 = vadd.f32 %v4621, %v4709
      %v4711 = vpop.f32.mrf.mxu0
      %v4712 = vadd.f32 %v4623, %v4711
      %4713 = vmatmul.bf16.gmra.mxu0 %v4427
      %v4714 = vpop.f32.mrf.mxu0
      %v4715 = vadd.f32 %v4626, %v4714
      %v4716 = vpop.f32.mrf.mxu0
      %v4717 = vadd.f32 %v4628, %v4716
      %4718 = vmatmul.bf16.gmra.mxu0 %v4429
      %v4719 = vpop.f32.mrf.mxu0
      %v4720 = vadd.f32 %v4631, %v4719
      %v4721 = vpop.f32.mrf.mxu0
      %v4722 = vadd.f32 %v4633, %v4721
      %4723 = vmatmul.bf16.gmra.mxu0 %v4431
      %v4724 = vpop.f32.mrf.mxu0
      %v4725 = vadd.f32 %v4636, %v4724
      %v4726 = vpop.f32.mrf.mxu0
      %v4727 = vadd.f32 %v4638, %v4726
      %4728 = vmatmul.bf16.gmra.mxu0 %v4433
      %v4729 = vpop.f32.mrf.mxu0
      %v4730 = vadd.f32 %v4641, %v4729
      %v4731 = vpop.f32.mrf.mxu0
      %v4732 = vadd.f32 %v4643, %v4731
      %4733 = vmatmul.bf16.gmra.mxu0 %v4435
      %v4734 = vpop.f32.mrf.mxu0
      %v4735 = vadd.f32 %v4646, %v4734
      %v4736 = vpop.f32.mrf.mxu0
      %v4737 = vadd.f32 %v4648, %v4736
      %4738 = vmatmul.bf16.gmra.mxu0 %v4437
      %v4739 = vpop.f32.mrf.mxu0
      %v4740 = vadd.f32 %v4651, %v4739
      %v4741 = vpop.f32.mrf.mxu0
      %v4742 = vadd.f32 %v4653, %v4741
      %4743 = vdwg.mxu0
      %v4744 = vadd.f32 %v4212, %v4665
      %v4745 = vadd.f32 %v4213, %v4667
      %v4746 = vadd.f32 %v4214, %v4670
      %v4747 = vadd.f32 %v4215, %v4672
      %v4748 = vadd.f32 %v4216, %v4675
      %v4749 = vadd.f32 %v4217, %v4677
      %v4750 = vadd.f32 %v4218, %v4680
      %v4751 = vadd.f32 %v4219, %v4682
      %v4752 = vadd.f32 %v4220, %v4685
      %v4753 = vadd.f32 %v4221, %v4687
      %v4754 = vadd.f32 %v4222, %v4690
      %v4755 = vadd.f32 %v4223, %v4692
      %v4756 = vadd.f32 %v4224, %v4695
      %v4757 = vadd.f32 %v4225, %v4697
      %v4758 = vadd.f32 %v4226, %v4700
      %v4759 = vadd.f32 %v4227, %v4702
      %v4760 = vadd.f32 %v4228, %v4705
      %v4761 = vadd.f32 %v4229, %v4707
      %v4762 = vadd.f32 %v4230, %v4710
      %v4763 = vadd.f32 %v4231, %v4712
      %v4764 = vadd.f32 %v4232, %v4715
      %v4765 = vadd.f32 %v4233, %v4717
      %v4766 = vadd.f32 %v4234, %v4720
      %v4767 = vadd.f32 %v4235, %v4722
      %v4768 = vadd.f32 %v4236, %v4725
      %v4769 = vadd.f32 %v4237, %v4727
      %v4770 = vadd.f32 %v4238, %v4730
      %v4771 = vadd.f32 %v4239, %v4732
      %v4772 = vadd.f32 %v4240, %v4735
      %v4773 = vadd.f32 %v4241, %v4737
      %v4774 = vadd.f32 %v4242, %v4740
      %v4775 = vadd.f32 %v4243, %v4742
      %s4776 = scalar_lea.vmem [#allocation2], 304
      %v4777 = vld [vmem:[%s4776] sm:$0xff]
      %v4778 = vld [vmem:[%s4776 + $0x8] sm:$0xff]
      %v4779 = vld [vmem:[%s4776 + $0x10] sm:$0xff]
      %v4780 = vld [vmem:[%s4776 + $0x18] sm:$0xff]
      %v4781 = vld [vmem:[%s4776 + $0x20] sm:$0xff]
      %v4782 = vld [vmem:[%s4776 + $0x28] sm:$0xff]
      %v4783 = vld [vmem:[%s4776 + $0x30] sm:$0xff]
      %v4784 = vld [vmem:[%s4776 + $0x38] sm:$0xff]
      %v4785 = vld [vmem:[%s4776 + $0x40] sm:$0xff]
      %v4786 = vld [vmem:[%s4776 + $0x48] sm:$0xff]
      %v4787 = vld [vmem:[%s4776 + $0x50] sm:$0xff]
      %v4788 = vld [vmem:[%s4776 + $0x58] sm:$0xff]
      %v4789 = vld [vmem:[%s4776 + $0x60] sm:$0xff]
      %v4790 = vld [vmem:[%s4776 + $0x68] sm:$0xff]
      %v4791 = vld [vmem:[%s4776 + $0x70] sm:$0xff]
      %v4792 = vld [vmem:[%s4776 + $0x78] sm:$0xff]
      %v4793 = vld [vmem:[%s4776 + $0x80] sm:$0xff]
      %v4794 = vld [vmem:[%s4776 + $0x88] sm:$0xff]
      %v4795 = vld [vmem:[%s4776 + $0x90] sm:$0xff]
      %v4796 = vld [vmem:[%s4776 + $0x98] sm:$0xff]
      %v4797 = vld [vmem:[%s4776 + $0xa0] sm:$0xff]
      %v4798 = vld [vmem:[%s4776 + $0xa8] sm:$0xff]
      %v4799 = vld [vmem:[%s4776 + $0xb0] sm:$0xff]
      %v4800 = vld [vmem:[%s4776 + $0xb8] sm:$0xff]
      %v4801 = vld [vmem:[%s4776 + $0xc0] sm:$0xff]
      %v4802 = vld [vmem:[%s4776 + $0xc8] sm:$0xff]
      %v4803 = vld [vmem:[%s4776 + $0xd0] sm:$0xff]
      %v4804 = vld [vmem:[%s4776 + $0xd8] sm:$0xff]
      %v4805 = vld [vmem:[%s4776 + $0xe0] sm:$0xff]
      %v4806 = vld [vmem:[%s4776 + $0xe8] sm:$0xff]
      %v4807 = vld [vmem:[%s4776 + $0xf0] sm:$0xff]
      %v4808 = vld [vmem:[%s4776 + $0xf8] sm:$0xff]
      %s4809 = scalar_lea.vmem %s6, 512
      %v4810 = vld [vmem:[%s4809] sm:$0xf]
      %v4811 = vld [vmem:[%s4809 + $0x4] sm:$0xf]
      %v4812 = vld [vmem:[%s4809 + $0x8] sm:$0xf]
      %v4813 = vld [vmem:[%s4809 + $0xc] sm:$0xf]
      %v4814 = vld [vmem:[%s4809 + $0x10] sm:$0xf]
      %v4815 = vld [vmem:[%s4809 + $0x14] sm:$0xf]
      %v4816 = vld [vmem:[%s4809 + $0x18] sm:$0xf]
      %v4817 = vld [vmem:[%s4809 + $0x1c] sm:$0xf]
      %v4818 = vld [vmem:[%s4809 + $0x20] sm:$0xf]
      %v4819 = vld [vmem:[%s4809 + $0x24] sm:$0xf]
      %v4820 = vld [vmem:[%s4809 + $0x28] sm:$0xf]
      %v4821 = vld [vmem:[%s4809 + $0x2c] sm:$0xf]
      %v4822 = vld [vmem:[%s4809 + $0x30] sm:$0xf]
      %v4823 = vld [vmem:[%s4809 + $0x34] sm:$0xf]
      %v4824 = vld [vmem:[%s4809 + $0x38] sm:$0xf]
      %v4825 = vld [vmem:[%s4809 + $0x3c] sm:$0xf]
      %v4826 = vld [vmem:[%s4809 + $0x40] sm:$0xf]
      %v4827 = vld [vmem:[%s4809 + $0x44] sm:$0xf]
      %v4828 = vld [vmem:[%s4809 + $0x48] sm:$0xf]
      %v4829 = vld [vmem:[%s4809 + $0x4c] sm:$0xf]
      %v4830 = vld [vmem:[%s4809 + $0x50] sm:$0xf]
      %v4831 = vld [vmem:[%s4809 + $0x54] sm:$0xf]
      %v4832 = vld [vmem:[%s4809 + $0x58] sm:$0xf]
      %v4833 = vld [vmem:[%s4809 + $0x5c] sm:$0xf]
      %v4834 = vld [vmem:[%s4809 + $0x60] sm:$0xf]
      %v4835 = vld [vmem:[%s4809 + $0x64] sm:$0xf]
      %v4836 = vld [vmem:[%s4809 + $0x68] sm:$0xf]
      %v4837 = vld [vmem:[%s4809 + $0x6c] sm:$0xf]
      %v4838 = vld [vmem:[%s4809 + $0x70] sm:$0xf]
      %v4839 = vld [vmem:[%s4809 + $0x74] sm:$0xf]
      %v4840 = vld [vmem:[%s4809 + $0x78] sm:$0xf]
      %v4841 = vld [vmem:[%s4809 + $0x7c] sm:$0xf]
      %v4874 = vunpack.c.l.b16 %v4777
      %v4875 = vunpack.c.h.b16 %v4777
      %v4876 = vunpack.c.l.b16 %v4778
      %v4877 = vunpack.c.h.b16 %v4778
      %v4878 = vunpack.c.l.b16 %v4779
      %v4879 = vunpack.c.h.b16 %v4779
      %v4880 = vunpack.c.l.b16 %v4780
      %v4881 = vunpack.c.h.b16 %v4780
      %v4882 = vunpack.c.l.b16 %v4781
      %v4883 = vunpack.c.h.b16 %v4781
      %v4884 = vunpack.c.l.b16 %v4782
      %v4885 = vunpack.c.h.b16 %v4782
      %v4886 = vunpack.c.l.b16 %v4783
      %v4887 = vunpack.c.h.b16 %v4783
      %v4888 = vunpack.c.l.b16 %v4784
      %v4889 = vunpack.c.h.b16 %v4784
      %v4890 = vunpack.c.l.b16 %v4785
      %v4891 = vunpack.c.h.b16 %v4785
      %v4892 = vunpack.c.l.b16 %v4786
      %v4893 = vunpack.c.h.b16 %v4786
      %v4894 = vunpack.c.l.b16 %v4787
      %v4895 = vunpack.c.h.b16 %v4787
      %v4896 = vunpack.c.l.b16 %v4788
      %v4897 = vunpack.c.h.b16 %v4788
      %v4898 = vunpack.c.l.b16 %v4789
      %v4899 = vunpack.c.h.b16 %v4789
      %v4900 = vunpack.c.l.b16 %v4790
      %v4901 = vunpack.c.h.b16 %v4790
      %v4902 = vunpack.c.l.b16 %v4791
      %v4903 = vunpack.c.h.b16 %v4791
      %v4904 = vunpack.c.l.b16 %v4792
      %v4905 = vunpack.c.h.b16 %v4792
      %v4906 = vunpack.c.l.b16 %v4793
      %v4907 = vunpack.c.h.b16 %v4793
      %v4908 = vunpack.c.l.b16 %v4794
      %v4909 = vunpack.c.h.b16 %v4794
      %v4910 = vunpack.c.l.b16 %v4795
      %v4911 = vunpack.c.h.b16 %v4795
      %v4912 = vunpack.c.l.b16 %v4796
      %v4913 = vunpack.c.h.b16 %v4796
      %v4914 = vunpack.c.l.b16 %v4797
      %v4915 = vunpack.c.h.b16 %v4797
      %v4916 = vunpack.c.l.b16 %v4798
      %v4917 = vunpack.c.h.b16 %v4798
      %v4918 = vunpack.c.l.b16 %v4799
      %v4919 = vunpack.c.h.b16 %v4799
      %v4920 = vunpack.c.l.b16 %v4800
      %v4921 = vunpack.c.h.b16 %v4800
      %v4922 = vunpack.c.l.b16 %v4801
      %v4923 = vunpack.c.h.b16 %v4801
      %v4924 = vunpack.c.l.b16 %v4802
      %v4925 = vunpack.c.h.b16 %v4802
      %v4926 = vunpack.c.l.b16 %v4803
      %v4927 = vunpack.c.h.b16 %v4803
      %v4928 = vunpack.c.l.b16 %v4804
      %v4929 = vunpack.c.h.b16 %v4804
      %v4930 = vunpack.c.l.b16 %v4805
      %v4931 = vunpack.c.h.b16 %v4805
      %v4932 = vunpack.c.l.b16 %v4806
      %v4933 = vunpack.c.h.b16 %v4806
      %v4934 = vunpack.c.l.b16 %v4807
      %v4935 = vunpack.c.h.b16 %v4807
      %v4936 = vunpack.c.l.b16 %v4808
      %v4937 = vunpack.c.h.b16 %v4808
      %v4938 = vpack.c.b16 %v4876, %v4874
      %v4939 = vpack.c.b16 %v4877, %v4875
      %v4940 = vpack.c.b16 %v4880, %v4878
      %v4941 = vpack.c.b16 %v4881, %v4879
      %v4942 = vpack.c.b16 %v4884, %v4882
      %v4943 = vpack.c.b16 %v4885, %v4883
      %v4944 = vpack.c.b16 %v4888, %v4886
      %v4945 = vpack.c.b16 %v4889, %v4887
      %v4946 = vpack.c.b16 %v4892, %v4890
      %v4947 = vpack.c.b16 %v4893, %v4891
      %v4948 = vpack.c.b16 %v4896, %v4894
      %v4949 = vpack.c.b16 %v4897, %v4895
      %v4950 = vpack.c.b16 %v4900, %v4898
      %v4951 = vpack.c.b16 %v4901, %v4899
      %v4952 = vpack.c.b16 %v4904, %v4902
      %v4953 = vpack.c.b16 %v4905, %v4903
      %v4954 = vpack.c.b16 %v4908, %v4906
      %v4955 = vpack.c.b16 %v4909, %v4907
      %v4956 = vpack.c.b16 %v4912, %v4910
      %v4957 = vpack.c.b16 %v4913, %v4911
      %v4958 = vpack.c.b16 %v4916, %v4914
      %v4959 = vpack.c.b16 %v4917, %v4915
      %v4960 = vpack.c.b16 %v4920, %v4918
      %v4961 = vpack.c.b16 %v4921, %v4919
      %v4962 = vpack.c.b16 %v4924, %v4922
      %v4963 = vpack.c.b16 %v4925, %v4923
      %v4964 = vpack.c.b16 %v4928, %v4926
      %v4965 = vpack.c.b16 %v4929, %v4927
      %v4966 = vpack.c.b16 %v4932, %v4930
      %v4967 = vpack.c.b16 %v4933, %v4931
      %v4968 = vpack.c.b16 %v4936, %v4934
      %v4969 = vpack.c.b16 %v4937, %v4935
      %v5034 = vunpack.c.l.b16 %v4810
      %v5035 = vunpack.c.l.b16 %v4811
      %v5036 = vunpack.c.l.b16 %v4812
      %v5037 = vunpack.c.l.b16 %v4813
      %v5038 = vunpack.c.l.b16 %v4814
      %v5039 = vunpack.c.l.b16 %v4815
      %v5040 = vunpack.c.l.b16 %v4816
      %v5041 = vunpack.c.l.b16 %v4817
      %v5042 = vunpack.c.l.b16 %v4818
      %v5043 = vunpack.c.l.b16 %v4819
      %v5044 = vunpack.c.l.b16 %v4820
      %v5045 = vunpack.c.l.b16 %v4821
      %v5046 = vunpack.c.l.b16 %v4822
      %v5047 = vunpack.c.l.b16 %v4823
      %v5048 = vunpack.c.l.b16 %v4824
      %v5049 = vunpack.c.l.b16 %v4825
      %v5050 = vunpack.c.l.b16 %v4826
      %v5051 = vunpack.c.l.b16 %v4827
      %v5052 = vunpack.c.l.b16 %v4828
      %v5053 = vunpack.c.l.b16 %v4829
      %v5054 = vunpack.c.l.b16 %v4830
      %v5055 = vunpack.c.l.b16 %v4831
      %v5056 = vunpack.c.l.b16 %v4832
      %v5057 = vunpack.c.l.b16 %v4833
      %v5058 = vunpack.c.l.b16 %v4834
      %v5059 = vunpack.c.l.b16 %v4835
      %v5060 = vunpack.c.l.b16 %v4836
      %v5061 = vunpack.c.l.b16 %v4837
      %v5062 = vunpack.c.l.b16 %v4838
      %v5063 = vunpack.c.l.b16 %v4839
      %v5064 = vunpack.c.l.b16 %v4840
      %v5065 = vunpack.c.l.b16 %v4841
      %v5066 = vpack.c.b16 %v5035, %v5034
      %v5067 = vpack.c.b16 %v5037, %v5036
      %v5068 = vpack.c.b16 %v5039, %v5038
      %v5069 = vpack.c.b16 %v5041, %v5040
      %v5070 = vpack.c.b16 %v5043, %v5042
      %v5071 = vpack.c.b16 %v5045, %v5044
      %v5072 = vpack.c.b16 %v5047, %v5046
      %v5073 = vpack.c.b16 %v5049, %v5048
      %v5074 = vpack.c.b16 %v5051, %v5050
      %v5075 = vpack.c.b16 %v5053, %v5052
      %v5076 = vpack.c.b16 %v5055, %v5054
      %v5077 = vpack.c.b16 %v5057, %v5056
      %v5078 = vpack.c.b16 %v5059, %v5058
      %v5079 = vpack.c.b16 %v5061, %v5060
      %v5080 = vpack.c.b16 %v5063, %v5062
      %v5081 = vpack.c.b16 %v5065, %v5064
      %5098 = vmatpush.bf16.msra.mxu0 %v5073
      %5099 = vmatpush.bf16.msra.mxu0 %v5072
      %5100 = vmatpush.bf16.msra.mxu0 %v5071
      %5101 = vmatpush.bf16.msra.mxu0 %v5070
      %5102 = vmatpush.bf16.msra.mxu0 %v5069
      %5103 = vmatpush.bf16.msra.mxu0 %v5068
      %5104 = vmatpush.bf16.msra.mxu0 %v5067
      %5105 = vmatpush.bf16.msra.mxu0 %v5066
      %5106 = vmatmul.bf16.gmra.mxu0 %v4938
      %v5107 = vpop.f32.mrf.mxu0
      %v5108 = vadd.f32 0.0, %v5107
      %v5109 = vpop.f32.mrf.mxu0
      %v5110 = vadd.f32 0.0, %v5109
      %5111 = vmatmul.bf16.gmra.mxu0 %v4940
      %v5112 = vpop.f32.mrf.mxu0
      %v5113 = vadd.f32 0.0, %v5112
      %v5114 = vpop.f32.mrf.mxu0
      %v5115 = vadd.f32 0.0, %v5114
      %5116 = vmatmul.bf16.gmra.mxu0 %v4942
      %v5117 = vpop.f32.mrf.mxu0
      %v5118 = vadd.f32 0.0, %v5117
      %v5119 = vpop.f32.mrf.mxu0
      %v5120 = vadd.f32 0.0, %v5119
      %5121 = vmatmul.bf16.gmra.mxu0 %v4944
      %v5122 = vpop.f32.mrf.mxu0
      %v5123 = vadd.f32 0.0, %v5122
      %v5124 = vpop.f32.mrf.mxu0
      %v5125 = vadd.f32 0.0, %v5124
      %5126 = vmatmul.bf16.gmra.mxu0 %v4946
      %v5127 = vpop.f32.mrf.mxu0
      %v5128 = vadd.f32 0.0, %v5127
      %v5129 = vpop.f32.mrf.mxu0
      %v5130 = vadd.f32 0.0, %v5129
      %5131 = vmatmul.bf16.gmra.mxu0 %v4948
      %v5132 = vpop.f32.mrf.mxu0
      %v5133 = vadd.f32 0.0, %v5132
      %v5134 = vpop.f32.mrf.mxu0
      %v5135 = vadd.f32 0.0, %v5134
      %5136 = vmatmul.bf16.gmra.mxu0 %v4950
      %v5137 = vpop.f32.mrf.mxu0
      %v5138 = vadd.f32 0.0, %v5137
      %v5139 = vpop.f32.mrf.mxu0
      %v5140 = vadd.f32 0.0, %v5139
      %5141 = vmatmul.bf16.gmra.mxu0 %v4952
      %v5142 = vpop.f32.mrf.mxu0
      %v5143 = vadd.f32 0.0, %v5142
      %v5144 = vpop.f32.mrf.mxu0
      %v5145 = vadd.f32 0.0, %v5144
      %5146 = vmatmul.bf16.gmra.mxu0 %v4954
      %v5147 = vpop.f32.mrf.mxu0
      %v5148 = vadd.f32 0.0, %v5147
      %v5149 = vpop.f32.mrf.mxu0
      %v5150 = vadd.f32 0.0, %v5149
      %5151 = vmatmul.bf16.gmra.mxu0 %v4956
      %v5152 = vpop.f32.mrf.mxu0
      %v5153 = vadd.f32 0.0, %v5152
      %v5154 = vpop.f32.mrf.mxu0
      %v5155 = vadd.f32 0.0, %v5154
      %5156 = vmatmul.bf16.gmra.mxu0 %v4958
      %v5157 = vpop.f32.mrf.mxu0
      %v5158 = vadd.f32 0.0, %v5157
      %v5159 = vpop.f32.mrf.mxu0
      %v5160 = vadd.f32 0.0, %v5159
      %5161 = vmatmul.bf16.gmra.mxu0 %v4960
      %v5162 = vpop.f32.mrf.mxu0
      %v5163 = vadd.f32 0.0, %v5162
      %v5164 = vpop.f32.mrf.mxu0
      %v5165 = vadd.f32 0.0, %v5164
      %5166 = vmatmul.bf16.gmra.mxu0 %v4962
      %v5167 = vpop.f32.mrf.mxu0
      %v5168 = vadd.f32 0.0, %v5167
      %v5169 = vpop.f32.mrf.mxu0
      %v5170 = vadd.f32 0.0, %v5169
      %5171 = vmatmul.bf16.gmra.mxu0 %v4964
      %v5172 = vpop.f32.mrf.mxu0
      %v5173 = vadd.f32 0.0, %v5172
      %v5174 = vpop.f32.mrf.mxu0
      %v5175 = vadd.f32 0.0, %v5174
      %5176 = vmatmul.bf16.gmra.mxu0 %v4966
      %v5177 = vpop.f32.mrf.mxu0
      %v5178 = vadd.f32 0.0, %v5177
      %v5179 = vpop.f32.mrf.mxu0
      %v5180 = vadd.f32 0.0, %v5179
      %5181 = vmatmul.bf16.gmra.mxu0 %v4968
      %v5182 = vpop.f32.mrf.mxu0
      %v5183 = vadd.f32 0.0, %v5182
      %v5184 = vpop.f32.mrf.mxu0
      %v5185 = vadd.f32 0.0, %v5184
      %5186 = vdwg.mxu0
      %5187 = vmatpush.bf16.msra.mxu0 %v5081
      %5188 = vmatpush.bf16.msra.mxu0 %v5080
      %5189 = vmatpush.bf16.msra.mxu0 %v5079
      %5190 = vmatpush.bf16.msra.mxu0 %v5078
      %5191 = vmatpush.bf16.msra.mxu0 %v5077
      %5192 = vmatpush.bf16.msra.mxu0 %v5076
      %5193 = vmatpush.bf16.msra.mxu0 %v5075
      %5194 = vmatpush.bf16.msra.mxu0 %v5074
      %5195 = vmatmul.bf16.gmra.mxu0 %v4939
      %v5196 = vpop.f32.mrf.mxu0
      %v5197 = vadd.f32 %v5108, %v5196
      %v5198 = vpop.f32.mrf.mxu0
      %v5199 = vadd.f32 %v5110, %v5198
      %5200 = vmatmul.bf16.gmra.mxu0 %v4941
      %v5201 = vpop.f32.mrf.mxu0
      %v5202 = vadd.f32 %v5113, %v5201
      %v5203 = vpop.f32.mrf.mxu0
      %v5204 = vadd.f32 %v5115, %v5203
      %5205 = vmatmul.bf16.gmra.mxu0 %v4943
      %v5206 = vpop.f32.mrf.mxu0
      %v5207 = vadd.f32 %v5118, %v5206
      %v5208 = vpop.f32.mrf.mxu0
      %v5209 = vadd.f32 %v5120, %v5208
      %5210 = vmatmul.bf16.gmra.mxu0 %v4945
      %v5211 = vpop.f32.mrf.mxu0
      %v5212 = vadd.f32 %v5123, %v5211
      %v5213 = vpop.f32.mrf.mxu0
      %v5214 = vadd.f32 %v5125, %v5213
      %5215 = vmatmul.bf16.gmra.mxu0 %v4947
      %v5216 = vpop.f32.mrf.mxu0
      %v5217 = vadd.f32 %v5128, %v5216
      %v5218 = vpop.f32.mrf.mxu0
      %v5219 = vadd.f32 %v5130, %v5218
      %5220 = vmatmul.bf16.gmra.mxu0 %v4949
      %v5221 = vpop.f32.mrf.mxu0
      %v5222 = vadd.f32 %v5133, %v5221
      %v5223 = vpop.f32.mrf.mxu0
      %v5224 = vadd.f32 %v5135, %v5223
      %5225 = vmatmul.bf16.gmra.mxu0 %v4951
      %v5226 = vpop.f32.mrf.mxu0
      %v5227 = vadd.f32 %v5138, %v5226
      %v5228 = vpop.f32.mrf.mxu0
      %v5229 = vadd.f32 %v5140, %v5228
      %5230 = vmatmul.bf16.gmra.mxu0 %v4953
      %v5231 = vpop.f32.mrf.mxu0
      %v5232 = vadd.f32 %v5143, %v5231
      %v5233 = vpop.f32.mrf.mxu0
      %v5234 = vadd.f32 %v5145, %v5233
      %5235 = vmatmul.bf16.gmra.mxu0 %v4955
      %v5236 = vpop.f32.mrf.mxu0
      %v5237 = vadd.f32 %v5148, %v5236
      %v5238 = vpop.f32.mrf.mxu0
      %v5239 = vadd.f32 %v5150, %v5238
      %5240 = vmatmul.bf16.gmra.mxu0 %v4957
      %v5241 = vpop.f32.mrf.mxu0
      %v5242 = vadd.f32 %v5153, %v5241
      %v5243 = vpop.f32.mrf.mxu0
      %v5244 = vadd.f32 %v5155, %v5243
      %5245 = vmatmul.bf16.gmra.mxu0 %v4959
      %v5246 = vpop.f32.mrf.mxu0
      %v5247 = vadd.f32 %v5158, %v5246
      %v5248 = vpop.f32.mrf.mxu0
      %v5249 = vadd.f32 %v5160, %v5248
      %5250 = vmatmul.bf16.gmra.mxu0 %v4961
      %v5251 = vpop.f32.mrf.mxu0
      %v5252 = vadd.f32 %v5163, %v5251
      %v5253 = vpop.f32.mrf.mxu0
      %v5254 = vadd.f32 %v5165, %v5253
      %5255 = vmatmul.bf16.gmra.mxu0 %v4963
      %v5256 = vpop.f32.mrf.mxu0
      %v5257 = vadd.f32 %v5168, %v5256
      %v5258 = vpop.f32.mrf.mxu0
      %v5259 = vadd.f32 %v5170, %v5258
      %5260 = vmatmul.bf16.gmra.mxu0 %v4965
      %v5261 = vpop.f32.mrf.mxu0
      %v5262 = vadd.f32 %v5173, %v5261
      %v5263 = vpop.f32.mrf.mxu0
      %v5264 = vadd.f32 %v5175, %v5263
      %5265 = vmatmul.bf16.gmra.mxu0 %v4967
      %v5266 = vpop.f32.mrf.mxu0
      %v5267 = vadd.f32 %v5178, %v5266
      %v5268 = vpop.f32.mrf.mxu0
      %v5269 = vadd.f32 %v5180, %v5268
      %5270 = vmatmul.bf16.gmra.mxu0 %v4969
      %v5271 = vpop.f32.mrf.mxu0
      %v5272 = vadd.f32 %v5183, %v5271
      %v5273 = vpop.f32.mrf.mxu0
      %v5274 = vadd.f32 %v5185, %v5273
      %5275 = vdwg.mxu0
      %v5276 = vadd.f32 %v4744, %v5197
      %v5277 = vadd.f32 %v4745, %v5199
      %v5278 = vadd.f32 %v4746, %v5202
      %v5279 = vadd.f32 %v4747, %v5204
      %v5280 = vadd.f32 %v4748, %v5207
      %v5281 = vadd.f32 %v4749, %v5209
      %v5282 = vadd.f32 %v4750, %v5212
      %v5283 = vadd.f32 %v4751, %v5214
      %v5284 = vadd.f32 %v4752, %v5217
      %v5285 = vadd.f32 %v4753, %v5219
      %v5286 = vadd.f32 %v4754, %v5222
      %v5287 = vadd.f32 %v4755, %v5224
      %v5288 = vadd.f32 %v4756, %v5227
      %v5289 = vadd.f32 %v4757, %v5229
      %v5290 = vadd.f32 %v4758, %v5232
      %v5291 = vadd.f32 %v4759, %v5234
      %v5292 = vadd.f32 %v4760, %v5237
      %v5293 = vadd.f32 %v4761, %v5239
      %v5294 = vadd.f32 %v4762, %v5242
      %v5295 = vadd.f32 %v4763, %v5244
      %v5296 = vadd.f32 %v4764, %v5247
      %v5297 = vadd.f32 %v4765, %v5249
      %v5298 = vadd.f32 %v4766, %v5252
      %v5299 = vadd.f32 %v4767, %v5254
      %v5300 = vadd.f32 %v4768, %v5257
      %v5301 = vadd.f32 %v4769, %v5259
      %v5302 = vadd.f32 %v4770, %v5262
      %v5303 = vadd.f32 %v4771, %v5264
      %v5304 = vadd.f32 %v4772, %v5267
      %v5305 = vadd.f32 %v4773, %v5269
      %v5306 = vadd.f32 %v4774, %v5272
      %v5307 = vadd.f32 %v4775, %v5274
      %s5308 = scalar_lea.vmem [#allocation2], 592
      %v5309 = vld [vmem:[%s5308] sm:$0xff]
      %v5310 = vld [vmem:[%s5308 + $0x8] sm:$0xff]
      %v5311 = vld [vmem:[%s5308 + $0x10] sm:$0xff]
      %v5312 = vld [vmem:[%s5308 + $0x18] sm:$0xff]
      %v5313 = vld [vmem:[%s5308 + $0x20] sm:$0xff]
      %v5314 = vld [vmem:[%s5308 + $0x28] sm:$0xff]
      %v5315 = vld [vmem:[%s5308 + $0x30] sm:$0xff]
      %v5316 = vld [vmem:[%s5308 + $0x38] sm:$0xff]
      %v5317 = vld [vmem:[%s5308 + $0x40] sm:$0xff]
      %v5318 = vld [vmem:[%s5308 + $0x48] sm:$0xff]
      %v5319 = vld [vmem:[%s5308 + $0x50] sm:$0xff]
      %v5320 = vld [vmem:[%s5308 + $0x58] sm:$0xff]
      %v5321 = vld [vmem:[%s5308 + $0x60] sm:$0xff]
      %v5322 = vld [vmem:[%s5308 + $0x68] sm:$0xff]
      %v5323 = vld [vmem:[%s5308 + $0x70] sm:$0xff]
      %v5324 = vld [vmem:[%s5308 + $0x78] sm:$0xff]
      %v5325 = vld [vmem:[%s5308 + $0x80] sm:$0xff]
      %v5326 = vld [vmem:[%s5308 + $0x88] sm:$0xff]
      %v5327 = vld [vmem:[%s5308 + $0x90] sm:$0xff]
      %v5328 = vld [vmem:[%s5308 + $0x98] sm:$0xff]
      %v5329 = vld [vmem:[%s5308 + $0xa0] sm:$0xff]
      %v5330 = vld [vmem:[%s5308 + $0xa8] sm:$0xff]
      %v5331 = vld [vmem:[%s5308 + $0xb0] sm:$0xff]
      %v5332 = vld [vmem:[%s5308 + $0xb8] sm:$0xff]
      %v5333 = vld [vmem:[%s5308 + $0xc0] sm:$0xff]
      %v5334 = vld [vmem:[%s5308 + $0xc8] sm:$0xff]
      %v5335 = vld [vmem:[%s5308 + $0xd0] sm:$0xff]
      %v5336 = vld [vmem:[%s5308 + $0xd8] sm:$0xff]
      %v5337 = vld [vmem:[%s5308 + $0xe0] sm:$0xff]
      %v5338 = vld [vmem:[%s5308 + $0xe8] sm:$0xff]
      %v5339 = vld [vmem:[%s5308 + $0xf0] sm:$0xff]
      %v5340 = vld [vmem:[%s5308 + $0xf8] sm:$0xff]
      %s5341 = scalar_lea.vmem %s6, 640
      %v5342 = vld [vmem:[%s5341] sm:$0xf]
      %v5343 = vld [vmem:[%s5341 + $0x4] sm:$0xf]
      %v5344 = vld [vmem:[%s5341 + $0x8] sm:$0xf]
      %v5345 = vld [vmem:[%s5341 + $0xc] sm:$0xf]
      %v5346 = vld [vmem:[%s5341 + $0x10] sm:$0xf]
      %v5347 = vld [vmem:[%s5341 + $0x14] sm:$0xf]
      %v5348 = vld [vmem:[%s5341 + $0x18] sm:$0xf]
      %v5349 = vld [vmem:[%s5341 + $0x1c] sm:$0xf]
      %v5350 = vld [vmem:[%s5341 + $0x20] sm:$0xf]
      %v5351 = vld [vmem:[%s5341 + $0x24] sm:$0xf]
      %v5352 = vld [vmem:[%s5341 + $0x28] sm:$0xf]
      %v5353 = vld [vmem:[%s5341 + $0x2c] sm:$0xf]
      %v5354 = vld [vmem:[%s5341 + $0x30] sm:$0xf]
      %v5355 = vld [vmem:[%s5341 + $0x34] sm:$0xf]
      %v5356 = vld [vmem:[%s5341 + $0x38] sm:$0xf]
      %v5357 = vld [vmem:[%s5341 + $0x3c] sm:$0xf]
      %v5358 = vld [vmem:[%s5341 + $0x40] sm:$0xf]
      %v5359 = vld [vmem:[%s5341 + $0x44] sm:$0xf]
      %v5360 = vld [vmem:[%s5341 + $0x48] sm:$0xf]
      %v5361 = vld [vmem:[%s5341 + $0x4c] sm:$0xf]
      %v5362 = vld [vmem:[%s5341 + $0x50] sm:$0xf]
      %v5363 = vld [vmem:[%s5341 + $0x54] sm:$0xf]
      %v5364 = vld [vmem:[%s5341 + $0x58] sm:$0xf]
      %v5365 = vld [vmem:[%s5341 + $0x5c] sm:$0xf]
      %v5366 = vld [vmem:[%s5341 + $0x60] sm:$0xf]
      %v5367 = vld [vmem:[%s5341 + $0x64] sm:$0xf]
      %v5368 = vld [vmem:[%s5341 + $0x68] sm:$0xf]
      %v5369 = vld [vmem:[%s5341 + $0x6c] sm:$0xf]
      %v5370 = vld [vmem:[%s5341 + $0x70] sm:$0xf]
      %v5371 = vld [vmem:[%s5341 + $0x74] sm:$0xf]
      %v5372 = vld [vmem:[%s5341 + $0x78] sm:$0xf]
      %v5373 = vld [vmem:[%s5341 + $0x7c] sm:$0xf]
      %v5406 = vunpack.c.l.b16 %v5309
      %v5407 = vunpack.c.h.b16 %v5309
      %v5408 = vunpack.c.l.b16 %v5310
      %v5409 = vunpack.c.h.b16 %v5310
      %v5410 = vunpack.c.l.b16 %v5311
      %v5411 = vunpack.c.h.b16 %v5311
      %v5412 = vunpack.c.l.b16 %v5312
      %v5413 = vunpack.c.h.b16 %v5312
      %v5414 = vunpack.c.l.b16 %v5313
      %v5415 = vunpack.c.h.b16 %v5313
      %v5416 = vunpack.c.l.b16 %v5314
      %v5417 = vunpack.c.h.b16 %v5314
      %v5418 = vunpack.c.l.b16 %v5315
      %v5419 = vunpack.c.h.b16 %v5315
      %v5420 = vunpack.c.l.b16 %v5316
      %v5421 = vunpack.c.h.b16 %v5316
      %v5422 = vunpack.c.l.b16 %v5317
      %v5423 = vunpack.c.h.b16 %v5317
      %v5424 = vunpack.c.l.b16 %v5318
      %v5425 = vunpack.c.h.b16 %v5318
      %v5426 = vunpack.c.l.b16 %v5319
      %v5427 = vunpack.c.h.b16 %v5319
      %v5428 = vunpack.c.l.b16 %v5320
      %v5429 = vunpack.c.h.b16 %v5320
      %v5430 = vunpack.c.l.b16 %v5321
      %v5431 = vunpack.c.h.b16 %v5321
      %v5432 = vunpack.c.l.b16 %v5322
      %v5433 = vunpack.c.h.b16 %v5322
      %v5434 = vunpack.c.l.b16 %v5323
      %v5435 = vunpack.c.h.b16 %v5323
      %v5436 = vunpack.c.l.b16 %v5324
      %v5437 = vunpack.c.h.b16 %v5324
      %v5438 = vunpack.c.l.b16 %v5325
      %v5439 = vunpack.c.h.b16 %v5325
      %v5440 = vunpack.c.l.b16 %v5326
      %v5441 = vunpack.c.h.b16 %v5326
      %v5442 = vunpack.c.l.b16 %v5327
      %v5443 = vunpack.c.h.b16 %v5327
      %v5444 = vunpack.c.l.b16 %v5328
      %v5445 = vunpack.c.h.b16 %v5328
      %v5446 = vunpack.c.l.b16 %v5329
      %v5447 = vunpack.c.h.b16 %v5329
      %v5448 = vunpack.c.l.b16 %v5330
      %v5449 = vunpack.c.h.b16 %v5330
      %v5450 = vunpack.c.l.b16 %v5331
      %v5451 = vunpack.c.h.b16 %v5331
      %v5452 = vunpack.c.l.b16 %v5332
      %v5453 = vunpack.c.h.b16 %v5332
      %v5454 = vunpack.c.l.b16 %v5333
      %v5455 = vunpack.c.h.b16 %v5333
      %v5456 = vunpack.c.l.b16 %v5334
      %v5457 = vunpack.c.h.b16 %v5334
      %v5458 = vunpack.c.l.b16 %v5335
      %v5459 = vunpack.c.h.b16 %v5335
      %v5460 = vunpack.c.l.b16 %v5336
      %v5461 = vunpack.c.h.b16 %v5336
      %v5462 = vunpack.c.l.b16 %v5337
      %v5463 = vunpack.c.h.b16 %v5337
      %v5464 = vunpack.c.l.b16 %v5338
      %v5465 = vunpack.c.h.b16 %v5338
      %v5466 = vunpack.c.l.b16 %v5339
      %v5467 = vunpack.c.h.b16 %v5339
      %v5468 = vunpack.c.l.b16 %v5340
      %v5469 = vunpack.c.h.b16 %v5340
      %v5470 = vpack.c.b16 %v5408, %v5406
      %v5471 = vpack.c.b16 %v5409, %v5407
      %v5472 = vpack.c.b16 %v5412, %v5410
      %v5473 = vpack.c.b16 %v5413, %v5411
      %v5474 = vpack.c.b16 %v5416, %v5414
      %v5475 = vpack.c.b16 %v5417, %v5415
      %v5476 = vpack.c.b16 %v5420, %v5418
      %v5477 = vpack.c.b16 %v5421, %v5419
      %v5478 = vpack.c.b16 %v5424, %v5422
      %v5479 = vpack.c.b16 %v5425, %v5423
      %v5480 = vpack.c.b16 %v5428, %v5426
      %v5481 = vpack.c.b16 %v5429, %v5427
      %v5482 = vpack.c.b16 %v5432, %v5430
      %v5483 = vpack.c.b16 %v5433, %v5431
      %v5484 = vpack.c.b16 %v5436, %v5434
      %v5485 = vpack.c.b16 %v5437, %v5435
      %v5486 = vpack.c.b16 %v5440, %v5438
      %v5487 = vpack.c.b16 %v5441, %v5439
      %v5488 = vpack.c.b16 %v5444, %v5442
      %v5489 = vpack.c.b16 %v5445, %v5443
      %v5490 = vpack.c.b16 %v5448, %v5446
      %v5491 = vpack.c.b16 %v5449, %v5447
      %v5492 = vpack.c.b16 %v5452, %v5450
      %v5493 = vpack.c.b16 %v5453, %v5451
      %v5494 = vpack.c.b16 %v5456, %v5454
      %v5495 = vpack.c.b16 %v5457, %v5455
      %v5496 = vpack.c.b16 %v5460, %v5458
      %v5497 = vpack.c.b16 %v5461, %v5459
      %v5498 = vpack.c.b16 %v5464, %v5462
      %v5499 = vpack.c.b16 %v5465, %v5463
      %v5500 = vpack.c.b16 %v5468, %v5466
      %v5501 = vpack.c.b16 %v5469, %v5467
      %v5566 = vunpack.c.l.b16 %v5342
      %v5567 = vunpack.c.l.b16 %v5343
      %v5568 = vunpack.c.l.b16 %v5344
      %v5569 = vunpack.c.l.b16 %v5345
      %v5570 = vunpack.c.l.b16 %v5346
      %v5571 = vunpack.c.l.b16 %v5347
      %v5572 = vunpack.c.l.b16 %v5348
      %v5573 = vunpack.c.l.b16 %v5349
      %v5574 = vunpack.c.l.b16 %v5350
      %v5575 = vunpack.c.l.b16 %v5351
      %v5576 = vunpack.c.l.b16 %v5352
      %v5577 = vunpack.c.l.b16 %v5353
      %v5578 = vunpack.c.l.b16 %v5354
      %v5579 = vunpack.c.l.b16 %v5355
      %v5580 = vunpack.c.l.b16 %v5356
      %v5581 = vunpack.c.l.b16 %v5357
      %v5582 = vunpack.c.l.b16 %v5358
      %v5583 = vunpack.c.l.b16 %v5359
      %v5584 = vunpack.c.l.b16 %v5360
      %v5585 = vunpack.c.l.b16 %v5361
      %v5586 = vunpack.c.l.b16 %v5362
      %v5587 = vunpack.c.l.b16 %v5363
      %v5588 = vunpack.c.l.b16 %v5364
      %v5589 = vunpack.c.l.b16 %v5365
      %v5590 = vunpack.c.l.b16 %v5366
      %v5591 = vunpack.c.l.b16 %v5367
      %v5592 = vunpack.c.l.b16 %v5368
      %v5593 = vunpack.c.l.b16 %v5369
      %v5594 = vunpack.c.l.b16 %v5370
      %v5595 = vunpack.c.l.b16 %v5371
      %v5596 = vunpack.c.l.b16 %v5372
      %v5597 = vunpack.c.l.b16 %v5373
      %v5598 = vpack.c.b16 %v5567, %v5566
      %v5599 = vpack.c.b16 %v5569, %v5568
      %v5600 = vpack.c.b16 %v5571, %v5570
      %v5601 = vpack.c.b16 %v5573, %v5572
      %v5602 = vpack.c.b16 %v5575, %v5574
      %v5603 = vpack.c.b16 %v5577, %v5576
      %v5604 = vpack.c.b16 %v5579, %v5578
      %v5605 = vpack.c.b16 %v5581, %v5580
      %v5606 = vpack.c.b16 %v5583, %v5582
      %v5607 = vpack.c.b16 %v5585, %v5584
      %v5608 = vpack.c.b16 %v5587, %v5586
      %v5609 = vpack.c.b16 %v5589, %v5588
      %v5610 = vpack.c.b16 %v5591, %v5590
      %v5611 = vpack.c.b16 %v5593, %v5592
      %v5612 = vpack.c.b16 %v5595, %v5594
      %v5613 = vpack.c.b16 %v5597, %v5596
      %5630 = vmatpush.bf16.msra.mxu0 %v5605
      %5631 = vmatpush.bf16.msra.mxu0 %v5604
      %5632 = vmatpush.bf16.msra.mxu0 %v5603
      %5633 = vmatpush.bf16.msra.mxu0 %v5602
      %5634 = vmatpush.bf16.msra.mxu0 %v5601
      %5635 = vmatpush.bf16.msra.mxu0 %v5600
      %5636 = vmatpush.bf16.msra.mxu0 %v5599
      %5637 = vmatpush.bf16.msra.mxu0 %v5598
      %5638 = vmatmul.bf16.gmra.mxu0 %v5470
      %v5639 = vpop.f32.mrf.mxu0
      %v5640 = vadd.f32 0.0, %v5639
      %v5641 = vpop.f32.mrf.mxu0
      %v5642 = vadd.f32 0.0, %v5641
      %5643 = vmatmul.bf16.gmra.mxu0 %v5472
      %v5644 = vpop.f32.mrf.mxu0
      %v5645 = vadd.f32 0.0, %v5644
      %v5646 = vpop.f32.mrf.mxu0
      %v5647 = vadd.f32 0.0, %v5646
      %5648 = vmatmul.bf16.gmra.mxu0 %v5474
      %v5649 = vpop.f32.mrf.mxu0
      %v5650 = vadd.f32 0.0, %v5649
      %v5651 = vpop.f32.mrf.mxu0
      %v5652 = vadd.f32 0.0, %v5651
      %5653 = vmatmul.bf16.gmra.mxu0 %v5476
      %v5654 = vpop.f32.mrf.mxu0
      %v5655 = vadd.f32 0.0, %v5654
      %v5656 = vpop.f32.mrf.mxu0
      %v5657 = vadd.f32 0.0, %v5656
      %5658 = vmatmul.bf16.gmra.mxu0 %v5478
      %v5659 = vpop.f32.mrf.mxu0
      %v5660 = vadd.f32 0.0, %v5659
      %v5661 = vpop.f32.mrf.mxu0
      %v5662 = vadd.f32 0.0, %v5661
      %5663 = vmatmul.bf16.gmra.mxu0 %v5480
      %v5664 = vpop.f32.mrf.mxu0
      %v5665 = vadd.f32 0.0, %v5664
      %v5666 = vpop.f32.mrf.mxu0
      %v5667 = vadd.f32 0.0, %v5666
      %5668 = vmatmul.bf16.gmra.mxu0 %v5482
      %v5669 = vpop.f32.mrf.mxu0
      %v5670 = vadd.f32 0.0, %v5669
      %v5671 = vpop.f32.mrf.mxu0
      %v5672 = vadd.f32 0.0, %v5671
      %5673 = vmatmul.bf16.gmra.mxu0 %v5484
      %v5674 = vpop.f32.mrf.mxu0
      %v5675 = vadd.f32 0.0, %v5674
      %v5676 = vpop.f32.mrf.mxu0
      %v5677 = vadd.f32 0.0, %v5676
      %5678 = vmatmul.bf16.gmra.mxu0 %v5486
      %v5679 = vpop.f32.mrf.mxu0
      %v5680 = vadd.f32 0.0, %v5679
      %v5681 = vpop.f32.mrf.mxu0
      %v5682 = vadd.f32 0.0, %v5681
      %5683 = vmatmul.bf16.gmra.mxu0 %v5488
      %v5684 = vpop.f32.mrf.mxu0
      %v5685 = vadd.f32 0.0, %v5684
      %v5686 = vpop.f32.mrf.mxu0
      %v5687 = vadd.f32 0.0, %v5686
      %5688 = vmatmul.bf16.gmra.mxu0 %v5490
      %v5689 = vpop.f32.mrf.mxu0
      %v5690 = vadd.f32 0.0, %v5689
      %v5691 = vpop.f32.mrf.mxu0
      %v5692 = vadd.f32 0.0, %v5691
      %5693 = vmatmul.bf16.gmra.mxu0 %v5492
      %v5694 = vpop.f32.mrf.mxu0
      %v5695 = vadd.f32 0.0, %v5694
      %v5696 = vpop.f32.mrf.mxu0
      %v5697 = vadd.f32 0.0, %v5696
      %5698 = vmatmul.bf16.gmra.mxu0 %v5494
      %v5699 = vpop.f32.mrf.mxu0
      %v5700 = vadd.f32 0.0, %v5699
      %v5701 = vpop.f32.mrf.mxu0
      %v5702 = vadd.f32 0.0, %v5701
      %5703 = vmatmul.bf16.gmra.mxu0 %v5496
      %v5704 = vpop.f32.mrf.mxu0
      %v5705 = vadd.f32 0.0, %v5704
      %v5706 = vpop.f32.mrf.mxu0
      %v5707 = vadd.f32 0.0, %v5706
      %5708 = vmatmul.bf16.gmra.mxu0 %v5498
      %v5709 = vpop.f32.mrf.mxu0
      %v5710 = vadd.f32 0.0, %v5709
      %v5711 = vpop.f32.mrf.mxu0
      %v5712 = vadd.f32 0.0, %v5711
      %5713 = vmatmul.bf16.gmra.mxu0 %v5500
      %v5714 = vpop.f32.mrf.mxu0
      %v5715 = vadd.f32 0.0, %v5714
      %v5716 = vpop.f32.mrf.mxu0
      %v5717 = vadd.f32 0.0, %v5716
      %5718 = vdwg.mxu0
      %5719 = vmatpush.bf16.msra.mxu0 %v5613
      %5720 = vmatpush.bf16.msra.mxu0 %v5612
      %5721 = vmatpush.bf16.msra.mxu0 %v5611
      %5722 = vmatpush.bf16.msra.mxu0 %v5610
      %5723 = vmatpush.bf16.msra.mxu0 %v5609
      %5724 = vmatpush.bf16.msra.mxu0 %v5608
      %5725 = vmatpush.bf16.msra.mxu0 %v5607
      %5726 = vmatpush.bf16.msra.mxu0 %v5606
      %5727 = vmatmul.bf16.gmra.mxu0 %v5471
      %v5728 = vpop.f32.mrf.mxu0
      %v5729 = vadd.f32 %v5640, %v5728
      %v5730 = vpop.f32.mrf.mxu0
      %v5731 = vadd.f32 %v5642, %v5730
      %5732 = vmatmul.bf16.gmra.mxu0 %v5473
      %v5733 = vpop.f32.mrf.mxu0
      %v5734 = vadd.f32 %v5645, %v5733
      %v5735 = vpop.f32.mrf.mxu0
      %v5736 = vadd.f32 %v5647, %v5735
      %5737 = vmatmul.bf16.gmra.mxu0 %v5475
      %v5738 = vpop.f32.mrf.mxu0
      %v5739 = vadd.f32 %v5650, %v5738
      %v5740 = vpop.f32.mrf.mxu0
      %v5741 = vadd.f32 %v5652, %v5740
      %5742 = vmatmul.bf16.gmra.mxu0 %v5477
      %v5743 = vpop.f32.mrf.mxu0
      %v5744 = vadd.f32 %v5655, %v5743
      %v5745 = vpop.f32.mrf.mxu0
      %v5746 = vadd.f32 %v5657, %v5745
      %5747 = vmatmul.bf16.gmra.mxu0 %v5479
      %v5748 = vpop.f32.mrf.mxu0
      %v5749 = vadd.f32 %v5660, %v5748
      %v5750 = vpop.f32.mrf.mxu0
      %v5751 = vadd.f32 %v5662, %v5750
      %5752 = vmatmul.bf16.gmra.mxu0 %v5481
      %v5753 = vpop.f32.mrf.mxu0
      %v5754 = vadd.f32 %v5665, %v5753
      %v5755 = vpop.f32.mrf.mxu0
      %v5756 = vadd.f32 %v5667, %v5755
      %5757 = vmatmul.bf16.gmra.mxu0 %v5483
      %v5758 = vpop.f32.mrf.mxu0
      %v5759 = vadd.f32 %v5670, %v5758
      %v5760 = vpop.f32.mrf.mxu0
      %v5761 = vadd.f32 %v5672, %v5760
      %5762 = vmatmul.bf16.gmra.mxu0 %v5485
      %v5763 = vpop.f32.mrf.mxu0
      %v5764 = vadd.f32 %v5675, %v5763
      %v5765 = vpop.f32.mrf.mxu0
      %v5766 = vadd.f32 %v5677, %v5765
      %5767 = vmatmul.bf16.gmra.mxu0 %v5487
      %v5768 = vpop.f32.mrf.mxu0
      %v5769 = vadd.f32 %v5680, %v5768
      %v5770 = vpop.f32.mrf.mxu0
      %v5771 = vadd.f32 %v5682, %v5770
      %5772 = vmatmul.bf16.gmra.mxu0 %v5489
      %v5773 = vpop.f32.mrf.mxu0
      %v5774 = vadd.f32 %v5685, %v5773
      %v5775 = vpop.f32.mrf.mxu0
      %v5776 = vadd.f32 %v5687, %v5775
      %5777 = vmatmul.bf16.gmra.mxu0 %v5491
      %v5778 = vpop.f32.mrf.mxu0
      %v5779 = vadd.f32 %v5690, %v5778
      %v5780 = vpop.f32.mrf.mxu0
      %v5781 = vadd.f32 %v5692, %v5780
      %5782 = vmatmul.bf16.gmra.mxu0 %v5493
      %v5783 = vpop.f32.mrf.mxu0
      %v5784 = vadd.f32 %v5695, %v5783
      %v5785 = vpop.f32.mrf.mxu0
      %v5786 = vadd.f32 %v5697, %v5785
      %5787 = vmatmul.bf16.gmra.mxu0 %v5495
      %v5788 = vpop.f32.mrf.mxu0
      %v5789 = vadd.f32 %v5700, %v5788
      %v5790 = vpop.f32.mrf.mxu0
      %v5791 = vadd.f32 %v5702, %v5790
      %5792 = vmatmul.bf16.gmra.mxu0 %v5497
      %v5793 = vpop.f32.mrf.mxu0
      %v5794 = vadd.f32 %v5705, %v5793
      %v5795 = vpop.f32.mrf.mxu0
      %v5796 = vadd.f32 %v5707, %v5795
      %5797 = vmatmul.bf16.gmra.mxu0 %v5499
      %v5798 = vpop.f32.mrf.mxu0
      %v5799 = vadd.f32 %v5710, %v5798
      %v5800 = vpop.f32.mrf.mxu0
      %v5801 = vadd.f32 %v5712, %v5800
      %5802 = vmatmul.bf16.gmra.mxu0 %v5501
      %v5803 = vpop.f32.mrf.mxu0
      %v5804 = vadd.f32 %v5715, %v5803
      %v5805 = vpop.f32.mrf.mxu0
      %v5806 = vadd.f32 %v5717, %v5805
      %5807 = vdwg.mxu0
      %v5808 = vadd.f32 %v5276, %v5729
      %v5809 = vadd.f32 %v5277, %v5731
      %v5810 = vadd.f32 %v5278, %v5734
      %v5811 = vadd.f32 %v5279, %v5736
      %v5812 = vadd.f32 %v5280, %v5739
      %v5813 = vadd.f32 %v5281, %v5741
      %v5814 = vadd.f32 %v5282, %v5744
      %v5815 = vadd.f32 %v5283, %v5746
      %v5816 = vadd.f32 %v5284, %v5749
      %v5817 = vadd.f32 %v5285, %v5751
      %v5818 = vadd.f32 %v5286, %v5754
      %v5819 = vadd.f32 %v5287, %v5756
      %v5820 = vadd.f32 %v5288, %v5759
      %v5821 = vadd.f32 %v5289, %v5761
      %v5822 = vadd.f32 %v5290, %v5764
      %v5823 = vadd.f32 %v5291, %v5766
      %v5824 = vadd.f32 %v5292, %v5769
      %v5825 = vadd.f32 %v5293, %v5771
      %v5826 = vadd.f32 %v5294, %v5774
      %v5827 = vadd.f32 %v5295, %v5776
      %v5828 = vadd.f32 %v5296, %v5779
      %v5829 = vadd.f32 %v5297, %v5781
      %v5830 = vadd.f32 %v5298, %v5784
      %v5831 = vadd.f32 %v5299, %v5786
      %v5832 = vadd.f32 %v5300, %v5789
      %v5833 = vadd.f32 %v5301, %v5791
      %v5834 = vadd.f32 %v5302, %v5794
      %v5835 = vadd.f32 %v5303, %v5796
      %v5836 = vadd.f32 %v5304, %v5799
      %v5837 = vadd.f32 %v5305, %v5801
      %v5838 = vadd.f32 %v5306, %v5804
      %v5839 = vadd.f32 %v5307, %v5806
      %s5840 = scalar_lea.vmem [#allocation2], 32
      %v5841 = vld [vmem:[%s5840] sm:$0xff]
      %v5842 = vld [vmem:[%s5840 + $0x8] sm:$0xff]
      %v5843 = vld [vmem:[%s5840 + $0x10] sm:$0xff]
      %v5844 = vld [vmem:[%s5840 + $0x18] sm:$0xff]
      %v5845 = vld [vmem:[%s5840 + $0x20] sm:$0xff]
      %v5846 = vld [vmem:[%s5840 + $0x28] sm:$0xff]
      %v5847 = vld [vmem:[%s5840 + $0x30] sm:$0xff]
      %v5848 = vld [vmem:[%s5840 + $0x38] sm:$0xff]
      %v5849 = vld [vmem:[%s5840 + $0x40] sm:$0xff]
      %v5850 = vld [vmem:[%s5840 + $0x48] sm:$0xff]
      %v5851 = vld [vmem:[%s5840 + $0x50] sm:$0xff]
      %v5852 = vld [vmem:[%s5840 + $0x58] sm:$0xff]
      %v5853 = vld [vmem:[%s5840 + $0x60] sm:$0xff]
      %v5854 = vld [vmem:[%s5840 + $0x68] sm:$0xff]
      %v5855 = vld [vmem:[%s5840 + $0x70] sm:$0xff]
      %v5856 = vld [vmem:[%s5840 + $0x78] sm:$0xff]
      %v5857 = vld [vmem:[%s5840 + $0x80] sm:$0xff]
      %v5858 = vld [vmem:[%s5840 + $0x88] sm:$0xff]
      %v5859 = vld [vmem:[%s5840 + $0x90] sm:$0xff]
      %v5860 = vld [vmem:[%s5840 + $0x98] sm:$0xff]
      %v5861 = vld [vmem:[%s5840 + $0xa0] sm:$0xff]
      %v5862 = vld [vmem:[%s5840 + $0xa8] sm:$0xff]
      %v5863 = vld [vmem:[%s5840 + $0xb0] sm:$0xff]
      %v5864 = vld [vmem:[%s5840 + $0xb8] sm:$0xff]
      %v5865 = vld [vmem:[%s5840 + $0xc0] sm:$0xff]
      %v5866 = vld [vmem:[%s5840 + $0xc8] sm:$0xff]
      %v5867 = vld [vmem:[%s5840 + $0xd0] sm:$0xff]
      %v5868 = vld [vmem:[%s5840 + $0xd8] sm:$0xff]
      %v5869 = vld [vmem:[%s5840 + $0xe0] sm:$0xff]
      %v5870 = vld [vmem:[%s5840 + $0xe8] sm:$0xff]
      %v5871 = vld [vmem:[%s5840 + $0xf0] sm:$0xff]
      %v5872 = vld [vmem:[%s5840 + $0xf8] sm:$0xff]
      %s5873 = scalar_lea.vmem %s6, 768
      %v5874 = vld [vmem:[%s5873] sm:$0xf]
      %v5875 = vld [vmem:[%s5873 + $0x4] sm:$0xf]
      %v5876 = vld [vmem:[%s5873 + $0x8] sm:$0xf]
      %v5877 = vld [vmem:[%s5873 + $0xc] sm:$0xf]
      %v5878 = vld [vmem:[%s5873 + $0x10] sm:$0xf]
      %v5879 = vld [vmem:[%s5873 + $0x14] sm:$0xf]
      %v5880 = vld [vmem:[%s5873 + $0x18] sm:$0xf]
      %v5881 = vld [vmem:[%s5873 + $0x1c] sm:$0xf]
      %v5882 = vld [vmem:[%s5873 + $0x20] sm:$0xf]
      %v5883 = vld [vmem:[%s5873 + $0x24] sm:$0xf]
      %v5884 = vld [vmem:[%s5873 + $0x28] sm:$0xf]
      %v5885 = vld [vmem:[%s5873 + $0x2c] sm:$0xf]
      %v5886 = vld [vmem:[%s5873 + $0x30] sm:$0xf]
      %v5887 = vld [vmem:[%s5873 + $0x34] sm:$0xf]
      %v5888 = vld [vmem:[%s5873 + $0x38] sm:$0xf]
      %v5889 = vld [vmem:[%s5873 + $0x3c] sm:$0xf]
      %v5890 = vld [vmem:[%s5873 + $0x40] sm:$0xf]
      %v5891 = vld [vmem:[%s5873 + $0x44] sm:$0xf]
      %v5892 = vld [vmem:[%s5873 + $0x48] sm:$0xf]
      %v5893 = vld [vmem:[%s5873 + $0x4c] sm:$0xf]
      %v5894 = vld [vmem:[%s5873 + $0x50] sm:$0xf]
      %v5895 = vld [vmem:[%s5873 + $0x54] sm:$0xf]
      %v5896 = vld [vmem:[%s5873 + $0x58] sm:$0xf]
      %v5897 = vld [vmem:[%s5873 + $0x5c] sm:$0xf]
      %v5898 = vld [vmem:[%s5873 + $0x60] sm:$0xf]
      %v5899 = vld [vmem:[%s5873 + $0x64] sm:$0xf]
      %v5900 = vld [vmem:[%s5873 + $0x68] sm:$0xf]
      %v5901 = vld [vmem:[%s5873 + $0x6c] sm:$0xf]
      %v5902 = vld [vmem:[%s5873 + $0x70] sm:$0xf]
      %v5903 = vld [vmem:[%s5873 + $0x74] sm:$0xf]
      %v5904 = vld [vmem:[%s5873 + $0x78] sm:$0xf]
      %v5905 = vld [vmem:[%s5873 + $0x7c] sm:$0xf]
      %v5938 = vunpack.c.l.b16 %v5841
      %v5939 = vunpack.c.h.b16 %v5841
      %v5940 = vunpack.c.l.b16 %v5842
      %v5941 = vunpack.c.h.b16 %v5842
      %v5942 = vunpack.c.l.b16 %v5843
      %v5943 = vunpack.c.h.b16 %v5843
      %v5944 = vunpack.c.l.b16 %v5844
      %v5945 = vunpack.c.h.b16 %v5844
      %v5946 = vunpack.c.l.b16 %v5845
      %v5947 = vunpack.c.h.b16 %v5845
      %v5948 = vunpack.c.l.b16 %v5846
      %v5949 = vunpack.c.h.b16 %v5846
      %v5950 = vunpack.c.l.b16 %v5847
      %v5951 = vunpack.c.h.b16 %v5847
      %v5952 = vunpack.c.l.b16 %v5848
      %v5953 = vunpack.c.h.b16 %v5848
      %v5954 = vunpack.c.l.b16 %v5849
      %v5955 = vunpack.c.h.b16 %v5849
      %v5956 = vunpack.c.l.b16 %v5850
      %v5957 = vunpack.c.h.b16 %v5850
      %v5958 = vunpack.c.l.b16 %v5851
      %v5959 = vunpack.c.h.b16 %v5851
      %v5960 = vunpack.c.l.b16 %v5852
      %v5961 = vunpack.c.h.b16 %v5852
      %v5962 = vunpack.c.l.b16 %v5853
      %v5963 = vunpack.c.h.b16 %v5853
      %v5964 = vunpack.c.l.b16 %v5854
      %v5965 = vunpack.c.h.b16 %v5854
      %v5966 = vunpack.c.l.b16 %v5855
      %v5967 = vunpack.c.h.b16 %v5855
      %v5968 = vunpack.c.l.b16 %v5856
      %v5969 = vunpack.c.h.b16 %v5856
      %v5970 = vunpack.c.l.b16 %v5857
      %v5971 = vunpack.c.h.b16 %v5857
      %v5972 = vunpack.c.l.b16 %v5858
      %v5973 = vunpack.c.h.b16 %v5858
      %v5974 = vunpack.c.l.b16 %v5859
      %v5975 = vunpack.c.h.b16 %v5859
      %v5976 = vunpack.c.l.b16 %v5860
      %v5977 = vunpack.c.h.b16 %v5860
      %v5978 = vunpack.c.l.b16 %v5861
      %v5979 = vunpack.c.h.b16 %v5861
      %v5980 = vunpack.c.l.b16 %v5862
      %v5981 = vunpack.c.h.b16 %v5862
      %v5982 = vunpack.c.l.b16 %v5863
      %v5983 = vunpack.c.h.b16 %v5863
      %v5984 = vunpack.c.l.b16 %v5864
      %v5985 = vunpack.c.h.b16 %v5864
      %v5986 = vunpack.c.l.b16 %v5865
      %v5987 = vunpack.c.h.b16 %v5865
      %v5988 = vunpack.c.l.b16 %v5866
      %v5989 = vunpack.c.h.b16 %v5866
      %v5990 = vunpack.c.l.b16 %v5867
      %v5991 = vunpack.c.h.b16 %v5867
      %v5992 = vunpack.c.l.b16 %v5868
      %v5993 = vunpack.c.h.b16 %v5868
      %v5994 = vunpack.c.l.b16 %v5869
      %v5995 = vunpack.c.h.b16 %v5869
      %v5996 = vunpack.c.l.b16 %v5870
      %v5997 = vunpack.c.h.b16 %v5870
      %v5998 = vunpack.c.l.b16 %v5871
      %v5999 = vunpack.c.h.b16 %v5871
      %v6000 = vunpack.c.l.b16 %v5872
      %v6001 = vunpack.c.h.b16 %v5872
      %v6002 = vpack.c.b16 %v5940, %v5938
      %v6003 = vpack.c.b16 %v5941, %v5939
      %v6004 = vpack.c.b16 %v5944, %v5942
      %v6005 = vpack.c.b16 %v5945, %v5943
      %v6006 = vpack.c.b16 %v5948, %v5946
      %v6007 = vpack.c.b16 %v5949, %v5947
      %v6008 = vpack.c.b16 %v5952, %v5950
      %v6009 = vpack.c.b16 %v5953, %v5951
      %v6010 = vpack.c.b16 %v5956, %v5954
      %v6011 = vpack.c.b16 %v5957, %v5955
      %v6012 = vpack.c.b16 %v5960, %v5958
      %v6013 = vpack.c.b16 %v5961, %v5959
      %v6014 = vpack.c.b16 %v5964, %v5962
      %v6015 = vpack.c.b16 %v5965, %v5963
      %v6016 = vpack.c.b16 %v5968, %v5966
      %v6017 = vpack.c.b16 %v5969, %v5967
      %v6018 = vpack.c.b16 %v5972, %v5970
      %v6019 = vpack.c.b16 %v5973, %v5971
      %v6020 = vpack.c.b16 %v5976, %v5974
      %v6021 = vpack.c.b16 %v5977, %v5975
      %v6022 = vpack.c.b16 %v5980, %v5978
      %v6023 = vpack.c.b16 %v5981, %v5979
      %v6024 = vpack.c.b16 %v5984, %v5982
      %v6025 = vpack.c.b16 %v5985, %v5983
      %v6026 = vpack.c.b16 %v5988, %v5986
      %v6027 = vpack.c.b16 %v5989, %v5987
      %v6028 = vpack.c.b16 %v5992, %v5990
      %v6029 = vpack.c.b16 %v5993, %v5991
      %v6030 = vpack.c.b16 %v5996, %v5994
      %v6031 = vpack.c.b16 %v5997, %v5995
      %v6032 = vpack.c.b16 %v6000, %v5998
      %v6033 = vpack.c.b16 %v6001, %v5999
      %v6098 = vunpack.c.l.b16 %v5874
      %v6099 = vunpack.c.l.b16 %v5875
      %v6100 = vunpack.c.l.b16 %v5876
      %v6101 = vunpack.c.l.b16 %v5877
      %v6102 = vunpack.c.l.b16 %v5878
      %v6103 = vunpack.c.l.b16 %v5879
      %v6104 = vunpack.c.l.b16 %v5880
      %v6105 = vunpack.c.l.b16 %v5881
      %v6106 = vunpack.c.l.b16 %v5882
      %v6107 = vunpack.c.l.b16 %v5883
      %v6108 = vunpack.c.l.b16 %v5884
      %v6109 = vunpack.c.l.b16 %v5885
      %v6110 = vunpack.c.l.b16 %v5886
      %v6111 = vunpack.c.l.b16 %v5887
      %v6112 = vunpack.c.l.b16 %v5888
      %v6113 = vunpack.c.l.b16 %v5889
      %v6114 = vunpack.c.l.b16 %v5890
      %v6115 = vunpack.c.l.b16 %v5891
      %v6116 = vunpack.c.l.b16 %v5892
      %v6117 = vunpack.c.l.b16 %v5893
      %v6118 = vunpack.c.l.b16 %v5894
      %v6119 = vunpack.c.l.b16 %v5895
      %v6120 = vunpack.c.l.b16 %v5896
      %v6121 = vunpack.c.l.b16 %v5897
      %v6122 = vunpack.c.l.b16 %v5898
      %v6123 = vunpack.c.l.b16 %v5899
      %v6124 = vunpack.c.l.b16 %v5900
      %v6125 = vunpack.c.l.b16 %v5901
      %v6126 = vunpack.c.l.b16 %v5902
      %v6127 = vunpack.c.l.b16 %v5903
      %v6128 = vunpack.c.l.b16 %v5904
      %v6129 = vunpack.c.l.b16 %v5905
      %v6130 = vpack.c.b16 %v6099, %v6098
      %v6131 = vpack.c.b16 %v6101, %v6100
      %v6132 = vpack.c.b16 %v6103, %v6102
      %v6133 = vpack.c.b16 %v6105, %v6104
      %v6134 = vpack.c.b16 %v6107, %v6106
      %v6135 = vpack.c.b16 %v6109, %v6108
      %v6136 = vpack.c.b16 %v6111, %v6110
      %v6137 = vpack.c.b16 %v6113, %v6112
      %v6138 = vpack.c.b16 %v6115, %v6114
      %v6139 = vpack.c.b16 %v6117, %v6116
      %v6140 = vpack.c.b16 %v6119, %v6118
      %v6141 = vpack.c.b16 %v6121, %v6120
      %v6142 = vpack.c.b16 %v6123, %v6122
      %v6143 = vpack.c.b16 %v6125, %v6124
      %v6144 = vpack.c.b16 %v6127, %v6126
      %v6145 = vpack.c.b16 %v6129, %v6128
      %6162 = vmatpush.bf16.msra.mxu0 %v6137
      %6163 = vmatpush.bf16.msra.mxu0 %v6136
      %6164 = vmatpush.bf16.msra.mxu0 %v6135
      %6165 = vmatpush.bf16.msra.mxu0 %v6134
      %6166 = vmatpush.bf16.msra.mxu0 %v6133
      %6167 = vmatpush.bf16.msra.mxu0 %v6132
      %6168 = vmatpush.bf16.msra.mxu0 %v6131
      %6169 = vmatpush.bf16.msra.mxu0 %v6130
      %6170 = vmatmul.bf16.gmra.mxu0 %v6002
      %v6171 = vpop.f32.mrf.mxu0
      %v6172 = vadd.f32 0.0, %v6171
      %v6173 = vpop.f32.mrf.mxu0
      %v6174 = vadd.f32 0.0, %v6173
      %6175 = vmatmul.bf16.gmra.mxu0 %v6004
      %v6176 = vpop.f32.mrf.mxu0
      %v6177 = vadd.f32 0.0, %v6176
      %v6178 = vpop.f32.mrf.mxu0
      %v6179 = vadd.f32 0.0, %v6178
      %6180 = vmatmul.bf16.gmra.mxu0 %v6006
      %v6181 = vpop.f32.mrf.mxu0
      %v6182 = vadd.f32 0.0, %v6181
      %v6183 = vpop.f32.mrf.mxu0
      %v6184 = vadd.f32 0.0, %v6183
      %6185 = vmatmul.bf16.gmra.mxu0 %v6008
      %v6186 = vpop.f32.mrf.mxu0
      %v6187 = vadd.f32 0.0, %v6186
      %v6188 = vpop.f32.mrf.mxu0
      %v6189 = vadd.f32 0.0, %v6188
      %6190 = vmatmul.bf16.gmra.mxu0 %v6010
      %v6191 = vpop.f32.mrf.mxu0
      %v6192 = vadd.f32 0.0, %v6191
      %v6193 = vpop.f32.mrf.mxu0
      %v6194 = vadd.f32 0.0, %v6193
      %6195 = vmatmul.bf16.gmra.mxu0 %v6012
      %v6196 = vpop.f32.mrf.mxu0
      %v6197 = vadd.f32 0.0, %v6196
      %v6198 = vpop.f32.mrf.mxu0
      %v6199 = vadd.f32 0.0, %v6198
      %6200 = vmatmul.bf16.gmra.mxu0 %v6014
      %v6201 = vpop.f32.mrf.mxu0
      %v6202 = vadd.f32 0.0, %v6201
      %v6203 = vpop.f32.mrf.mxu0
      %v6204 = vadd.f32 0.0, %v6203
      %6205 = vmatmul.bf16.gmra.mxu0 %v6016
      %v6206 = vpop.f32.mrf.mxu0
      %v6207 = vadd.f32 0.0, %v6206
      %v6208 = vpop.f32.mrf.mxu0
      %v6209 = vadd.f32 0.0, %v6208
      %6210 = vmatmul.bf16.gmra.mxu0 %v6018
      %v6211 = vpop.f32.mrf.mxu0
      %v6212 = vadd.f32 0.0, %v6211
      %v6213 = vpop.f32.mrf.mxu0
      %v6214 = vadd.f32 0.0, %v6213
      %6215 = vmatmul.bf16.gmra.mxu0 %v6020
      %v6216 = vpop.f32.mrf.mxu0
      %v6217 = vadd.f32 0.0, %v6216
      %v6218 = vpop.f32.mrf.mxu0
      %v6219 = vadd.f32 0.0, %v6218
      %6220 = vmatmul.bf16.gmra.mxu0 %v6022
      %v6221 = vpop.f32.mrf.mxu0
      %v6222 = vadd.f32 0.0, %v6221
      %v6223 = vpop.f32.mrf.mxu0
      %v6224 = vadd.f32 0.0, %v6223
      %6225 = vmatmul.bf16.gmra.mxu0 %v6024
      %v6226 = vpop.f32.mrf.mxu0
      %v6227 = vadd.f32 0.0, %v6226
      %v6228 = vpop.f32.mrf.mxu0
      %v6229 = vadd.f32 0.0, %v6228
      %6230 = vmatmul.bf16.gmra.mxu0 %v6026
      %v6231 = vpop.f32.mrf.mxu0
      %v6232 = vadd.f32 0.0, %v6231
      %v6233 = vpop.f32.mrf.mxu0
      %v6234 = vadd.f32 0.0, %v6233
      %6235 = vmatmul.bf16.gmra.mxu0 %v6028
      %v6236 = vpop.f32.mrf.mxu0
      %v6237 = vadd.f32 0.0, %v6236
      %v6238 = vpop.f32.mrf.mxu0
      %v6239 = vadd.f32 0.0, %v6238
      %6240 = vmatmul.bf16.gmra.mxu0 %v6030
      %v6241 = vpop.f32.mrf.mxu0
      %v6242 = vadd.f32 0.0, %v6241
      %v6243 = vpop.f32.mrf.mxu0
      %v6244 = vadd.f32 0.0, %v6243
      %6245 = vmatmul.bf16.gmra.mxu0 %v6032
      %v6246 = vpop.f32.mrf.mxu0
      %v6247 = vadd.f32 0.0, %v6246
      %v6248 = vpop.f32.mrf.mxu0
      %v6249 = vadd.f32 0.0, %v6248
      %6250 = vdwg.mxu0
      %6251 = vmatpush.bf16.msra.mxu0 %v6145
      %6252 = vmatpush.bf16.msra.mxu0 %v6144
      %6253 = vmatpush.bf16.msra.mxu0 %v6143
      %6254 = vmatpush.bf16.msra.mxu0 %v6142
      %6255 = vmatpush.bf16.msra.mxu0 %v6141
      %6256 = vmatpush.bf16.msra.mxu0 %v6140
      %6257 = vmatpush.bf16.msra.mxu0 %v6139
      %6258 = vmatpush.bf16.msra.mxu0 %v6138
      %6259 = vmatmul.bf16.gmra.mxu0 %v6003
      %v6260 = vpop.f32.mrf.mxu0
      %v6261 = vadd.f32 %v6172, %v6260
      %v6262 = vpop.f32.mrf.mxu0
      %v6263 = vadd.f32 %v6174, %v6262
      %6264 = vmatmul.bf16.gmra.mxu0 %v6005
      %v6265 = vpop.f32.mrf.mxu0
      %v6266 = vadd.f32 %v6177, %v6265
      %v6267 = vpop.f32.mrf.mxu0
      %v6268 = vadd.f32 %v6179, %v6267
      %6269 = vmatmul.bf16.gmra.mxu0 %v6007
      %v6270 = vpop.f32.mrf.mxu0
      %v6271 = vadd.f32 %v6182, %v6270
      %v6272 = vpop.f32.mrf.mxu0
      %v6273 = vadd.f32 %v6184, %v6272
      %6274 = vmatmul.bf16.gmra.mxu0 %v6009
      %v6275 = vpop.f32.mrf.mxu0
      %v6276 = vadd.f32 %v6187, %v6275
      %v6277 = vpop.f32.mrf.mxu0
      %v6278 = vadd.f32 %v6189, %v6277
      %6279 = vmatmul.bf16.gmra.mxu0 %v6011
      %v6280 = vpop.f32.mrf.mxu0
      %v6281 = vadd.f32 %v6192, %v6280
      %v6282 = vpop.f32.mrf.mxu0
      %v6283 = vadd.f32 %v6194, %v6282
      %6284 = vmatmul.bf16.gmra.mxu0 %v6013
      %v6285 = vpop.f32.mrf.mxu0
      %v6286 = vadd.f32 %v6197, %v6285
      %v6287 = vpop.f32.mrf.mxu0
      %v6288 = vadd.f32 %v6199, %v6287
      %6289 = vmatmul.bf16.gmra.mxu0 %v6015
      %v6290 = vpop.f32.mrf.mxu0
      %v6291 = vadd.f32 %v6202, %v6290
      %v6292 = vpop.f32.mrf.mxu0
      %v6293 = vadd.f32 %v6204, %v6292
      %6294 = vmatmul.bf16.gmra.mxu0 %v6017
      %v6295 = vpop.f32.mrf.mxu0
      %v6296 = vadd.f32 %v6207, %v6295
      %v6297 = vpop.f32.mrf.mxu0
      %v6298 = vadd.f32 %v6209, %v6297
      %6299 = vmatmul.bf16.gmra.mxu0 %v6019
      %v6300 = vpop.f32.mrf.mxu0
      %v6301 = vadd.f32 %v6212, %v6300
      %v6302 = vpop.f32.mrf.mxu0
      %v6303 = vadd.f32 %v6214, %v6302
      %6304 = vmatmul.bf16.gmra.mxu0 %v6021
      %v6305 = vpop.f32.mrf.mxu0
      %v6306 = vadd.f32 %v6217, %v6305
      %v6307 = vpop.f32.mrf.mxu0
      %v6308 = vadd.f32 %v6219, %v6307
      %6309 = vmatmul.bf16.gmra.mxu0 %v6023
      %v6310 = vpop.f32.mrf.mxu0
      %v6311 = vadd.f32 %v6222, %v6310
      %v6312 = vpop.f32.mrf.mxu0
      %v6313 = vadd.f32 %v6224, %v6312
      %6314 = vmatmul.bf16.gmra.mxu0 %v6025
      %v6315 = vpop.f32.mrf.mxu0
      %v6316 = vadd.f32 %v6227, %v6315
      %v6317 = vpop.f32.mrf.mxu0
      %v6318 = vadd.f32 %v6229, %v6317
      %6319 = vmatmul.bf16.gmra.mxu0 %v6027
      %v6320 = vpop.f32.mrf.mxu0
      %v6321 = vadd.f32 %v6232, %v6320
      %v6322 = vpop.f32.mrf.mxu0
      %v6323 = vadd.f32 %v6234, %v6322
      %6324 = vmatmul.bf16.gmra.mxu0 %v6029
      %v6325 = vpop.f32.mrf.mxu0
      %v6326 = vadd.f32 %v6237, %v6325
      %v6327 = vpop.f32.mrf.mxu0
      %v6328 = vadd.f32 %v6239, %v6327
      %6329 = vmatmul.bf16.gmra.mxu0 %v6031
      %v6330 = vpop.f32.mrf.mxu0
      %v6331 = vadd.f32 %v6242, %v6330
      %v6332 = vpop.f32.mrf.mxu0
      %v6333 = vadd.f32 %v6244, %v6332
      %6334 = vmatmul.bf16.gmra.mxu0 %v6033
      %v6335 = vpop.f32.mrf.mxu0
      %v6336 = vadd.f32 %v6247, %v6335
      %v6337 = vpop.f32.mrf.mxu0
      %v6338 = vadd.f32 %v6249, %v6337
      %6339 = vdwg.mxu0
      %v6340 = vadd.f32 %v5808, %v6261
      %v6341 = vadd.f32 %v5809, %v6263
      %v6342 = vadd.f32 %v5810, %v6266
      %v6343 = vadd.f32 %v5811, %v6268
      %v6344 = vadd.f32 %v5812, %v6271
      %v6345 = vadd.f32 %v5813, %v6273
      %v6346 = vadd.f32 %v5814, %v6276
      %v6347 = vadd.f32 %v5815, %v6278
      %v6348 = vadd.f32 %v5816, %v6281
      %v6349 = vadd.f32 %v5817, %v6283
      %v6350 = vadd.f32 %v5818, %v6286
      %v6351 = vadd.f32 %v5819, %v6288
      %v6352 = vadd.f32 %v5820, %v6291
      %v6353 = vadd.f32 %v5821, %v6293
      %v6354 = vadd.f32 %v5822, %v6296
      %v6355 = vadd.f32 %v5823, %v6298
      %v6356 = vadd.f32 %v5824, %v6301
      %v6357 = vadd.f32 %v5825, %v6303
      %v6358 = vadd.f32 %v5826, %v6306
      %v6359 = vadd.f32 %v5827, %v6308
      %v6360 = vadd.f32 %v5828, %v6311
      %v6361 = vadd.f32 %v5829, %v6313
      %v6362 = vadd.f32 %v5830, %v6316
      %v6363 = vadd.f32 %v5831, %v6318
      %v6364 = vadd.f32 %v5832, %v6321
      %v6365 = vadd.f32 %v5833, %v6323
      %v6366 = vadd.f32 %v5834, %v6326
      %v6367 = vadd.f32 %v5835, %v6328
      %v6368 = vadd.f32 %v5836, %v6331
      %v6369 = vadd.f32 %v5837, %v6333
      %v6370 = vadd.f32 %v5838, %v6336
      %v6371 = vadd.f32 %v5839, %v6338
      %s6372 = scalar_lea.vmem [#allocation2], 320
      %v6373 = vld [vmem:[%s6372] sm:$0xff]
      %v6374 = vld [vmem:[%s6372 + $0x8] sm:$0xff]
      %v6375 = vld [vmem:[%s6372 + $0x10] sm:$0xff]
      %v6376 = vld [vmem:[%s6372 + $0x18] sm:$0xff]
      %v6377 = vld [vmem:[%s6372 + $0x20] sm:$0xff]
      %v6378 = vld [vmem:[%s6372 + $0x28] sm:$0xff]
      %v6379 = vld [vmem:[%s6372 + $0x30] sm:$0xff]
      %v6380 = vld [vmem:[%s6372 + $0x38] sm:$0xff]
      %v6381 = vld [vmem:[%s6372 + $0x40] sm:$0xff]
      %v6382 = vld [vmem:[%s6372 + $0x48] sm:$0xff]
      %v6383 = vld [vmem:[%s6372 + $0x50] sm:$0xff]
      %v6384 = vld [vmem:[%s6372 + $0x58] sm:$0xff]
      %v6385 = vld [vmem:[%s6372 + $0x60] sm:$0xff]
      %v6386 = vld [vmem:[%s6372 + $0x68] sm:$0xff]
      %v6387 = vld [vmem:[%s6372 + $0x70] sm:$0xff]
      %v6388 = vld [vmem:[%s6372 + $0x78] sm:$0xff]
      %v6389 = vld [vmem:[%s6372 + $0x80] sm:$0xff]
      %v6390 = vld [vmem:[%s6372 + $0x88] sm:$0xff]
      %v6391 = vld [vmem:[%s6372 + $0x90] sm:$0xff]
      %v6392 = vld [vmem:[%s6372 + $0x98] sm:$0xff]
      %v6393 = vld [vmem:[%s6372 + $0xa0] sm:$0xff]
      %v6394 = vld [vmem:[%s6372 + $0xa8] sm:$0xff]
      %v6395 = vld [vmem:[%s6372 + $0xb0] sm:$0xff]
      %v6396 = vld [vmem:[%s6372 + $0xb8] sm:$0xff]
      %v6397 = vld [vmem:[%s6372 + $0xc0] sm:$0xff]
      %v6398 = vld [vmem:[%s6372 + $0xc8] sm:$0xff]
      %v6399 = vld [vmem:[%s6372 + $0xd0] sm:$0xff]
      %v6400 = vld [vmem:[%s6372 + $0xd8] sm:$0xff]
      %v6401 = vld [vmem:[%s6372 + $0xe0] sm:$0xff]
      %v6402 = vld [vmem:[%s6372 + $0xe8] sm:$0xff]
      %v6403 = vld [vmem:[%s6372 + $0xf0] sm:$0xff]
      %v6404 = vld [vmem:[%s6372 + $0xf8] sm:$0xff]
      %s6405 = scalar_lea.vmem %s6, 896
      %v6406 = vld [vmem:[%s6405] sm:$0xf]
      %v6407 = vld [vmem:[%s6405 + $0x4] sm:$0xf]
      %v6408 = vld [vmem:[%s6405 + $0x8] sm:$0xf]
      %v6409 = vld [vmem:[%s6405 + $0xc] sm:$0xf]
      %v6410 = vld [vmem:[%s6405 + $0x10] sm:$0xf]
      %v6411 = vld [vmem:[%s6405 + $0x14] sm:$0xf]
      %v6412 = vld [vmem:[%s6405 + $0x18] sm:$0xf]
      %v6413 = vld [vmem:[%s6405 + $0x1c] sm:$0xf]
      %v6414 = vld [vmem:[%s6405 + $0x20] sm:$0xf]
      %v6415 = vld [vmem:[%s6405 + $0x24] sm:$0xf]
      %v6416 = vld [vmem:[%s6405 + $0x28] sm:$0xf]
      %v6417 = vld [vmem:[%s6405 + $0x2c] sm:$0xf]
      %v6418 = vld [vmem:[%s6405 + $0x30] sm:$0xf]
      %v6419 = vld [vmem:[%s6405 + $0x34] sm:$0xf]
      %v6420 = vld [vmem:[%s6405 + $0x38] sm:$0xf]
      %v6421 = vld [vmem:[%s6405 + $0x3c] sm:$0xf]
      %v6422 = vld [vmem:[%s6405 + $0x40] sm:$0xf]
      %v6423 = vld [vmem:[%s6405 + $0x44] sm:$0xf]
      %v6424 = vld [vmem:[%s6405 + $0x48] sm:$0xf]
      %v6425 = vld [vmem:[%s6405 + $0x4c] sm:$0xf]
      %v6426 = vld [vmem:[%s6405 + $0x50] sm:$0xf]
      %v6427 = vld [vmem:[%s6405 + $0x54] sm:$0xf]
      %v6428 = vld [vmem:[%s6405 + $0x58] sm:$0xf]
      %v6429 = vld [vmem:[%s6405 + $0x5c] sm:$0xf]
      %v6430 = vld [vmem:[%s6405 + $0x60] sm:$0xf]
      %v6431 = vld [vmem:[%s6405 + $0x64] sm:$0xf]
      %v6432 = vld [vmem:[%s6405 + $0x68] sm:$0xf]
      %v6433 = vld [vmem:[%s6405 + $0x6c] sm:$0xf]
      %v6434 = vld [vmem:[%s6405 + $0x70] sm:$0xf]
      %v6435 = vld [vmem:[%s6405 + $0x74] sm:$0xf]
      %v6436 = vld [vmem:[%s6405 + $0x78] sm:$0xf]
      %v6437 = vld [vmem:[%s6405 + $0x7c] sm:$0xf]
      %v6470 = vunpack.c.l.b16 %v6373
      %v6471 = vunpack.c.h.b16 %v6373
      %v6472 = vunpack.c.l.b16 %v6374
      %v6473 = vunpack.c.h.b16 %v6374
      %v6474 = vunpack.c.l.b16 %v6375
      %v6475 = vunpack.c.h.b16 %v6375
      %v6476 = vunpack.c.l.b16 %v6376
      %v6477 = vunpack.c.h.b16 %v6376
      %v6478 = vunpack.c.l.b16 %v6377
      %v6479 = vunpack.c.h.b16 %v6377
      %v6480 = vunpack.c.l.b16 %v6378
      %v6481 = vunpack.c.h.b16 %v6378
      %v6482 = vunpack.c.l.b16 %v6379
      %v6483 = vunpack.c.h.b16 %v6379
      %v6484 = vunpack.c.l.b16 %v6380
      %v6485 = vunpack.c.h.b16 %v6380
      %v6486 = vunpack.c.l.b16 %v6381
      %v6487 = vunpack.c.h.b16 %v6381
      %v6488 = vunpack.c.l.b16 %v6382
      %v6489 = vunpack.c.h.b16 %v6382
      %v6490 = vunpack.c.l.b16 %v6383
      %v6491 = vunpack.c.h.b16 %v6383
      %v6492 = vunpack.c.l.b16 %v6384
      %v6493 = vunpack.c.h.b16 %v6384
      %v6494 = vunpack.c.l.b16 %v6385
      %v6495 = vunpack.c.h.b16 %v6385
      %v6496 = vunpack.c.l.b16 %v6386
      %v6497 = vunpack.c.h.b16 %v6386
      %v6498 = vunpack.c.l.b16 %v6387
      %v6499 = vunpack.c.h.b16 %v6387
      %v6500 = vunpack.c.l.b16 %v6388
      %v6501 = vunpack.c.h.b16 %v6388
      %v6502 = vunpack.c.l.b16 %v6389
      %v6503 = vunpack.c.h.b16 %v6389
      %v6504 = vunpack.c.l.b16 %v6390
      %v6505 = vunpack.c.h.b16 %v6390
      %v6506 = vunpack.c.l.b16 %v6391
      %v6507 = vunpack.c.h.b16 %v6391
      %v6508 = vunpack.c.l.b16 %v6392
      %v6509 = vunpack.c.h.b16 %v6392
      %v6510 = vunpack.c.l.b16 %v6393
      %v6511 = vunpack.c.h.b16 %v6393
      %v6512 = vunpack.c.l.b16 %v6394
      %v6513 = vunpack.c.h.b16 %v6394
      %v6514 = vunpack.c.l.b16 %v6395
      %v6515 = vunpack.c.h.b16 %v6395
      %v6516 = vunpack.c.l.b16 %v6396
      %v6517 = vunpack.c.h.b16 %v6396
      %v6518 = vunpack.c.l.b16 %v6397
      %v6519 = vunpack.c.h.b16 %v6397
      %v6520 = vunpack.c.l.b16 %v6398
      %v6521 = vunpack.c.h.b16 %v6398
      %v6522 = vunpack.c.l.b16 %v6399
      %v6523 = vunpack.c.h.b16 %v6399
      %v6524 = vunpack.c.l.b16 %v6400
      %v6525 = vunpack.c.h.b16 %v6400
      %v6526 = vunpack.c.l.b16 %v6401
      %v6527 = vunpack.c.h.b16 %v6401
      %v6528 = vunpack.c.l.b16 %v6402
      %v6529 = vunpack.c.h.b16 %v6402
      %v6530 = vunpack.c.l.b16 %v6403
      %v6531 = vunpack.c.h.b16 %v6403
      %v6532 = vunpack.c.l.b16 %v6404
      %v6533 = vunpack.c.h.b16 %v6404
      %v6534 = vpack.c.b16 %v6472, %v6470
      %v6535 = vpack.c.b16 %v6473, %v6471
      %v6536 = vpack.c.b16 %v6476, %v6474
      %v6537 = vpack.c.b16 %v6477, %v6475
      %v6538 = vpack.c.b16 %v6480, %v6478
      %v6539 = vpack.c.b16 %v6481, %v6479
      %v6540 = vpack.c.b16 %v6484, %v6482
      %v6541 = vpack.c.b16 %v6485, %v6483
      %v6542 = vpack.c.b16 %v6488, %v6486
      %v6543 = vpack.c.b16 %v6489, %v6487
      %v6544 = vpack.c.b16 %v6492, %v6490
      %v6545 = vpack.c.b16 %v6493, %v6491
      %v6546 = vpack.c.b16 %v6496, %v6494
      %v6547 = vpack.c.b16 %v6497, %v6495
      %v6548 = vpack.c.b16 %v6500, %v6498
      %v6549 = vpack.c.b16 %v6501, %v6499
      %v6550 = vpack.c.b16 %v6504, %v6502
      %v6551 = vpack.c.b16 %v6505, %v6503
      %v6552 = vpack.c.b16 %v6508, %v6506
      %v6553 = vpack.c.b16 %v6509, %v6507
      %v6554 = vpack.c.b16 %v6512, %v6510
      %v6555 = vpack.c.b16 %v6513, %v6511
      %v6556 = vpack.c.b16 %v6516, %v6514
      %v6557 = vpack.c.b16 %v6517, %v6515
      %v6558 = vpack.c.b16 %v6520, %v6518
      %v6559 = vpack.c.b16 %v6521, %v6519
      %v6560 = vpack.c.b16 %v6524, %v6522
      %v6561 = vpack.c.b16 %v6525, %v6523
      %v6562 = vpack.c.b16 %v6528, %v6526
      %v6563 = vpack.c.b16 %v6529, %v6527
      %v6564 = vpack.c.b16 %v6532, %v6530
      %v6565 = vpack.c.b16 %v6533, %v6531
      %v6630 = vunpack.c.l.b16 %v6406
      %v6631 = vunpack.c.l.b16 %v6407
      %v6632 = vunpack.c.l.b16 %v6408
      %v6633 = vunpack.c.l.b16 %v6409
      %v6634 = vunpack.c.l.b16 %v6410
      %v6635 = vunpack.c.l.b16 %v6411
      %v6636 = vunpack.c.l.b16 %v6412
      %v6637 = vunpack.c.l.b16 %v6413
      %v6638 = vunpack.c.l.b16 %v6414
      %v6639 = vunpack.c.l.b16 %v6415
      %v6640 = vunpack.c.l.b16 %v6416
      %v6641 = vunpack.c.l.b16 %v6417
      %v6642 = vunpack.c.l.b16 %v6418
      %v6643 = vunpack.c.l.b16 %v6419
      %v6644 = vunpack.c.l.b16 %v6420
      %v6645 = vunpack.c.l.b16 %v6421
      %v6646 = vunpack.c.l.b16 %v6422
      %v6647 = vunpack.c.l.b16 %v6423
      %v6648 = vunpack.c.l.b16 %v6424
      %v6649 = vunpack.c.l.b16 %v6425
      %v6650 = vunpack.c.l.b16 %v6426
      %v6651 = vunpack.c.l.b16 %v6427
      %v6652 = vunpack.c.l.b16 %v6428
      %v6653 = vunpack.c.l.b16 %v6429
      %v6654 = vunpack.c.l.b16 %v6430
      %v6655 = vunpack.c.l.b16 %v6431
      %v6656 = vunpack.c.l.b16 %v6432
      %v6657 = vunpack.c.l.b16 %v6433
      %v6658 = vunpack.c.l.b16 %v6434
      %v6659 = vunpack.c.l.b16 %v6435
      %v6660 = vunpack.c.l.b16 %v6436
      %v6661 = vunpack.c.l.b16 %v6437
      %v6662 = vpack.c.b16 %v6631, %v6630
      %v6663 = vpack.c.b16 %v6633, %v6632
      %v6664 = vpack.c.b16 %v6635, %v6634
      %v6665 = vpack.c.b16 %v6637, %v6636
      %v6666 = vpack.c.b16 %v6639, %v6638
      %v6667 = vpack.c.b16 %v6641, %v6640
      %v6668 = vpack.c.b16 %v6643, %v6642
      %v6669 = vpack.c.b16 %v6645, %v6644
      %v6670 = vpack.c.b16 %v6647, %v6646
      %v6671 = vpack.c.b16 %v6649, %v6648
      %v6672 = vpack.c.b16 %v6651, %v6650
      %v6673 = vpack.c.b16 %v6653, %v6652
      %v6674 = vpack.c.b16 %v6655, %v6654
      %v6675 = vpack.c.b16 %v6657, %v6656
      %v6676 = vpack.c.b16 %v6659, %v6658
      %v6677 = vpack.c.b16 %v6661, %v6660
      %6694 = vmatpush.bf16.msra.mxu0 %v6669
      %6695 = vmatpush.bf16.msra.mxu0 %v6668
      %6696 = vmatpush.bf16.msra.mxu0 %v6667
      %6697 = vmatpush.bf16.msra.mxu0 %v6666
      %6698 = vmatpush.bf16.msra.mxu0 %v6665
      %6699 = vmatpush.bf16.msra.mxu0 %v6664
      %6700 = vmatpush.bf16.msra.mxu0 %v6663
      %6701 = vmatpush.bf16.msra.mxu0 %v6662
      %6702 = vmatmul.bf16.gmra.mxu0 %v6534
      %v6703 = vpop.f32.mrf.mxu0
      %v6704 = vadd.f32 0.0, %v6703
      %v6705 = vpop.f32.mrf.mxu0
      %v6706 = vadd.f32 0.0, %v6705
      %6707 = vmatmul.bf16.gmra.mxu0 %v6536
      %v6708 = vpop.f32.mrf.mxu0
      %v6709 = vadd.f32 0.0, %v6708
      %v6710 = vpop.f32.mrf.mxu0
      %v6711 = vadd.f32 0.0, %v6710
      %6712 = vmatmul.bf16.gmra.mxu0 %v6538
      %v6713 = vpop.f32.mrf.mxu0
      %v6714 = vadd.f32 0.0, %v6713
      %v6715 = vpop.f32.mrf.mxu0
      %v6716 = vadd.f32 0.0, %v6715
      %6717 = vmatmul.bf16.gmra.mxu0 %v6540
      %v6718 = vpop.f32.mrf.mxu0
      %v6719 = vadd.f32 0.0, %v6718
      %v6720 = vpop.f32.mrf.mxu0
      %v6721 = vadd.f32 0.0, %v6720
      %6722 = vmatmul.bf16.gmra.mxu0 %v6542
      %v6723 = vpop.f32.mrf.mxu0
      %v6724 = vadd.f32 0.0, %v6723
      %v6725 = vpop.f32.mrf.mxu0
      %v6726 = vadd.f32 0.0, %v6725
      %6727 = vmatmul.bf16.gmra.mxu0 %v6544
      %v6728 = vpop.f32.mrf.mxu0
      %v6729 = vadd.f32 0.0, %v6728
      %v6730 = vpop.f32.mrf.mxu0
      %v6731 = vadd.f32 0.0, %v6730
      %6732 = vmatmul.bf16.gmra.mxu0 %v6546
      %v6733 = vpop.f32.mrf.mxu0
      %v6734 = vadd.f32 0.0, %v6733
      %v6735 = vpop.f32.mrf.mxu0
      %v6736 = vadd.f32 0.0, %v6735
      %6737 = vmatmul.bf16.gmra.mxu0 %v6548
      %v6738 = vpop.f32.mrf.mxu0
      %v6739 = vadd.f32 0.0, %v6738
      %v6740 = vpop.f32.mrf.mxu0
      %v6741 = vadd.f32 0.0, %v6740
      %6742 = vmatmul.bf16.gmra.mxu0 %v6550
      %v6743 = vpop.f32.mrf.mxu0
      %v6744 = vadd.f32 0.0, %v6743
      %v6745 = vpop.f32.mrf.mxu0
      %v6746 = vadd.f32 0.0, %v6745
      %6747 = vmatmul.bf16.gmra.mxu0 %v6552
      %v6748 = vpop.f32.mrf.mxu0
      %v6749 = vadd.f32 0.0, %v6748
      %v6750 = vpop.f32.mrf.mxu0
      %v6751 = vadd.f32 0.0, %v6750
      %6752 = vmatmul.bf16.gmra.mxu0 %v6554
      %v6753 = vpop.f32.mrf.mxu0
      %v6754 = vadd.f32 0.0, %v6753
      %v6755 = vpop.f32.mrf.mxu0
      %v6756 = vadd.f32 0.0, %v6755
      %6757 = vmatmul.bf16.gmra.mxu0 %v6556
      %v6758 = vpop.f32.mrf.mxu0
      %v6759 = vadd.f32 0.0, %v6758
      %v6760 = vpop.f32.mrf.mxu0
      %v6761 = vadd.f32 0.0, %v6760
      %6762 = vmatmul.bf16.gmra.mxu0 %v6558
      %v6763 = vpop.f32.mrf.mxu0
      %v6764 = vadd.f32 0.0, %v6763
      %v6765 = vpop.f32.mrf.mxu0
      %v6766 = vadd.f32 0.0, %v6765
      %6767 = vmatmul.bf16.gmra.mxu0 %v6560
      %v6768 = vpop.f32.mrf.mxu0
      %v6769 = vadd.f32 0.0, %v6768
      %v6770 = vpop.f32.mrf.mxu0
      %v6771 = vadd.f32 0.0, %v6770
      %6772 = vmatmul.bf16.gmra.mxu0 %v6562
      %v6773 = vpop.f32.mrf.mxu0
      %v6774 = vadd.f32 0.0, %v6773
      %v6775 = vpop.f32.mrf.mxu0
      %v6776 = vadd.f32 0.0, %v6775
      %6777 = vmatmul.bf16.gmra.mxu0 %v6564
      %v6778 = vpop.f32.mrf.mxu0
      %v6779 = vadd.f32 0.0, %v6778
      %v6780 = vpop.f32.mrf.mxu0
      %v6781 = vadd.f32 0.0, %v6780
      %6782 = vdwg.mxu0
      %6783 = vmatpush.bf16.msra.mxu0 %v6677
      %6784 = vmatpush.bf16.msra.mxu0 %v6676
      %6785 = vmatpush.bf16.msra.mxu0 %v6675
      %6786 = vmatpush.bf16.msra.mxu0 %v6674
      %6787 = vmatpush.bf16.msra.mxu0 %v6673
      %6788 = vmatpush.bf16.msra.mxu0 %v6672
      %6789 = vmatpush.bf16.msra.mxu0 %v6671
      %6790 = vmatpush.bf16.msra.mxu0 %v6670
      %6791 = vmatmul.bf16.gmra.mxu0 %v6535
      %v6792 = vpop.f32.mrf.mxu0
      %v6793 = vadd.f32 %v6704, %v6792
      %v6794 = vpop.f32.mrf.mxu0
      %v6795 = vadd.f32 %v6706, %v6794
      %6796 = vmatmul.bf16.gmra.mxu0 %v6537
      %v6797 = vpop.f32.mrf.mxu0
      %v6798 = vadd.f32 %v6709, %v6797
      %v6799 = vpop.f32.mrf.mxu0
      %v6800 = vadd.f32 %v6711, %v6799
      %6801 = vmatmul.bf16.gmra.mxu0 %v6539
      %v6802 = vpop.f32.mrf.mxu0
      %v6803 = vadd.f32 %v6714, %v6802
      %v6804 = vpop.f32.mrf.mxu0
      %v6805 = vadd.f32 %v6716, %v6804
      %6806 = vmatmul.bf16.gmra.mxu0 %v6541
      %v6807 = vpop.f32.mrf.mxu0
      %v6808 = vadd.f32 %v6719, %v6807
      %v6809 = vpop.f32.mrf.mxu0
      %v6810 = vadd.f32 %v6721, %v6809
      %6811 = vmatmul.bf16.gmra.mxu0 %v6543
      %v6812 = vpop.f32.mrf.mxu0
      %v6813 = vadd.f32 %v6724, %v6812
      %v6814 = vpop.f32.mrf.mxu0
      %v6815 = vadd.f32 %v6726, %v6814
      %6816 = vmatmul.bf16.gmra.mxu0 %v6545
      %v6817 = vpop.f32.mrf.mxu0
      %v6818 = vadd.f32 %v6729, %v6817
      %v6819 = vpop.f32.mrf.mxu0
      %v6820 = vadd.f32 %v6731, %v6819
      %6821 = vmatmul.bf16.gmra.mxu0 %v6547
      %v6822 = vpop.f32.mrf.mxu0
      %v6823 = vadd.f32 %v6734, %v6822
      %v6824 = vpop.f32.mrf.mxu0
      %v6825 = vadd.f32 %v6736, %v6824
      %6826 = vmatmul.bf16.gmra.mxu0 %v6549
      %v6827 = vpop.f32.mrf.mxu0
      %v6828 = vadd.f32 %v6739, %v6827
      %v6829 = vpop.f32.mrf.mxu0
      %v6830 = vadd.f32 %v6741, %v6829
      %6831 = vmatmul.bf16.gmra.mxu0 %v6551
      %v6832 = vpop.f32.mrf.mxu0
      %v6833 = vadd.f32 %v6744, %v6832
      %v6834 = vpop.f32.mrf.mxu0
      %v6835 = vadd.f32 %v6746, %v6834
      %6836 = vmatmul.bf16.gmra.mxu0 %v6553
      %v6837 = vpop.f32.mrf.mxu0
      %v6838 = vadd.f32 %v6749, %v6837
      %v6839 = vpop.f32.mrf.mxu0
      %v6840 = vadd.f32 %v6751, %v6839
      %6841 = vmatmul.bf16.gmra.mxu0 %v6555
      %v6842 = vpop.f32.mrf.mxu0
      %v6843 = vadd.f32 %v6754, %v6842
      %v6844 = vpop.f32.mrf.mxu0
      %v6845 = vadd.f32 %v6756, %v6844
      %6846 = vmatmul.bf16.gmra.mxu0 %v6557
      %v6847 = vpop.f32.mrf.mxu0
      %v6848 = vadd.f32 %v6759, %v6847
      %v6849 = vpop.f32.mrf.mxu0
      %v6850 = vadd.f32 %v6761, %v6849
      %6851 = vmatmul.bf16.gmra.mxu0 %v6559
      %v6852 = vpop.f32.mrf.mxu0
      %v6853 = vadd.f32 %v6764, %v6852
      %v6854 = vpop.f32.mrf.mxu0
      %v6855 = vadd.f32 %v6766, %v6854
      %6856 = vmatmul.bf16.gmra.mxu0 %v6561
      %v6857 = vpop.f32.mrf.mxu0
      %v6858 = vadd.f32 %v6769, %v6857
      %v6859 = vpop.f32.mrf.mxu0
      %v6860 = vadd.f32 %v6771, %v6859
      %6861 = vmatmul.bf16.gmra.mxu0 %v6563
      %v6862 = vpop.f32.mrf.mxu0
      %v6863 = vadd.f32 %v6774, %v6862
      %v6864 = vpop.f32.mrf.mxu0
      %v6865 = vadd.f32 %v6776, %v6864
      %6866 = vmatmul.bf16.gmra.mxu0 %v6565
      %v6867 = vpop.f32.mrf.mxu0
      %v6868 = vadd.f32 %v6779, %v6867
      %v6869 = vpop.f32.mrf.mxu0
      %v6870 = vadd.f32 %v6781, %v6869
      %6871 = vdwg.mxu0
      %v6872 = vadd.f32 %v6340, %v6793
      %v6873 = vadd.f32 %v6341, %v6795
      %v6874 = vadd.f32 %v6342, %v6798
      %v6875 = vadd.f32 %v6343, %v6800
      %v6876 = vadd.f32 %v6344, %v6803
      %v6877 = vadd.f32 %v6345, %v6805
      %v6878 = vadd.f32 %v6346, %v6808
      %v6879 = vadd.f32 %v6347, %v6810
      %v6880 = vadd.f32 %v6348, %v6813
      %v6881 = vadd.f32 %v6349, %v6815
      %v6882 = vadd.f32 %v6350, %v6818
      %v6883 = vadd.f32 %v6351, %v6820
      %v6884 = vadd.f32 %v6352, %v6823
      %v6885 = vadd.f32 %v6353, %v6825
      %v6886 = vadd.f32 %v6354, %v6828
      %v6887 = vadd.f32 %v6355, %v6830
      %v6888 = vadd.f32 %v6356, %v6833
      %v6889 = vadd.f32 %v6357, %v6835
      %v6890 = vadd.f32 %v6358, %v6838
      %v6891 = vadd.f32 %v6359, %v6840
      %v6892 = vadd.f32 %v6360, %v6843
      %v6893 = vadd.f32 %v6361, %v6845
      %v6894 = vadd.f32 %v6362, %v6848
      %v6895 = vadd.f32 %v6363, %v6850
      %v6896 = vadd.f32 %v6364, %v6853
      %v6897 = vadd.f32 %v6365, %v6855
      %v6898 = vadd.f32 %v6366, %v6858
      %v6899 = vadd.f32 %v6367, %v6860
      %v6900 = vadd.f32 %v6368, %v6863
      %v6901 = vadd.f32 %v6369, %v6865
      %v6902 = vadd.f32 %v6370, %v6868
      %v6903 = vadd.f32 %v6371, %v6870
      %s6904 = scalar_lea.vmem [#allocation2], 608
      %v6905 = vld [vmem:[%s6904] sm:$0xff]
      %v6906 = vld [vmem:[%s6904 + $0x8] sm:$0xff]
      %v6907 = vld [vmem:[%s6904 + $0x10] sm:$0xff]
      %v6908 = vld [vmem:[%s6904 + $0x18] sm:$0xff]
      %v6909 = vld [vmem:[%s6904 + $0x20] sm:$0xff]
      %v6910 = vld [vmem:[%s6904 + $0x28] sm:$0xff]
      %v6911 = vld [vmem:[%s6904 + $0x30] sm:$0xff]
      %v6912 = vld [vmem:[%s6904 + $0x38] sm:$0xff]
      %v6913 = vld [vmem:[%s6904 + $0x40] sm:$0xff]
      %v6914 = vld [vmem:[%s6904 + $0x48] sm:$0xff]
      %v6915 = vld [vmem:[%s6904 + $0x50] sm:$0xff]
      %v6916 = vld [vmem:[%s6904 + $0x58] sm:$0xff]
      %v6917 = vld [vmem:[%s6904 + $0x60] sm:$0xff]
      %v6918 = vld [vmem:[%s6904 + $0x68] sm:$0xff]
      %v6919 = vld [vmem:[%s6904 + $0x70] sm:$0xff]
      %v6920 = vld [vmem:[%s6904 + $0x78] sm:$0xff]
      %v6921 = vld [vmem:[%s6904 + $0x80] sm:$0xff]
      %v6922 = vld [vmem:[%s6904 + $0x88] sm:$0xff]
      %v6923 = vld [vmem:[%s6904 + $0x90] sm:$0xff]
      %v6924 = vld [vmem:[%s6904 + $0x98] sm:$0xff]
      %v6925 = vld [vmem:[%s6904 + $0xa0] sm:$0xff]
      %v6926 = vld [vmem:[%s6904 + $0xa8] sm:$0xff]
      %v6927 = vld [vmem:[%s6904 + $0xb0] sm:$0xff]
      %v6928 = vld [vmem:[%s6904 + $0xb8] sm:$0xff]
      %v6929 = vld [vmem:[%s6904 + $0xc0] sm:$0xff]
      %v6930 = vld [vmem:[%s6904 + $0xc8] sm:$0xff]
      %v6931 = vld [vmem:[%s6904 + $0xd0] sm:$0xff]
      %v6932 = vld [vmem:[%s6904 + $0xd8] sm:$0xff]
      %v6933 = vld [vmem:[%s6904 + $0xe0] sm:$0xff]
      %v6934 = vld [vmem:[%s6904 + $0xe8] sm:$0xff]
      %v6935 = vld [vmem:[%s6904 + $0xf0] sm:$0xff]
      %v6936 = vld [vmem:[%s6904 + $0xf8] sm:$0xff]
      %s6937 = scalar_lea.vmem %s6, 1024
      %v6938 = vld [vmem:[%s6937] sm:$0xf]
      %v6939 = vld [vmem:[%s6937 + $0x4] sm:$0xf]
      %v6940 = vld [vmem:[%s6937 + $0x8] sm:$0xf]
      %v6941 = vld [vmem:[%s6937 + $0xc] sm:$0xf]
      %v6942 = vld [vmem:[%s6937 + $0x10] sm:$0xf]
      %v6943 = vld [vmem:[%s6937 + $0x14] sm:$0xf]
      %v6944 = vld [vmem:[%s6937 + $0x18] sm:$0xf]
      %v6945 = vld [vmem:[%s6937 + $0x1c] sm:$0xf]
      %v6946 = vld [vmem:[%s6937 + $0x20] sm:$0xf]
      %v6947 = vld [vmem:[%s6937 + $0x24] sm:$0xf]
      %v6948 = vld [vmem:[%s6937 + $0x28] sm:$0xf]
      %v6949 = vld [vmem:[%s6937 + $0x2c] sm:$0xf]
      %v6950 = vld [vmem:[%s6937 + $0x30] sm:$0xf]
      %v6951 = vld [vmem:[%s6937 + $0x34] sm:$0xf]
      %v6952 = vld [vmem:[%s6937 + $0x38] sm:$0xf]
      %v6953 = vld [vmem:[%s6937 + $0x3c] sm:$0xf]
      %v6954 = vld [vmem:[%s6937 + $0x40] sm:$0xf]
      %v6955 = vld [vmem:[%s6937 + $0x44] sm:$0xf]
      %v6956 = vld [vmem:[%s6937 + $0x48] sm:$0xf]
      %v6957 = vld [vmem:[%s6937 + $0x4c] sm:$0xf]
      %v6958 = vld [vmem:[%s6937 + $0x50] sm:$0xf]
      %v6959 = vld [vmem:[%s6937 + $0x54] sm:$0xf]
      %v6960 = vld [vmem:[%s6937 + $0x58] sm:$0xf]
      %v6961 = vld [vmem:[%s6937 + $0x5c] sm:$0xf]
      %v6962 = vld [vmem:[%s6937 + $0x60] sm:$0xf]
      %v6963 = vld [vmem:[%s6937 + $0x64] sm:$0xf]
      %v6964 = vld [vmem:[%s6937 + $0x68] sm:$0xf]
      %v6965 = vld [vmem:[%s6937 + $0x6c] sm:$0xf]
      %v6966 = vld [vmem:[%s6937 + $0x70] sm:$0xf]
      %v6967 = vld [vmem:[%s6937 + $0x74] sm:$0xf]
      %v6968 = vld [vmem:[%s6937 + $0x78] sm:$0xf]
      %v6969 = vld [vmem:[%s6937 + $0x7c] sm:$0xf]
      %v7002 = vunpack.c.l.b16 %v6905
      %v7003 = vunpack.c.h.b16 %v6905
      %v7004 = vunpack.c.l.b16 %v6906
      %v7005 = vunpack.c.h.b16 %v6906
      %v7006 = vunpack.c.l.b16 %v6907
      %v7007 = vunpack.c.h.b16 %v6907
      %v7008 = vunpack.c.l.b16 %v6908
      %v7009 = vunpack.c.h.b16 %v6908
      %v7010 = vunpack.c.l.b16 %v6909
      %v7011 = vunpack.c.h.b16 %v6909
      %v7012 = vunpack.c.l.b16 %v6910
      %v7013 = vunpack.c.h.b16 %v6910
      %v7014 = vunpack.c.l.b16 %v6911
      %v7015 = vunpack.c.h.b16 %v6911
      %v7016 = vunpack.c.l.b16 %v6912
      %v7017 = vunpack.c.h.b16 %v6912
      %v7018 = vunpack.c.l.b16 %v6913
      %v7019 = vunpack.c.h.b16 %v6913
      %v7020 = vunpack.c.l.b16 %v6914
      %v7021 = vunpack.c.h.b16 %v6914
      %v7022 = vunpack.c.l.b16 %v6915
      %v7023 = vunpack.c.h.b16 %v6915
      %v7024 = vunpack.c.l.b16 %v6916
      %v7025 = vunpack.c.h.b16 %v6916
      %v7026 = vunpack.c.l.b16 %v6917
      %v7027 = vunpack.c.h.b16 %v6917
      %v7028 = vunpack.c.l.b16 %v6918
      %v7029 = vunpack.c.h.b16 %v6918
      %v7030 = vunpack.c.l.b16 %v6919
      %v7031 = vunpack.c.h.b16 %v6919
      %v7032 = vunpack.c.l.b16 %v6920
      %v7033 = vunpack.c.h.b16 %v6920
      %v7034 = vunpack.c.l.b16 %v6921
      %v7035 = vunpack.c.h.b16 %v6921
      %v7036 = vunpack.c.l.b16 %v6922
      %v7037 = vunpack.c.h.b16 %v6922
      %v7038 = vunpack.c.l.b16 %v6923
      %v7039 = vunpack.c.h.b16 %v6923
      %v7040 = vunpack.c.l.b16 %v6924
      %v7041 = vunpack.c.h.b16 %v6924
      %v7042 = vunpack.c.l.b16 %v6925
      %v7043 = vunpack.c.h.b16 %v6925
      %v7044 = vunpack.c.l.b16 %v6926
      %v7045 = vunpack.c.h.b16 %v6926
      %v7046 = vunpack.c.l.b16 %v6927
      %v7047 = vunpack.c.h.b16 %v6927
      %v7048 = vunpack.c.l.b16 %v6928
      %v7049 = vunpack.c.h.b16 %v6928
      %v7050 = vunpack.c.l.b16 %v6929
      %v7051 = vunpack.c.h.b16 %v6929
      %v7052 = vunpack.c.l.b16 %v6930
      %v7053 = vunpack.c.h.b16 %v6930
      %v7054 = vunpack.c.l.b16 %v6931
      %v7055 = vunpack.c.h.b16 %v6931
      %v7056 = vunpack.c.l.b16 %v6932
      %v7057 = vunpack.c.h.b16 %v6932
      %v7058 = vunpack.c.l.b16 %v6933
      %v7059 = vunpack.c.h.b16 %v6933
      %v7060 = vunpack.c.l.b16 %v6934
      %v7061 = vunpack.c.h.b16 %v6934
      %v7062 = vunpack.c.l.b16 %v6935
      %v7063 = vunpack.c.h.b16 %v6935
      %v7064 = vunpack.c.l.b16 %v6936
      %v7065 = vunpack.c.h.b16 %v6936
      %v7066 = vpack.c.b16 %v7004, %v7002
      %v7067 = vpack.c.b16 %v7005, %v7003
      %v7068 = vpack.c.b16 %v7008, %v7006
      %v7069 = vpack.c.b16 %v7009, %v7007
      %v7070 = vpack.c.b16 %v7012, %v7010
      %v7071 = vpack.c.b16 %v7013, %v7011
      %v7072 = vpack.c.b16 %v7016, %v7014
      %v7073 = vpack.c.b16 %v7017, %v7015
      %v7074 = vpack.c.b16 %v7020, %v7018
      %v7075 = vpack.c.b16 %v7021, %v7019
      %v7076 = vpack.c.b16 %v7024, %v7022
      %v7077 = vpack.c.b16 %v7025, %v7023
      %v7078 = vpack.c.b16 %v7028, %v7026
      %v7079 = vpack.c.b16 %v7029, %v7027
      %v7080 = vpack.c.b16 %v7032, %v7030
      %v7081 = vpack.c.b16 %v7033, %v7031
      %v7082 = vpack.c.b16 %v7036, %v7034
      %v7083 = vpack.c.b16 %v7037, %v7035
      %v7084 = vpack.c.b16 %v7040, %v7038
      %v7085 = vpack.c.b16 %v7041, %v7039
      %v7086 = vpack.c.b16 %v7044, %v7042
      %v7087 = vpack.c.b16 %v7045, %v7043
      %v7088 = vpack.c.b16 %v7048, %v7046
      %v7089 = vpack.c.b16 %v7049, %v7047
      %v7090 = vpack.c.b16 %v7052, %v7050
      %v7091 = vpack.c.b16 %v7053, %v7051
      %v7092 = vpack.c.b16 %v7056, %v7054
      %v7093 = vpack.c.b16 %v7057, %v7055
      %v7094 = vpack.c.b16 %v7060, %v7058
      %v7095 = vpack.c.b16 %v7061, %v7059
      %v7096 = vpack.c.b16 %v7064, %v7062
      %v7097 = vpack.c.b16 %v7065, %v7063
      %v7162 = vunpack.c.l.b16 %v6938
      %v7163 = vunpack.c.l.b16 %v6939
      %v7164 = vunpack.c.l.b16 %v6940
      %v7165 = vunpack.c.l.b16 %v6941
      %v7166 = vunpack.c.l.b16 %v6942
      %v7167 = vunpack.c.l.b16 %v6943
      %v7168 = vunpack.c.l.b16 %v6944
      %v7169 = vunpack.c.l.b16 %v6945
      %v7170 = vunpack.c.l.b16 %v6946
      %v7171 = vunpack.c.l.b16 %v6947
      %v7172 = vunpack.c.l.b16 %v6948
      %v7173 = vunpack.c.l.b16 %v6949
      %v7174 = vunpack.c.l.b16 %v6950
      %v7175 = vunpack.c.l.b16 %v6951
      %v7176 = vunpack.c.l.b16 %v6952
      %v7177 = vunpack.c.l.b16 %v6953
      %v7178 = vunpack.c.l.b16 %v6954
      %v7179 = vunpack.c.l.b16 %v6955
      %v7180 = vunpack.c.l.b16 %v6956
      %v7181 = vunpack.c.l.b16 %v6957
      %v7182 = vunpack.c.l.b16 %v6958
      %v7183 = vunpack.c.l.b16 %v6959
      %v7184 = vunpack.c.l.b16 %v6960
      %v7185 = vunpack.c.l.b16 %v6961
      %v7186 = vunpack.c.l.b16 %v6962
      %v7187 = vunpack.c.l.b16 %v6963
      %v7188 = vunpack.c.l.b16 %v6964
      %v7189 = vunpack.c.l.b16 %v6965
      %v7190 = vunpack.c.l.b16 %v6966
      %v7191 = vunpack.c.l.b16 %v6967
      %v7192 = vunpack.c.l.b16 %v6968
      %v7193 = vunpack.c.l.b16 %v6969
      %v7194 = vpack.c.b16 %v7163, %v7162
      %v7195 = vpack.c.b16 %v7165, %v7164
      %v7196 = vpack.c.b16 %v7167, %v7166
      %v7197 = vpack.c.b16 %v7169, %v7168
      %v7198 = vpack.c.b16 %v7171, %v7170
      %v7199 = vpack.c.b16 %v7173, %v7172
      %v7200 = vpack.c.b16 %v7175, %v7174
      %v7201 = vpack.c.b16 %v7177, %v7176
      %v7202 = vpack.c.b16 %v7179, %v7178
      %v7203 = vpack.c.b16 %v7181, %v7180
      %v7204 = vpack.c.b16 %v7183, %v7182
      %v7205 = vpack.c.b16 %v7185, %v7184
      %v7206 = vpack.c.b16 %v7187, %v7186
      %v7207 = vpack.c.b16 %v7189, %v7188
      %v7208 = vpack.c.b16 %v7191, %v7190
      %v7209 = vpack.c.b16 %v7193, %v7192
      %7226 = vmatpush.bf16.msra.mxu0 %v7201
      %7227 = vmatpush.bf16.msra.mxu0 %v7200
      %7228 = vmatpush.bf16.msra.mxu0 %v7199
      %7229 = vmatpush.bf16.msra.mxu0 %v7198
      %7230 = vmatpush.bf16.msra.mxu0 %v7197
      %7231 = vmatpush.bf16.msra.mxu0 %v7196
      %7232 = vmatpush.bf16.msra.mxu0 %v7195
      %7233 = vmatpush.bf16.msra.mxu0 %v7194
      %7234 = vmatmul.bf16.gmra.mxu0 %v7066
      %v7235 = vpop.f32.mrf.mxu0
      %v7236 = vadd.f32 0.0, %v7235
      %v7237 = vpop.f32.mrf.mxu0
      %v7238 = vadd.f32 0.0, %v7237
      %7239 = vmatmul.bf16.gmra.mxu0 %v7068
      %v7240 = vpop.f32.mrf.mxu0
      %v7241 = vadd.f32 0.0, %v7240
      %v7242 = vpop.f32.mrf.mxu0
      %v7243 = vadd.f32 0.0, %v7242
      %7244 = vmatmul.bf16.gmra.mxu0 %v7070
      %v7245 = vpop.f32.mrf.mxu0
      %v7246 = vadd.f32 0.0, %v7245
      %v7247 = vpop.f32.mrf.mxu0
      %v7248 = vadd.f32 0.0, %v7247
      %7249 = vmatmul.bf16.gmra.mxu0 %v7072
      %v7250 = vpop.f32.mrf.mxu0
      %v7251 = vadd.f32 0.0, %v7250
      %v7252 = vpop.f32.mrf.mxu0
      %v7253 = vadd.f32 0.0, %v7252
      %7254 = vmatmul.bf16.gmra.mxu0 %v7074
      %v7255 = vpop.f32.mrf.mxu0
      %v7256 = vadd.f32 0.0, %v7255
      %v7257 = vpop.f32.mrf.mxu0
      %v7258 = vadd.f32 0.0, %v7257
      %7259 = vmatmul.bf16.gmra.mxu0 %v7076
      %v7260 = vpop.f32.mrf.mxu0
      %v7261 = vadd.f32 0.0, %v7260
      %v7262 = vpop.f32.mrf.mxu0
      %v7263 = vadd.f32 0.0, %v7262
      %7264 = vmatmul.bf16.gmra.mxu0 %v7078
      %v7265 = vpop.f32.mrf.mxu0
      %v7266 = vadd.f32 0.0, %v7265
      %v7267 = vpop.f32.mrf.mxu0
      %v7268 = vadd.f32 0.0, %v7267
      %7269 = vmatmul.bf16.gmra.mxu0 %v7080
      %v7270 = vpop.f32.mrf.mxu0
      %v7271 = vadd.f32 0.0, %v7270
      %v7272 = vpop.f32.mrf.mxu0
      %v7273 = vadd.f32 0.0, %v7272
      %7274 = vmatmul.bf16.gmra.mxu0 %v7082
      %v7275 = vpop.f32.mrf.mxu0
      %v7276 = vadd.f32 0.0, %v7275
      %v7277 = vpop.f32.mrf.mxu0
      %v7278 = vadd.f32 0.0, %v7277
      %7279 = vmatmul.bf16.gmra.mxu0 %v7084
      %v7280 = vpop.f32.mrf.mxu0
      %v7281 = vadd.f32 0.0, %v7280
      %v7282 = vpop.f32.mrf.mxu0
      %v7283 = vadd.f32 0.0, %v7282
      %7284 = vmatmul.bf16.gmra.mxu0 %v7086
      %v7285 = vpop.f32.mrf.mxu0
      %v7286 = vadd.f32 0.0, %v7285
      %v7287 = vpop.f32.mrf.mxu0
      %v7288 = vadd.f32 0.0, %v7287
      %7289 = vmatmul.bf16.gmra.mxu0 %v7088
      %v7290 = vpop.f32.mrf.mxu0
      %v7291 = vadd.f32 0.0, %v7290
      %v7292 = vpop.f32.mrf.mxu0
      %v7293 = vadd.f32 0.0, %v7292
      %7294 = vmatmul.bf16.gmra.mxu0 %v7090
      %v7295 = vpop.f32.mrf.mxu0
      %v7296 = vadd.f32 0.0, %v7295
      %v7297 = vpop.f32.mrf.mxu0
      %v7298 = vadd.f32 0.0, %v7297
      %7299 = vmatmul.bf16.gmra.mxu0 %v7092
      %v7300 = vpop.f32.mrf.mxu0
      %v7301 = vadd.f32 0.0, %v7300
      %v7302 = vpop.f32.mrf.mxu0
      %v7303 = vadd.f32 0.0, %v7302
      %7304 = vmatmul.bf16.gmra.mxu0 %v7094
      %v7305 = vpop.f32.mrf.mxu0
      %v7306 = vadd.f32 0.0, %v7305
      %v7307 = vpop.f32.mrf.mxu0
      %v7308 = vadd.f32 0.0, %v7307
      %7309 = vmatmul.bf16.gmra.mxu0 %v7096
      %v7310 = vpop.f32.mrf.mxu0
      %v7311 = vadd.f32 0.0, %v7310
      %v7312 = vpop.f32.mrf.mxu0
      %v7313 = vadd.f32 0.0, %v7312
      %7314 = vdwg.mxu0
      %7315 = vmatpush.bf16.msra.mxu0 %v7209
      %7316 = vmatpush.bf16.msra.mxu0 %v7208
      %7317 = vmatpush.bf16.msra.mxu0 %v7207
      %7318 = vmatpush.bf16.msra.mxu0 %v7206
      %7319 = vmatpush.bf16.msra.mxu0 %v7205
      %7320 = vmatpush.bf16.msra.mxu0 %v7204
      %7321 = vmatpush.bf16.msra.mxu0 %v7203
      %7322 = vmatpush.bf16.msra.mxu0 %v7202
      %7323 = vmatmul.bf16.gmra.mxu0 %v7067
      %v7324 = vpop.f32.mrf.mxu0
      %v7325 = vadd.f32 %v7236, %v7324
      %v7326 = vpop.f32.mrf.mxu0
      %v7327 = vadd.f32 %v7238, %v7326
      %7328 = vmatmul.bf16.gmra.mxu0 %v7069
      %v7329 = vpop.f32.mrf.mxu0
      %v7330 = vadd.f32 %v7241, %v7329
      %v7331 = vpop.f32.mrf.mxu0
      %v7332 = vadd.f32 %v7243, %v7331
      %7333 = vmatmul.bf16.gmra.mxu0 %v7071
      %v7334 = vpop.f32.mrf.mxu0
      %v7335 = vadd.f32 %v7246, %v7334
      %v7336 = vpop.f32.mrf.mxu0
      %v7337 = vadd.f32 %v7248, %v7336
      %7338 = vmatmul.bf16.gmra.mxu0 %v7073
      %v7339 = vpop.f32.mrf.mxu0
      %v7340 = vadd.f32 %v7251, %v7339
      %v7341 = vpop.f32.mrf.mxu0
      %v7342 = vadd.f32 %v7253, %v7341
      %7343 = vmatmul.bf16.gmra.mxu0 %v7075
      %v7344 = vpop.f32.mrf.mxu0
      %v7345 = vadd.f32 %v7256, %v7344
      %v7346 = vpop.f32.mrf.mxu0
      %v7347 = vadd.f32 %v7258, %v7346
      %7348 = vmatmul.bf16.gmra.mxu0 %v7077
      %v7349 = vpop.f32.mrf.mxu0
      %v7350 = vadd.f32 %v7261, %v7349
      %v7351 = vpop.f32.mrf.mxu0
      %v7352 = vadd.f32 %v7263, %v7351
      %7353 = vmatmul.bf16.gmra.mxu0 %v7079
      %v7354 = vpop.f32.mrf.mxu0
      %v7355 = vadd.f32 %v7266, %v7354
      %v7356 = vpop.f32.mrf.mxu0
      %v7357 = vadd.f32 %v7268, %v7356
      %7358 = vmatmul.bf16.gmra.mxu0 %v7081
      %v7359 = vpop.f32.mrf.mxu0
      %v7360 = vadd.f32 %v7271, %v7359
      %v7361 = vpop.f32.mrf.mxu0
      %v7362 = vadd.f32 %v7273, %v7361
      %7363 = vmatmul.bf16.gmra.mxu0 %v7083
      %v7364 = vpop.f32.mrf.mxu0
      %v7365 = vadd.f32 %v7276, %v7364
      %v7366 = vpop.f32.mrf.mxu0
      %v7367 = vadd.f32 %v7278, %v7366
      %7368 = vmatmul.bf16.gmra.mxu0 %v7085
      %v7369 = vpop.f32.mrf.mxu0
      %v7370 = vadd.f32 %v7281, %v7369
      %v7371 = vpop.f32.mrf.mxu0
      %v7372 = vadd.f32 %v7283, %v7371
      %7373 = vmatmul.bf16.gmra.mxu0 %v7087
      %v7374 = vpop.f32.mrf.mxu0
      %v7375 = vadd.f32 %v7286, %v7374
      %v7376 = vpop.f32.mrf.mxu0
      %v7377 = vadd.f32 %v7288, %v7376
      %7378 = vmatmul.bf16.gmra.mxu0 %v7089
      %v7379 = vpop.f32.mrf.mxu0
      %v7380 = vadd.f32 %v7291, %v7379
      %v7381 = vpop.f32.mrf.mxu0
      %v7382 = vadd.f32 %v7293, %v7381
      %7383 = vmatmul.bf16.gmra.mxu0 %v7091
      %v7384 = vpop.f32.mrf.mxu0
      %v7385 = vadd.f32 %v7296, %v7384
      %v7386 = vpop.f32.mrf.mxu0
      %v7387 = vadd.f32 %v7298, %v7386
      %7388 = vmatmul.bf16.gmra.mxu0 %v7093
      %v7389 = vpop.f32.mrf.mxu0
      %v7390 = vadd.f32 %v7301, %v7389
      %v7391 = vpop.f32.mrf.mxu0
      %v7392 = vadd.f32 %v7303, %v7391
      %7393 = vmatmul.bf16.gmra.mxu0 %v7095
      %v7394 = vpop.f32.mrf.mxu0
      %v7395 = vadd.f32 %v7306, %v7394
      %v7396 = vpop.f32.mrf.mxu0
      %v7397 = vadd.f32 %v7308, %v7396
      %7398 = vmatmul.bf16.gmra.mxu0 %v7097
      %v7399 = vpop.f32.mrf.mxu0
      %v7400 = vadd.f32 %v7311, %v7399
      %v7401 = vpop.f32.mrf.mxu0
      %v7402 = vadd.f32 %v7313, %v7401
      %7403 = vdwg.mxu0
      %v7404 = vadd.f32 %v6872, %v7325
      %v7405 = vadd.f32 %v6873, %v7327
      %v7406 = vadd.f32 %v6874, %v7330
      %v7407 = vadd.f32 %v6875, %v7332
      %v7408 = vadd.f32 %v6876, %v7335
      %v7409 = vadd.f32 %v6877, %v7337
      %v7410 = vadd.f32 %v6878, %v7340
      %v7411 = vadd.f32 %v6879, %v7342
      %v7412 = vadd.f32 %v6880, %v7345
      %v7413 = vadd.f32 %v6881, %v7347
      %v7414 = vadd.f32 %v6882, %v7350
      %v7415 = vadd.f32 %v6883, %v7352
      %v7416 = vadd.f32 %v6884, %v7355
      %v7417 = vadd.f32 %v6885, %v7357
      %v7418 = vadd.f32 %v6886, %v7360
      %v7419 = vadd.f32 %v6887, %v7362
      %v7420 = vadd.f32 %v6888, %v7365
      %v7421 = vadd.f32 %v6889, %v7367
      %v7422 = vadd.f32 %v6890, %v7370
      %v7423 = vadd.f32 %v6891, %v7372
      %v7424 = vadd.f32 %v6892, %v7375
      %v7425 = vadd.f32 %v6893, %v7377
      %v7426 = vadd.f32 %v6894, %v7380
      %v7427 = vadd.f32 %v6895, %v7382
      %v7428 = vadd.f32 %v6896, %v7385
      %v7429 = vadd.f32 %v6897, %v7387
      %v7430 = vadd.f32 %v6898, %v7390
      %v7431 = vadd.f32 %v6899, %v7392
      %v7432 = vadd.f32 %v6900, %v7395
      %v7433 = vadd.f32 %v6901, %v7397
      %v7434 = vadd.f32 %v6902, %v7400
      %v7435 = vadd.f32 %v6903, %v7402
      %v7437 = vperm.slane %v1764, 0
      %v7439 = vmul.f32 %v7404, %v7437
      %v7440 = vmul.f32 %v7405, %v7437
      %v7441 = vmul.f32 %v7406, %v7437
      %v7442 = vmul.f32 %v7407, %v7437
      %v7443 = vmul.f32 %v7408, %v7437
      %v7444 = vmul.f32 %v7409, %v7437
      %v7445 = vmul.f32 %v7410, %v7437
      %v7446 = vmul.f32 %v7411, %v7437
      %v7447 = vmul.f32 %v7412, %v7437
      %v7448 = vmul.f32 %v7413, %v7437
      %v7449 = vmul.f32 %v7414, %v7437
      %v7450 = vmul.f32 %v7415, %v7437
      %v7451 = vmul.f32 %v7416, %v7437
      %v7452 = vmul.f32 %v7417, %v7437
      %v7453 = vmul.f32 %v7418, %v7437
      %v7454 = vmul.f32 %v7419, %v7437
      %v7455 = vmul.f32 %v7420, %v7437
      %v7456 = vmul.f32 %v7421, %v7437
      %v7457 = vmul.f32 %v7422, %v7437
      %v7458 = vmul.f32 %v7423, %v7437
      %v7459 = vmul.f32 %v7424, %v7437
      %v7460 = vmul.f32 %v7425, %v7437
      %v7461 = vmul.f32 %v7426, %v7437
      %v7462 = vmul.f32 %v7427, %v7437
      %v7463 = vmul.f32 %v7428, %v7437
      %v7464 = vmul.f32 %v7429, %v7437
      %v7465 = vmul.f32 %v7430, %v7437
      %v7466 = vmul.f32 %v7431, %v7437
      %v7467 = vmul.f32 %v7432, %v7437
      %v7468 = vmul.f32 %v7433, %v7437
      %v7469 = vmul.f32 %v7434, %v7437
      %v7470 = vmul.f32 %v7435, %v7437
      %v7472 = vperm.slane %v1765, 0
      %v7474 = vadd.f32 %v7439, %v7472
      %v7475 = vadd.f32 %v7440, %v7472
      %v7476 = vadd.f32 %v7441, %v7472
      %v7477 = vadd.f32 %v7442, %v7472
      %v7478 = vadd.f32 %v7443, %v7472
      %v7479 = vadd.f32 %v7444, %v7472
      %v7480 = vadd.f32 %v7445, %v7472
      %v7481 = vadd.f32 %v7446, %v7472
      %v7482 = vadd.f32 %v7447, %v7472
      %v7483 = vadd.f32 %v7448, %v7472
      %v7484 = vadd.f32 %v7449, %v7472
      %v7485 = vadd.f32 %v7450, %v7472
      %v7486 = vadd.f32 %v7451, %v7472
      %v7487 = vadd.f32 %v7452, %v7472
      %v7488 = vadd.f32 %v7453, %v7472
      %v7489 = vadd.f32 %v7454, %v7472
      %v7490 = vadd.f32 %v7455, %v7472
      %v7491 = vadd.f32 %v7456, %v7472
      %v7492 = vadd.f32 %v7457, %v7472
      %v7493 = vadd.f32 %v7458, %v7472
      %v7494 = vadd.f32 %v7459, %v7472
      %v7495 = vadd.f32 %v7460, %v7472
      %v7496 = vadd.f32 %v7461, %v7472
      %v7497 = vadd.f32 %v7462, %v7472
      %v7498 = vadd.f32 %v7463, %v7472
      %v7499 = vadd.f32 %v7464, %v7472
      %v7500 = vadd.f32 %v7465, %v7472
      %v7501 = vadd.f32 %v7466, %v7472
      %v7502 = vadd.f32 %v7467, %v7472
      %v7503 = vadd.f32 %v7468, %v7472
      %v7504 = vadd.f32 %v7469, %v7472
      %v7505 = vadd.f32 %v7470, %v7472
      %v7506 = vmax.f32 %v7474, 0.0
      %v7507 = vmax.f32 %v7475, 0.0
      %v7508 = vmax.f32 %v7476, 0.0
      %v7509 = vmax.f32 %v7477, 0.0
      %v7510 = vmax.f32 %v7478, 0.0
      %v7511 = vmax.f32 %v7479, 0.0
      %v7512 = vmax.f32 %v7480, 0.0
      %v7513 = vmax.f32 %v7481, 0.0
      %v7514 = vmax.f32 %v7482, 0.0
      %v7515 = vmax.f32 %v7483, 0.0
      %v7516 = vmax.f32 %v7484, 0.0
      %v7517 = vmax.f32 %v7485, 0.0
      %v7518 = vmax.f32 %v7486, 0.0
      %v7519 = vmax.f32 %v7487, 0.0
      %v7520 = vmax.f32 %v7488, 0.0
      %v7521 = vmax.f32 %v7489, 0.0
      %v7522 = vmax.f32 %v7490, 0.0
      %v7523 = vmax.f32 %v7491, 0.0
      %v7524 = vmax.f32 %v7492, 0.0
      %v7525 = vmax.f32 %v7493, 0.0
      %v7526 = vmax.f32 %v7494, 0.0
      %v7527 = vmax.f32 %v7495, 0.0
      %v7528 = vmax.f32 %v7496, 0.0
      %v7529 = vmax.f32 %v7497, 0.0
      %v7530 = vmax.f32 %v7498, 0.0
      %v7531 = vmax.f32 %v7499, 0.0
      %v7532 = vmax.f32 %v7500, 0.0
      %v7533 = vmax.f32 %v7501, 0.0
      %v7534 = vmax.f32 %v7502, 0.0
      %v7535 = vmax.f32 %v7503, 0.0
      %v7536 = vmax.f32 %v7504, 0.0
      %v7537 = vmax.f32 %v7505, 0.0
      %v7538 = vpack.c.bf16 %v7506, %v7506
      %v7539 = vpack.c.bf16 %v7507, %v7507
      %v7540 = vpack.c.bf16 %v7508, %v7508
      %v7541 = vpack.c.bf16 %v7509, %v7509
      %v7542 = vpack.c.bf16 %v7510, %v7510
      %v7543 = vpack.c.bf16 %v7511, %v7511
      %v7544 = vpack.c.bf16 %v7512, %v7512
      %v7545 = vpack.c.bf16 %v7513, %v7513
      %v7546 = vpack.c.bf16 %v7514, %v7514
      %v7547 = vpack.c.bf16 %v7515, %v7515
      %v7548 = vpack.c.bf16 %v7516, %v7516
      %v7549 = vpack.c.bf16 %v7517, %v7517
      %v7550 = vpack.c.bf16 %v7518, %v7518
      %v7551 = vpack.c.bf16 %v7519, %v7519
      %v7552 = vpack.c.bf16 %v7520, %v7520
      %v7553 = vpack.c.bf16 %v7521, %v7521
      %v7554 = vpack.c.bf16 %v7522, %v7522
      %v7555 = vpack.c.bf16 %v7523, %v7523
      %v7556 = vpack.c.bf16 %v7524, %v7524
      %v7557 = vpack.c.bf16 %v7525, %v7525
      %v7558 = vpack.c.bf16 %v7526, %v7526
      %v7559 = vpack.c.bf16 %v7527, %v7527
      %v7560 = vpack.c.bf16 %v7528, %v7528
      %v7561 = vpack.c.bf16 %v7529, %v7529
      %v7562 = vpack.c.bf16 %v7530, %v7530
      %v7563 = vpack.c.bf16 %v7531, %v7531
      %v7564 = vpack.c.bf16 %v7532, %v7532
      %v7565 = vpack.c.bf16 %v7533, %v7533
      %v7566 = vpack.c.bf16 %v7534, %v7534
      %v7567 = vpack.c.bf16 %v7535, %v7535
      %v7568 = vpack.c.bf16 %v7536, %v7536
      %v7569 = vpack.c.bf16 %v7537, %v7537
      %v7570 = vld [vmem:[%s10] sm:$0x1]
      %v7571 = vld [vmem:[%s11] sm:$0x1]
      %v7604 = vunpack.c.l.b16 %v7538
      %v7605 = vunpack.c.l.b16 %v7539
      %v7606 = vunpack.c.l.b16 %v7540
      %v7607 = vunpack.c.l.b16 %v7541
      %v7608 = vunpack.c.l.b16 %v7542
      %v7609 = vunpack.c.l.b16 %v7543
      %v7610 = vunpack.c.l.b16 %v7544
      %v7611 = vunpack.c.l.b16 %v7545
      %v7612 = vunpack.c.l.b16 %v7546
      %v7613 = vunpack.c.l.b16 %v7547
      %v7614 = vunpack.c.l.b16 %v7548
      %v7615 = vunpack.c.l.b16 %v7549
      %v7616 = vunpack.c.l.b16 %v7550
      %v7617 = vunpack.c.l.b16 %v7551
      %v7618 = vunpack.c.l.b16 %v7552
      %v7619 = vunpack.c.l.b16 %v7553
      %v7620 = vunpack.c.l.b16 %v7554
      %v7621 = vunpack.c.l.b16 %v7555
      %v7622 = vunpack.c.l.b16 %v7556
      %v7623 = vunpack.c.l.b16 %v7557
      %v7624 = vunpack.c.l.b16 %v7558
      %v7625 = vunpack.c.l.b16 %v7559
      %v7626 = vunpack.c.l.b16 %v7560
      %v7627 = vunpack.c.l.b16 %v7561
      %v7628 = vunpack.c.l.b16 %v7562
      %v7629 = vunpack.c.l.b16 %v7563
      %v7630 = vunpack.c.l.b16 %v7564
      %v7631 = vunpack.c.l.b16 %v7565
      %v7632 = vunpack.c.l.b16 %v7566
      %v7633 = vunpack.c.l.b16 %v7567
      %v7634 = vunpack.c.l.b16 %v7568
      %v7635 = vunpack.c.l.b16 %v7569
      %v7636 = vpack.c.b16 %v7605, %v7604
      %v7637 = vpack.c.b16 %v7607, %v7606
      %v7638 = vpack.c.b16 %v7609, %v7608
      %v7639 = vpack.c.b16 %v7611, %v7610
      %v7640 = vpack.c.b16 %v7613, %v7612
      %v7641 = vpack.c.b16 %v7615, %v7614
      %v7642 = vpack.c.b16 %v7617, %v7616
      %v7643 = vpack.c.b16 %v7619, %v7618
      %v7644 = vpack.c.b16 %v7621, %v7620
      %v7645 = vpack.c.b16 %v7623, %v7622
      %v7646 = vpack.c.b16 %v7625, %v7624
      %v7647 = vpack.c.b16 %v7627, %v7626
      %v7648 = vpack.c.b16 %v7629, %v7628
      %v7649 = vpack.c.b16 %v7631, %v7630
      %v7650 = vpack.c.b16 %v7633, %v7632
      %v7651 = vpack.c.b16 %v7635, %v7634
      %v7652 = vpack.c.b16 %v7604, %v7604
      %v7653 = vpack.c.b16 %v7605, %v7605
      %v7654 = vpack.c.b16 %v7606, %v7606
      %v7655 = vpack.c.b16 %v7607, %v7607
      %v7656 = vpack.c.b16 %v7608, %v7608
      %v7657 = vpack.c.b16 %v7609, %v7609
      %v7658 = vpack.c.b16 %v7610, %v7610
      %v7659 = vpack.c.b16 %v7611, %v7611
      %v7660 = vpack.c.b16 %v7612, %v7612
      %v7661 = vpack.c.b16 %v7613, %v7613
      %v7662 = vpack.c.b16 %v7614, %v7614
      %v7663 = vpack.c.b16 %v7615, %v7615
      %v7664 = vpack.c.b16 %v7616, %v7616
      %v7665 = vpack.c.b16 %v7617, %v7617
      %v7666 = vpack.c.b16 %v7618, %v7618
      %v7667 = vpack.c.b16 %v7619, %v7619
      %v7668 = vpack.c.b16 %v7620, %v7620
      %v7669 = vpack.c.b16 %v7621, %v7621
      %v7670 = vpack.c.b16 %v7622, %v7622
      %v7671 = vpack.c.b16 %v7623, %v7623
      %v7672 = vpack.c.b16 %v7624, %v7624
      %v7673 = vpack.c.b16 %v7625, %v7625
      %v7674 = vpack.c.b16 %v7626, %v7626
      %v7675 = vpack.c.b16 %v7627, %v7627
      %v7676 = vpack.c.b16 %v7628, %v7628
      %v7677 = vpack.c.b16 %v7629, %v7629
      %v7678 = vpack.c.b16 %v7630, %v7630
      %v7679 = vpack.c.b16 %v7631, %v7631
      %v7680 = vpack.c.b16 %v7632, %v7632
      %v7681 = vpack.c.b16 %v7633, %v7633
      %v7682 = vpack.c.b16 %v7634, %v7634
      %v7683 = vpack.c.b16 %v7635, %v7635
      %s7716 = scalar_lea.vmem [#allocation3], 144
      %vm7717 = vcmask 519168
      %7718 = vst.msk [vmem:[%s7716] sm:$0xf] %vm7717, %v1769
      %7719 = vst.msk [vmem:[%s7716 + $0x4] sm:$0xf] %vm7717, %v1770
      %7720 = vst.msk [vmem:[%s7716 + $0x8] sm:$0xf] %vm7717, %v7652
      %7721 = vst.msk [vmem:[%s7716 + $0xc] sm:$0xf] %vm7717, %v7653
      %7722 = vst.msk [vmem:[%s7716 + $0x10] sm:$0xf] %vm7717, %v7654
      %7723 = vst.msk [vmem:[%s7716 + $0x14] sm:$0xf] %vm7717, %v7655
      %7724 = vst.msk [vmem:[%s7716 + $0x18] sm:$0xf] %vm7717, %v7656
      %7725 = vst.msk [vmem:[%s7716 + $0x1c] sm:$0xf] %vm7717, %v7657
      %7726 = vst.msk [vmem:[%s7716 + $0x20] sm:$0xf] %vm7717, %v7658
      %7727 = vst.msk [vmem:[%s7716 + $0x24] sm:$0xf] %vm7717, %v7659
      %7728 = vst.msk [vmem:[%s7716 + $0x28] sm:$0xf] %vm7717, %v7660
      %7729 = vst.msk [vmem:[%s7716 + $0x2c] sm:$0xf] %vm7717, %v7661
      %7730 = vst.msk [vmem:[%s7716 + $0x30] sm:$0xf] %vm7717, %v7662
      %7731 = vst.msk [vmem:[%s7716 + $0x34] sm:$0xf] %vm7717, %v7663
      %7732 = vst.msk [vmem:[%s7716 + $0x38] sm:$0xf] %vm7717, %v7664
      %7733 = vst.msk [vmem:[%s7716 + $0x3c] sm:$0xf] %vm7717, %v7665
      %7734 = vst.msk [vmem:[%s7716 + $0x40] sm:$0xf] %vm7717, %v7666
      %7735 = vst.msk [vmem:[%s7716 + $0x44] sm:$0xf] %vm7717, %v7667
      %7736 = vst.msk [vmem:[%s7716 + $0x48] sm:$0xf] %vm7717, %v7668
      %7737 = vst.msk [vmem:[%s7716 + $0x4c] sm:$0xf] %vm7717, %v7669
      %7738 = vst.msk [vmem:[%s7716 + $0x50] sm:$0xf] %vm7717, %v7670
      %7739 = vst.msk [vmem:[%s7716 + $0x54] sm:$0xf] %vm7717, %v7671
      %7740 = vst.msk [vmem:[%s7716 + $0x58] sm:$0xf] %vm7717, %v7672
      %7741 = vst.msk [vmem:[%s7716 + $0x5c] sm:$0xf] %vm7717, %v7673
      %7742 = vst.msk [vmem:[%s7716 + $0x60] sm:$0xf] %vm7717, %v7674
      %7743 = vst.msk [vmem:[%s7716 + $0x64] sm:$0xf] %vm7717, %v7675
      %7744 = vst.msk [vmem:[%s7716 + $0x68] sm:$0xf] %vm7717, %v7676
      %7745 = vst.msk [vmem:[%s7716 + $0x6c] sm:$0xf] %vm7717, %v7677
      %7746 = vst.msk [vmem:[%s7716 + $0x70] sm:$0xf] %vm7717, %v7678
      %7747 = vst.msk [vmem:[%s7716 + $0x74] sm:$0xf] %vm7717, %v7679
      %7748 = vst.msk [vmem:[%s7716 + $0x78] sm:$0xf] %vm7717, %v7680
      %7749 = vst.msk [vmem:[%s7716 + $0x7c] sm:$0xf] %vm7717, %v7681
      %7750 = vst.msk [vmem:[%s7716 + $0x80] sm:$0xf] %vm7717, %v7682
      %7751 = vst.msk [vmem:[%s7716 + $0x84] sm:$0xf] %vm7717, %v7683
      %7752 = vst.msk [vmem:[%s7716 + $0x88] sm:$0xf] %vm7717, %v1769
      %7753 = vst.msk [vmem:[%s7716 + $0x8c] sm:$0xf] %vm7717, %v1770
      %v7755 = vshrl.u32 %v7636, 16
      %v7757 = vrot.slane %v7755, 7
      %v7758 = vshll.u32 %v7636, 16
      %v7760 = vor.u32 %v7757, %v7758
      %v7762 = vshrl.u32 %v7637, 16
      %v7764 = vrot.slane %v7762, 7
      %v7765 = vshll.u32 %v7637, 16
      %v7767 = vor.u32 %v7764, %v7765
      %v7769 = vshrl.u32 %v7638, 16
      %v7771 = vrot.slane %v7769, 7
      %v7772 = vshll.u32 %v7638, 16
      %v7774 = vor.u32 %v7771, %v7772
      %v7776 = vshrl.u32 %v7639, 16
      %v7778 = vrot.slane %v7776, 7
      %v7779 = vshll.u32 %v7639, 16
      %v7781 = vor.u32 %v7778, %v7779
      %v7783 = vshrl.u32 %v7640, 16
      %v7785 = vrot.slane %v7783, 7
      %v7786 = vshll.u32 %v7640, 16
      %v7788 = vor.u32 %v7785, %v7786
      %v7790 = vshrl.u32 %v7641, 16
      %v7792 = vrot.slane %v7790, 7
      %v7793 = vshll.u32 %v7641, 16
      %v7795 = vor.u32 %v7792, %v7793
      %v7797 = vshrl.u32 %v7642, 16
      %v7799 = vrot.slane %v7797, 7
      %v7800 = vshll.u32 %v7642, 16
      %v7802 = vor.u32 %v7799, %v7800
      %v7804 = vshrl.u32 %v7643, 16
      %v7806 = vrot.slane %v7804, 7
      %v7807 = vshll.u32 %v7643, 16
      %v7809 = vor.u32 %v7806, %v7807
      %v7811 = vshrl.u32 %v7644, 16
      %v7813 = vrot.slane %v7811, 7
      %v7814 = vshll.u32 %v7644, 16
      %v7816 = vor.u32 %v7813, %v7814
      %v7818 = vshrl.u32 %v7645, 16
      %v7820 = vrot.slane %v7818, 7
      %v7821 = vshll.u32 %v7645, 16
      %v7823 = vor.u32 %v7820, %v7821
      %v7825 = vshrl.u32 %v7646, 16
      %v7827 = vrot.slane %v7825, 7
      %v7828 = vshll.u32 %v7646, 16
      %v7830 = vor.u32 %v7827, %v7828
      %v7832 = vshrl.u32 %v7647, 16
      %v7834 = vrot.slane %v7832, 7
      %v7835 = vshll.u32 %v7647, 16
      %v7837 = vor.u32 %v7834, %v7835
      %v7839 = vshrl.u32 %v7648, 16
      %v7841 = vrot.slane %v7839, 7
      %v7842 = vshll.u32 %v7648, 16
      %v7844 = vor.u32 %v7841, %v7842
      %v7846 = vshrl.u32 %v7649, 16
      %v7848 = vrot.slane %v7846, 7
      %v7849 = vshll.u32 %v7649, 16
      %v7851 = vor.u32 %v7848, %v7849
      %v7853 = vshrl.u32 %v7650, 16
      %v7855 = vrot.slane %v7853, 7
      %v7856 = vshll.u32 %v7650, 16
      %v7858 = vor.u32 %v7855, %v7856
      %v7860 = vshrl.u32 %v7651, 16
      %v7862 = vrot.slane %v7860, 7
      %v7863 = vshll.u32 %v7651, 16
      %v7865 = vor.u32 %v7862, %v7863
      %v7882 = vsel %vm2140, 0, %v7760
      %v7883 = vsel %vm2140, 0, %v7767
      %v7884 = vsel %vm2140, 0, %v7774
      %v7885 = vsel %vm2140, 0, %v7781
      %v7886 = vsel %vm2140, 0, %v7788
      %v7887 = vsel %vm2140, 0, %v7795
      %v7888 = vsel %vm2140, 0, %v7802
      %v7889 = vsel %vm2140, 0, %v7809
      %v7890 = vsel %vm2140, 0, %v7816
      %v7891 = vsel %vm2140, 0, %v7823
      %v7892 = vsel %vm2140, 0, %v7830
      %v7893 = vsel %vm2140, 0, %v7837
      %v7894 = vsel %vm2140, 0, %v7844
      %v7895 = vsel %vm2140, 0, %v7851
      %v7896 = vsel %vm2140, 0, %v7858
      %v7897 = vsel %vm2140, 0, %v7865
      %v7914 = vunpack.c.l.b16 %v7882
      %v7915 = vunpack.c.h.b16 %v7882
      %v7916 = vunpack.c.l.b16 %v7883
      %v7917 = vunpack.c.h.b16 %v7883
      %v7918 = vunpack.c.l.b16 %v7884
      %v7919 = vunpack.c.h.b16 %v7884
      %v7920 = vunpack.c.l.b16 %v7885
      %v7921 = vunpack.c.h.b16 %v7885
      %v7922 = vunpack.c.l.b16 %v7886
      %v7923 = vunpack.c.h.b16 %v7886
      %v7924 = vunpack.c.l.b16 %v7887
      %v7925 = vunpack.c.h.b16 %v7887
      %v7926 = vunpack.c.l.b16 %v7888
      %v7927 = vunpack.c.h.b16 %v7888
      %v7928 = vunpack.c.l.b16 %v7889
      %v7929 = vunpack.c.h.b16 %v7889
      %v7930 = vunpack.c.l.b16 %v7890
      %v7931 = vunpack.c.h.b16 %v7890
      %v7932 = vunpack.c.l.b16 %v7891
      %v7933 = vunpack.c.h.b16 %v7891
      %v7934 = vunpack.c.l.b16 %v7892
      %v7935 = vunpack.c.h.b16 %v7892
      %v7936 = vunpack.c.l.b16 %v7893
      %v7937 = vunpack.c.h.b16 %v7893
      %v7938 = vunpack.c.l.b16 %v7894
      %v7939 = vunpack.c.h.b16 %v7894
      %v7940 = vunpack.c.l.b16 %v7895
      %v7941 = vunpack.c.h.b16 %v7895
      %v7942 = vunpack.c.l.b16 %v7896
      %v7943 = vunpack.c.h.b16 %v7896
      %v7944 = vunpack.c.l.b16 %v7897
      %v7945 = vunpack.c.h.b16 %v7897
      %v7946 = vpack.c.b16 %v7914, %v7914
      %v7947 = vpack.c.b16 %v7915, %v7915
      %v7948 = vpack.c.b16 %v7916, %v7916
      %v7949 = vpack.c.b16 %v7917, %v7917
      %v7950 = vpack.c.b16 %v7918, %v7918
      %v7951 = vpack.c.b16 %v7919, %v7919
      %v7952 = vpack.c.b16 %v7920, %v7920
      %v7953 = vpack.c.b16 %v7921, %v7921
      %v7954 = vpack.c.b16 %v7922, %v7922
      %v7955 = vpack.c.b16 %v7923, %v7923
      %v7956 = vpack.c.b16 %v7924, %v7924
      %v7957 = vpack.c.b16 %v7925, %v7925
      %v7958 = vpack.c.b16 %v7926, %v7926
      %v7959 = vpack.c.b16 %v7927, %v7927
      %v7960 = vpack.c.b16 %v7928, %v7928
      %v7961 = vpack.c.b16 %v7929, %v7929
      %v7962 = vpack.c.b16 %v7930, %v7930
      %v7963 = vpack.c.b16 %v7931, %v7931
      %v7964 = vpack.c.b16 %v7932, %v7932
      %v7965 = vpack.c.b16 %v7933, %v7933
      %v7966 = vpack.c.b16 %v7934, %v7934
      %v7967 = vpack.c.b16 %v7935, %v7935
      %v7968 = vpack.c.b16 %v7936, %v7936
      %v7969 = vpack.c.b16 %v7937, %v7937
      %v7970 = vpack.c.b16 %v7938, %v7938
      %v7971 = vpack.c.b16 %v7939, %v7939
      %v7972 = vpack.c.b16 %v7940, %v7940
      %v7973 = vpack.c.b16 %v7941, %v7941
      %v7974 = vpack.c.b16 %v7942, %v7942
      %v7975 = vpack.c.b16 %v7943, %v7943
      %v7976 = vpack.c.b16 %v7944, %v7944
      %v7977 = vpack.c.b16 %v7945, %v7945
      %8010 = vst.msk [vmem:[#allocation3] sm:$0xf] %vm7717, %v2273
      %8011 = vst.msk [vmem:[#allocation3 + $0x4] sm:$0xf] %vm7717, %v2274
      %8012 = vst.msk [vmem:[#allocation3 + $0x8] sm:$0xf] %vm7717, %v7946
      %8013 = vst.msk [vmem:[#allocation3 + $0xc] sm:$0xf] %vm7717, %v7947
      %8014 = vst.msk [vmem:[#allocation3 + $0x10] sm:$0xf] %vm7717, %v7948
      %8015 = vst.msk [vmem:[#allocation3 + $0x14] sm:$0xf] %vm7717, %v7949
      %8016 = vst.msk [vmem:[#allocation3 + $0x18] sm:$0xf] %vm7717, %v7950
      %8017 = vst.msk [vmem:[#allocation3 + $0x1c] sm:$0xf] %vm7717, %v7951
      %8018 = vst.msk [vmem:[#allocation3 + $0x20] sm:$0xf] %vm7717, %v7952
      %8019 = vst.msk [vmem:[#allocation3 + $0x24] sm:$0xf] %vm7717, %v7953
      %8020 = vst.msk [vmem:[#allocation3 + $0x28] sm:$0xf] %vm7717, %v7954
      %8021 = vst.msk [vmem:[#allocation3 + $0x2c] sm:$0xf] %vm7717, %v7955
      %8022 = vst.msk [vmem:[#allocation3 + $0x30] sm:$0xf] %vm7717, %v7956
      %8023 = vst.msk [vmem:[#allocation3 + $0x34] sm:$0xf] %vm7717, %v7957
      %8024 = vst.msk [vmem:[#allocation3 + $0x38] sm:$0xf] %vm7717, %v7958
      %8025 = vst.msk [vmem:[#allocation3 + $0x3c] sm:$0xf] %vm7717, %v7959
      %8026 = vst.msk [vmem:[#allocation3 + $0x40] sm:$0xf] %vm7717, %v7960
      %8027 = vst.msk [vmem:[#allocation3 + $0x44] sm:$0xf] %vm7717, %v7961
      %8028 = vst.msk [vmem:[#allocation3 + $0x48] sm:$0xf] %vm7717, %v7962
      %8029 = vst.msk [vmem:[#allocation3 + $0x4c] sm:$0xf] %vm7717, %v7963
      %8030 = vst.msk [vmem:[#allocation3 + $0x50] sm:$0xf] %vm7717, %v7964
      %8031 = vst.msk [vmem:[#allocation3 + $0x54] sm:$0xf] %vm7717, %v7965
      %8032 = vst.msk [vmem:[#allocation3 + $0x58] sm:$0xf] %vm7717, %v7966
      %8033 = vst.msk [vmem:[#allocation3 + $0x5c] sm:$0xf] %vm7717, %v7967
      %8034 = vst.msk [vmem:[#allocation3 + $0x60] sm:$0xf] %vm7717, %v7968
      %8035 = vst.msk [vmem:[#allocation3 + $0x64] sm:$0xf] %vm7717, %v7969
      %8036 = vst.msk [vmem:[#allocation3 + $0x68] sm:$0xf] %vm7717, %v7970
      %8037 = vst.msk [vmem:[#allocation3 + $0x6c] sm:$0xf] %vm7717, %v7971
      %8038 = vst.msk [vmem:[#allocation3 + $0x70] sm:$0xf] %vm7717, %v7972
      %8039 = vst.msk [vmem:[#allocation3 + $0x74] sm:$0xf] %vm7717, %v7973
      %8040 = vst.msk [vmem:[#allocation3 + $0x78] sm:$0xf] %vm7717, %v7974
      %8041 = vst.msk [vmem:[#allocation3 + $0x7c] sm:$0xf] %vm7717, %v7975
      %8042 = vst.msk [vmem:[#allocation3 + $0x80] sm:$0xf] %vm7717, %v7976
      %8043 = vst.msk [vmem:[#allocation3 + $0x84] sm:$0xf] %vm7717, %v7977
      %8044 = vst.msk [vmem:[#allocation3 + $0x88] sm:$0xf] %vm7717, %v2273
      %8045 = vst.msk [vmem:[#allocation3 + $0x8c] sm:$0xf] %vm7717, %v2274
      %v8046 = vrot.slane %v7758, 1
      %v8047 = vor.u32 %v7755, %v8046
      %v8048 = vrot.slane %v7765, 1
      %v8049 = vor.u32 %v7762, %v8048
      %v8050 = vrot.slane %v7772, 1
      %v8051 = vor.u32 %v7769, %v8050
      %v8052 = vrot.slane %v7779, 1
      %v8053 = vor.u32 %v7776, %v8052
      %v8054 = vrot.slane %v7786, 1
      %v8055 = vor.u32 %v7783, %v8054
      %v8056 = vrot.slane %v7793, 1
      %v8057 = vor.u32 %v7790, %v8056
      %v8058 = vrot.slane %v7800, 1
      %v8059 = vor.u32 %v7797, %v8058
      %v8060 = vrot.slane %v7807, 1
      %v8061 = vor.u32 %v7804, %v8060
      %v8062 = vrot.slane %v7814, 1
      %v8063 = vor.u32 %v7811, %v8062
      %v8064 = vrot.slane %v7821, 1
      %v8065 = vor.u32 %v7818, %v8064
      %v8066 = vrot.slane %v7828, 1
      %v8067 = vor.u32 %v7825, %v8066
      %v8068 = vrot.slane %v7835, 1
      %v8069 = vor.u32 %v7832, %v8068
      %v8070 = vrot.slane %v7842, 1
      %v8071 = vor.u32 %v7839, %v8070
      %v8072 = vrot.slane %v7849, 1
      %v8073 = vor.u32 %v7846, %v8072
      %v8074 = vrot.slane %v7856, 1
      %v8075 = vor.u32 %v7853, %v8074
      %v8076 = vrot.slane %v7863, 1
      %v8077 = vor.u32 %v7860, %v8076
      %v8094 = vsel %vm2478, %v8047, 0
      %v8095 = vsel %vm2478, %v8049, 0
      %v8096 = vsel %vm2478, %v8051, 0
      %v8097 = vsel %vm2478, %v8053, 0
      %v8098 = vsel %vm2478, %v8055, 0
      %v8099 = vsel %vm2478, %v8057, 0
      %v8100 = vsel %vm2478, %v8059, 0
      %v8101 = vsel %vm2478, %v8061, 0
      %v8102 = vsel %vm2478, %v8063, 0
      %v8103 = vsel %vm2478, %v8065, 0
      %v8104 = vsel %vm2478, %v8067, 0
      %v8105 = vsel %vm2478, %v8069, 0
      %v8106 = vsel %vm2478, %v8071, 0
      %v8107 = vsel %vm2478, %v8073, 0
      %v8108 = vsel %vm2478, %v8075, 0
      %v8109 = vsel %vm2478, %v8077, 0
      %v8126 = vunpack.c.l.b16 %v8094
      %v8127 = vunpack.c.h.b16 %v8094
      %v8128 = vunpack.c.l.b16 %v8095
      %v8129 = vunpack.c.h.b16 %v8095
      %v8130 = vunpack.c.l.b16 %v8096
      %v8131 = vunpack.c.h.b16 %v8096
      %v8132 = vunpack.c.l.b16 %v8097
      %v8133 = vunpack.c.h.b16 %v8097
      %v8134 = vunpack.c.l.b16 %v8098
      %v8135 = vunpack.c.h.b16 %v8098
      %v8136 = vunpack.c.l.b16 %v8099
      %v8137 = vunpack.c.h.b16 %v8099
      %v8138 = vunpack.c.l.b16 %v8100
      %v8139 = vunpack.c.h.b16 %v8100
      %v8140 = vunpack.c.l.b16 %v8101
      %v8141 = vunpack.c.h.b16 %v8101
      %v8142 = vunpack.c.l.b16 %v8102
      %v8143 = vunpack.c.h.b16 %v8102
      %v8144 = vunpack.c.l.b16 %v8103
      %v8145 = vunpack.c.h.b16 %v8103
      %v8146 = vunpack.c.l.b16 %v8104
      %v8147 = vunpack.c.h.b16 %v8104
      %v8148 = vunpack.c.l.b16 %v8105
      %v8149 = vunpack.c.h.b16 %v8105
      %v8150 = vunpack.c.l.b16 %v8106
      %v8151 = vunpack.c.h.b16 %v8106
      %v8152 = vunpack.c.l.b16 %v8107
      %v8153 = vunpack.c.h.b16 %v8107
      %v8154 = vunpack.c.l.b16 %v8108
      %v8155 = vunpack.c.h.b16 %v8108
      %v8156 = vunpack.c.l.b16 %v8109
      %v8157 = vunpack.c.h.b16 %v8109
      %v8158 = vpack.c.b16 %v8126, %v8126
      %v8159 = vpack.c.b16 %v8127, %v8127
      %v8160 = vpack.c.b16 %v8128, %v8128
      %v8161 = vpack.c.b16 %v8129, %v8129
      %v8162 = vpack.c.b16 %v8130, %v8130
      %v8163 = vpack.c.b16 %v8131, %v8131
      %v8164 = vpack.c.b16 %v8132, %v8132
      %v8165 = vpack.c.b16 %v8133, %v8133
      %v8166 = vpack.c.b16 %v8134, %v8134
      %v8167 = vpack.c.b16 %v8135, %v8135
      %v8168 = vpack.c.b16 %v8136, %v8136
      %v8169 = vpack.c.b16 %v8137, %v8137
      %v8170 = vpack.c.b16 %v8138, %v8138
      %v8171 = vpack.c.b16 %v8139, %v8139
      %v8172 = vpack.c.b16 %v8140, %v8140
      %v8173 = vpack.c.b16 %v8141, %v8141
      %v8174 = vpack.c.b16 %v8142, %v8142
      %v8175 = vpack.c.b16 %v8143, %v8143
      %v8176 = vpack.c.b16 %v8144, %v8144
      %v8177 = vpack.c.b16 %v8145, %v8145
      %v8178 = vpack.c.b16 %v8146, %v8146
      %v8179 = vpack.c.b16 %v8147, %v8147
      %v8180 = vpack.c.b16 %v8148, %v8148
      %v8181 = vpack.c.b16 %v8149, %v8149
      %v8182 = vpack.c.b16 %v8150, %v8150
      %v8183 = vpack.c.b16 %v8151, %v8151
      %v8184 = vpack.c.b16 %v8152, %v8152
      %v8185 = vpack.c.b16 %v8153, %v8153
      %v8186 = vpack.c.b16 %v8154, %v8154
      %v8187 = vpack.c.b16 %v8155, %v8155
      %v8188 = vpack.c.b16 %v8156, %v8156
      %v8189 = vpack.c.b16 %v8157, %v8157
      %s8222 = scalar_lea.vmem [#allocation3], 288
      %8223 = vst.msk [vmem:[%s8222] sm:$0xf] %vm7717, %v2611
      %8224 = vst.msk [vmem:[%s8222 + $0x4] sm:$0xf] %vm7717, %v2612
      %8225 = vst.msk [vmem:[%s8222 + $0x8] sm:$0xf] %vm7717, %v8158
      %8226 = vst.msk [vmem:[%s8222 + $0xc] sm:$0xf] %vm7717, %v8159
      %8227 = vst.msk [vmem:[%s8222 + $0x10] sm:$0xf] %vm7717, %v8160
      %8228 = vst.msk [vmem:[%s8222 + $0x14] sm:$0xf] %vm7717, %v8161
      %8229 = vst.msk [vmem:[%s8222 + $0x18] sm:$0xf] %vm7717, %v8162
      %8230 = vst.msk [vmem:[%s8222 + $0x1c] sm:$0xf] %vm7717, %v8163
      %8231 = vst.msk [vmem:[%s8222 + $0x20] sm:$0xf] %vm7717, %v8164
      %8232 = vst.msk [vmem:[%s8222 + $0x24] sm:$0xf] %vm7717, %v8165
      %8233 = vst.msk [vmem:[%s8222 + $0x28] sm:$0xf] %vm7717, %v8166
      %8234 = vst.msk [vmem:[%s8222 + $0x2c] sm:$0xf] %vm7717, %v8167
      %8235 = vst.msk [vmem:[%s8222 + $0x30] sm:$0xf] %vm7717, %v8168
      %8236 = vst.msk [vmem:[%s8222 + $0x34] sm:$0xf] %vm7717, %v8169
      %8237 = vst.msk [vmem:[%s8222 + $0x38] sm:$0xf] %vm7717, %v8170
      %8238 = vst.msk [vmem:[%s8222 + $0x3c] sm:$0xf] %vm7717, %v8171
      %8239 = vst.msk [vmem:[%s8222 + $0x40] sm:$0xf] %vm7717, %v8172
      %8240 = vst.msk [vmem:[%s8222 + $0x44] sm:$0xf] %vm7717, %v8173
      %8241 = vst.msk [vmem:[%s8222 + $0x48] sm:$0xf] %vm7717, %v8174
      %8242 = vst.msk [vmem:[%s8222 + $0x4c] sm:$0xf] %vm7717, %v8175
      %8243 = vst.msk [vmem:[%s8222 + $0x50] sm:$0xf] %vm7717, %v8176
      %8244 = vst.msk [vmem:[%s8222 + $0x54] sm:$0xf] %vm7717, %v8177
      %8245 = vst.msk [vmem:[%s8222 + $0x58] sm:$0xf] %vm7717, %v8178
      %8246 = vst.msk [vmem:[%s8222 + $0x5c] sm:$0xf] %vm7717, %v8179
      %8247 = vst.msk [vmem:[%s8222 + $0x60] sm:$0xf] %vm7717, %v8180
      %8248 = vst.msk [vmem:[%s8222 + $0x64] sm:$0xf] %vm7717, %v8181
      %8249 = vst.msk [vmem:[%s8222 + $0x68] sm:$0xf] %vm7717, %v8182
      %8250 = vst.msk [vmem:[%s8222 + $0x6c] sm:$0xf] %vm7717, %v8183
      %8251 = vst.msk [vmem:[%s8222 + $0x70] sm:$0xf] %vm7717, %v8184
      %8252 = vst.msk [vmem:[%s8222 + $0x74] sm:$0xf] %vm7717, %v8185
      %8253 = vst.msk [vmem:[%s8222 + $0x78] sm:$0xf] %vm7717, %v8186
      %8254 = vst.msk [vmem:[%s8222 + $0x7c] sm:$0xf] %vm7717, %v8187
      %8255 = vst.msk [vmem:[%s8222 + $0x80] sm:$0xf] %vm7717, %v8188
      %8256 = vst.msk [vmem:[%s8222 + $0x84] sm:$0xf] %vm7717, %v8189
      %8257 = vst.msk [vmem:[%s8222 + $0x88] sm:$0xf] %vm7717, %v2611
      %8258 = vst.msk [vmem:[%s8222 + $0x8c] sm:$0xf] %vm7717, %v2612
      %v8259 = vld [vmem:[#allocation3] sm:$0xf]
      %v8260 = vld [vmem:[#allocation3 + $0x4] sm:$0xf]
      %v8261 = vld [vmem:[#allocation3 + $0x8] sm:$0xf]
      %v8262 = vld [vmem:[#allocation3 + $0xc] sm:$0xf]
      %v8263 = vld [vmem:[#allocation3 + $0x10] sm:$0xf]
      %v8264 = vld [vmem:[#allocation3 + $0x14] sm:$0xf]
      %v8265 = vld [vmem:[#allocation3 + $0x18] sm:$0xf]
      %v8266 = vld [vmem:[#allocation3 + $0x1c] sm:$0xf]
      %v8267 = vld [vmem:[#allocation3 + $0x20] sm:$0xf]
      %v8268 = vld [vmem:[#allocation3 + $0x24] sm:$0xf]
      %v8269 = vld [vmem:[#allocation3 + $0x28] sm:$0xf]
      %v8270 = vld [vmem:[#allocation3 + $0x2c] sm:$0xf]
      %v8271 = vld [vmem:[#allocation3 + $0x30] sm:$0xf]
      %v8272 = vld [vmem:[#allocation3 + $0x34] sm:$0xf]
      %v8273 = vld [vmem:[#allocation3 + $0x38] sm:$0xf]
      %v8274 = vld [vmem:[#allocation3 + $0x3c] sm:$0xf]
      %v8275 = vld [vmem:[#allocation3 + $0x40] sm:$0xf]
      %v8276 = vld [vmem:[#allocation3 + $0x44] sm:$0xf]
      %v8277 = vld [vmem:[#allocation3 + $0x48] sm:$0xf]
      %v8278 = vld [vmem:[#allocation3 + $0x4c] sm:$0xf]
      %v8279 = vld [vmem:[#allocation3 + $0x50] sm:$0xf]
      %v8280 = vld [vmem:[#allocation3 + $0x54] sm:$0xf]
      %v8281 = vld [vmem:[#allocation3 + $0x58] sm:$0xf]
      %v8282 = vld [vmem:[#allocation3 + $0x5c] sm:$0xf]
      %v8283 = vld [vmem:[#allocation3 + $0x60] sm:$0xf]
      %v8284 = vld [vmem:[#allocation3 + $0x64] sm:$0xf]
      %v8285 = vld [vmem:[#allocation3 + $0x68] sm:$0xf]
      %v8286 = vld [vmem:[#allocation3 + $0x6c] sm:$0xf]
      %v8287 = vld [vmem:[#allocation3 + $0x70] sm:$0xf]
      %v8288 = vld [vmem:[#allocation3 + $0x74] sm:$0xf]
      %v8289 = vld [vmem:[#allocation3 + $0x78] sm:$0xf]
      %v8290 = vld [vmem:[#allocation3 + $0x7c] sm:$0xf]
      %v8291 = vld [vmem:[%s9] sm:$0xf]
      %v8292 = vld [vmem:[%s9 + $0x4] sm:$0xf]
      %v8293 = vld [vmem:[%s9 + $0x8] sm:$0xf]
      %v8294 = vld [vmem:[%s9 + $0xc] sm:$0xf]
      %v8295 = vld [vmem:[%s9 + $0x10] sm:$0xf]
      %v8296 = vld [vmem:[%s9 + $0x14] sm:$0xf]
      %v8297 = vld [vmem:[%s9 + $0x18] sm:$0xf]
      %v8298 = vld [vmem:[%s9 + $0x1c] sm:$0xf]
      %v8299 = vld [vmem:[%s7716] sm:$0xf]
      %v8300 = vld [vmem:[%s7716 + $0x4] sm:$0xf]
      %v8301 = vld [vmem:[%s7716 + $0x8] sm:$0xf]
      %v8302 = vld [vmem:[%s7716 + $0xc] sm:$0xf]
      %v8303 = vld [vmem:[%s7716 + $0x10] sm:$0xf]
      %v8304 = vld [vmem:[%s7716 + $0x14] sm:$0xf]
      %v8305 = vld [vmem:[%s7716 + $0x18] sm:$0xf]
      %v8306 = vld [vmem:[%s7716 + $0x1c] sm:$0xf]
      %v8307 = vld [vmem:[%s7716 + $0x20] sm:$0xf]
      %v8308 = vld [vmem:[%s7716 + $0x24] sm:$0xf]
      %v8309 = vld [vmem:[%s7716 + $0x28] sm:$0xf]
      %v8310 = vld [vmem:[%s7716 + $0x2c] sm:$0xf]
      %v8311 = vld [vmem:[%s7716 + $0x30] sm:$0xf]
      %v8312 = vld [vmem:[%s7716 + $0x34] sm:$0xf]
      %v8313 = vld [vmem:[%s7716 + $0x38] sm:$0xf]
      %v8314 = vld [vmem:[%s7716 + $0x3c] sm:$0xf]
      %v8315 = vld [vmem:[%s7716 + $0x40] sm:$0xf]
      %v8316 = vld [vmem:[%s7716 + $0x44] sm:$0xf]
      %v8317 = vld [vmem:[%s7716 + $0x48] sm:$0xf]
      %v8318 = vld [vmem:[%s7716 + $0x4c] sm:$0xf]
      %v8319 = vld [vmem:[%s7716 + $0x50] sm:$0xf]
      %v8320 = vld [vmem:[%s7716 + $0x54] sm:$0xf]
      %v8321 = vld [vmem:[%s7716 + $0x58] sm:$0xf]
      %v8322 = vld [vmem:[%s7716 + $0x5c] sm:$0xf]
      %v8323 = vld [vmem:[%s7716 + $0x60] sm:$0xf]
      %v8324 = vld [vmem:[%s7716 + $0x64] sm:$0xf]
      %v8325 = vld [vmem:[%s7716 + $0x68] sm:$0xf]
      %v8326 = vld [vmem:[%s7716 + $0x6c] sm:$0xf]
      %v8327 = vld [vmem:[%s7716 + $0x70] sm:$0xf]
      %v8328 = vld [vmem:[%s7716 + $0x74] sm:$0xf]
      %v8329 = vld [vmem:[%s7716 + $0x78] sm:$0xf]
      %v8330 = vld [vmem:[%s7716 + $0x7c] sm:$0xf]
      %s8331 = scalar_lea.vmem %s9, 32
      %v8332 = vld [vmem:[%s8331] sm:$0xf]
      %v8333 = vld [vmem:[%s8331 + $0x4] sm:$0xf]
      %v8334 = vld [vmem:[%s8331 + $0x8] sm:$0xf]
      %v8335 = vld [vmem:[%s8331 + $0xc] sm:$0xf]
      %v8336 = vld [vmem:[%s8331 + $0x10] sm:$0xf]
      %v8337 = vld [vmem:[%s8331 + $0x14] sm:$0xf]
      %v8338 = vld [vmem:[%s8331 + $0x18] sm:$0xf]
      %v8339 = vld [vmem:[%s8331 + $0x1c] sm:$0xf]
      %v8372 = vunpack.c.l.b16 %v8299
      %v8373 = vunpack.c.l.b16 %v8300
      %v8374 = vunpack.c.l.b16 %v8301
      %v8375 = vunpack.c.l.b16 %v8302
      %v8376 = vunpack.c.l.b16 %v8303
      %v8377 = vunpack.c.l.b16 %v8304
      %v8378 = vunpack.c.l.b16 %v8305
      %v8379 = vunpack.c.l.b16 %v8306
      %v8380 = vunpack.c.l.b16 %v8307
      %v8381 = vunpack.c.l.b16 %v8308
      %v8382 = vunpack.c.l.b16 %v8309
      %v8383 = vunpack.c.l.b16 %v8310
      %v8384 = vunpack.c.l.b16 %v8311
      %v8385 = vunpack.c.l.b16 %v8312
      %v8386 = vunpack.c.l.b16 %v8313
      %v8387 = vunpack.c.l.b16 %v8314
      %v8388 = vunpack.c.l.b16 %v8315
      %v8389 = vunpack.c.l.b16 %v8316
      %v8390 = vunpack.c.l.b16 %v8317
      %v8391 = vunpack.c.l.b16 %v8318
      %v8392 = vunpack.c.l.b16 %v8319
      %v8393 = vunpack.c.l.b16 %v8320
      %v8394 = vunpack.c.l.b16 %v8321
      %v8395 = vunpack.c.l.b16 %v8322
      %v8396 = vunpack.c.l.b16 %v8323
      %v8397 = vunpack.c.l.b16 %v8324
      %v8398 = vunpack.c.l.b16 %v8325
      %v8399 = vunpack.c.l.b16 %v8326
      %v8400 = vunpack.c.l.b16 %v8327
      %v8401 = vunpack.c.l.b16 %v8328
      %v8402 = vunpack.c.l.b16 %v8329
      %v8403 = vunpack.c.l.b16 %v8330
      %v8404 = vpack.c.b16 %v8373, %v8372
      %v8405 = vpack.c.b16 %v8375, %v8374
      %v8406 = vpack.c.b16 %v8377, %v8376
      %v8407 = vpack.c.b16 %v8379, %v8378
      %v8408 = vpack.c.b16 %v8381, %v8380
      %v8409 = vpack.c.b16 %v8383, %v8382
      %v8410 = vpack.c.b16 %v8385, %v8384
      %v8411 = vpack.c.b16 %v8387, %v8386
      %v8412 = vpack.c.b16 %v8389, %v8388
      %v8413 = vpack.c.b16 %v8391, %v8390
      %v8414 = vpack.c.b16 %v8393, %v8392
      %v8415 = vpack.c.b16 %v8395, %v8394
      %v8416 = vpack.c.b16 %v8397, %v8396
      %v8417 = vpack.c.b16 %v8399, %v8398
      %v8418 = vpack.c.b16 %v8401, %v8400
      %v8419 = vpack.c.b16 %v8403, %v8402
      %v8428 = vunpack.c.l.b16 %v8332
      %v8429 = vunpack.c.l.b16 %v8333
      %v8430 = vunpack.c.l.b16 %v8334
      %v8431 = vunpack.c.l.b16 %v8335
      %v8432 = vunpack.c.l.b16 %v8336
      %v8433 = vunpack.c.l.b16 %v8337
      %v8434 = vunpack.c.l.b16 %v8338
      %v8435 = vunpack.c.l.b16 %v8339
      %v8436 = vpack.c.b16 %v8429, %v8428
      %v8437 = vpack.c.b16 %v8431, %v8430
      %v8438 = vpack.c.b16 %v8433, %v8432
      %v8439 = vpack.c.b16 %v8435, %v8434
      %vm8444 = vcmask 523264
      %v8446 = vsel %vm8444, %v8404, 0
      %v8449 = vsel %vm8444, %v8405, 0
      %v8452 = vsel %vm8444, %v8406, 0
      %v8455 = vsel %vm8444, %v8407, 0
      %v8458 = vsel %vm8444, %v8408, 0
      %v8461 = vsel %vm8444, %v8409, 0
      %v8464 = vsel %vm8444, %v8410, 0
      %v8467 = vsel %vm8444, %v8411, 0
      %v8470 = vsel %vm8444, %v8412, 0
      %v8473 = vsel %vm8444, %v8413, 0
      %v8476 = vsel %vm8444, %v8414, 0
      %v8479 = vsel %vm8444, %v8415, 0
      %v8482 = vsel %vm8444, %v8416, 0
      %v8485 = vsel %vm8444, %v8417, 0
      %v8488 = vsel %vm8444, %v8418, 0
      %v8491 = vsel %vm8444, %v8419, 0
      %8493 = vmatpush.bf16.msra.mxu0 0
      %8494 = vmatpush.bf16.msra.mxu0 0
      %8495 = vmatpush.bf16.msra.mxu0 0
      %8496 = vmatpush.bf16.msra.mxu0 0
      %8497 = vmatpush.bf16.msra.mxu0 %v8439
      %8498 = vmatpush.bf16.msra.mxu0 %v8438
      %8499 = vmatpush.bf16.msra.mxu0 %v8437
      %8500 = vmatpush.bf16.msra.mxu0 %v8436
      %8501 = vmatmul.bf16.gmra.mxu0 %v8446
      %v8502 = vpop.f32.mrf.mxu0
      %v8503 = vadd.f32 0.0, %v8502
      %v8504 = vpop.f32.mrf.mxu0
      %v8505 = vadd.f32 0.0, %v8504
      %8506 = vmatmul.bf16.gmra.mxu0 %v8449
      %v8507 = vpop.f32.mrf.mxu0
      %v8508 = vadd.f32 0.0, %v8507
      %v8509 = vpop.f32.mrf.mxu0
      %v8510 = vadd.f32 0.0, %v8509
      %8511 = vmatmul.bf16.gmra.mxu0 %v8452
      %v8512 = vpop.f32.mrf.mxu0
      %v8513 = vadd.f32 0.0, %v8512
      %v8514 = vpop.f32.mrf.mxu0
      %v8515 = vadd.f32 0.0, %v8514
      %8516 = vmatmul.bf16.gmra.mxu0 %v8455
      %v8517 = vpop.f32.mrf.mxu0
      %v8518 = vadd.f32 0.0, %v8517
      %v8519 = vpop.f32.mrf.mxu0
      %v8520 = vadd.f32 0.0, %v8519
      %8521 = vmatmul.bf16.gmra.mxu0 %v8458
      %v8522 = vpop.f32.mrf.mxu0
      %v8523 = vadd.f32 0.0, %v8522
      %v8524 = vpop.f32.mrf.mxu0
      %v8525 = vadd.f32 0.0, %v8524
      %8526 = vmatmul.bf16.gmra.mxu0 %v8461
      %v8527 = vpop.f32.mrf.mxu0
      %v8528 = vadd.f32 0.0, %v8527
      %v8529 = vpop.f32.mrf.mxu0
      %v8530 = vadd.f32 0.0, %v8529
      %8531 = vmatmul.bf16.gmra.mxu0 %v8464
      %v8532 = vpop.f32.mrf.mxu0
      %v8533 = vadd.f32 0.0, %v8532
      %v8534 = vpop.f32.mrf.mxu0
      %v8535 = vadd.f32 0.0, %v8534
      %8536 = vmatmul.bf16.gmra.mxu0 %v8467
      %v8537 = vpop.f32.mrf.mxu0
      %v8538 = vadd.f32 0.0, %v8537
      %v8539 = vpop.f32.mrf.mxu0
      %v8540 = vadd.f32 0.0, %v8539
      %8541 = vmatmul.bf16.gmra.mxu0 %v8470
      %v8542 = vpop.f32.mrf.mxu0
      %v8543 = vadd.f32 0.0, %v8542
      %v8544 = vpop.f32.mrf.mxu0
      %v8545 = vadd.f32 0.0, %v8544
      %8546 = vmatmul.bf16.gmra.mxu0 %v8473
      %v8547 = vpop.f32.mrf.mxu0
      %v8548 = vadd.f32 0.0, %v8547
      %v8549 = vpop.f32.mrf.mxu0
      %v8550 = vadd.f32 0.0, %v8549
      %8551 = vmatmul.bf16.gmra.mxu0 %v8476
      %v8552 = vpop.f32.mrf.mxu0
      %v8553 = vadd.f32 0.0, %v8552
      %v8554 = vpop.f32.mrf.mxu0
      %v8555 = vadd.f32 0.0, %v8554
      %8556 = vmatmul.bf16.gmra.mxu0 %v8479
      %v8557 = vpop.f32.mrf.mxu0
      %v8558 = vadd.f32 0.0, %v8557
      %v8559 = vpop.f32.mrf.mxu0
      %v8560 = vadd.f32 0.0, %v8559
      %8561 = vmatmul.bf16.gmra.mxu0 %v8482
      %v8562 = vpop.f32.mrf.mxu0
      %v8563 = vadd.f32 0.0, %v8562
      %v8564 = vpop.f32.mrf.mxu0
      %v8565 = vadd.f32 0.0, %v8564
      %8566 = vmatmul.bf16.gmra.mxu0 %v8485
      %v8567 = vpop.f32.mrf.mxu0
      %v8568 = vadd.f32 0.0, %v8567
      %v8569 = vpop.f32.mrf.mxu0
      %v8570 = vadd.f32 0.0, %v8569
      %8571 = vmatmul.bf16.gmra.mxu0 %v8488
      %v8572 = vpop.f32.mrf.mxu0
      %v8573 = vadd.f32 0.0, %v8572
      %v8574 = vpop.f32.mrf.mxu0
      %v8575 = vadd.f32 0.0, %v8574
      %8576 = vmatmul.bf16.gmra.mxu0 %v8491
      %v8577 = vpop.f32.mrf.mxu0
      %v8578 = vadd.f32 0.0, %v8577
      %v8579 = vpop.f32.mrf.mxu0
      %v8580 = vadd.f32 0.0, %v8579
      %8581 = vdwg.mxu0
      %v8614 = vunpack.c.l.b16 %v8259
      %v8615 = vunpack.c.l.b16 %v8260
      %v8616 = vunpack.c.l.b16 %v8261
      %v8617 = vunpack.c.l.b16 %v8262
      %v8618 = vunpack.c.l.b16 %v8263
      %v8619 = vunpack.c.l.b16 %v8264
      %v8620 = vunpack.c.l.b16 %v8265
      %v8621 = vunpack.c.l.b16 %v8266
      %v8622 = vunpack.c.l.b16 %v8267
      %v8623 = vunpack.c.l.b16 %v8268
      %v8624 = vunpack.c.l.b16 %v8269
      %v8625 = vunpack.c.l.b16 %v8270
      %v8626 = vunpack.c.l.b16 %v8271
      %v8627 = vunpack.c.l.b16 %v8272
      %v8628 = vunpack.c.l.b16 %v8273
      %v8629 = vunpack.c.l.b16 %v8274
      %v8630 = vunpack.c.l.b16 %v8275
      %v8631 = vunpack.c.l.b16 %v8276
      %v8632 = vunpack.c.l.b16 %v8277
      %v8633 = vunpack.c.l.b16 %v8278
      %v8634 = vunpack.c.l.b16 %v8279
      %v8635 = vunpack.c.l.b16 %v8280
      %v8636 = vunpack.c.l.b16 %v8281
      %v8637 = vunpack.c.l.b16 %v8282
      %v8638 = vunpack.c.l.b16 %v8283
      %v8639 = vunpack.c.l.b16 %v8284
      %v8640 = vunpack.c.l.b16 %v8285
      %v8641 = vunpack.c.l.b16 %v8286
      %v8642 = vunpack.c.l.b16 %v8287
      %v8643 = vunpack.c.l.b16 %v8288
      %v8644 = vunpack.c.l.b16 %v8289
      %v8645 = vunpack.c.l.b16 %v8290
      %v8646 = vpack.c.b16 %v8615, %v8614
      %v8647 = vpack.c.b16 %v8617, %v8616
      %v8648 = vpack.c.b16 %v8619, %v8618
      %v8649 = vpack.c.b16 %v8621, %v8620
      %v8650 = vpack.c.b16 %v8623, %v8622
      %v8651 = vpack.c.b16 %v8625, %v8624
      %v8652 = vpack.c.b16 %v8627, %v8626
      %v8653 = vpack.c.b16 %v8629, %v8628
      %v8654 = vpack.c.b16 %v8631, %v8630
      %v8655 = vpack.c.b16 %v8633, %v8632
      %v8656 = vpack.c.b16 %v8635, %v8634
      %v8657 = vpack.c.b16 %v8637, %v8636
      %v8658 = vpack.c.b16 %v8639, %v8638
      %v8659 = vpack.c.b16 %v8641, %v8640
      %v8660 = vpack.c.b16 %v8643, %v8642
      %v8661 = vpack.c.b16 %v8645, %v8644
      %v8670 = vunpack.c.l.b16 %v8291
      %v8671 = vunpack.c.l.b16 %v8292
      %v8672 = vunpack.c.l.b16 %v8293
      %v8673 = vunpack.c.l.b16 %v8294
      %v8674 = vunpack.c.l.b16 %v8295
      %v8675 = vunpack.c.l.b16 %v8296
      %v8676 = vunpack.c.l.b16 %v8297
      %v8677 = vunpack.c.l.b16 %v8298
      %v8678 = vpack.c.b16 %v8671, %v8670
      %v8679 = vpack.c.b16 %v8673, %v8672
      %v8680 = vpack.c.b16 %v8675, %v8674
      %v8681 = vpack.c.b16 %v8677, %v8676
      %v8687 = vsel %vm8444, %v8646, 0
      %v8690 = vsel %vm8444, %v8647, 0
      %v8693 = vsel %vm8444, %v8648, 0
      %v8696 = vsel %vm8444, %v8649, 0
      %v8699 = vsel %vm8444, %v8650, 0
      %v8702 = vsel %vm8444, %v8651, 0
      %v8705 = vsel %vm8444, %v8652, 0
      %v8708 = vsel %vm8444, %v8653, 0
      %v8711 = vsel %vm8444, %v8654, 0
      %v8714 = vsel %vm8444, %v8655, 0
      %v8717 = vsel %vm8444, %v8656, 0
      %v8720 = vsel %vm8444, %v8657, 0
      %v8723 = vsel %vm8444, %v8658, 0
      %v8726 = vsel %vm8444, %v8659, 0
      %v8729 = vsel %vm8444, %v8660, 0
      %v8732 = vsel %vm8444, %v8661, 0
      %8734 = vmatpush.bf16.msra.mxu0 0
      %8735 = vmatpush.bf16.msra.mxu0 0
      %8736 = vmatpush.bf16.msra.mxu0 0
      %8737 = vmatpush.bf16.msra.mxu0 0
      %8738 = vmatpush.bf16.msra.mxu0 %v8681
      %8739 = vmatpush.bf16.msra.mxu0 %v8680
      %8740 = vmatpush.bf16.msra.mxu0 %v8679
      %8741 = vmatpush.bf16.msra.mxu0 %v8678
      %8742 = vmatmul.bf16.gmra.mxu0 %v8687
      %v8743 = vpop.f32.mrf.mxu0
      %v8744 = vadd.f32 %v8503, %v8743
      %v8745 = vpop.f32.mrf.mxu0
      %v8746 = vadd.f32 %v8505, %v8745
      %8747 = vmatmul.bf16.gmra.mxu0 %v8690
      %v8748 = vpop.f32.mrf.mxu0
      %v8749 = vadd.f32 %v8508, %v8748
      %v8750 = vpop.f32.mrf.mxu0
      %v8751 = vadd.f32 %v8510, %v8750
      %8752 = vmatmul.bf16.gmra.mxu0 %v8693
      %v8753 = vpop.f32.mrf.mxu0
      %v8754 = vadd.f32 %v8513, %v8753
      %v8755 = vpop.f32.mrf.mxu0
      %v8756 = vadd.f32 %v8515, %v8755
      %8757 = vmatmul.bf16.gmra.mxu0 %v8696
      %v8758 = vpop.f32.mrf.mxu0
      %v8759 = vadd.f32 %v8518, %v8758
      %v8760 = vpop.f32.mrf.mxu0
      %v8761 = vadd.f32 %v8520, %v8760
      %8762 = vmatmul.bf16.gmra.mxu0 %v8699
      %v8763 = vpop.f32.mrf.mxu0
      %v8764 = vadd.f32 %v8523, %v8763
      %v8765 = vpop.f32.mrf.mxu0
      %v8766 = vadd.f32 %v8525, %v8765
      %8767 = vmatmul.bf16.gmra.mxu0 %v8702
      %v8768 = vpop.f32.mrf.mxu0
      %v8769 = vadd.f32 %v8528, %v8768
      %v8770 = vpop.f32.mrf.mxu0
      %v8771 = vadd.f32 %v8530, %v8770
      %8772 = vmatmul.bf16.gmra.mxu0 %v8705
      %v8773 = vpop.f32.mrf.mxu0
      %v8774 = vadd.f32 %v8533, %v8773
      %v8775 = vpop.f32.mrf.mxu0
      %v8776 = vadd.f32 %v8535, %v8775
      %8777 = vmatmul.bf16.gmra.mxu0 %v8708
      %v8778 = vpop.f32.mrf.mxu0
      %v8779 = vadd.f32 %v8538, %v8778
      %v8780 = vpop.f32.mrf.mxu0
      %v8781 = vadd.f32 %v8540, %v8780
      %8782 = vmatmul.bf16.gmra.mxu0 %v8711
      %v8783 = vpop.f32.mrf.mxu0
      %v8784 = vadd.f32 %v8543, %v8783
      %v8785 = vpop.f32.mrf.mxu0
      %v8786 = vadd.f32 %v8545, %v8785
      %8787 = vmatmul.bf16.gmra.mxu0 %v8714
      %v8788 = vpop.f32.mrf.mxu0
      %v8789 = vadd.f32 %v8548, %v8788
      %v8790 = vpop.f32.mrf.mxu0
      %v8791 = vadd.f32 %v8550, %v8790
      %8792 = vmatmul.bf16.gmra.mxu0 %v8717
      %v8793 = vpop.f32.mrf.mxu0
      %v8794 = vadd.f32 %v8553, %v8793
      %v8795 = vpop.f32.mrf.mxu0
      %v8796 = vadd.f32 %v8555, %v8795
      %8797 = vmatmul.bf16.gmra.mxu0 %v8720
      %v8798 = vpop.f32.mrf.mxu0
      %v8799 = vadd.f32 %v8558, %v8798
      %v8800 = vpop.f32.mrf.mxu0
      %v8801 = vadd.f32 %v8560, %v8800
      %8802 = vmatmul.bf16.gmra.mxu0 %v8723
      %v8803 = vpop.f32.mrf.mxu0
      %v8804 = vadd.f32 %v8563, %v8803
      %v8805 = vpop.f32.mrf.mxu0
      %v8806 = vadd.f32 %v8565, %v8805
      %8807 = vmatmul.bf16.gmra.mxu0 %v8726
      %v8808 = vpop.f32.mrf.mxu0
      %v8809 = vadd.f32 %v8568, %v8808
      %v8810 = vpop.f32.mrf.mxu0
      %v8811 = vadd.f32 %v8570, %v8810
      %8812 = vmatmul.bf16.gmra.mxu0 %v8729
      %v8813 = vpop.f32.mrf.mxu0
      %v8814 = vadd.f32 %v8573, %v8813
      %v8815 = vpop.f32.mrf.mxu0
      %v8816 = vadd.f32 %v8575, %v8815
      %8817 = vmatmul.bf16.gmra.mxu0 %v8732
      %v8818 = vpop.f32.mrf.mxu0
      %v8819 = vadd.f32 %v8578, %v8818
      %v8820 = vpop.f32.mrf.mxu0
      %v8821 = vadd.f32 %v8580, %v8820
      %8822 = vdwg.mxu0
      %v8823 = vld [vmem:[%s8222] sm:$0xf]
      %v8824 = vld [vmem:[%s8222 + $0x4] sm:$0xf]
      %v8825 = vld [vmem:[%s8222 + $0x8] sm:$0xf]
      %v8826 = vld [vmem:[%s8222 + $0xc] sm:$0xf]
      %v8827 = vld [vmem:[%s8222 + $0x10] sm:$0xf]
      %v8828 = vld [vmem:[%s8222 + $0x14] sm:$0xf]
      %v8829 = vld [vmem:[%s8222 + $0x18] sm:$0xf]
      %v8830 = vld [vmem:[%s8222 + $0x1c] sm:$0xf]
      %v8831 = vld [vmem:[%s8222 + $0x20] sm:$0xf]
      %v8832 = vld [vmem:[%s8222 + $0x24] sm:$0xf]
      %v8833 = vld [vmem:[%s8222 + $0x28] sm:$0xf]
      %v8834 = vld [vmem:[%s8222 + $0x2c] sm:$0xf]
      %v8835 = vld [vmem:[%s8222 + $0x30] sm:$0xf]
      %v8836 = vld [vmem:[%s8222 + $0x34] sm:$0xf]
      %v8837 = vld [vmem:[%s8222 + $0x38] sm:$0xf]
      %v8838 = vld [vmem:[%s8222 + $0x3c] sm:$0xf]
      %v8839 = vld [vmem:[%s8222 + $0x40] sm:$0xf]
      %v8840 = vld [vmem:[%s8222 + $0x44] sm:$0xf]
      %v8841 = vld [vmem:[%s8222 + $0x48] sm:$0xf]
      %v8842 = vld [vmem:[%s8222 + $0x4c] sm:$0xf]
      %v8843 = vld [vmem:[%s8222 + $0x50] sm:$0xf]
      %v8844 = vld [vmem:[%s8222 + $0x54] sm:$0xf]
      %v8845 = vld [vmem:[%s8222 + $0x58] sm:$0xf]
      %v8846 = vld [vmem:[%s8222 + $0x5c] sm:$0xf]
      %v8847 = vld [vmem:[%s8222 + $0x60] sm:$0xf]
      %v8848 = vld [vmem:[%s8222 + $0x64] sm:$0xf]
      %v8849 = vld [vmem:[%s8222 + $0x68] sm:$0xf]
      %v8850 = vld [vmem:[%s8222 + $0x6c] sm:$0xf]
      %v8851 = vld [vmem:[%s8222 + $0x70] sm:$0xf]
      %v8852 = vld [vmem:[%s8222 + $0x74] sm:$0xf]
      %v8853 = vld [vmem:[%s8222 + $0x78] sm:$0xf]
      %v8854 = vld [vmem:[%s8222 + $0x7c] sm:$0xf]
      %s8855 = scalar_lea.vmem %s9, 64
      %v8856 = vld [vmem:[%s8855] sm:$0xf]
      %v8857 = vld [vmem:[%s8855 + $0x4] sm:$0xf]
      %v8858 = vld [vmem:[%s8855 + $0x8] sm:$0xf]
      %v8859 = vld [vmem:[%s8855 + $0xc] sm:$0xf]
      %v8860 = vld [vmem:[%s8855 + $0x10] sm:$0xf]
      %v8861 = vld [vmem:[%s8855 + $0x14] sm:$0xf]
      %v8862 = vld [vmem:[%s8855 + $0x18] sm:$0xf]
      %v8863 = vld [vmem:[%s8855 + $0x1c] sm:$0xf]
      %v8896 = vunpack.c.l.b16 %v8823
      %v8897 = vunpack.c.l.b16 %v8824
      %v8898 = vunpack.c.l.b16 %v8825
      %v8899 = vunpack.c.l.b16 %v8826
      %v8900 = vunpack.c.l.b16 %v8827
      %v8901 = vunpack.c.l.b16 %v8828
      %v8902 = vunpack.c.l.b16 %v8829
      %v8903 = vunpack.c.l.b16 %v8830
      %v8904 = vunpack.c.l.b16 %v8831
      %v8905 = vunpack.c.l.b16 %v8832
      %v8906 = vunpack.c.l.b16 %v8833
      %v8907 = vunpack.c.l.b16 %v8834
      %v8908 = vunpack.c.l.b16 %v8835
      %v8909 = vunpack.c.l.b16 %v8836
      %v8910 = vunpack.c.l.b16 %v8837
      %v8911 = vunpack.c.l.b16 %v8838
      %v8912 = vunpack.c.l.b16 %v8839
      %v8913 = vunpack.c.l.b16 %v8840
      %v8914 = vunpack.c.l.b16 %v8841
      %v8915 = vunpack.c.l.b16 %v8842
      %v8916 = vunpack.c.l.b16 %v8843
      %v8917 = vunpack.c.l.b16 %v8844
      %v8918 = vunpack.c.l.b16 %v8845
      %v8919 = vunpack.c.l.b16 %v8846
      %v8920 = vunpack.c.l.b16 %v8847
      %v8921 = vunpack.c.l.b16 %v8848
      %v8922 = vunpack.c.l.b16 %v8849
      %v8923 = vunpack.c.l.b16 %v8850
      %v8924 = vunpack.c.l.b16 %v8851
      %v8925 = vunpack.c.l.b16 %v8852
      %v8926 = vunpack.c.l.b16 %v8853
      %v8927 = vunpack.c.l.b16 %v8854
      %v8928 = vpack.c.b16 %v8897, %v8896
      %v8929 = vpack.c.b16 %v8899, %v8898
      %v8930 = vpack.c.b16 %v8901, %v8900
      %v8931 = vpack.c.b16 %v8903, %v8902
      %v8932 = vpack.c.b16 %v8905, %v8904
      %v8933 = vpack.c.b16 %v8907, %v8906
      %v8934 = vpack.c.b16 %v8909, %v8908
      %v8935 = vpack.c.b16 %v8911, %v8910
      %v8936 = vpack.c.b16 %v8913, %v8912
      %v8937 = vpack.c.b16 %v8915, %v8914
      %v8938 = vpack.c.b16 %v8917, %v8916
      %v8939 = vpack.c.b16 %v8919, %v8918
      %v8940 = vpack.c.b16 %v8921, %v8920
      %v8941 = vpack.c.b16 %v8923, %v8922
      %v8942 = vpack.c.b16 %v8925, %v8924
      %v8943 = vpack.c.b16 %v8927, %v8926
      %v8952 = vunpack.c.l.b16 %v8856
      %v8953 = vunpack.c.l.b16 %v8857
      %v8954 = vunpack.c.l.b16 %v8858
      %v8955 = vunpack.c.l.b16 %v8859
      %v8956 = vunpack.c.l.b16 %v8860
      %v8957 = vunpack.c.l.b16 %v8861
      %v8958 = vunpack.c.l.b16 %v8862
      %v8959 = vunpack.c.l.b16 %v8863
      %v8960 = vpack.c.b16 %v8953, %v8952
      %v8961 = vpack.c.b16 %v8955, %v8954
      %v8962 = vpack.c.b16 %v8957, %v8956
      %v8963 = vpack.c.b16 %v8959, %v8958
      %v8969 = vsel %vm8444, %v8928, 0
      %v8972 = vsel %vm8444, %v8929, 0
      %v8975 = vsel %vm8444, %v8930, 0
      %v8978 = vsel %vm8444, %v8931, 0
      %v8981 = vsel %vm8444, %v8932, 0
      %v8984 = vsel %vm8444, %v8933, 0
      %v8987 = vsel %vm8444, %v8934, 0
      %v8990 = vsel %vm8444, %v8935, 0
      %v8993 = vsel %vm8444, %v8936, 0
      %v8996 = vsel %vm8444, %v8937, 0
      %v8999 = vsel %vm8444, %v8938, 0
      %v9002 = vsel %vm8444, %v8939, 0
      %v9005 = vsel %vm8444, %v8940, 0
      %v9008 = vsel %vm8444, %v8941, 0
      %v9011 = vsel %vm8444, %v8942, 0
      %v9014 = vsel %vm8444, %v8943, 0
      %9016 = vmatpush.bf16.msra.mxu0 0
      %9017 = vmatpush.bf16.msra.mxu0 0
      %9018 = vmatpush.bf16.msra.mxu0 0
      %9019 = vmatpush.bf16.msra.mxu0 0
      %9020 = vmatpush.bf16.msra.mxu0 %v8963
      %9021 = vmatpush.bf16.msra.mxu0 %v8962
      %9022 = vmatpush.bf16.msra.mxu0 %v8961
      %9023 = vmatpush.bf16.msra.mxu0 %v8960
      %9024 = vmatmul.bf16.gmra.mxu0 %v8969
      %v9025 = vpop.f32.mrf.mxu0
      %v9026 = vadd.f32 0.0, %v9025
      %v9027 = vpop.f32.mrf.mxu0
      %v9028 = vadd.f32 0.0, %v9027
      %9029 = vmatmul.bf16.gmra.mxu0 %v8972
      %v9030 = vpop.f32.mrf.mxu0
      %v9031 = vadd.f32 0.0, %v9030
      %v9032 = vpop.f32.mrf.mxu0
      %v9033 = vadd.f32 0.0, %v9032
      %9034 = vmatmul.bf16.gmra.mxu0 %v8975
      %v9035 = vpop.f32.mrf.mxu0
      %v9036 = vadd.f32 0.0, %v9035
      %v9037 = vpop.f32.mrf.mxu0
      %v9038 = vadd.f32 0.0, %v9037
      %9039 = vmatmul.bf16.gmra.mxu0 %v8978
      %v9040 = vpop.f32.mrf.mxu0
      %v9041 = vadd.f32 0.0, %v9040
      %v9042 = vpop.f32.mrf.mxu0
      %v9043 = vadd.f32 0.0, %v9042
      %9044 = vmatmul.bf16.gmra.mxu0 %v8981
      %v9045 = vpop.f32.mrf.mxu0
      %v9046 = vadd.f32 0.0, %v9045
      %v9047 = vpop.f32.mrf.mxu0
      %v9048 = vadd.f32 0.0, %v9047
      %9049 = vmatmul.bf16.gmra.mxu0 %v8984
      %v9050 = vpop.f32.mrf.mxu0
      %v9051 = vadd.f32 0.0, %v9050
      %v9052 = vpop.f32.mrf.mxu0
      %v9053 = vadd.f32 0.0, %v9052
      %9054 = vmatmul.bf16.gmra.mxu0 %v8987
      %v9055 = vpop.f32.mrf.mxu0
      %v9056 = vadd.f32 0.0, %v9055
      %v9057 = vpop.f32.mrf.mxu0
      %v9058 = vadd.f32 0.0, %v9057
      %9059 = vmatmul.bf16.gmra.mxu0 %v8990
      %v9060 = vpop.f32.mrf.mxu0
      %v9061 = vadd.f32 0.0, %v9060
      %v9062 = vpop.f32.mrf.mxu0
      %v9063 = vadd.f32 0.0, %v9062
      %9064 = vmatmul.bf16.gmra.mxu0 %v8993
      %v9065 = vpop.f32.mrf.mxu0
      %v9066 = vadd.f32 0.0, %v9065
      %v9067 = vpop.f32.mrf.mxu0
      %v9068 = vadd.f32 0.0, %v9067
      %9069 = vmatmul.bf16.gmra.mxu0 %v8996
      %v9070 = vpop.f32.mrf.mxu0
      %v9071 = vadd.f32 0.0, %v9070
      %v9072 = vpop.f32.mrf.mxu0
      %v9073 = vadd.f32 0.0, %v9072
      %9074 = vmatmul.bf16.gmra.mxu0 %v8999
      %v9075 = vpop.f32.mrf.mxu0
      %v9076 = vadd.f32 0.0, %v9075
      %v9077 = vpop.f32.mrf.mxu0
      %v9078 = vadd.f32 0.0, %v9077
      %9079 = vmatmul.bf16.gmra.mxu0 %v9002
      %v9080 = vpop.f32.mrf.mxu0
      %v9081 = vadd.f32 0.0, %v9080
      %v9082 = vpop.f32.mrf.mxu0
      %v9083 = vadd.f32 0.0, %v9082
      %9084 = vmatmul.bf16.gmra.mxu0 %v9005
      %v9085 = vpop.f32.mrf.mxu0
      %v9086 = vadd.f32 0.0, %v9085
      %v9087 = vpop.f32.mrf.mxu0
      %v9088 = vadd.f32 0.0, %v9087
      %9089 = vmatmul.bf16.gmra.mxu0 %v9008
      %v9090 = vpop.f32.mrf.mxu0
      %v9091 = vadd.f32 0.0, %v9090
      %v9092 = vpop.f32.mrf.mxu0
      %v9093 = vadd.f32 0.0, %v9092
      %9094 = vmatmul.bf16.gmra.mxu0 %v9011
      %v9095 = vpop.f32.mrf.mxu0
      %v9096 = vadd.f32 0.0, %v9095
      %v9097 = vpop.f32.mrf.mxu0
      %v9098 = vadd.f32 0.0, %v9097
      %9099 = vmatmul.bf16.gmra.mxu0 %v9014
      %v9100 = vpop.f32.mrf.mxu0
      %v9101 = vadd.f32 0.0, %v9100
      %v9102 = vpop.f32.mrf.mxu0
      %v9103 = vadd.f32 0.0, %v9102
      %9104 = vdwg.mxu0
      %v9105 = vadd.f32 %v8744, %v9026
      %v9106 = vadd.f32 %v8746, %v9028
      %v9107 = vadd.f32 %v8749, %v9031
      %v9108 = vadd.f32 %v8751, %v9033
      %v9109 = vadd.f32 %v8754, %v9036
      %v9110 = vadd.f32 %v8756, %v9038
      %v9111 = vadd.f32 %v8759, %v9041
      %v9112 = vadd.f32 %v8761, %v9043
      %v9113 = vadd.f32 %v8764, %v9046
      %v9114 = vadd.f32 %v8766, %v9048
      %v9115 = vadd.f32 %v8769, %v9051
      %v9116 = vadd.f32 %v8771, %v9053
      %v9117 = vadd.f32 %v8774, %v9056
      %v9118 = vadd.f32 %v8776, %v9058
      %v9119 = vadd.f32 %v8779, %v9061
      %v9120 = vadd.f32 %v8781, %v9063
      %v9121 = vadd.f32 %v8784, %v9066
      %v9122 = vadd.f32 %v8786, %v9068
      %v9123 = vadd.f32 %v8789, %v9071
      %v9124 = vadd.f32 %v8791, %v9073
      %v9125 = vadd.f32 %v8794, %v9076
      %v9126 = vadd.f32 %v8796, %v9078
      %v9127 = vadd.f32 %v8799, %v9081
      %v9128 = vadd.f32 %v8801, %v9083
      %v9129 = vadd.f32 %v8804, %v9086
      %v9130 = vadd.f32 %v8806, %v9088
      %v9131 = vadd.f32 %v8809, %v9091
      %v9132 = vadd.f32 %v8811, %v9093
      %v9133 = vadd.f32 %v8814, %v9096
      %v9134 = vadd.f32 %v8816, %v9098
      %v9135 = vadd.f32 %v8819, %v9101
      %v9136 = vadd.f32 %v8821, %v9103
      %s9137 = scalar_lea.vmem [#allocation3], 8
      %v9138 = vld [vmem:[%s9137] sm:$0xf]
      %v9139 = vld [vmem:[%s9137 + $0x4] sm:$0xf]
      %v9140 = vld [vmem:[%s9137 + $0x8] sm:$0xf]
      %v9141 = vld [vmem:[%s9137 + $0xc] sm:$0xf]
      %v9142 = vld [vmem:[%s9137 + $0x10] sm:$0xf]
      %v9143 = vld [vmem:[%s9137 + $0x14] sm:$0xf]
      %v9144 = vld [vmem:[%s9137 + $0x18] sm:$0xf]
      %v9145 = vld [vmem:[%s9137 + $0x1c] sm:$0xf]
      %v9146 = vld [vmem:[%s9137 + $0x20] sm:$0xf]
      %v9147 = vld [vmem:[%s9137 + $0x24] sm:$0xf]
      %v9148 = vld [vmem:[%s9137 + $0x28] sm:$0xf]
      %v9149 = vld [vmem:[%s9137 + $0x2c] sm:$0xf]
      %v9150 = vld [vmem:[%s9137 + $0x30] sm:$0xf]
      %v9151 = vld [vmem:[%s9137 + $0x34] sm:$0xf]
      %v9152 = vld [vmem:[%s9137 + $0x38] sm:$0xf]
      %v9153 = vld [vmem:[%s9137 + $0x3c] sm:$0xf]
      %v9154 = vld [vmem:[%s9137 + $0x40] sm:$0xf]
      %v9155 = vld [vmem:[%s9137 + $0x44] sm:$0xf]
      %v9156 = vld [vmem:[%s9137 + $0x48] sm:$0xf]
      %v9157 = vld [vmem:[%s9137 + $0x4c] sm:$0xf]
      %v9158 = vld [vmem:[%s9137 + $0x50] sm:$0xf]
      %v9159 = vld [vmem:[%s9137 + $0x54] sm:$0xf]
      %v9160 = vld [vmem:[%s9137 + $0x58] sm:$0xf]
      %v9161 = vld [vmem:[%s9137 + $0x5c] sm:$0xf]
      %v9162 = vld [vmem:[%s9137 + $0x60] sm:$0xf]
      %v9163 = vld [vmem:[%s9137 + $0x64] sm:$0xf]
      %v9164 = vld [vmem:[%s9137 + $0x68] sm:$0xf]
      %v9165 = vld [vmem:[%s9137 + $0x6c] sm:$0xf]
      %v9166 = vld [vmem:[%s9137 + $0x70] sm:$0xf]
      %v9167 = vld [vmem:[%s9137 + $0x74] sm:$0xf]
      %v9168 = vld [vmem:[%s9137 + $0x78] sm:$0xf]
      %v9169 = vld [vmem:[%s9137 + $0x7c] sm:$0xf]
      %s9170 = scalar_lea.vmem %s9, 96
      %v9171 = vld [vmem:[%s9170] sm:$0xf]
      %v9172 = vld [vmem:[%s9170 + $0x4] sm:$0xf]
      %v9173 = vld [vmem:[%s9170 + $0x8] sm:$0xf]
      %v9174 = vld [vmem:[%s9170 + $0xc] sm:$0xf]
      %v9175 = vld [vmem:[%s9170 + $0x10] sm:$0xf]
      %v9176 = vld [vmem:[%s9170 + $0x14] sm:$0xf]
      %v9177 = vld [vmem:[%s9170 + $0x18] sm:$0xf]
      %v9178 = vld [vmem:[%s9170 + $0x1c] sm:$0xf]
      %v9211 = vunpack.c.l.b16 %v9138
      %v9212 = vunpack.c.l.b16 %v9139
      %v9213 = vunpack.c.l.b16 %v9140
      %v9214 = vunpack.c.l.b16 %v9141
      %v9215 = vunpack.c.l.b16 %v9142
      %v9216 = vunpack.c.l.b16 %v9143
      %v9217 = vunpack.c.l.b16 %v9144
      %v9218 = vunpack.c.l.b16 %v9145
      %v9219 = vunpack.c.l.b16 %v9146
      %v9220 = vunpack.c.l.b16 %v9147
      %v9221 = vunpack.c.l.b16 %v9148
      %v9222 = vunpack.c.l.b16 %v9149
      %v9223 = vunpack.c.l.b16 %v9150
      %v9224 = vunpack.c.l.b16 %v9151
      %v9225 = vunpack.c.l.b16 %v9152
      %v9226 = vunpack.c.l.b16 %v9153
      %v9227 = vunpack.c.l.b16 %v9154
      %v9228 = vunpack.c.l.b16 %v9155
      %v9229 = vunpack.c.l.b16 %v9156
      %v9230 = vunpack.c.l.b16 %v9157
      %v9231 = vunpack.c.l.b16 %v9158
      %v9232 = vunpack.c.l.b16 %v9159
      %v9233 = vunpack.c.l.b16 %v9160
      %v9234 = vunpack.c.l.b16 %v9161
      %v9235 = vunpack.c.l.b16 %v9162
      %v9236 = vunpack.c.l.b16 %v9163
      %v9237 = vunpack.c.l.b16 %v9164
      %v9238 = vunpack.c.l.b16 %v9165
      %v9239 = vunpack.c.l.b16 %v9166
      %v9240 = vunpack.c.l.b16 %v9167
      %v9241 = vunpack.c.l.b16 %v9168
      %v9242 = vunpack.c.l.b16 %v9169
      %v9243 = vpack.c.b16 %v9212, %v9211
      %v9244 = vpack.c.b16 %v9214, %v9213
      %v9245 = vpack.c.b16 %v9216, %v9215
      %v9246 = vpack.c.b16 %v9218, %v9217
      %v9247 = vpack.c.b16 %v9220, %v9219
      %v9248 = vpack.c.b16 %v9222, %v9221
      %v9249 = vpack.c.b16 %v9224, %v9223
      %v9250 = vpack.c.b16 %v9226, %v9225
      %v9251 = vpack.c.b16 %v9228, %v9227
      %v9252 = vpack.c.b16 %v9230, %v9229
      %v9253 = vpack.c.b16 %v9232, %v9231
      %v9254 = vpack.c.b16 %v9234, %v9233
      %v9255 = vpack.c.b16 %v9236, %v9235
      %v9256 = vpack.c.b16 %v9238, %v9237
      %v9257 = vpack.c.b16 %v9240, %v9239
      %v9258 = vpack.c.b16 %v9242, %v9241
      %v9267 = vunpack.c.l.b16 %v9171
      %v9268 = vunpack.c.l.b16 %v9172
      %v9269 = vunpack.c.l.b16 %v9173
      %v9270 = vunpack.c.l.b16 %v9174
      %v9271 = vunpack.c.l.b16 %v9175
      %v9272 = vunpack.c.l.b16 %v9176
      %v9273 = vunpack.c.l.b16 %v9177
      %v9274 = vunpack.c.l.b16 %v9178
      %v9275 = vpack.c.b16 %v9268, %v9267
      %v9276 = vpack.c.b16 %v9270, %v9269
      %v9277 = vpack.c.b16 %v9272, %v9271
      %v9278 = vpack.c.b16 %v9274, %v9273
      %v9284 = vsel %vm8444, %v9243, 0
      %v9287 = vsel %vm8444, %v9244, 0
      %v9290 = vsel %vm8444, %v9245, 0
      %v9293 = vsel %vm8444, %v9246, 0
      %v9296 = vsel %vm8444, %v9247, 0
      %v9299 = vsel %vm8444, %v9248, 0
      %v9302 = vsel %vm8444, %v9249, 0
      %v9305 = vsel %vm8444, %v9250, 0
      %v9308 = vsel %vm8444, %v9251, 0
      %v9311 = vsel %vm8444, %v9252, 0
      %v9314 = vsel %vm8444, %v9253, 0
      %v9317 = vsel %vm8444, %v9254, 0
      %v9320 = vsel %vm8444, %v9255, 0
      %v9323 = vsel %vm8444, %v9256, 0
      %v9326 = vsel %vm8444, %v9257, 0
      %v9329 = vsel %vm8444, %v9258, 0
      %9331 = vmatpush.bf16.msra.mxu0 0
      %9332 = vmatpush.bf16.msra.mxu0 0
      %9333 = vmatpush.bf16.msra.mxu0 0
      %9334 = vmatpush.bf16.msra.mxu0 0
      %9335 = vmatpush.bf16.msra.mxu0 %v9278
      %9336 = vmatpush.bf16.msra.mxu0 %v9277
      %9337 = vmatpush.bf16.msra.mxu0 %v9276
      %9338 = vmatpush.bf16.msra.mxu0 %v9275
      %9339 = vmatmul.bf16.gmra.mxu0 %v9284
      %v9340 = vpop.f32.mrf.mxu0
      %v9341 = vadd.f32 0.0, %v9340
      %v9342 = vpop.f32.mrf.mxu0
      %v9343 = vadd.f32 0.0, %v9342
      %9344 = vmatmul.bf16.gmra.mxu0 %v9287
      %v9345 = vpop.f32.mrf.mxu0
      %v9346 = vadd.f32 0.0, %v9345
      %v9347 = vpop.f32.mrf.mxu0
      %v9348 = vadd.f32 0.0, %v9347
      %9349 = vmatmul.bf16.gmra.mxu0 %v9290
      %v9350 = vpop.f32.mrf.mxu0
      %v9351 = vadd.f32 0.0, %v9350
      %v9352 = vpop.f32.mrf.mxu0
      %v9353 = vadd.f32 0.0, %v9352
      %9354 = vmatmul.bf16.gmra.mxu0 %v9293
      %v9355 = vpop.f32.mrf.mxu0
      %v9356 = vadd.f32 0.0, %v9355
      %v9357 = vpop.f32.mrf.mxu0
      %v9358 = vadd.f32 0.0, %v9357
      %9359 = vmatmul.bf16.gmra.mxu0 %v9296
      %v9360 = vpop.f32.mrf.mxu0
      %v9361 = vadd.f32 0.0, %v9360
      %v9362 = vpop.f32.mrf.mxu0
      %v9363 = vadd.f32 0.0, %v9362
      %9364 = vmatmul.bf16.gmra.mxu0 %v9299
      %v9365 = vpop.f32.mrf.mxu0
      %v9366 = vadd.f32 0.0, %v9365
      %v9367 = vpop.f32.mrf.mxu0
      %v9368 = vadd.f32 0.0, %v9367
      %9369 = vmatmul.bf16.gmra.mxu0 %v9302
      %v9370 = vpop.f32.mrf.mxu0
      %v9371 = vadd.f32 0.0, %v9370
      %v9372 = vpop.f32.mrf.mxu0
      %v9373 = vadd.f32 0.0, %v9372
      %9374 = vmatmul.bf16.gmra.mxu0 %v9305
      %v9375 = vpop.f32.mrf.mxu0
      %v9376 = vadd.f32 0.0, %v9375
      %v9377 = vpop.f32.mrf.mxu0
      %v9378 = vadd.f32 0.0, %v9377
      %9379 = vmatmul.bf16.gmra.mxu0 %v9308
      %v9380 = vpop.f32.mrf.mxu0
      %v9381 = vadd.f32 0.0, %v9380
      %v9382 = vpop.f32.mrf.mxu0
      %v9383 = vadd.f32 0.0, %v9382
      %9384 = vmatmul.bf16.gmra.mxu0 %v9311
      %v9385 = vpop.f32.mrf.mxu0
      %v9386 = vadd.f32 0.0, %v9385
      %v9387 = vpop.f32.mrf.mxu0
      %v9388 = vadd.f32 0.0, %v9387
      %9389 = vmatmul.bf16.gmra.mxu0 %v9314
      %v9390 = vpop.f32.mrf.mxu0
      %v9391 = vadd.f32 0.0, %v9390
      %v9392 = vpop.f32.mrf.mxu0
      %v9393 = vadd.f32 0.0, %v9392
      %9394 = vmatmul.bf16.gmra.mxu0 %v9317
      %v9395 = vpop.f32.mrf.mxu0
      %v9396 = vadd.f32 0.0, %v9395
      %v9397 = vpop.f32.mrf.mxu0
      %v9398 = vadd.f32 0.0, %v9397
      %9399 = vmatmul.bf16.gmra.mxu0 %v9320
      %v9400 = vpop.f32.mrf.mxu0
      %v9401 = vadd.f32 0.0, %v9400
      %v9402 = vpop.f32.mrf.mxu0
      %v9403 = vadd.f32 0.0, %v9402
      %9404 = vmatmul.bf16.gmra.mxu0 %v9323
      %v9405 = vpop.f32.mrf.mxu0
      %v9406 = vadd.f32 0.0, %v9405
      %v9407 = vpop.f32.mrf.mxu0
      %v9408 = vadd.f32 0.0, %v9407
      %9409 = vmatmul.bf16.gmra.mxu0 %v9326
      %v9410 = vpop.f32.mrf.mxu0
      %v9411 = vadd.f32 0.0, %v9410
      %v9412 = vpop.f32.mrf.mxu0
      %v9413 = vadd.f32 0.0, %v9412
      %9414 = vmatmul.bf16.gmra.mxu0 %v9329
      %v9415 = vpop.f32.mrf.mxu0
      %v9416 = vadd.f32 0.0, %v9415
      %v9417 = vpop.f32.mrf.mxu0
      %v9418 = vadd.f32 0.0, %v9417
      %9419 = vdwg.mxu0
      %v9420 = vadd.f32 %v9105, %v9341
      %v9421 = vadd.f32 %v9106, %v9343
      %v9422 = vadd.f32 %v9107, %v9346
      %v9423 = vadd.f32 %v9108, %v9348
      %v9424 = vadd.f32 %v9109, %v9351
      %v9425 = vadd.f32 %v9110, %v9353
      %v9426 = vadd.f32 %v9111, %v9356
      %v9427 = vadd.f32 %v9112, %v9358
      %v9428 = vadd.f32 %v9113, %v9361
      %v9429 = vadd.f32 %v9114, %v9363
      %v9430 = vadd.f32 %v9115, %v9366
      %v9431 = vadd.f32 %v9116, %v9368
      %v9432 = vadd.f32 %v9117, %v9371
      %v9433 = vadd.f32 %v9118, %v9373
      %v9434 = vadd.f32 %v9119, %v9376
      %v9435 = vadd.f32 %v9120, %v9378
      %v9436 = vadd.f32 %v9121, %v9381
      %v9437 = vadd.f32 %v9122, %v9383
      %v9438 = vadd.f32 %v9123, %v9386
      %v9439 = vadd.f32 %v9124, %v9388
      %v9440 = vadd.f32 %v9125, %v9391
      %v9441 = vadd.f32 %v9126, %v9393
      %v9442 = vadd.f32 %v9127, %v9396
      %v9443 = vadd.f32 %v9128, %v9398
      %v9444 = vadd.f32 %v9129, %v9401
      %v9445 = vadd.f32 %v9130, %v9403
      %v9446 = vadd.f32 %v9131, %v9406
      %v9447 = vadd.f32 %v9132, %v9408
      %v9448 = vadd.f32 %v9133, %v9411
      %v9449 = vadd.f32 %v9134, %v9413
      %v9450 = vadd.f32 %v9135, %v9416
      %v9451 = vadd.f32 %v9136, %v9418
      %s9452 = scalar_lea.vmem [#allocation3], 152
      %v9453 = vld [vmem:[%s9452] sm:$0xf]
      %v9454 = vld [vmem:[%s9452 + $0x4] sm:$0xf]
      %v9455 = vld [vmem:[%s9452 + $0x8] sm:$0xf]
      %v9456 = vld [vmem:[%s9452 + $0xc] sm:$0xf]
      %v9457 = vld [vmem:[%s9452 + $0x10] sm:$0xf]
      %v9458 = vld [vmem:[%s9452 + $0x14] sm:$0xf]
      %v9459 = vld [vmem:[%s9452 + $0x18] sm:$0xf]
      %v9460 = vld [vmem:[%s9452 + $0x1c] sm:$0xf]
      %v9461 = vld [vmem:[%s9452 + $0x20] sm:$0xf]
      %v9462 = vld [vmem:[%s9452 + $0x24] sm:$0xf]
      %v9463 = vld [vmem:[%s9452 + $0x28] sm:$0xf]
      %v9464 = vld [vmem:[%s9452 + $0x2c] sm:$0xf]
      %v9465 = vld [vmem:[%s9452 + $0x30] sm:$0xf]
      %v9466 = vld [vmem:[%s9452 + $0x34] sm:$0xf]
      %v9467 = vld [vmem:[%s9452 + $0x38] sm:$0xf]
      %v9468 = vld [vmem:[%s9452 + $0x3c] sm:$0xf]
      %v9469 = vld [vmem:[%s9452 + $0x40] sm:$0xf]
      %v9470 = vld [vmem:[%s9452 + $0x44] sm:$0xf]
      %v9471 = vld [vmem:[%s9452 + $0x48] sm:$0xf]
      %v9472 = vld [vmem:[%s9452 + $0x4c] sm:$0xf]
      %v9473 = vld [vmem:[%s9452 + $0x50] sm:$0xf]
      %v9474 = vld [vmem:[%s9452 + $0x54] sm:$0xf]
      %v9475 = vld [vmem:[%s9452 + $0x58] sm:$0xf]
      %v9476 = vld [vmem:[%s9452 + $0x5c] sm:$0xf]
      %v9477 = vld [vmem:[%s9452 + $0x60] sm:$0xf]
      %v9478 = vld [vmem:[%s9452 + $0x64] sm:$0xf]
      %v9479 = vld [vmem:[%s9452 + $0x68] sm:$0xf]
      %v9480 = vld [vmem:[%s9452 + $0x6c] sm:$0xf]
      %v9481 = vld [vmem:[%s9452 + $0x70] sm:$0xf]
      %v9482 = vld [vmem:[%s9452 + $0x74] sm:$0xf]
      %v9483 = vld [vmem:[%s9452 + $0x78] sm:$0xf]
      %v9484 = vld [vmem:[%s9452 + $0x7c] sm:$0xf]
      %s9485 = scalar_lea.vmem %s9, 128
      %v9486 = vld [vmem:[%s9485] sm:$0xf]
      %v9487 = vld [vmem:[%s9485 + $0x4] sm:$0xf]
      %v9488 = vld [vmem:[%s9485 + $0x8] sm:$0xf]
      %v9489 = vld [vmem:[%s9485 + $0xc] sm:$0xf]
      %v9490 = vld [vmem:[%s9485 + $0x10] sm:$0xf]
      %v9491 = vld [vmem:[%s9485 + $0x14] sm:$0xf]
      %v9492 = vld [vmem:[%s9485 + $0x18] sm:$0xf]
      %v9493 = vld [vmem:[%s9485 + $0x1c] sm:$0xf]
      %v9526 = vunpack.c.l.b16 %v9453
      %v9527 = vunpack.c.l.b16 %v9454
      %v9528 = vunpack.c.l.b16 %v9455
      %v9529 = vunpack.c.l.b16 %v9456
      %v9530 = vunpack.c.l.b16 %v9457
      %v9531 = vunpack.c.l.b16 %v9458
      %v9532 = vunpack.c.l.b16 %v9459
      %v9533 = vunpack.c.l.b16 %v9460
      %v9534 = vunpack.c.l.b16 %v9461
      %v9535 = vunpack.c.l.b16 %v9462
      %v9536 = vunpack.c.l.b16 %v9463
      %v9537 = vunpack.c.l.b16 %v9464
      %v9538 = vunpack.c.l.b16 %v9465
      %v9539 = vunpack.c.l.b16 %v9466
      %v9540 = vunpack.c.l.b16 %v9467
      %v9541 = vunpack.c.l.b16 %v9468
      %v9542 = vunpack.c.l.b16 %v9469
      %v9543 = vunpack.c.l.b16 %v9470
      %v9544 = vunpack.c.l.b16 %v9471
      %v9545 = vunpack.c.l.b16 %v9472
      %v9546 = vunpack.c.l.b16 %v9473
      %v9547 = vunpack.c.l.b16 %v9474
      %v9548 = vunpack.c.l.b16 %v9475
      %v9549 = vunpack.c.l.b16 %v9476
      %v9550 = vunpack.c.l.b16 %v9477
      %v9551 = vunpack.c.l.b16 %v9478
      %v9552 = vunpack.c.l.b16 %v9479
      %v9553 = vunpack.c.l.b16 %v9480
      %v9554 = vunpack.c.l.b16 %v9481
      %v9555 = vunpack.c.l.b16 %v9482
      %v9556 = vunpack.c.l.b16 %v9483
      %v9557 = vunpack.c.l.b16 %v9484
      %v9558 = vpack.c.b16 %v9527, %v9526
      %v9559 = vpack.c.b16 %v9529, %v9528
      %v9560 = vpack.c.b16 %v9531, %v9530
      %v9561 = vpack.c.b16 %v9533, %v9532
      %v9562 = vpack.c.b16 %v9535, %v9534
      %v9563 = vpack.c.b16 %v9537, %v9536
      %v9564 = vpack.c.b16 %v9539, %v9538
      %v9565 = vpack.c.b16 %v9541, %v9540
      %v9566 = vpack.c.b16 %v9543, %v9542
      %v9567 = vpack.c.b16 %v9545, %v9544
      %v9568 = vpack.c.b16 %v9547, %v9546
      %v9569 = vpack.c.b16 %v9549, %v9548
      %v9570 = vpack.c.b16 %v9551, %v9550
      %v9571 = vpack.c.b16 %v9553, %v9552
      %v9572 = vpack.c.b16 %v9555, %v9554
      %v9573 = vpack.c.b16 %v9557, %v9556
      %v9582 = vunpack.c.l.b16 %v9486
      %v9583 = vunpack.c.l.b16 %v9487
      %v9584 = vunpack.c.l.b16 %v9488
      %v9585 = vunpack.c.l.b16 %v9489
      %v9586 = vunpack.c.l.b16 %v9490
      %v9587 = vunpack.c.l.b16 %v9491
      %v9588 = vunpack.c.l.b16 %v9492
      %v9589 = vunpack.c.l.b16 %v9493
      %v9590 = vpack.c.b16 %v9583, %v9582
      %v9591 = vpack.c.b16 %v9585, %v9584
      %v9592 = vpack.c.b16 %v9587, %v9586
      %v9593 = vpack.c.b16 %v9589, %v9588
      %v9599 = vsel %vm8444, %v9558, 0
      %v9602 = vsel %vm8444, %v9559, 0
      %v9605 = vsel %vm8444, %v9560, 0
      %v9608 = vsel %vm8444, %v9561, 0
      %v9611 = vsel %vm8444, %v9562, 0
      %v9614 = vsel %vm8444, %v9563, 0
      %v9617 = vsel %vm8444, %v9564, 0
      %v9620 = vsel %vm8444, %v9565, 0
      %v9623 = vsel %vm8444, %v9566, 0
      %v9626 = vsel %vm8444, %v9567, 0
      %v9629 = vsel %vm8444, %v9568, 0
      %v9632 = vsel %vm8444, %v9569, 0
      %v9635 = vsel %vm8444, %v9570, 0
      %v9638 = vsel %vm8444, %v9571, 0
      %v9641 = vsel %vm8444, %v9572, 0
      %v9644 = vsel %vm8444, %v9573, 0
      %9646 = vmatpush.bf16.msra.mxu0 0
      %9647 = vmatpush.bf16.msra.mxu0 0
      %9648 = vmatpush.bf16.msra.mxu0 0
      %9649 = vmatpush.bf16.msra.mxu0 0
      %9650 = vmatpush.bf16.msra.mxu0 %v9593
      %9651 = vmatpush.bf16.msra.mxu0 %v9592
      %9652 = vmatpush.bf16.msra.mxu0 %v9591
      %9653 = vmatpush.bf16.msra.mxu0 %v9590
      %9654 = vmatmul.bf16.gmra.mxu0 %v9599
      %v9655 = vpop.f32.mrf.mxu0
      %v9656 = vadd.f32 0.0, %v9655
      %v9657 = vpop.f32.mrf.mxu0
      %v9658 = vadd.f32 0.0, %v9657
      %9659 = vmatmul.bf16.gmra.mxu0 %v9602
      %v9660 = vpop.f32.mrf.mxu0
      %v9661 = vadd.f32 0.0, %v9660
      %v9662 = vpop.f32.mrf.mxu0
      %v9663 = vadd.f32 0.0, %v9662
      %9664 = vmatmul.bf16.gmra.mxu0 %v9605
      %v9665 = vpop.f32.mrf.mxu0
      %v9666 = vadd.f32 0.0, %v9665
      %v9667 = vpop.f32.mrf.mxu0
      %v9668 = vadd.f32 0.0, %v9667
      %9669 = vmatmul.bf16.gmra.mxu0 %v9608
      %v9670 = vpop.f32.mrf.mxu0
      %v9671 = vadd.f32 0.0, %v9670
      %v9672 = vpop.f32.mrf.mxu0
      %v9673 = vadd.f32 0.0, %v9672
      %9674 = vmatmul.bf16.gmra.mxu0 %v9611
      %v9675 = vpop.f32.mrf.mxu0
      %v9676 = vadd.f32 0.0, %v9675
      %v9677 = vpop.f32.mrf.mxu0
      %v9678 = vadd.f32 0.0, %v9677
      %9679 = vmatmul.bf16.gmra.mxu0 %v9614
      %v9680 = vpop.f32.mrf.mxu0
      %v9681 = vadd.f32 0.0, %v9680
      %v9682 = vpop.f32.mrf.mxu0
      %v9683 = vadd.f32 0.0, %v9682
      %9684 = vmatmul.bf16.gmra.mxu0 %v9617
      %v9685 = vpop.f32.mrf.mxu0
      %v9686 = vadd.f32 0.0, %v9685
      %v9687 = vpop.f32.mrf.mxu0
      %v9688 = vadd.f32 0.0, %v9687
      %9689 = vmatmul.bf16.gmra.mxu0 %v9620
      %v9690 = vpop.f32.mrf.mxu0
      %v9691 = vadd.f32 0.0, %v9690
      %v9692 = vpop.f32.mrf.mxu0
      %v9693 = vadd.f32 0.0, %v9692
      %9694 = vmatmul.bf16.gmra.mxu0 %v9623
      %v9695 = vpop.f32.mrf.mxu0
      %v9696 = vadd.f32 0.0, %v9695
      %v9697 = vpop.f32.mrf.mxu0
      %v9698 = vadd.f32 0.0, %v9697
      %9699 = vmatmul.bf16.gmra.mxu0 %v9626
      %v9700 = vpop.f32.mrf.mxu0
      %v9701 = vadd.f32 0.0, %v9700
      %v9702 = vpop.f32.mrf.mxu0
      %v9703 = vadd.f32 0.0, %v9702
      %9704 = vmatmul.bf16.gmra.mxu0 %v9629
      %v9705 = vpop.f32.mrf.mxu0
      %v9706 = vadd.f32 0.0, %v9705
      %v9707 = vpop.f32.mrf.mxu0
      %v9708 = vadd.f32 0.0, %v9707
      %9709 = vmatmul.bf16.gmra.mxu0 %v9632
      %v9710 = vpop.f32.mrf.mxu0
      %v9711 = vadd.f32 0.0, %v9710
      %v9712 = vpop.f32.mrf.mxu0
      %v9713 = vadd.f32 0.0, %v9712
      %9714 = vmatmul.bf16.gmra.mxu0 %v9635
      %v9715 = vpop.f32.mrf.mxu0
      %v9716 = vadd.f32 0.0, %v9715
      %v9717 = vpop.f32.mrf.mxu0
      %v9718 = vadd.f32 0.0, %v9717
      %9719 = vmatmul.bf16.gmra.mxu0 %v9638
      %v9720 = vpop.f32.mrf.mxu0
      %v9721 = vadd.f32 0.0, %v9720
      %v9722 = vpop.f32.mrf.mxu0
      %v9723 = vadd.f32 0.0, %v9722
      %9724 = vmatmul.bf16.gmra.mxu0 %v9641
      %v9725 = vpop.f32.mrf.mxu0
      %v9726 = vadd.f32 0.0, %v9725
      %v9727 = vpop.f32.mrf.mxu0
      %v9728 = vadd.f32 0.0, %v9727
      %9729 = vmatmul.bf16.gmra.mxu0 %v9644
      %v9730 = vpop.f32.mrf.mxu0
      %v9731 = vadd.f32 0.0, %v9730
      %v9732 = vpop.f32.mrf.mxu0
      %v9733 = vadd.f32 0.0, %v9732
      %9734 = vdwg.mxu0
      %v9735 = vadd.f32 %v9420, %v9656
      %v9736 = vadd.f32 %v9421, %v9658
      %v9737 = vadd.f32 %v9422, %v9661
      %v9738 = vadd.f32 %v9423, %v9663
      %v9739 = vadd.f32 %v9424, %v9666
      %v9740 = vadd.f32 %v9425, %v9668
      %v9741 = vadd.f32 %v9426, %v9671
      %v9742 = vadd.f32 %v9427, %v9673
      %v9743 = vadd.f32 %v9428, %v9676
      %v9744 = vadd.f32 %v9429, %v9678
      %v9745 = vadd.f32 %v9430, %v9681
      %v9746 = vadd.f32 %v9431, %v9683
      %v9747 = vadd.f32 %v9432, %v9686
      %v9748 = vadd.f32 %v9433, %v9688
      %v9749 = vadd.f32 %v9434, %v9691
      %v9750 = vadd.f32 %v9435, %v9693
      %v9751 = vadd.f32 %v9436, %v9696
      %v9752 = vadd.f32 %v9437, %v9698
      %v9753 = vadd.f32 %v9438, %v9701
      %v9754 = vadd.f32 %v9439, %v9703
      %v9755 = vadd.f32 %v9440, %v9706
      %v9756 = vadd.f32 %v9441, %v9708
      %v9757 = vadd.f32 %v9442, %v9711
      %v9758 = vadd.f32 %v9443, %v9713
      %v9759 = vadd.f32 %v9444, %v9716
      %v9760 = vadd.f32 %v9445, %v9718
      %v9761 = vadd.f32 %v9446, %v9721
      %v9762 = vadd.f32 %v9447, %v9723
      %v9763 = vadd.f32 %v9448, %v9726
      %v9764 = vadd.f32 %v9449, %v9728
      %v9765 = vadd.f32 %v9450, %v9731
      %v9766 = vadd.f32 %v9451, %v9733
      %s9767 = scalar_lea.vmem [#allocation3], 296
      %v9768 = vld [vmem:[%s9767] sm:$0xf]
      %v9769 = vld [vmem:[%s9767 + $0x4] sm:$0xf]
      %v9770 = vld [vmem:[%s9767 + $0x8] sm:$0xf]
      %v9771 = vld [vmem:[%s9767 + $0xc] sm:$0xf]
      %v9772 = vld [vmem:[%s9767 + $0x10] sm:$0xf]
      %v9773 = vld [vmem:[%s9767 + $0x14] sm:$0xf]
      %v9774 = vld [vmem:[%s9767 + $0x18] sm:$0xf]
      %v9775 = vld [vmem:[%s9767 + $0x1c] sm:$0xf]
      %v9776 = vld [vmem:[%s9767 + $0x20] sm:$0xf]
      %v9777 = vld [vmem:[%s9767 + $0x24] sm:$0xf]
      %v9778 = vld [vmem:[%s9767 + $0x28] sm:$0xf]
      %v9779 = vld [vmem:[%s9767 + $0x2c] sm:$0xf]
      %v9780 = vld [vmem:[%s9767 + $0x30] sm:$0xf]
      %v9781 = vld [vmem:[%s9767 + $0x34] sm:$0xf]
      %v9782 = vld [vmem:[%s9767 + $0x38] sm:$0xf]
      %v9783 = vld [vmem:[%s9767 + $0x3c] sm:$0xf]
      %v9784 = vld [vmem:[%s9767 + $0x40] sm:$0xf]
      %v9785 = vld [vmem:[%s9767 + $0x44] sm:$0xf]
      %v9786 = vld [vmem:[%s9767 + $0x48] sm:$0xf]
      %v9787 = vld [vmem:[%s9767 + $0x4c] sm:$0xf]
      %v9788 = vld [vmem:[%s9767 + $0x50] sm:$0xf]
      %v9789 = vld [vmem:[%s9767 + $0x54] sm:$0xf]
      %v9790 = vld [vmem:[%s9767 + $0x58] sm:$0xf]
      %v9791 = vld [vmem:[%s9767 + $0x5c] sm:$0xf]
      %v9792 = vld [vmem:[%s9767 + $0x60] sm:$0xf]
      %v9793 = vld [vmem:[%s9767 + $0x64] sm:$0xf]
      %v9794 = vld [vmem:[%s9767 + $0x68] sm:$0xf]
      %v9795 = vld [vmem:[%s9767 + $0x6c] sm:$0xf]
      %v9796 = vld [vmem:[%s9767 + $0x70] sm:$0xf]
      %v9797 = vld [vmem:[%s9767 + $0x74] sm:$0xf]
      %v9798 = vld [vmem:[%s9767 + $0x78] sm:$0xf]
      %v9799 = vld [vmem:[%s9767 + $0x7c] sm:$0xf]
      %s9800 = scalar_lea.vmem %s9, 160
      %v9801 = vld [vmem:[%s9800] sm:$0xf]
      %v9802 = vld [vmem:[%s9800 + $0x4] sm:$0xf]
      %v9803 = vld [vmem:[%s9800 + $0x8] sm:$0xf]
      %v9804 = vld [vmem:[%s9800 + $0xc] sm:$0xf]
      %v9805 = vld [vmem:[%s9800 + $0x10] sm:$0xf]
      %v9806 = vld [vmem:[%s9800 + $0x14] sm:$0xf]
      %v9807 = vld [vmem:[%s9800 + $0x18] sm:$0xf]
      %v9808 = vld [vmem:[%s9800 + $0x1c] sm:$0xf]
      %v9841 = vunpack.c.l.b16 %v9768
      %v9842 = vunpack.c.l.b16 %v9769
      %v9843 = vunpack.c.l.b16 %v9770
      %v9844 = vunpack.c.l.b16 %v9771
      %v9845 = vunpack.c.l.b16 %v9772
      %v9846 = vunpack.c.l.b16 %v9773
      %v9847 = vunpack.c.l.b16 %v9774
      %v9848 = vunpack.c.l.b16 %v9775
      %v9849 = vunpack.c.l.b16 %v9776
      %v9850 = vunpack.c.l.b16 %v9777
      %v9851 = vunpack.c.l.b16 %v9778
      %v9852 = vunpack.c.l.b16 %v9779
      %v9853 = vunpack.c.l.b16 %v9780
      %v9854 = vunpack.c.l.b16 %v9781
      %v9855 = vunpack.c.l.b16 %v9782
      %v9856 = vunpack.c.l.b16 %v9783
      %v9857 = vunpack.c.l.b16 %v9784
      %v9858 = vunpack.c.l.b16 %v9785
      %v9859 = vunpack.c.l.b16 %v9786
      %v9860 = vunpack.c.l.b16 %v9787
      %v9861 = vunpack.c.l.b16 %v9788
      %v9862 = vunpack.c.l.b16 %v9789
      %v9863 = vunpack.c.l.b16 %v9790
      %v9864 = vunpack.c.l.b16 %v9791
      %v9865 = vunpack.c.l.b16 %v9792
      %v9866 = vunpack.c.l.b16 %v9793
      %v9867 = vunpack.c.l.b16 %v9794
      %v9868 = vunpack.c.l.b16 %v9795
      %v9869 = vunpack.c.l.b16 %v9796
      %v9870 = vunpack.c.l.b16 %v9797
      %v9871 = vunpack.c.l.b16 %v9798
      %v9872 = vunpack.c.l.b16 %v9799
      %v9873 = vpack.c.b16 %v9842, %v9841
      %v9874 = vpack.c.b16 %v9844, %v9843
      %v9875 = vpack.c.b16 %v9846, %v9845
      %v9876 = vpack.c.b16 %v9848, %v9847
      %v9877 = vpack.c.b16 %v9850, %v9849
      %v9878 = vpack.c.b16 %v9852, %v9851
      %v9879 = vpack.c.b16 %v9854, %v9853
      %v9880 = vpack.c.b16 %v9856, %v9855
      %v9881 = vpack.c.b16 %v9858, %v9857
      %v9882 = vpack.c.b16 %v9860, %v9859
      %v9883 = vpack.c.b16 %v9862, %v9861
      %v9884 = vpack.c.b16 %v9864, %v9863
      %v9885 = vpack.c.b16 %v9866, %v9865
      %v9886 = vpack.c.b16 %v9868, %v9867
      %v9887 = vpack.c.b16 %v9870, %v9869
      %v9888 = vpack.c.b16 %v9872, %v9871
      %v9897 = vunpack.c.l.b16 %v9801
      %v9898 = vunpack.c.l.b16 %v9802
      %v9899 = vunpack.c.l.b16 %v9803
      %v9900 = vunpack.c.l.b16 %v9804
      %v9901 = vunpack.c.l.b16 %v9805
      %v9902 = vunpack.c.l.b16 %v9806
      %v9903 = vunpack.c.l.b16 %v9807
      %v9904 = vunpack.c.l.b16 %v9808
      %v9905 = vpack.c.b16 %v9898, %v9897
      %v9906 = vpack.c.b16 %v9900, %v9899
      %v9907 = vpack.c.b16 %v9902, %v9901
      %v9908 = vpack.c.b16 %v9904, %v9903
      %v9914 = vsel %vm8444, %v9873, 0
      %v9917 = vsel %vm8444, %v9874, 0
      %v9920 = vsel %vm8444, %v9875, 0
      %v9923 = vsel %vm8444, %v9876, 0
      %v9926 = vsel %vm8444, %v9877, 0
      %v9929 = vsel %vm8444, %v9878, 0
      %v9932 = vsel %vm8444, %v9879, 0
      %v9935 = vsel %vm8444, %v9880, 0
      %v9938 = vsel %vm8444, %v9881, 0
      %v9941 = vsel %vm8444, %v9882, 0
      %v9944 = vsel %vm8444, %v9883, 0
      %v9947 = vsel %vm8444, %v9884, 0
      %v9950 = vsel %vm8444, %v9885, 0
      %v9953 = vsel %vm8444, %v9886, 0
      %v9956 = vsel %vm8444, %v9887, 0
      %v9959 = vsel %vm8444, %v9888, 0
      %9961 = vmatpush.bf16.msra.mxu0 0
      %9962 = vmatpush.bf16.msra.mxu0 0
      %9963 = vmatpush.bf16.msra.mxu0 0
      %9964 = vmatpush.bf16.msra.mxu0 0
      %9965 = vmatpush.bf16.msra.mxu0 %v9908
      %9966 = vmatpush.bf16.msra.mxu0 %v9907
      %9967 = vmatpush.bf16.msra.mxu0 %v9906
      %9968 = vmatpush.bf16.msra.mxu0 %v9905
      %9969 = vmatmul.bf16.gmra.mxu0 %v9914
      %v9970 = vpop.f32.mrf.mxu0
      %v9971 = vadd.f32 0.0, %v9970
      %v9972 = vpop.f32.mrf.mxu0
      %v9973 = vadd.f32 0.0, %v9972
      %9974 = vmatmul.bf16.gmra.mxu0 %v9917
      %v9975 = vpop.f32.mrf.mxu0
      %v9976 = vadd.f32 0.0, %v9975
      %v9977 = vpop.f32.mrf.mxu0
      %v9978 = vadd.f32 0.0, %v9977
      %9979 = vmatmul.bf16.gmra.mxu0 %v9920
      %v9980 = vpop.f32.mrf.mxu0
      %v9981 = vadd.f32 0.0, %v9980
      %v9982 = vpop.f32.mrf.mxu0
      %v9983 = vadd.f32 0.0, %v9982
      %9984 = vmatmul.bf16.gmra.mxu0 %v9923
      %v9985 = vpop.f32.mrf.mxu0
      %v9986 = vadd.f32 0.0, %v9985
      %v9987 = vpop.f32.mrf.mxu0
      %v9988 = vadd.f32 0.0, %v9987
      %9989 = vmatmul.bf16.gmra.mxu0 %v9926
      %v9990 = vpop.f32.mrf.mxu0
      %v9991 = vadd.f32 0.0, %v9990
      %v9992 = vpop.f32.mrf.mxu0
      %v9993 = vadd.f32 0.0, %v9992
      %9994 = vmatmul.bf16.gmra.mxu0 %v9929
      %v9995 = vpop.f32.mrf.mxu0
      %v9996 = vadd.f32 0.0, %v9995
      %v9997 = vpop.f32.mrf.mxu0
      %v9998 = vadd.f32 0.0, %v9997
      %9999 = vmatmul.bf16.gmra.mxu0 %v9932
      %v10000 = vpop.f32.mrf.mxu0
      %v10001 = vadd.f32 0.0, %v10000
      %v10002 = vpop.f32.mrf.mxu0
      %v10003 = vadd.f32 0.0, %v10002
      %10004 = vmatmul.bf16.gmra.mxu0 %v9935
      %v10005 = vpop.f32.mrf.mxu0
      %v10006 = vadd.f32 0.0, %v10005
      %v10007 = vpop.f32.mrf.mxu0
      %v10008 = vadd.f32 0.0, %v10007
      %10009 = vmatmul.bf16.gmra.mxu0 %v9938
      %v10010 = vpop.f32.mrf.mxu0
      %v10011 = vadd.f32 0.0, %v10010
      %v10012 = vpop.f32.mrf.mxu0
      %v10013 = vadd.f32 0.0, %v10012
      %10014 = vmatmul.bf16.gmra.mxu0 %v9941
      %v10015 = vpop.f32.mrf.mxu0
      %v10016 = vadd.f32 0.0, %v10015
      %v10017 = vpop.f32.mrf.mxu0
      %v10018 = vadd.f32 0.0, %v10017
      %10019 = vmatmul.bf16.gmra.mxu0 %v9944
      %v10020 = vpop.f32.mrf.mxu0
      %v10021 = vadd.f32 0.0, %v10020
      %v10022 = vpop.f32.mrf.mxu0
      %v10023 = vadd.f32 0.0, %v10022
      %10024 = vmatmul.bf16.gmra.mxu0 %v9947
      %v10025 = vpop.f32.mrf.mxu0
      %v10026 = vadd.f32 0.0, %v10025
      %v10027 = vpop.f32.mrf.mxu0
      %v10028 = vadd.f32 0.0, %v10027
      %10029 = vmatmul.bf16.gmra.mxu0 %v9950
      %v10030 = vpop.f32.mrf.mxu0
      %v10031 = vadd.f32 0.0, %v10030
      %v10032 = vpop.f32.mrf.mxu0
      %v10033 = vadd.f32 0.0, %v10032
      %10034 = vmatmul.bf16.gmra.mxu0 %v9953
      %v10035 = vpop.f32.mrf.mxu0
      %v10036 = vadd.f32 0.0, %v10035
      %v10037 = vpop.f32.mrf.mxu0
      %v10038 = vadd.f32 0.0, %v10037
      %10039 = vmatmul.bf16.gmra.mxu0 %v9956
      %v10040 = vpop.f32.mrf.mxu0
      %v10041 = vadd.f32 0.0, %v10040
      %v10042 = vpop.f32.mrf.mxu0
      %v10043 = vadd.f32 0.0, %v10042
      %10044 = vmatmul.bf16.gmra.mxu0 %v9959
      %v10045 = vpop.f32.mrf.mxu0
      %v10046 = vadd.f32 0.0, %v10045
      %v10047 = vpop.f32.mrf.mxu0
      %v10048 = vadd.f32 0.0, %v10047
      %10049 = vdwg.mxu0
      %v10050 = vadd.f32 %v9735, %v9971
      %v10051 = vadd.f32 %v9736, %v9973
      %v10052 = vadd.f32 %v9737, %v9976
      %v10053 = vadd.f32 %v9738, %v9978
      %v10054 = vadd.f32 %v9739, %v9981
      %v10055 = vadd.f32 %v9740, %v9983
      %v10056 = vadd.f32 %v9741, %v9986
      %v10057 = vadd.f32 %v9742, %v9988
      %v10058 = vadd.f32 %v9743, %v9991
      %v10059 = vadd.f32 %v9744, %v9993
      %v10060 = vadd.f32 %v9745, %v9996
      %v10061 = vadd.f32 %v9746, %v9998
      %v10062 = vadd.f32 %v9747, %v10001
      %v10063 = vadd.f32 %v9748, %v10003
      %v10064 = vadd.f32 %v9749, %v10006
      %v10065 = vadd.f32 %v9750, %v10008
      %v10066 = vadd.f32 %v9751, %v10011
      %v10067 = vadd.f32 %v9752, %v10013
      %v10068 = vadd.f32 %v9753, %v10016
      %v10069 = vadd.f32 %v9754, %v10018
      %v10070 = vadd.f32 %v9755, %v10021
      %v10071 = vadd.f32 %v9756, %v10023
      %v10072 = vadd.f32 %v9757, %v10026
      %v10073 = vadd.f32 %v9758, %v10028
      %v10074 = vadd.f32 %v9759, %v10031
      %v10075 = vadd.f32 %v9760, %v10033
      %v10076 = vadd.f32 %v9761, %v10036
      %v10077 = vadd.f32 %v9762, %v10038
      %v10078 = vadd.f32 %v9763, %v10041
      %v10079 = vadd.f32 %v9764, %v10043
      %v10080 = vadd.f32 %v9765, %v10046
      %v10081 = vadd.f32 %v9766, %v10048
      %s10082 = scalar_lea.vmem [#allocation3], 16
      %v10083 = vld [vmem:[%s10082] sm:$0xf]
      %v10084 = vld [vmem:[%s10082 + $0x4] sm:$0xf]
      %v10085 = vld [vmem:[%s10082 + $0x8] sm:$0xf]
      %v10086 = vld [vmem:[%s10082 + $0xc] sm:$0xf]
      %v10087 = vld [vmem:[%s10082 + $0x10] sm:$0xf]
      %v10088 = vld [vmem:[%s10082 + $0x14] sm:$0xf]
      %v10089 = vld [vmem:[%s10082 + $0x18] sm:$0xf]
      %v10090 = vld [vmem:[%s10082 + $0x1c] sm:$0xf]
      %v10091 = vld [vmem:[%s10082 + $0x20] sm:$0xf]
      %v10092 = vld [vmem:[%s10082 + $0x24] sm:$0xf]
      %v10093 = vld [vmem:[%s10082 + $0x28] sm:$0xf]
      %v10094 = vld [vmem:[%s10082 + $0x2c] sm:$0xf]
      %v10095 = vld [vmem:[%s10082 + $0x30] sm:$0xf]
      %v10096 = vld [vmem:[%s10082 + $0x34] sm:$0xf]
      %v10097 = vld [vmem:[%s10082 + $0x38] sm:$0xf]
      %v10098 = vld [vmem:[%s10082 + $0x3c] sm:$0xf]
      %v10099 = vld [vmem:[%s10082 + $0x40] sm:$0xf]
      %v10100 = vld [vmem:[%s10082 + $0x44] sm:$0xf]
      %v10101 = vld [vmem:[%s10082 + $0x48] sm:$0xf]
      %v10102 = vld [vmem:[%s10082 + $0x4c] sm:$0xf]
      %v10103 = vld [vmem:[%s10082 + $0x50] sm:$0xf]
      %v10104 = vld [vmem:[%s10082 + $0x54] sm:$0xf]
      %v10105 = vld [vmem:[%s10082 + $0x58] sm:$0xf]
      %v10106 = vld [vmem:[%s10082 + $0x5c] sm:$0xf]
      %v10107 = vld [vmem:[%s10082 + $0x60] sm:$0xf]
      %v10108 = vld [vmem:[%s10082 + $0x64] sm:$0xf]
      %v10109 = vld [vmem:[%s10082 + $0x68] sm:$0xf]
      %v10110 = vld [vmem:[%s10082 + $0x6c] sm:$0xf]
      %v10111 = vld [vmem:[%s10082 + $0x70] sm:$0xf]
      %v10112 = vld [vmem:[%s10082 + $0x74] sm:$0xf]
      %v10113 = vld [vmem:[%s10082 + $0x78] sm:$0xf]
      %v10114 = vld [vmem:[%s10082 + $0x7c] sm:$0xf]
      %s10115 = scalar_lea.vmem %s9, 192
      %v10116 = vld [vmem:[%s10115] sm:$0xf]
      %v10117 = vld [vmem:[%s10115 + $0x4] sm:$0xf]
      %v10118 = vld [vmem:[%s10115 + $0x8] sm:$0xf]
      %v10119 = vld [vmem:[%s10115 + $0xc] sm:$0xf]
      %v10120 = vld [vmem:[%s10115 + $0x10] sm:$0xf]
      %v10121 = vld [vmem:[%s10115 + $0x14] sm:$0xf]
      %v10122 = vld [vmem:[%s10115 + $0x18] sm:$0xf]
      %v10123 = vld [vmem:[%s10115 + $0x1c] sm:$0xf]
      %v10156 = vunpack.c.l.b16 %v10083
      %v10157 = vunpack.c.l.b16 %v10084
      %v10158 = vunpack.c.l.b16 %v10085
      %v10159 = vunpack.c.l.b16 %v10086
      %v10160 = vunpack.c.l.b16 %v10087
      %v10161 = vunpack.c.l.b16 %v10088
      %v10162 = vunpack.c.l.b16 %v10089
      %v10163 = vunpack.c.l.b16 %v10090
      %v10164 = vunpack.c.l.b16 %v10091
      %v10165 = vunpack.c.l.b16 %v10092
      %v10166 = vunpack.c.l.b16 %v10093
      %v10167 = vunpack.c.l.b16 %v10094
      %v10168 = vunpack.c.l.b16 %v10095
      %v10169 = vunpack.c.l.b16 %v10096
      %v10170 = vunpack.c.l.b16 %v10097
      %v10171 = vunpack.c.l.b16 %v10098
      %v10172 = vunpack.c.l.b16 %v10099
      %v10173 = vunpack.c.l.b16 %v10100
      %v10174 = vunpack.c.l.b16 %v10101
      %v10175 = vunpack.c.l.b16 %v10102
      %v10176 = vunpack.c.l.b16 %v10103
      %v10177 = vunpack.c.l.b16 %v10104
      %v10178 = vunpack.c.l.b16 %v10105
      %v10179 = vunpack.c.l.b16 %v10106
      %v10180 = vunpack.c.l.b16 %v10107
      %v10181 = vunpack.c.l.b16 %v10108
      %v10182 = vunpack.c.l.b16 %v10109
      %v10183 = vunpack.c.l.b16 %v10110
      %v10184 = vunpack.c.l.b16 %v10111
      %v10185 = vunpack.c.l.b16 %v10112
      %v10186 = vunpack.c.l.b16 %v10113
      %v10187 = vunpack.c.l.b16 %v10114
      %v10188 = vpack.c.b16 %v10157, %v10156
      %v10189 = vpack.c.b16 %v10159, %v10158
      %v10190 = vpack.c.b16 %v10161, %v10160
      %v10191 = vpack.c.b16 %v10163, %v10162
      %v10192 = vpack.c.b16 %v10165, %v10164
      %v10193 = vpack.c.b16 %v10167, %v10166
      %v10194 = vpack.c.b16 %v10169, %v10168
      %v10195 = vpack.c.b16 %v10171, %v10170
      %v10196 = vpack.c.b16 %v10173, %v10172
      %v10197 = vpack.c.b16 %v10175, %v10174
      %v10198 = vpack.c.b16 %v10177, %v10176
      %v10199 = vpack.c.b16 %v10179, %v10178
      %v10200 = vpack.c.b16 %v10181, %v10180
      %v10201 = vpack.c.b16 %v10183, %v10182
      %v10202 = vpack.c.b16 %v10185, %v10184
      %v10203 = vpack.c.b16 %v10187, %v10186
      %v10212 = vunpack.c.l.b16 %v10116
      %v10213 = vunpack.c.l.b16 %v10117
      %v10214 = vunpack.c.l.b16 %v10118
      %v10215 = vunpack.c.l.b16 %v10119
      %v10216 = vunpack.c.l.b16 %v10120
      %v10217 = vunpack.c.l.b16 %v10121
      %v10218 = vunpack.c.l.b16 %v10122
      %v10219 = vunpack.c.l.b16 %v10123
      %v10220 = vpack.c.b16 %v10213, %v10212
      %v10221 = vpack.c.b16 %v10215, %v10214
      %v10222 = vpack.c.b16 %v10217, %v10216
      %v10223 = vpack.c.b16 %v10219, %v10218
      %v10229 = vsel %vm8444, %v10188, 0
      %v10232 = vsel %vm8444, %v10189, 0
      %v10235 = vsel %vm8444, %v10190, 0
      %v10238 = vsel %vm8444, %v10191, 0
      %v10241 = vsel %vm8444, %v10192, 0
      %v10244 = vsel %vm8444, %v10193, 0
      %v10247 = vsel %vm8444, %v10194, 0
      %v10250 = vsel %vm8444, %v10195, 0
      %v10253 = vsel %vm8444, %v10196, 0
      %v10256 = vsel %vm8444, %v10197, 0
      %v10259 = vsel %vm8444, %v10198, 0
      %v10262 = vsel %vm8444, %v10199, 0
      %v10265 = vsel %vm8444, %v10200, 0
      %v10268 = vsel %vm8444, %v10201, 0
      %v10271 = vsel %vm8444, %v10202, 0
      %v10274 = vsel %vm8444, %v10203, 0
      %10276 = vmatpush.bf16.msra.mxu0 0
      %10277 = vmatpush.bf16.msra.mxu0 0
      %10278 = vmatpush.bf16.msra.mxu0 0
      %10279 = vmatpush.bf16.msra.mxu0 0
      %10280 = vmatpush.bf16.msra.mxu0 %v10223
      %10281 = vmatpush.bf16.msra.mxu0 %v10222
      %10282 = vmatpush.bf16.msra.mxu0 %v10221
      %10283 = vmatpush.bf16.msra.mxu0 %v10220
      %10284 = vmatmul.bf16.gmra.mxu0 %v10229
      %v10285 = vpop.f32.mrf.mxu0
      %v10286 = vadd.f32 0.0, %v10285
      %v10287 = vpop.f32.mrf.mxu0
      %v10288 = vadd.f32 0.0, %v10287
      %10289 = vmatmul.bf16.gmra.mxu0 %v10232
      %v10290 = vpop.f32.mrf.mxu0
      %v10291 = vadd.f32 0.0, %v10290
      %v10292 = vpop.f32.mrf.mxu0
      %v10293 = vadd.f32 0.0, %v10292
      %10294 = vmatmul.bf16.gmra.mxu0 %v10235
      %v10295 = vpop.f32.mrf.mxu0
      %v10296 = vadd.f32 0.0, %v10295
      %v10297 = vpop.f32.mrf.mxu0
      %v10298 = vadd.f32 0.0, %v10297
      %10299 = vmatmul.bf16.gmra.mxu0 %v10238
      %v10300 = vpop.f32.mrf.mxu0
      %v10301 = vadd.f32 0.0, %v10300
      %v10302 = vpop.f32.mrf.mxu0
      %v10303 = vadd.f32 0.0, %v10302
      %10304 = vmatmul.bf16.gmra.mxu0 %v10241
      %v10305 = vpop.f32.mrf.mxu0
      %v10306 = vadd.f32 0.0, %v10305
      %v10307 = vpop.f32.mrf.mxu0
      %v10308 = vadd.f32 0.0, %v10307
      %10309 = vmatmul.bf16.gmra.mxu0 %v10244
      %v10310 = vpop.f32.mrf.mxu0
      %v10311 = vadd.f32 0.0, %v10310
      %v10312 = vpop.f32.mrf.mxu0
      %v10313 = vadd.f32 0.0, %v10312
      %10314 = vmatmul.bf16.gmra.mxu0 %v10247
      %v10315 = vpop.f32.mrf.mxu0
      %v10316 = vadd.f32 0.0, %v10315
      %v10317 = vpop.f32.mrf.mxu0
      %v10318 = vadd.f32 0.0, %v10317
      %10319 = vmatmul.bf16.gmra.mxu0 %v10250
      %v10320 = vpop.f32.mrf.mxu0
      %v10321 = vadd.f32 0.0, %v10320
      %v10322 = vpop.f32.mrf.mxu0
      %v10323 = vadd.f32 0.0, %v10322
      %10324 = vmatmul.bf16.gmra.mxu0 %v10253
      %v10325 = vpop.f32.mrf.mxu0
      %v10326 = vadd.f32 0.0, %v10325
      %v10327 = vpop.f32.mrf.mxu0
      %v10328 = vadd.f32 0.0, %v10327
      %10329 = vmatmul.bf16.gmra.mxu0 %v10256
      %v10330 = vpop.f32.mrf.mxu0
      %v10331 = vadd.f32 0.0, %v10330
      %v10332 = vpop.f32.mrf.mxu0
      %v10333 = vadd.f32 0.0, %v10332
      %10334 = vmatmul.bf16.gmra.mxu0 %v10259
      %v10335 = vpop.f32.mrf.mxu0
      %v10336 = vadd.f32 0.0, %v10335
      %v10337 = vpop.f32.mrf.mxu0
      %v10338 = vadd.f32 0.0, %v10337
      %10339 = vmatmul.bf16.gmra.mxu0 %v10262
      %v10340 = vpop.f32.mrf.mxu0
      %v10341 = vadd.f32 0.0, %v10340
      %v10342 = vpop.f32.mrf.mxu0
      %v10343 = vadd.f32 0.0, %v10342
      %10344 = vmatmul.bf16.gmra.mxu0 %v10265
      %v10345 = vpop.f32.mrf.mxu0
      %v10346 = vadd.f32 0.0, %v10345
      %v10347 = vpop.f32.mrf.mxu0
      %v10348 = vadd.f32 0.0, %v10347
      %10349 = vmatmul.bf16.gmra.mxu0 %v10268
      %v10350 = vpop.f32.mrf.mxu0
      %v10351 = vadd.f32 0.0, %v10350
      %v10352 = vpop.f32.mrf.mxu0
      %v10353 = vadd.f32 0.0, %v10352
      %10354 = vmatmul.bf16.gmra.mxu0 %v10271
      %v10355 = vpop.f32.mrf.mxu0
      %v10356 = vadd.f32 0.0, %v10355
      %v10357 = vpop.f32.mrf.mxu0
      %v10358 = vadd.f32 0.0, %v10357
      %10359 = vmatmul.bf16.gmra.mxu0 %v10274
      %v10360 = vpop.f32.mrf.mxu0
      %v10361 = vadd.f32 0.0, %v10360
      %v10362 = vpop.f32.mrf.mxu0
      %v10363 = vadd.f32 0.0, %v10362
      %10364 = vdwg.mxu0
      %v10365 = vadd.f32 %v10050, %v10286
      %v10366 = vadd.f32 %v10051, %v10288
      %v10367 = vadd.f32 %v10052, %v10291
      %v10368 = vadd.f32 %v10053, %v10293
      %v10369 = vadd.f32 %v10054, %v10296
      %v10370 = vadd.f32 %v10055, %v10298
      %v10371 = vadd.f32 %v10056, %v10301
      %v10372 = vadd.f32 %v10057, %v10303
      %v10373 = vadd.f32 %v10058, %v10306
      %v10374 = vadd.f32 %v10059, %v10308
      %v10375 = vadd.f32 %v10060, %v10311
      %v10376 = vadd.f32 %v10061, %v10313
      %v10377 = vadd.f32 %v10062, %v10316
      %v10378 = vadd.f32 %v10063, %v10318
      %v10379 = vadd.f32 %v10064, %v10321
      %v10380 = vadd.f32 %v10065, %v10323
      %v10381 = vadd.f32 %v10066, %v10326
      %v10382 = vadd.f32 %v10067, %v10328
      %v10383 = vadd.f32 %v10068, %v10331
      %v10384 = vadd.f32 %v10069, %v10333
      %v10385 = vadd.f32 %v10070, %v10336
      %v10386 = vadd.f32 %v10071, %v10338
      %v10387 = vadd.f32 %v10072, %v10341
      %v10388 = vadd.f32 %v10073, %v10343
      %v10389 = vadd.f32 %v10074, %v10346
      %v10390 = vadd.f32 %v10075, %v10348
      %v10391 = vadd.f32 %v10076, %v10351
      %v10392 = vadd.f32 %v10077, %v10353
      %v10393 = vadd.f32 %v10078, %v10356
      %v10394 = vadd.f32 %v10079, %v10358
      %v10395 = vadd.f32 %v10080, %v10361
      %v10396 = vadd.f32 %v10081, %v10363
      %s10397 = scalar_lea.vmem [#allocation3], 160
      %v10398 = vld [vmem:[%s10397] sm:$0xf]
      %v10399 = vld [vmem:[%s10397 + $0x4] sm:$0xf]
      %v10400 = vld [vmem:[%s10397 + $0x8] sm:$0xf]
      %v10401 = vld [vmem:[%s10397 + $0xc] sm:$0xf]
      %v10402 = vld [vmem:[%s10397 + $0x10] sm:$0xf]
      %v10403 = vld [vmem:[%s10397 + $0x14] sm:$0xf]
      %v10404 = vld [vmem:[%s10397 + $0x18] sm:$0xf]
      %v10405 = vld [vmem:[%s10397 + $0x1c] sm:$0xf]
      %v10406 = vld [vmem:[%s10397 + $0x20] sm:$0xf]
      %v10407 = vld [vmem:[%s10397 + $0x24] sm:$0xf]
      %v10408 = vld [vmem:[%s10397 + $0x28] sm:$0xf]
      %v10409 = vld [vmem:[%s10397 + $0x2c] sm:$0xf]
      %v10410 = vld [vmem:[%s10397 + $0x30] sm:$0xf]
      %v10411 = vld [vmem:[%s10397 + $0x34] sm:$0xf]
      %v10412 = vld [vmem:[%s10397 + $0x38] sm:$0xf]
      %v10413 = vld [vmem:[%s10397 + $0x3c] sm:$0xf]
      %v10414 = vld [vmem:[%s10397 + $0x40] sm:$0xf]
      %v10415 = vld [vmem:[%s10397 + $0x44] sm:$0xf]
      %v10416 = vld [vmem:[%s10397 + $0x48] sm:$0xf]
      %v10417 = vld [vmem:[%s10397 + $0x4c] sm:$0xf]
      %v10418 = vld [vmem:[%s10397 + $0x50] sm:$0xf]
      %v10419 = vld [vmem:[%s10397 + $0x54] sm:$0xf]
      %v10420 = vld [vmem:[%s10397 + $0x58] sm:$0xf]
      %v10421 = vld [vmem:[%s10397 + $0x5c] sm:$0xf]
      %v10422 = vld [vmem:[%s10397 + $0x60] sm:$0xf]
      %v10423 = vld [vmem:[%s10397 + $0x64] sm:$0xf]
      %v10424 = vld [vmem:[%s10397 + $0x68] sm:$0xf]
      %v10425 = vld [vmem:[%s10397 + $0x6c] sm:$0xf]
      %v10426 = vld [vmem:[%s10397 + $0x70] sm:$0xf]
      %v10427 = vld [vmem:[%s10397 + $0x74] sm:$0xf]
      %v10428 = vld [vmem:[%s10397 + $0x78] sm:$0xf]
      %v10429 = vld [vmem:[%s10397 + $0x7c] sm:$0xf]
      %s10430 = scalar_lea.vmem %s9, 224
      %v10431 = vld [vmem:[%s10430] sm:$0xf]
      %v10432 = vld [vmem:[%s10430 + $0x4] sm:$0xf]
      %v10433 = vld [vmem:[%s10430 + $0x8] sm:$0xf]
      %v10434 = vld [vmem:[%s10430 + $0xc] sm:$0xf]
      %v10435 = vld [vmem:[%s10430 + $0x10] sm:$0xf]
      %v10436 = vld [vmem:[%s10430 + $0x14] sm:$0xf]
      %v10437 = vld [vmem:[%s10430 + $0x18] sm:$0xf]
      %v10438 = vld [vmem:[%s10430 + $0x1c] sm:$0xf]
      %v10471 = vunpack.c.l.b16 %v10398
      %v10472 = vunpack.c.l.b16 %v10399
      %v10473 = vunpack.c.l.b16 %v10400
      %v10474 = vunpack.c.l.b16 %v10401
      %v10475 = vunpack.c.l.b16 %v10402
      %v10476 = vunpack.c.l.b16 %v10403
      %v10477 = vunpack.c.l.b16 %v10404
      %v10478 = vunpack.c.l.b16 %v10405
      %v10479 = vunpack.c.l.b16 %v10406
      %v10480 = vunpack.c.l.b16 %v10407
      %v10481 = vunpack.c.l.b16 %v10408
      %v10482 = vunpack.c.l.b16 %v10409
      %v10483 = vunpack.c.l.b16 %v10410
      %v10484 = vunpack.c.l.b16 %v10411
      %v10485 = vunpack.c.l.b16 %v10412
      %v10486 = vunpack.c.l.b16 %v10413
      %v10487 = vunpack.c.l.b16 %v10414
      %v10488 = vunpack.c.l.b16 %v10415
      %v10489 = vunpack.c.l.b16 %v10416
      %v10490 = vunpack.c.l.b16 %v10417
      %v10491 = vunpack.c.l.b16 %v10418
      %v10492 = vunpack.c.l.b16 %v10419
      %v10493 = vunpack.c.l.b16 %v10420
      %v10494 = vunpack.c.l.b16 %v10421
      %v10495 = vunpack.c.l.b16 %v10422
      %v10496 = vunpack.c.l.b16 %v10423
      %v10497 = vunpack.c.l.b16 %v10424
      %v10498 = vunpack.c.l.b16 %v10425
      %v10499 = vunpack.c.l.b16 %v10426
      %v10500 = vunpack.c.l.b16 %v10427
      %v10501 = vunpack.c.l.b16 %v10428
      %v10502 = vunpack.c.l.b16 %v10429
      %v10503 = vpack.c.b16 %v10472, %v10471
      %v10504 = vpack.c.b16 %v10474, %v10473
      %v10505 = vpack.c.b16 %v10476, %v10475
      %v10506 = vpack.c.b16 %v10478, %v10477
      %v10507 = vpack.c.b16 %v10480, %v10479
      %v10508 = vpack.c.b16 %v10482, %v10481
      %v10509 = vpack.c.b16 %v10484, %v10483
      %v10510 = vpack.c.b16 %v10486, %v10485
      %v10511 = vpack.c.b16 %v10488, %v10487
      %v10512 = vpack.c.b16 %v10490, %v10489
      %v10513 = vpack.c.b16 %v10492, %v10491
      %v10514 = vpack.c.b16 %v10494, %v10493
      %v10515 = vpack.c.b16 %v10496, %v10495
      %v10516 = vpack.c.b16 %v10498, %v10497
      %v10517 = vpack.c.b16 %v10500, %v10499
      %v10518 = vpack.c.b16 %v10502, %v10501
      %v10527 = vunpack.c.l.b16 %v10431
      %v10528 = vunpack.c.l.b16 %v10432
      %v10529 = vunpack.c.l.b16 %v10433
      %v10530 = vunpack.c.l.b16 %v10434
      %v10531 = vunpack.c.l.b16 %v10435
      %v10532 = vunpack.c.l.b16 %v10436
      %v10533 = vunpack.c.l.b16 %v10437
      %v10534 = vunpack.c.l.b16 %v10438
      %v10535 = vpack.c.b16 %v10528, %v10527
      %v10536 = vpack.c.b16 %v10530, %v10529
      %v10537 = vpack.c.b16 %v10532, %v10531
      %v10538 = vpack.c.b16 %v10534, %v10533
      %v10544 = vsel %vm8444, %v10503, 0
      %v10547 = vsel %vm8444, %v10504, 0
      %v10550 = vsel %vm8444, %v10505, 0
      %v10553 = vsel %vm8444, %v10506, 0
      %v10556 = vsel %vm8444, %v10507, 0
      %v10559 = vsel %vm8444, %v10508, 0
      %v10562 = vsel %vm8444, %v10509, 0
      %v10565 = vsel %vm8444, %v10510, 0
      %v10568 = vsel %vm8444, %v10511, 0
      %v10571 = vsel %vm8444, %v10512, 0
      %v10574 = vsel %vm8444, %v10513, 0
      %v10577 = vsel %vm8444, %v10514, 0
      %v10580 = vsel %vm8444, %v10515, 0
      %v10583 = vsel %vm8444, %v10516, 0
      %v10586 = vsel %vm8444, %v10517, 0
      %v10589 = vsel %vm8444, %v10518, 0
      %10591 = vmatpush.bf16.msra.mxu0 0
      %10592 = vmatpush.bf16.msra.mxu0 0
      %10593 = vmatpush.bf16.msra.mxu0 0
      %10594 = vmatpush.bf16.msra.mxu0 0
      %10595 = vmatpush.bf16.msra.mxu0 %v10538
      %10596 = vmatpush.bf16.msra.mxu0 %v10537
      %10597 = vmatpush.bf16.msra.mxu0 %v10536
      %10598 = vmatpush.bf16.msra.mxu0 %v10535
      %10599 = vmatmul.bf16.gmra.mxu0 %v10544
      %v10600 = vpop.f32.mrf.mxu0
      %v10601 = vadd.f32 0.0, %v10600
      %v10602 = vpop.f32.mrf.mxu0
      %v10603 = vadd.f32 0.0, %v10602
      %10604 = vmatmul.bf16.gmra.mxu0 %v10547
      %v10605 = vpop.f32.mrf.mxu0
      %v10606 = vadd.f32 0.0, %v10605
      %v10607 = vpop.f32.mrf.mxu0
      %v10608 = vadd.f32 0.0, %v10607
      %10609 = vmatmul.bf16.gmra.mxu0 %v10550
      %v10610 = vpop.f32.mrf.mxu0
      %v10611 = vadd.f32 0.0, %v10610
      %v10612 = vpop.f32.mrf.mxu0
      %v10613 = vadd.f32 0.0, %v10612
      %10614 = vmatmul.bf16.gmra.mxu0 %v10553
      %v10615 = vpop.f32.mrf.mxu0
      %v10616 = vadd.f32 0.0, %v10615
      %v10617 = vpop.f32.mrf.mxu0
      %v10618 = vadd.f32 0.0, %v10617
      %10619 = vmatmul.bf16.gmra.mxu0 %v10556
      %v10620 = vpop.f32.mrf.mxu0
      %v10621 = vadd.f32 0.0, %v10620
      %v10622 = vpop.f32.mrf.mxu0
      %v10623 = vadd.f32 0.0, %v10622
      %10624 = vmatmul.bf16.gmra.mxu0 %v10559
      %v10625 = vpop.f32.mrf.mxu0
      %v10626 = vadd.f32 0.0, %v10625
      %v10627 = vpop.f32.mrf.mxu0
      %v10628 = vadd.f32 0.0, %v10627
      %10629 = vmatmul.bf16.gmra.mxu0 %v10562
      %v10630 = vpop.f32.mrf.mxu0
      %v10631 = vadd.f32 0.0, %v10630
      %v10632 = vpop.f32.mrf.mxu0
      %v10633 = vadd.f32 0.0, %v10632
      %10634 = vmatmul.bf16.gmra.mxu0 %v10565
      %v10635 = vpop.f32.mrf.mxu0
      %v10636 = vadd.f32 0.0, %v10635
      %v10637 = vpop.f32.mrf.mxu0
      %v10638 = vadd.f32 0.0, %v10637
      %10639 = vmatmul.bf16.gmra.mxu0 %v10568
      %v10640 = vpop.f32.mrf.mxu0
      %v10641 = vadd.f32 0.0, %v10640
      %v10642 = vpop.f32.mrf.mxu0
      %v10643 = vadd.f32 0.0, %v10642
      %10644 = vmatmul.bf16.gmra.mxu0 %v10571
      %v10645 = vpop.f32.mrf.mxu0
      %v10646 = vadd.f32 0.0, %v10645
      %v10647 = vpop.f32.mrf.mxu0
      %v10648 = vadd.f32 0.0, %v10647
      %10649 = vmatmul.bf16.gmra.mxu0 %v10574
      %v10650 = vpop.f32.mrf.mxu0
      %v10651 = vadd.f32 0.0, %v10650
      %v10652 = vpop.f32.mrf.mxu0
      %v10653 = vadd.f32 0.0, %v10652
      %10654 = vmatmul.bf16.gmra.mxu0 %v10577
      %v10655 = vpop.f32.mrf.mxu0
      %v10656 = vadd.f32 0.0, %v10655
      %v10657 = vpop.f32.mrf.mxu0
      %v10658 = vadd.f32 0.0, %v10657
      %10659 = vmatmul.bf16.gmra.mxu0 %v10580
      %v10660 = vpop.f32.mrf.mxu0
      %v10661 = vadd.f32 0.0, %v10660
      %v10662 = vpop.f32.mrf.mxu0
      %v10663 = vadd.f32 0.0, %v10662
      %10664 = vmatmul.bf16.gmra.mxu0 %v10583
      %v10665 = vpop.f32.mrf.mxu0
      %v10666 = vadd.f32 0.0, %v10665
      %v10667 = vpop.f32.mrf.mxu0
      %v10668 = vadd.f32 0.0, %v10667
      %10669 = vmatmul.bf16.gmra.mxu0 %v10586
      %v10670 = vpop.f32.mrf.mxu0
      %v10671 = vadd.f32 0.0, %v10670
      %v10672 = vpop.f32.mrf.mxu0
      %v10673 = vadd.f32 0.0, %v10672
      %10674 = vmatmul.bf16.gmra.mxu0 %v10589
      %v10675 = vpop.f32.mrf.mxu0
      %v10676 = vadd.f32 0.0, %v10675
      %v10677 = vpop.f32.mrf.mxu0
      %v10678 = vadd.f32 0.0, %v10677
      %10679 = vdwg.mxu0
      %v10680 = vadd.f32 %v10365, %v10601
      %v10681 = vadd.f32 %v10366, %v10603
      %v10682 = vadd.f32 %v10367, %v10606
      %v10683 = vadd.f32 %v10368, %v10608
      %v10684 = vadd.f32 %v10369, %v10611
      %v10685 = vadd.f32 %v10370, %v10613
      %v10686 = vadd.f32 %v10371, %v10616
      %v10687 = vadd.f32 %v10372, %v10618
      %v10688 = vadd.f32 %v10373, %v10621
      %v10689 = vadd.f32 %v10374, %v10623
      %v10690 = vadd.f32 %v10375, %v10626
      %v10691 = vadd.f32 %v10376, %v10628
      %v10692 = vadd.f32 %v10377, %v10631
      %v10693 = vadd.f32 %v10378, %v10633
      %v10694 = vadd.f32 %v10379, %v10636
      %v10695 = vadd.f32 %v10380, %v10638
      %v10696 = vadd.f32 %v10381, %v10641
      %v10697 = vadd.f32 %v10382, %v10643
      %v10698 = vadd.f32 %v10383, %v10646
      %v10699 = vadd.f32 %v10384, %v10648
      %v10700 = vadd.f32 %v10385, %v10651
      %v10701 = vadd.f32 %v10386, %v10653
      %v10702 = vadd.f32 %v10387, %v10656
      %v10703 = vadd.f32 %v10388, %v10658
      %v10704 = vadd.f32 %v10389, %v10661
      %v10705 = vadd.f32 %v10390, %v10663
      %v10706 = vadd.f32 %v10391, %v10666
      %v10707 = vadd.f32 %v10392, %v10668
      %v10708 = vadd.f32 %v10393, %v10671
      %v10709 = vadd.f32 %v10394, %v10673
      %v10710 = vadd.f32 %v10395, %v10676
      %v10711 = vadd.f32 %v10396, %v10678
      %s10712 = scalar_lea.vmem [#allocation3], 304
      %v10713 = vld [vmem:[%s10712] sm:$0xf]
      %v10714 = vld [vmem:[%s10712 + $0x4] sm:$0xf]
      %v10715 = vld [vmem:[%s10712 + $0x8] sm:$0xf]
      %v10716 = vld [vmem:[%s10712 + $0xc] sm:$0xf]
      %v10717 = vld [vmem:[%s10712 + $0x10] sm:$0xf]
      %v10718 = vld [vmem:[%s10712 + $0x14] sm:$0xf]
      %v10719 = vld [vmem:[%s10712 + $0x18] sm:$0xf]
      %v10720 = vld [vmem:[%s10712 + $0x1c] sm:$0xf]
      %v10721 = vld [vmem:[%s10712 + $0x20] sm:$0xf]
      %v10722 = vld [vmem:[%s10712 + $0x24] sm:$0xf]
      %v10723 = vld [vmem:[%s10712 + $0x28] sm:$0xf]
      %v10724 = vld [vmem:[%s10712 + $0x2c] sm:$0xf]
      %v10725 = vld [vmem:[%s10712 + $0x30] sm:$0xf]
      %v10726 = vld [vmem:[%s10712 + $0x34] sm:$0xf]
      %v10727 = vld [vmem:[%s10712 + $0x38] sm:$0xf]
      %v10728 = vld [vmem:[%s10712 + $0x3c] sm:$0xf]
      %v10729 = vld [vmem:[%s10712 + $0x40] sm:$0xf]
      %v10730 = vld [vmem:[%s10712 + $0x44] sm:$0xf]
      %v10731 = vld [vmem:[%s10712 + $0x48] sm:$0xf]
      %v10732 = vld [vmem:[%s10712 + $0x4c] sm:$0xf]
      %v10733 = vld [vmem:[%s10712 + $0x50] sm:$0xf]
      %v10734 = vld [vmem:[%s10712 + $0x54] sm:$0xf]
      %v10735 = vld [vmem:[%s10712 + $0x58] sm:$0xf]
      %v10736 = vld [vmem:[%s10712 + $0x5c] sm:$0xf]
      %v10737 = vld [vmem:[%s10712 + $0x60] sm:$0xf]
      %v10738 = vld [vmem:[%s10712 + $0x64] sm:$0xf]
      %v10739 = vld [vmem:[%s10712 + $0x68] sm:$0xf]
      %v10740 = vld [vmem:[%s10712 + $0x6c] sm:$0xf]
      %v10741 = vld [vmem:[%s10712 + $0x70] sm:$0xf]
      %v10742 = vld [vmem:[%s10712 + $0x74] sm:$0xf]
      %v10743 = vld [vmem:[%s10712 + $0x78] sm:$0xf]
      %v10744 = vld [vmem:[%s10712 + $0x7c] sm:$0xf]
      %s10745 = scalar_lea.vmem %s9, 256
      %v10746 = vld [vmem:[%s10745] sm:$0xf]
      %v10747 = vld [vmem:[%s10745 + $0x4] sm:$0xf]
      %v10748 = vld [vmem:[%s10745 + $0x8] sm:$0xf]
      %v10749 = vld [vmem:[%s10745 + $0xc] sm:$0xf]
      %v10750 = vld [vmem:[%s10745 + $0x10] sm:$0xf]
      %v10751 = vld [vmem:[%s10745 + $0x14] sm:$0xf]
      %v10752 = vld [vmem:[%s10745 + $0x18] sm:$0xf]
      %v10753 = vld [vmem:[%s10745 + $0x1c] sm:$0xf]
      %v10786 = vunpack.c.l.b16 %v10713
      %v10787 = vunpack.c.l.b16 %v10714
      %v10788 = vunpack.c.l.b16 %v10715
      %v10789 = vunpack.c.l.b16 %v10716
      %v10790 = vunpack.c.l.b16 %v10717
      %v10791 = vunpack.c.l.b16 %v10718
      %v10792 = vunpack.c.l.b16 %v10719
      %v10793 = vunpack.c.l.b16 %v10720
      %v10794 = vunpack.c.l.b16 %v10721
      %v10795 = vunpack.c.l.b16 %v10722
      %v10796 = vunpack.c.l.b16 %v10723
      %v10797 = vunpack.c.l.b16 %v10724
      %v10798 = vunpack.c.l.b16 %v10725
      %v10799 = vunpack.c.l.b16 %v10726
      %v10800 = vunpack.c.l.b16 %v10727
      %v10801 = vunpack.c.l.b16 %v10728
      %v10802 = vunpack.c.l.b16 %v10729
      %v10803 = vunpack.c.l.b16 %v10730
      %v10804 = vunpack.c.l.b16 %v10731
      %v10805 = vunpack.c.l.b16 %v10732
      %v10806 = vunpack.c.l.b16 %v10733
      %v10807 = vunpack.c.l.b16 %v10734
      %v10808 = vunpack.c.l.b16 %v10735
      %v10809 = vunpack.c.l.b16 %v10736
      %v10810 = vunpack.c.l.b16 %v10737
      %v10811 = vunpack.c.l.b16 %v10738
      %v10812 = vunpack.c.l.b16 %v10739
      %v10813 = vunpack.c.l.b16 %v10740
      %v10814 = vunpack.c.l.b16 %v10741
      %v10815 = vunpack.c.l.b16 %v10742
      %v10816 = vunpack.c.l.b16 %v10743
      %v10817 = vunpack.c.l.b16 %v10744
      %v10818 = vpack.c.b16 %v10787, %v10786
      %v10819 = vpack.c.b16 %v10789, %v10788
      %v10820 = vpack.c.b16 %v10791, %v10790
      %v10821 = vpack.c.b16 %v10793, %v10792
      %v10822 = vpack.c.b16 %v10795, %v10794
      %v10823 = vpack.c.b16 %v10797, %v10796
      %v10824 = vpack.c.b16 %v10799, %v10798
      %v10825 = vpack.c.b16 %v10801, %v10800
      %v10826 = vpack.c.b16 %v10803, %v10802
      %v10827 = vpack.c.b16 %v10805, %v10804
      %v10828 = vpack.c.b16 %v10807, %v10806
      %v10829 = vpack.c.b16 %v10809, %v10808
      %v10830 = vpack.c.b16 %v10811, %v10810
      %v10831 = vpack.c.b16 %v10813, %v10812
      %v10832 = vpack.c.b16 %v10815, %v10814
      %v10833 = vpack.c.b16 %v10817, %v10816
      %v10842 = vunpack.c.l.b16 %v10746
      %v10843 = vunpack.c.l.b16 %v10747
      %v10844 = vunpack.c.l.b16 %v10748
      %v10845 = vunpack.c.l.b16 %v10749
      %v10846 = vunpack.c.l.b16 %v10750
      %v10847 = vunpack.c.l.b16 %v10751
      %v10848 = vunpack.c.l.b16 %v10752
      %v10849 = vunpack.c.l.b16 %v10753
      %v10850 = vpack.c.b16 %v10843, %v10842
      %v10851 = vpack.c.b16 %v10845, %v10844
      %v10852 = vpack.c.b16 %v10847, %v10846
      %v10853 = vpack.c.b16 %v10849, %v10848
      %v10859 = vsel %vm8444, %v10818, 0
      %v10862 = vsel %vm8444, %v10819, 0
      %v10865 = vsel %vm8444, %v10820, 0
      %v10868 = vsel %vm8444, %v10821, 0
      %v10871 = vsel %vm8444, %v10822, 0
      %v10874 = vsel %vm8444, %v10823, 0
      %v10877 = vsel %vm8444, %v10824, 0
      %v10880 = vsel %vm8444, %v10825, 0
      %v10883 = vsel %vm8444, %v10826, 0
      %v10886 = vsel %vm8444, %v10827, 0
      %v10889 = vsel %vm8444, %v10828, 0
      %v10892 = vsel %vm8444, %v10829, 0
      %v10895 = vsel %vm8444, %v10830, 0
      %v10898 = vsel %vm8444, %v10831, 0
      %v10901 = vsel %vm8444, %v10832, 0
      %v10904 = vsel %vm8444, %v10833, 0
      %10906 = vmatpush.bf16.msra.mxu0 0
      %10907 = vmatpush.bf16.msra.mxu0 0
      %10908 = vmatpush.bf16.msra.mxu0 0
      %10909 = vmatpush.bf16.msra.mxu0 0
      %10910 = vmatpush.bf16.msra.mxu0 %v10853
      %10911 = vmatpush.bf16.msra.mxu0 %v10852
      %10912 = vmatpush.bf16.msra.mxu0 %v10851
      %10913 = vmatpush.bf16.msra.mxu0 %v10850
      %10914 = vmatmul.bf16.gmra.mxu0 %v10859
      %v10915 = vpop.f32.mrf.mxu0
      %v10916 = vadd.f32 0.0, %v10915
      %v10917 = vpop.f32.mrf.mxu0
      %v10918 = vadd.f32 0.0, %v10917
      %10919 = vmatmul.bf16.gmra.mxu0 %v10862
      %v10920 = vpop.f32.mrf.mxu0
      %v10921 = vadd.f32 0.0, %v10920
      %v10922 = vpop.f32.mrf.mxu0
      %v10923 = vadd.f32 0.0, %v10922
      %10924 = vmatmul.bf16.gmra.mxu0 %v10865
      %v10925 = vpop.f32.mrf.mxu0
      %v10926 = vadd.f32 0.0, %v10925
      %v10927 = vpop.f32.mrf.mxu0
      %v10928 = vadd.f32 0.0, %v10927
      %10929 = vmatmul.bf16.gmra.mxu0 %v10868
      %v10930 = vpop.f32.mrf.mxu0
      %v10931 = vadd.f32 0.0, %v10930
      %v10932 = vpop.f32.mrf.mxu0
      %v10933 = vadd.f32 0.0, %v10932
      %10934 = vmatmul.bf16.gmra.mxu0 %v10871
      %v10935 = vpop.f32.mrf.mxu0
      %v10936 = vadd.f32 0.0, %v10935
      %v10937 = vpop.f32.mrf.mxu0
      %v10938 = vadd.f32 0.0, %v10937
      %10939 = vmatmul.bf16.gmra.mxu0 %v10874
      %v10940 = vpop.f32.mrf.mxu0
      %v10941 = vadd.f32 0.0, %v10940
      %v10942 = vpop.f32.mrf.mxu0
      %v10943 = vadd.f32 0.0, %v10942
      %10944 = vmatmul.bf16.gmra.mxu0 %v10877
      %v10945 = vpop.f32.mrf.mxu0
      %v10946 = vadd.f32 0.0, %v10945
      %v10947 = vpop.f32.mrf.mxu0
      %v10948 = vadd.f32 0.0, %v10947
      %10949 = vmatmul.bf16.gmra.mxu0 %v10880
      %v10950 = vpop.f32.mrf.mxu0
      %v10951 = vadd.f32 0.0, %v10950
      %v10952 = vpop.f32.mrf.mxu0
      %v10953 = vadd.f32 0.0, %v10952
      %10954 = vmatmul.bf16.gmra.mxu0 %v10883
      %v10955 = vpop.f32.mrf.mxu0
      %v10956 = vadd.f32 0.0, %v10955
      %v10957 = vpop.f32.mrf.mxu0
      %v10958 = vadd.f32 0.0, %v10957
      %10959 = vmatmul.bf16.gmra.mxu0 %v10886
      %v10960 = vpop.f32.mrf.mxu0
      %v10961 = vadd.f32 0.0, %v10960
      %v10962 = vpop.f32.mrf.mxu0
      %v10963 = vadd.f32 0.0, %v10962
      %10964 = vmatmul.bf16.gmra.mxu0 %v10889
      %v10965 = vpop.f32.mrf.mxu0
      %v10966 = vadd.f32 0.0, %v10965
      %v10967 = vpop.f32.mrf.mxu0
      %v10968 = vadd.f32 0.0, %v10967
      %10969 = vmatmul.bf16.gmra.mxu0 %v10892
      %v10970 = vpop.f32.mrf.mxu0
      %v10971 = vadd.f32 0.0, %v10970
      %v10972 = vpop.f32.mrf.mxu0
      %v10973 = vadd.f32 0.0, %v10972
      %10974 = vmatmul.bf16.gmra.mxu0 %v10895
      %v10975 = vpop.f32.mrf.mxu0
      %v10976 = vadd.f32 0.0, %v10975
      %v10977 = vpop.f32.mrf.mxu0
      %v10978 = vadd.f32 0.0, %v10977
      %10979 = vmatmul.bf16.gmra.mxu0 %v10898
      %v10980 = vpop.f32.mrf.mxu0
      %v10981 = vadd.f32 0.0, %v10980
      %v10982 = vpop.f32.mrf.mxu0
      %v10983 = vadd.f32 0.0, %v10982
      %10984 = vmatmul.bf16.gmra.mxu0 %v10901
      %v10985 = vpop.f32.mrf.mxu0
      %v10986 = vadd.f32 0.0, %v10985
      %v10987 = vpop.f32.mrf.mxu0
      %v10988 = vadd.f32 0.0, %v10987
      %10989 = vmatmul.bf16.gmra.mxu0 %v10904
      %v10990 = vpop.f32.mrf.mxu0
      %v10991 = vadd.f32 0.0, %v10990
      %v10992 = vpop.f32.mrf.mxu0
      %v10993 = vadd.f32 0.0, %v10992
      %10994 = vdwg.mxu0
      %v10995 = vadd.f32 %v10680, %v10916
      %v10996 = vadd.f32 %v10681, %v10918
      %v10997 = vadd.f32 %v10682, %v10921
      %v10998 = vadd.f32 %v10683, %v10923
      %v10999 = vadd.f32 %v10684, %v10926
      %v11000 = vadd.f32 %v10685, %v10928
      %v11001 = vadd.f32 %v10686, %v10931
      %v11002 = vadd.f32 %v10687, %v10933
      %v11003 = vadd.f32 %v10688, %v10936
      %v11004 = vadd.f32 %v10689, %v10938
      %v11005 = vadd.f32 %v10690, %v10941
      %v11006 = vadd.f32 %v10691, %v10943
      %v11007 = vadd.f32 %v10692, %v10946
      %v11008 = vadd.f32 %v10693, %v10948
      %v11009 = vadd.f32 %v10694, %v10951
      %v11010 = vadd.f32 %v10695, %v10953
      %v11011 = vadd.f32 %v10696, %v10956
      %v11012 = vadd.f32 %v10697, %v10958
      %v11013 = vadd.f32 %v10698, %v10961
      %v11014 = vadd.f32 %v10699, %v10963
      %v11015 = vadd.f32 %v10700, %v10966
      %v11016 = vadd.f32 %v10701, %v10968
      %v11017 = vadd.f32 %v10702, %v10971
      %v11018 = vadd.f32 %v10703, %v10973
      %v11019 = vadd.f32 %v10704, %v10976
      %v11020 = vadd.f32 %v10705, %v10978
      %v11021 = vadd.f32 %v10706, %v10981
      %v11022 = vadd.f32 %v10707, %v10983
      %v11023 = vadd.f32 %v10708, %v10986
      %v11024 = vadd.f32 %v10709, %v10988
      %v11025 = vadd.f32 %v10710, %v10991
      %v11026 = vadd.f32 %v10711, %v10993
      %v11028 = vperm.slane %v7570, 0
      %v11030 = vmul.f32 %v10995, %v11028
      %v11031 = vmul.f32 %v10996, %v11028
      %v11032 = vmul.f32 %v10997, %v11028
      %v11033 = vmul.f32 %v10998, %v11028
      %v11034 = vmul.f32 %v10999, %v11028
      %v11035 = vmul.f32 %v11000, %v11028
      %v11036 = vmul.f32 %v11001, %v11028
      %v11037 = vmul.f32 %v11002, %v11028
      %v11038 = vmul.f32 %v11003, %v11028
      %v11039 = vmul.f32 %v11004, %v11028
      %v11040 = vmul.f32 %v11005, %v11028
      %v11041 = vmul.f32 %v11006, %v11028
      %v11042 = vmul.f32 %v11007, %v11028
      %v11043 = vmul.f32 %v11008, %v11028
      %v11044 = vmul.f32 %v11009, %v11028
      %v11045 = vmul.f32 %v11010, %v11028
      %v11046 = vmul.f32 %v11011, %v11028
      %v11047 = vmul.f32 %v11012, %v11028
      %v11048 = vmul.f32 %v11013, %v11028
      %v11049 = vmul.f32 %v11014, %v11028
      %v11050 = vmul.f32 %v11015, %v11028
      %v11051 = vmul.f32 %v11016, %v11028
      %v11052 = vmul.f32 %v11017, %v11028
      %v11053 = vmul.f32 %v11018, %v11028
      %v11054 = vmul.f32 %v11019, %v11028
      %v11055 = vmul.f32 %v11020, %v11028
      %v11056 = vmul.f32 %v11021, %v11028
      %v11057 = vmul.f32 %v11022, %v11028
      %v11058 = vmul.f32 %v11023, %v11028
      %v11059 = vmul.f32 %v11024, %v11028
      %v11060 = vmul.f32 %v11025, %v11028
      %v11061 = vmul.f32 %v11026, %v11028
      %v11063 = vperm.slane %v7571, 0
      %v11065 = vadd.f32 %v11030, %v11063
      %v11066 = vadd.f32 %v11031, %v11063
      %v11067 = vadd.f32 %v11032, %v11063
      %v11068 = vadd.f32 %v11033, %v11063
      %v11069 = vadd.f32 %v11034, %v11063
      %v11070 = vadd.f32 %v11035, %v11063
      %v11071 = vadd.f32 %v11036, %v11063
      %v11072 = vadd.f32 %v11037, %v11063
      %v11073 = vadd.f32 %v11038, %v11063
      %v11074 = vadd.f32 %v11039, %v11063
      %v11075 = vadd.f32 %v11040, %v11063
      %v11076 = vadd.f32 %v11041, %v11063
      %v11077 = vadd.f32 %v11042, %v11063
      %v11078 = vadd.f32 %v11043, %v11063
      %v11079 = vadd.f32 %v11044, %v11063
      %v11080 = vadd.f32 %v11045, %v11063
      %v11081 = vadd.f32 %v11046, %v11063
      %v11082 = vadd.f32 %v11047, %v11063
      %v11083 = vadd.f32 %v11048, %v11063
      %v11084 = vadd.f32 %v11049, %v11063
      %v11085 = vadd.f32 %v11050, %v11063
      %v11086 = vadd.f32 %v11051, %v11063
      %v11087 = vadd.f32 %v11052, %v11063
      %v11088 = vadd.f32 %v11053, %v11063
      %v11089 = vadd.f32 %v11054, %v11063
      %v11090 = vadd.f32 %v11055, %v11063
      %v11091 = vadd.f32 %v11056, %v11063
      %v11092 = vadd.f32 %v11057, %v11063
      %v11093 = vadd.f32 %v11058, %v11063
      %v11094 = vadd.f32 %v11059, %v11063
      %v11095 = vadd.f32 %v11060, %v11063
      %v11096 = vadd.f32 %v11061, %v11063
      %v11097 = vmax.f32 %v11065, 0.0
      %v11098 = vmax.f32 %v11066, 0.0
      %v11099 = vmax.f32 %v11067, 0.0
      %v11100 = vmax.f32 %v11068, 0.0
      %v11101 = vmax.f32 %v11069, 0.0
      %v11102 = vmax.f32 %v11070, 0.0
      %v11103 = vmax.f32 %v11071, 0.0
      %v11104 = vmax.f32 %v11072, 0.0
      %v11105 = vmax.f32 %v11073, 0.0
      %v11106 = vmax.f32 %v11074, 0.0
      %v11107 = vmax.f32 %v11075, 0.0
      %v11108 = vmax.f32 %v11076, 0.0
      %v11109 = vmax.f32 %v11077, 0.0
      %v11110 = vmax.f32 %v11078, 0.0
      %v11111 = vmax.f32 %v11079, 0.0
      %v11112 = vmax.f32 %v11080, 0.0
      %v11113 = vmax.f32 %v11081, 0.0
      %v11114 = vmax.f32 %v11082, 0.0
      %v11115 = vmax.f32 %v11083, 0.0
      %v11116 = vmax.f32 %v11084, 0.0
      %v11117 = vmax.f32 %v11085, 0.0
      %v11118 = vmax.f32 %v11086, 0.0
      %v11119 = vmax.f32 %v11087, 0.0
      %v11120 = vmax.f32 %v11088, 0.0
      %v11121 = vmax.f32 %v11089, 0.0
      %v11122 = vmax.f32 %v11090, 0.0
      %v11123 = vmax.f32 %v11091, 0.0
      %v11124 = vmax.f32 %v11092, 0.0
      %v11125 = vmax.f32 %v11093, 0.0
      %v11126 = vmax.f32 %v11094, 0.0
      %v11127 = vmax.f32 %v11095, 0.0
      %v11128 = vmax.f32 %v11096, 0.0
      %11129 = vst [vmem:[%s435] sm:$0xff] %v11097
      %11130 = vst [vmem:[%s435 + $0x8] sm:$0xff] %v11098
      %11131 = vst [vmem:[%s435 + $0x10] sm:$0xff] %v11099
      %11132 = vst [vmem:[%s435 + $0x18] sm:$0xff] %v11100
      %11133 = vst [vmem:[%s435 + $0x20] sm:$0xff] %v11101
      %11134 = vst [vmem:[%s435 + $0x28] sm:$0xff] %v11102
      %11135 = vst [vmem:[%s435 + $0x30] sm:$0xff] %v11103
      %11136 = vst [vmem:[%s435 + $0x38] sm:$0xff] %v11104
      %11137 = vst [vmem:[%s435 + $0x40] sm:$0xff] %v11105
      %11138 = vst [vmem:[%s435 + $0x48] sm:$0xff] %v11106
      %11139 = vst [vmem:[%s435 + $0x50] sm:$0xff] %v11107
      %11140 = vst [vmem:[%s435 + $0x58] sm:$0xff] %v11108
      %11141 = vst [vmem:[%s435 + $0x60] sm:$0xff] %v11109
      %11142 = vst [vmem:[%s435 + $0x68] sm:$0xff] %v11110
      %11143 = vst [vmem:[%s435 + $0x70] sm:$0xff] %v11111
      %11144 = vst [vmem:[%s435 + $0x78] sm:$0xff] %v11112
      %11145 = vst [vmem:[%s435 + $0x80] sm:$0xff] %v11113
      %11146 = vst [vmem:[%s435 + $0x88] sm:$0xff] %v11114
      %11147 = vst [vmem:[%s435 + $0x90] sm:$0xff] %v11115
      %11148 = vst [vmem:[%s435 + $0x98] sm:$0xff] %v11116
      %11149 = vst [vmem:[%s435 + $0xa0] sm:$0xff] %v11117
      %11150 = vst [vmem:[%s435 + $0xa8] sm:$0xff] %v11118
      %11151 = vst [vmem:[%s435 + $0xb0] sm:$0xff] %v11119
      %11152 = vst [vmem:[%s435 + $0xb8] sm:$0xff] %v11120
      %11153 = vst [vmem:[%s435 + $0xc0] sm:$0xff] %v11121
      %11154 = vst [vmem:[%s435 + $0xc8] sm:$0xff] %v11122
      %11155 = vst [vmem:[%s435 + $0xd0] sm:$0xff] %v11123
      %11156 = vst [vmem:[%s435 + $0xd8] sm:$0xff] %v11124
      %11157 = vst [vmem:[%s435 + $0xe0] sm:$0xff] %v11125
      %11158 = vst [vmem:[%s435 + $0xe8] sm:$0xff] %v11126
      %11159 = vst [vmem:[%s435 + $0xf0] sm:$0xff] %v11127
      %11160 = vst [vmem:[%s435 + $0xf8] sm:$0xff] %v11128
      %p11161 = scmp.lt.s32.totalorder %s25, 1
      %s11162 = scalar_select %p11161, %s25, 1
      %s11163 = smul.addr %s11162, 32
      %s11164 = smul.addr %s11163, 8
      %s11165 = scalar_lea.vmem %s12, %s11164
      // Predicated region
      $region69: #{up_forward.1} parent=67 // pred_check
        %p11166 = pneg %p305
      $region70: #{up_forward.1} parent=67 // pred_check_branch
        %11168 = sbr.rel (%p11166) target = $region72
      $region71: #{up_forward.1} parent=67 // pred_region
        _
      $region72: #{up_forward.1} parent=67 // pred_fallthru
        _
    $region68: #{up_forward.1} parent=5 // pred_fallthru
      _
    %p11169 = scmp.le.s32.totalorder 2, %s20
    // Predicated region
    $region73: #{up_forward.1} parent=5 // pred_check
      %p11170 = pneg %p11169
    $region74: #{up_forward.1} parent=5 // pred_check_branch
      %11172 = sbr.rel (%p11170) target = $region76
    $region75: #{up_forward.1} parent=5 // pred_region
      %s11173 = ssub.s32 %s20, 2
      // Predicated region
      $region77: #{up_forward.1} parent=75 // pred_check
        %p11174 = pneg %p311
      $region78: #{up_forward.1} parent=75 // pred_check_branch
        %11176 = sbr.rel (%p11174) target = $region80
      $region79: #{up_forward.1} parent=75 // pred_region
        %p11177 = scmp.lt.s32.totalorder %s26, 1
        %s11178 = scalar_select %p11177, %s26, 1
        %s11179 = smul.addr %s11178, 32
        %s11180 = smul.addr %s11179, 8
        %s11181 = scalar_lea.vmem %s12, %s11180
      $region80: #{up_forward.1} parent=75 // pred_fallthru
        _
    $region76: #{up_forward.1} parent=5 // pred_fallthru
      _
  $region6: #{up_forward.1} parent=0 // loop_footer
    %s24 = sadd.s32 1, %s20
  $region7: #{up_forward.1} parent=0 // loop_footer_branch
    %19 = sbr.rel target = $region3
  $region8: #{up_forward.1} parent=0 // loop_exit
    _

</llo_original>
